<compile_context>
chip_gen: v5e
topology: v5e:2x2
jax: 0.10.0
libtpu: 0.0.40
codegen_flags: <defaults>
</compile_context>

<pallas_src>
import functools
import math

import jax
import jax.numpy as jnp
from jax.experimental import pallas as pl
from jax.experimental.pallas import tpu as pltpu


def _round_up(x, m):
    return (x + m - 1) // m * m


def _vmem_limit_bytes():
    # v7x has only 64 MiB physical VMEM/TC; stay well under it on every chip.
    cap = 64 * 1024 * 1024
    try:
        info = pltpu.get_tpu_info()
        cap = int(getattr(info, "vmem_capacity_bytes", cap))
    except Exception:
        pass
    return min(48 * 1024 * 1024, (cap * 3) // 4)


_VMEM_LIMIT = _vmem_limit_bytes()
_VMEM_BUDGET = min(40 * 1024 * 1024, _VMEM_LIMIT - 4 * 1024 * 1024)
_MAX_TK = 1024


def _pick_tk(Kp):
    if Kp <= _MAX_TK:
        return Kp                       # single K pass
    for tk in (1024, 768, 512, 384, 256, 128):
        if Kp % tk == 0:
            return tk
    return 128                          # unreachable: Kp is a multiple of 128


def _pick_tn(Np):
    for tn in (512, 256, 128):
        if Np % tn == 0:
            return tn
    return 128


# ----------------------------------------------------------------------------
# Fused matmul kernels: (a @ b) * scale + bias (+ residual) (+ ReLU) -> bf16
# ----------------------------------------------------------------------------
def _epilogue(acc, s_ref, c_ref, r_ref, relu):
    y = acc * s_ref[...] + c_ref[...]
    if r_ref is not None:
        y = y + r_ref[...].astype(jnp.float32)
    if relu:
        y = jnp.maximum(y, 0.0)
    return y


def _mm1_kernel(a_ref, b_ref, s_ref, c_ref, o_ref, *, relu):
    acc = jnp.dot(a_ref[...], b_ref[...], preferred_element_type=jnp.float32)
    o_ref[...] = _epilogue(acc, s_ref, c_ref, None, relu).astype(o_ref.dtype)


def _mm1_res_kernel(a_ref, b_ref, s_ref, c_ref, r_ref, o_ref, *, relu):
    acc = jnp.dot(a_ref[...], b_ref[...], preferred_element_type=jnp.float32)
    o_ref[...] = _epilogue(acc, s_ref, c_ref, r_ref, relu).astype(o_ref.dtype)


def _mmk_kernel(a_ref, b_ref, s_ref, c_ref, o_ref, acc_ref, *, relu, nk):
    k = pl.program_id(2)

    @pl.when(k == 0)
    def _init():
        acc_ref[...] = jnp.zeros_like(acc_ref)

    acc_ref[...] += jnp.dot(a_ref[...], b_ref[...],
                            preferred_element_type=jnp.float32)

    @pl.when(k == nk - 1)
    def _fin():
        o_ref[...] = _epilogue(acc_ref[...], s_ref, c_ref, None,
                               relu).astype(o_ref.dtype)


def _mmk_res_kernel(a_ref, b_ref, s_ref, c_ref, r_ref, o_ref, acc_ref, *,
                    relu, nk):
    k = pl.program_id(2)

    @pl.when(k == 0)
    def _init():
        acc_ref[...] = jnp.zeros_like(acc_ref)

    acc_ref[...] += jnp.dot(a_ref[...], b_ref[...],
                            preferred_element_type=jnp.float32)

    @pl.when(k == nk - 1)
    def _fin():
        o_ref[...] = _epilogue(acc_ref[...], s_ref, c_ref, r_ref,
                               relu).astype(o_ref.dtype)


def fused_matmul(a, b_p, scale_p, bias_p, residual=None, relu=False):
    """maybe_relu((a @ b) * scale + bias [+ residual]) -> bf16, padded lanes kept."""
    M, K = a.shape
    Kp, Np = b_p.shape
    if K < Kp:
        a = jnp.pad(a, ((0, 0), (0, Kp - K)))
    elif K > Kp:
        a = a[:, :Kp]

    tk = _pick_tk(Kp)
    nk = Kp // tk
    tn = _pick_tn(Np)
    tm = min(1024, _round_up(M, 8))
    Mp = _round_up(M, tm)
    has_res = residual is not None

    # >= 2 parallel grid cells (feeds both TensorCores on v7x; harmless on 1-TC).
    if (Mp // tm) * (Np // tn) < 2:
        if tm % 16 == 0:
            tm //= 2
        elif tn > 128:
            tn //= 2

    # VMEM budget check (double-buffered operands + accumulator); v7x: 64 MiB.
    def _est(tm_):
        b = 2 * (tm_ * tk + tk * tn + tm_ * tn) * 2      # a, b, out (bf16)
        if has_res:
            b += 2 * tm_ * tn * 2
        if nk > 1:
            b += tm_ * tn * 4
        return b

    while tm % 16 == 0 and _est(tm) > _VMEM_BUDGET:
        tm //= 2

    ap = a.astype(jnp.bfloat16)
    if Mp != M:
        ap = jnp.pad(ap, ((0, Mp - M), (0, 0)))

    operands = [ap, b_p, scale_p, bias_p]
    if has_res:
        rp = residual.astype(jnp.bfloat16)
        if rp.shape != (Mp, Np):
            rp = jnp.pad(rp, ((0, Mp - rp.shape[0]), (0, Np - rp.shape[1])))
        operands.append(rp)

    if nk == 1:
        grid = (Mp // tm, Np // tn)
        in_specs = [
            pl.BlockSpec((tm, tk), lambda i, j: (i, 0)),
            pl.BlockSpec((tk, tn), lambda i, j: (0, j)),
            pl.BlockSpec((1, tn), lambda i, j: (0, j)),
            pl.BlockSpec((1, tn), lambda i, j: (0, j)),
        ]
        if has_res:
            in_specs.append(pl.BlockSpec((tm, tn), lambda i, j: (i, j)))
            kernel = functools.partial(_mm1_res_kernel, relu=relu)
        else:
            kernel = functools.partial(_mm1_kernel, relu=relu)
        out_spec = pl.BlockSpec((tm, tn), lambda i, j: (i, j))
        scratch = []
        sem = ("parallel", "parallel")
    else:
        grid = (Mp // tm, Np // tn, nk)
        in_specs = [
            pl.BlockSpec((tm, tk), lambda i, j, k: (i, k)),
            pl.BlockSpec((tk, tn), lambda i, j, k: (k, j)),
            pl.BlockSpec((1, tn), lambda i, j, k: (0, j)),
            pl.BlockSpec((1, tn), lambda i, j, k: (0, j)),
        ]
        if has_res:
            in_specs.append(pl.BlockSpec((tm, tn), lambda i, j, k: (i, j)))
            kernel = functools.partial(_mmk_res_kernel, relu=relu, nk=nk)
        else:
            kernel = functools.partial(_mmk_kernel, relu=relu, nk=nk)
        out_spec = pl.BlockSpec((tm, tn), lambda i, j, k: (i, j))
        scratch = [pltpu.VMEM((tm, tn), jnp.float32)]
        sem = ("parallel", "parallel", "arbitrary")

    out = pl.pallas_call(
        kernel,
        out_shape=jax.ShapeDtypeStruct((Mp, Np), jnp.bfloat16),
        grid_spec=pltpu.PrefetchScalarGridSpec(
            num_scalar_prefetch=0,
            grid=grid,
            in_specs=in_specs,
            out_specs=out_spec,
            scratch_shapes=scratch,
        ),
        compiler_params=pltpu.CompilerParams(
            dimension_semantics=sem,
            vmem_limit_bytes=_VMEM_LIMIT,
        ),
    )(*operands)
    return out[:M]          # row crop only; channel lanes stay 128-padded


# ----------------------------------------------------------------------------
# Direct KxK conv kernel: row taps accumulated inside the kernel (no full
# im2col tensor in HBM); input is row-phase, W-im2col'd patches.
# ----------------------------------------------------------------------------
def _dconv_kernel(*refs, kh, nphase, Ho, Wo, Kw, relu):
    p_refs = refs[:nphase]
    w_ref, s_ref, c_ref, o_ref = refs[nphase:]
    acc = None
    for i in range(kh):
        off = (i // nphase) * Wo
        a = p_refs[i % nphase][0, off:off + Ho * Wo, :]
        w = w_ref[i * Kw:(i + 1) * Kw, :]
        d = jnp.dot(a, w, preferred_element_type=jnp.float32)
        acc = d if acc is None else acc + d
    y = acc * s_ref[...] + c_ref[...]
    if relu:
        y = jnp.maximum(y, 0.0)
    o_ref[0, :, :] = y.astype(o_ref.dtype)


def _row_patches(x, kh, kw, stride, pad, kw_pad):
    """Row-phase, W-only im2col for the direct conv.

    Returns `stride` tensors of shape (N, Ha*Wo, kw_pad) bf16 with
    P_r[n, a*Wo + wo, j*C + c] = x_pad[n, stride*a + r, stride*wo + j, c].
    Only the kw W taps are duplicated (factor kw/stride vs kh*kw/stride^2 for
    a full im2col); the kh row taps are accumulated inside the Pallas kernel.
    """
    x = x.astype(jnp.bfloat16)
    N, H, W, C = x.shape
    Ho = (H + 2 * pad - kh) // stride + 1
    Wo = (W + 2 * pad - kw) // stride + 1
    Ha = Ho + (kh - 1) // stride
    bot = max(pad, stride * (Ha - 1) + stride - H - pad)
    rgt = max(pad, (kw - 1) + stride * (Wo - 1) + 1 - W - pad)
    xp = jnp.pad(x, ((0, 0), (pad, bot), (pad, rgt), (0, 0)))
    phases = []
    for r in range(stride):
        rows = xp[:, r::stride, :, :][:, :Ha, :, :]
        cols = [rows[:, :, j:j + stride * (Wo - 1) + 1:stride, :]
                for j in range(kw)]
        p = jnp.concatenate(cols, axis=-1).reshape(N, Ha * Wo, kw * C)
        if kw_pad > kw * C:
            p = jnp.pad(p, ((0, 0), (0, 0), (0, kw_pad - kw * C)))
        phases.append(p)
    return phases, Ho, Wo


def direct_conv(x, conv, stride, pad, relu):
    """KxK conv + folded BN (+ReLU); x: NHWC bf16/f32, channels possibly padded."""
    kh, kw, Np, Kw = conv["kh"], conv["kw"], conv["Np"], conv["Kw"]
    cin_eff = conv["cin_eff"]
    C = x.shape[-1]
    if C < cin_eff:
        x = jnp.pad(x, ((0, 0), (0, 0), (0, 0), (0, cin_eff - C)))
    elif C > cin_eff:
        x = x[..., :cin_eff]

    phases, Ho, Wo = _row_patches(x, kh, kw, stride, pad, Kw)
    N = x.shape[0]
    HaWo = phases[0].shape[1]

    tn = _pick_tn(Np)
    while tn > 128 and 2 * kh * Kw * tn * 2 > _VMEM_BUDGET // 2:
        tn //= 2

    grid = (Np // tn, N)                       # n innermost -> weight reused
    in_specs = [pl.BlockSpec((1, HaWo, Kw), lambda j, n: (n, 0, 0))
                for _ in range(stride)]
    in_specs += [
        pl.BlockSpec((kh * Kw, tn), lambda j, n: (0, j)),
        pl.BlockSpec((1, tn), lambda j, n: (0, j)),
        pl.BlockSpec((1, tn), lambda j, n: (0, j)),
    ]
    kernel = functools.partial(_dconv_kernel, kh=kh, nphase=stride,
                               Ho=Ho, Wo=Wo, Kw=Kw, relu=relu)
    out = pl.pallas_call(
        kernel,
        out_shape=jax.ShapeDtypeStruct((N, Ho * Wo, Np), jnp.bfloat16),
        grid_spec=pltpu.PrefetchScalarGridSpec(
            num_scalar_prefetch=0,
            grid=grid,
            in_specs=in_specs,
            out_specs=pl.BlockSpec((1, Ho * Wo, tn), lambda j, n: (n, 0, j)),
        ),
        compiler_params=pltpu.CompilerParams(
            dimension_semantics=("parallel", "parallel"),
            vmem_limit_bytes=_VMEM_LIMIT,
        ),
    )(*phases, conv["wmat"], conv["scale"], conv["bias"])
    return out.reshape(N, Ho, Wo, Np)


# ----------------------------------------------------------------------------
# 1x1 conv (+BN +residual +ReLU) wrapper on the fused matmul kernel
# ----------------------------------------------------------------------------
def conv_bn_1x1(x, conv, stride, relu, residual=None):
    if stride > 1:
        x = x[:, ::stride, ::stride, :]
    N, Ho, Wo, C = x.shape
    a = x.reshape(N * Ho * Wo, C)
    res = None
    if residual is not None:
        res = residual.reshape(N * Ho * Wo, residual.shape[-1])
    out = fused_matmul(a, conv["wmat"], conv["scale"], conv["bias"],
                       residual=res, relu=relu)
    return out.reshape(N, Ho, Wo, conv["Np"])


# ----------------------------------------------------------------------------
# MaxPool 3x3 / stride 2 / pad 1 : fused shifted-window max (plain JAX; avoids
# the 9x stacked HBM tensor).  TODO(synk): dedicated Pallas window-max kernel
# over NHWC channel tiles.
# ----------------------------------------------------------------------------
def maxpool3x3_s2(x):
    N, H, W, C = x.shape
    k, s, pad = 3, 2, 1
    Ho = (H + 2 * pad - k) // s + 1
    Wo = (W + 2 * pad - k) // s + 1
    xp = jnp.pad(x, ((0, 0), (pad, pad), (pad, pad), (0, 0)),
                 constant_values=-jnp.inf)
    out = None
    for i in range(k):
        for j in range(k):
            v = xp[:, i:i + s * (Ho - 1) + 1:s, j:j + s * (Wo - 1) + 1:s, :]
            out = v if out is None else jnp.maximum(out, v)
    return out


# ----------------------------------------------------------------------------
# Global average pool + FC fused into one Pallas kernel
# ----------------------------------------------------------------------------
def _avgpool_fc_kernel(x_ref, w_ref, b_ref, o_ref):
    pooled = jnp.mean(x_ref[...].astype(jnp.float32), axis=1)      # (Nb, C)
    o_ref[...] = jnp.dot(pooled, w_ref[...],
                         preferred_element_type=jnp.float32) + b_ref[...]


def avgpool_fc(x, fc_w, fc_b, num_classes):
    N, H, W, C = x.shape
    Nb = _round_up(N, 8)
    xr = x.reshape(N, H * W, C)
    if Nb != N:
        xr = jnp.pad(xr, ((0, Nb - N), (0, 0), (0, 0)))
    Np = fc_w.shape[1]
    out = pl.pallas_call(
        _avgpool_fc_kernel,
        out_shape=jax.ShapeDtypeStruct((Nb, Np), jnp.float32),
        compiler_params=pltpu.CompilerParams(vmem_limit_bytes=_VMEM_LIMIT),
    )(xr, fc_w, fc_b)
    return out[:N, :num_classes]


# ----------------------------------------------------------------------------
# Parameter construction (deterministic, mirrors ResNet.__init__)
# ----------------------------------------------------------------------------
def make_resnet_params(key, layers=(1, 1, 1, 1), num_classes=9):
    keys = iter(jax.random.split(key, 512))

    def conv_w(cin, cout, k):
        # kaiming_normal_, mode='fan_out', nonlinearity='relu'
        std = math.sqrt(2.0 / (cout * k * k))
        return jax.random.normal(next(keys), (cout, cin, k, k),
                                 jnp.float32) * std

    def bn(c):
        # gamma=1, beta=0, running_mean=0, running_var=1  (eval-mode BN)
        return (jnp.ones((c,), jnp.float32), jnp.zeros((c,), jnp.float32),
                jnp.zeros((c,), jnp.float32), jnp.ones((c,), jnp.float32))

    params = {"conv1": conv_w(3, 64, 7), "bn1": bn(64), "layers": []}
    expansion = 4
    inplanes = 64
    for planes, nblocks, stride in zip((64, 128, 256, 512), layers,
                                       (1, 2, 2, 2)):
        blocks = []
        for bi in range(nblocks):
            s = stride if bi == 0 else 1
            blk = {
                "conv1": conv_w(inplanes, planes, 1), "bn1": bn(planes),
                "conv2": conv_w(planes, planes, 3), "bn2": bn(planes),
                "conv3": conv_w(planes, planes * expansion, 1),
                "bn3": bn(planes * expansion),
                "stride": s,
            }
            if bi == 0 and (stride != 1 or inplanes != planes * expansion):
                # downsample = cconv1x1 (kernel_size=1 -> plain conv) + BN
                blk["downsample"] = {
                    "conv": conv_w(inplanes, planes * expansion, 1),
                    "bn": bn(planes * expansion),
                }
            blocks.append(blk)
            if bi == 0:
                inplanes = planes * expansion
        params["layers"].append(blocks)

    fan_in = 512 * expansion
    bound = 1.0 / math.sqrt(fan_in)
    params["fc_w"] = jax.random.uniform(next(keys), (num_classes, fan_in),
                                        jnp.float32, -bound, bound)
    params["fc_b"] = jax.random.uniform(next(keys), (num_classes,),
                                        jnp.float32, -bound, bound)
    return params


# ----------------------------------------------------------------------------
# One-time param prep: fold BN, reshape/pad/cast weights (hoisted out of fwd)
# ----------------------------------------------------------------------------
def _fold_bn(bn):
    gamma, beta, mean, var = bn
    scale = gamma / jnp.sqrt(var + 1e-5)
    bias = beta - mean * scale
    return scale, bias


def _prep_1x1(w, bn, cin_eff):
    cout, cin = w.shape[0], w.shape[1]
    scale, bias = _fold_bn(bn)
    Kp = _round_up(cin_eff, 128)
    Np = _round_up(cout, 128)
    wmat = jnp.transpose(w[:, :, 0, 0], (1, 0))                # (cin, cout)
    wmat = jnp.pad(wmat, ((0, Kp - cin), (0, Np - cout))).astype(jnp.bfloat16)
    return {"wmat": wmat,
            "scale": jnp.pad(scale.reshape(1, -1), ((0, 0), (0, Np - cout))),
            "bias": jnp.pad(bias.reshape(1, -1), ((0, 0), (0, Np - cout))),
            "Np": Np}


def _prep_direct(w, bn, cin_eff):
    cout, cin, kh, kw = w.shape
    scale, bias = _fold_bn(bn)
    Np = _round_up(cout, 128)
    Kw = kw * cin_eff
    Kwp = _round_up(Kw, 128)
    wp = jnp.pad(w, ((0, 0), (0, cin_eff - cin), (0, 0), (0, 0)))
    wt = jnp.transpose(wp, (2, 3, 1, 0)).reshape(kh, Kw, cout)
    wt = jnp.pad(wt, ((0, 0), (0, Kwp - Kw), (0, Np - cout)))
    wmat = wt.reshape(kh * Kwp, Np).astype(jnp.bfloat16)
    return {"wmat": wmat,
            "scale": jnp.pad(scale.reshape(1, -1), ((0, 0), (0, Np - cout))),
            "bias": jnp.pad(bias.reshape(1, -1), ((0, 0), (0, Np - cout))),
            "kh": kh, "kw": kw, "Np": Np, "Kw": Kwp, "cin_eff": cin_eff}


def prepare_params(params):
    prep = {"conv1": _prep_direct(params["conv1"], params["bn1"], cin_eff=3),
            "layers": []}
    stored = _round_up(64, 128)     # channels kept lane-padded between layers
    for blocks in params["layers"]:
        pblocks = []
        for blk in blocks:
            planes = blk["conv1"].shape[0]
            mid = _round_up(planes, 128)
            pblk = {
                "conv1": _prep_1x1(blk["conv1"], blk["bn1"], cin_eff=stored),
                "conv2": _prep_direct(blk["conv2"], blk["bn2"], cin_eff=mid),
                "conv3": _prep_1x1(blk["conv3"], blk["bn3"], cin_eff=mid),
                "stride": blk["stride"],
            }
            if "downsample" in blk:
                pblk["downsample"] = _prep_1x1(blk["downsample"]["conv"],
                                               blk["downsample"]["bn"],
                                               cin_eff=stored)
            pblocks.append(pblk)
            stored = _round_up(blk["conv3"].shape[0], 128)
        prep["layers"].append(pblocks)
    nclass, fan_in = params["fc_w"].shape
    Np = _round_up(nclass, 128)
    prep["fc_w"] = jnp.pad(params["fc_w"].T, ((0, 0), (0, Np - nclass)))
    prep["fc_b"] = jnp.pad(params["fc_b"].reshape(1, -1),
                           ((0, 0), (0, Np - nclass)))
    prep["num_classes"] = nclass
    return prep


# ----------------------------------------------------------------------------
# Forward pass
# ----------------------------------------------------------------------------
def bottleneck_forward(x, blk):
    identity = x
    out = conv_bn_1x1(x, blk["conv1"], stride=1, relu=True)
    out = direct_conv(out, blk["conv2"], stride=blk["stride"], pad=1,
                      relu=True)
    if "downsample" in blk:
        identity = conv_bn_1x1(x, blk["downsample"], stride=blk["stride"],
                               relu=False)
    # conv3 + bn3 + residual add + relu fused in one Pallas call
    out = conv_bn_1x1(out, blk["conv3"], stride=1, relu=True,
                      residual=identity)
    return out


def resnet_forward(prep, x_nchw):
    # NCHW (PyTorch) -> NHWC (kernel layout)
    x = jnp.transpose(x_nchw, (0, 2, 3, 1))
    x = direct_conv(x, prep["conv1"], stride=2, pad=3, relu=True)
    x = maxpool3x3_s2(x)
    for blocks in prep["layers"]:
        for blk in blocks:
            x = bottleneck_forward(x, blk)
    return avgpool_fc(x, prep["fc_w"], prep["fc_b"], prep["num_classes"])


# ----------------------------------------------------------------------------
if __name__ == "__main__":
    key = jax.random.PRNGKey(0)
    pkey, xkey = jax.random.split(key)

    # Small config: ResNet-with-Bottleneck, layers=[1,1,1,1], 9 classes.
    params = make_resnet_params(pkey, layers=(1, 1, 1, 1), num_classes=9)
    prep = prepare_params(params)

    # Input in PyTorch NCHW convention: batch=2, channels=3, 64x64 spatial.
    x = jax.random.normal(xkey, (2, 3, 64, 64), jnp.float32)

    out = resnet_forward(prep, x)
    out = jax.block_until_ready(out)
    assert out.shape == (2, 9)
    print("KERNEL_OK")
</pallas_src>

<mosaic_0001>
module attributes {stable_mosaic.version = 11 : i64} {
  func.func @_dconv_kernel(%arg0: i32, %arg1: i32, %arg2: memref<1x1120x128xbf16, #tpu.memory_space<vmem>>, %arg3: memref<1x1120x128xbf16, #tpu.memory_space<vmem>>, %arg4: memref<896x128xbf16, #tpu.memory_space<vmem>>, %arg5: memref<1x128xf32, #tpu.memory_space<vmem>>, %arg6: memref<1x128xf32, #tpu.memory_space<vmem>>, %arg7: memref<1x1024x128xbf16, #tpu.memory_space<vmem>>) attributes {dimension_semantics = [#tpu.dimension_semantics<parallel>, #tpu.dimension_semantics<parallel>], iteration_bounds = array<i64: 1, 2>, scalar_prefetch = 0 : i64, scratch_operands = 0 : i64, tpu.core_type = #tpu.core_type<tc>, window_params = [{transform_indices = @transform_0, window_bounds = array<i64: 1, 1120, 128>}, {transform_indices = @transform_1, window_bounds = array<i64: 1, 1120, 128>}, {transform_indices = @transform_2, window_bounds = array<i64: 896, 128>}, {transform_indices = @transform_3, window_bounds = array<i64: 1, 128>}, {transform_indices = @transform_4, window_bounds = array<i64: 1, 128>}, {transform_indices = @transform_5, window_bounds = array<i64: 1, 1024, 128>}]} {
    %c0 = arith.constant 0 : index
    %c0_0 = arith.constant 0 : index
    %c0_1 = arith.constant 0 : index
    %0 = vector.load %arg2[%c0, %c0_0, %c0_1] : memref<1x1120x128xbf16, #tpu.memory_space<vmem>>, vector<1x1024x128xbf16>
    %1 = vector.shape_cast %0 : vector<1x1024x128xbf16> to vector<1024x128xbf16>
    %c0_2 = arith.constant 0 : index
    %c0_3 = arith.constant 0 : index
    %2 = vector.load %arg4[%c0_2, %c0_3] : memref<896x128xbf16, #tpu.memory_space<vmem>>, vector<128x128xbf16>
    %cst = arith.constant dense<0.000000e+00> : vector<1024x128xf32>
    %3 = tpu.matmul %1, %2, %cst {dimension_numbers = #tpu.dot_dimension_numbers<[1], [0], [0], [1], [0, 0, 1, 1], [], []>} : vector<1024x128xbf16>, vector<128x128xbf16>, vector<1024x128xf32> -> vector<1024x128xf32>
    %c0_4 = arith.constant 0 : index
    %c0_5 = arith.constant 0 : index
    %c0_6 = arith.constant 0 : index
    %4 = vector.load %arg3[%c0_4, %c0_5, %c0_6] : memref<1x1120x128xbf16, #tpu.memory_space<vmem>>, vector<1x1024x128xbf16>
    %5 = vector.shape_cast %4 : vector<1x1024x128xbf16> to vector<1024x128xbf16>
    %c128 = arith.constant 128 : index
    %c0_7 = arith.constant 0 : index
    %6 = vector.load %arg4[%c128, %c0_7] : memref<896x128xbf16, #tpu.memory_space<vmem>>, vector<128x128xbf16>
    %cst_8 = arith.constant dense<0.000000e+00> : vector<1024x128xf32>
    %7 = tpu.matmul %5, %6, %cst_8 {dimension_numbers = #tpu.dot_dimension_numbers<[1], [0], [0], [1], [0, 0, 1, 1], [], []>} : vector<1024x128xbf16>, vector<128x128xbf16>, vector<1024x128xf32> -> vector<1024x128xf32>
    %8 = arith.addf %3, %7 : vector<1024x128xf32>
    %c0_9 = arith.constant 0 : index
    %c32 = arith.constant 32 : index
    %c0_10 = arith.constant 0 : index
    %9 = vector.load %arg2[%c0_9, %c32, %c0_10] : memref<1x1120x128xbf16, #tpu.memory_space<vmem>>, vector<1x1024x128xbf16>
    %10 = vector.shape_cast %9 : vector<1x1024x128xbf16> to vector<1024x128xbf16>
    %c256 = arith.constant 256 : index
    %c0_11 = arith.constant 0 : index
    %11 = vector.load %arg4[%c256, %c0_11] : memref<896x128xbf16, #tpu.memory_space<vmem>>, vector<128x128xbf16>
    %cst_12 = arith.constant dense<0.000000e+00> : vector<1024x128xf32>
    %12 = tpu.matmul %10, %11, %cst_12 {dimension_numbers = #tpu.dot_dimension_numbers<[1], [0], [0], [1], [0, 0, 1, 1], [], []>} : vector<1024x128xbf16>, vector<128x128xbf16>, vector<1024x128xf32> -> vector<1024x128xf32>
    %13 = arith.addf %8, %12 : vector<1024x128xf32>
    %c0_13 = arith.constant 0 : index
    %c32_14 = arith.constant 32 : index
    %c0_15 = arith.constant 0 : index
    %14 = vector.load %arg3[%c0_13, %c32_14, %c0_15] : memref<1x1120x128xbf16, #tpu.memory_space<vmem>>, vector<1x1024x128xbf16>
    %15 = vector.shape_cast %14 : vector<1x1024x128xbf16> to vector<1024x128xbf16>
    %c384 = arith.constant 384 : index
    %c0_16 = arith.constant 0 : index
    %16 = vector.load %arg4[%c384, %c0_16] : memref<896x128xbf16, #tpu.memory_space<vmem>>, vector<128x128xbf16>
    %cst_17 = arith.constant dense<0.000000e+00> : vector<1024x128xf32>
    %17 = tpu.matmul %15, %16, %cst_17 {dimension_numbers = #tpu.dot_dimension_numbers<[1], [0], [0], [1], [0, 0, 1, 1], [], []>} : vector<1024x128xbf16>, vector<128x128xbf16>, vector<1024x128xf32> -> vector<1024x128xf32>
    %18 = arith.addf %13, %17 : vector<1024x128xf32>
    %c0_18 = arith.constant 0 : index
    %c64 = arith.constant 64 : index
    %c0_19 = arith.constant 0 : index
    %19 = vector.load %arg2[%c0_18, %c64, %c0_19] : memref<1x1120x128xbf16, #tpu.memory_space<vmem>>, vector<1x1024x128xbf16>
    %20 = vector.shape_cast %19 : vector<1x1024x128xbf16> to vector<1024x128xbf16>
    %c512 = arith.constant 512 : index
    %c0_20 = arith.constant 0 : index
    %21 = vector.load %arg4[%c512, %c0_20] : memref<896x128xbf16, #tpu.memory_space<vmem>>, vector<128x128xbf16>
    %cst_21 = arith.constant dense<0.000000e+00> : vector<1024x128xf32>
    %22 = tpu.matmul %20, %21, %cst_21 {dimension_numbers = #tpu.dot_dimension_numbers<[1], [0], [0], [1], [0, 0, 1, 1], [], []>} : vector<1024x128xbf16>, vector<128x128xbf16>, vector<1024x128xf32> -> vector<1024x128xf32>
    %23 = arith.addf %18, %22 : vector<1024x128xf32>
    %c0_22 = arith.constant 0 : index
    %c64_23 = arith.constant 64 : index
    %c0_24 = arith.constant 0 : index
    %24 = vector.load %arg3[%c0_22, %c64_23, %c0_24] : memref<1x1120x128xbf16, #tpu.memory_space<vmem>>, vector<1x1024x128xbf16>
    %25 = vector.shape_cast %24 : vector<1x1024x128xbf16> to vector<1024x128xbf16>
    %c640 = arith.constant 640 : index
    %c0_25 = arith.constant 0 : index
    %26 = vector.load %arg4[%c640, %c0_25] : memref<896x128xbf16, #tpu.memory_space<vmem>>, vector<128x128xbf16>
    %cst_26 = arith.constant dense<0.000000e+00> : vector<1024x128xf32>
    %27 = tpu.matmul %25, %26, %cst_26 {dimension_numbers = #tpu.dot_dimension_numbers<[1], [0], [0], [1], [0, 0, 1, 1], [], []>} : vector<1024x128xbf16>, vector<128x128xbf16>, vector<1024x128xf32> -> vector<1024x128xf32>
    %28 = arith.addf %23, %27 : vector<1024x128xf32>
    %c0_27 = arith.constant 0 : index
    %c96 = arith.constant 96 : index
    %c0_28 = arith.constant 0 : index
    %29 = vector.load %arg2[%c0_27, %c96, %c0_28] : memref<1x1120x128xbf16, #tpu.memory_space<vmem>>, vector<1x1024x128xbf16>
    %30 = vector.shape_cast %29 : vector<1x1024x128xbf16> to vector<1024x128xbf16>
    %c768 = arith.constant 768 : index
    %c0_29 = arith.constant 0 : index
    %31 = vector.load %arg4[%c768, %c0_29] : memref<896x128xbf16, #tpu.memory_space<vmem>>, vector<128x128xbf16>
    %cst_30 = arith.constant dense<0.000000e+00> : vector<1024x128xf32>
    %32 = tpu.matmul %30, %31, %cst_30 {dimension_numbers = #tpu.dot_dimension_numbers<[1], [0], [0], [1], [0, 0, 1, 1], [], []>} : vector<1024x128xbf16>, vector<128x128xbf16>, vector<1024x128xf32> -> vector<1024x128xf32>
    %33 = arith.addf %28, %32 : vector<1024x128xf32>
    %c0_31 = arith.constant 0 : index
    %c0_32 = arith.constant 0 : index
    %34 = vector.load %arg5[%c0_31, %c0_32] : memref<1x128xf32, #tpu.memory_space<vmem>>, vector<1x128xf32>
    %35 = vector.broadcast %34 : vector<1x128xf32> to vector<1024x128xf32>
    %36 = arith.mulf %33, %35 : vector<1024x128xf32>
    %c0_33 = arith.constant 0 : index
    %c0_34 = arith.constant 0 : index
    %37 = vector.load %arg6[%c0_33, %c0_34] : memref<1x128xf32, #tpu.memory_space<vmem>>, vector<1x128xf32>
    %38 = vector.broadcast %37 : vector<1x128xf32> to vector<1024x128xf32>
    %39 = arith.addf %36, %38 : vector<1024x128xf32>
    %cst_35 = arith.constant 0.000000e+00 : f32
    %40 = vector.broadcast %cst_35 : f32 to vector<1024x128xf32>
    %41 = arith.maximumf %39, %40 : vector<1024x128xf32>
    %42 = arith.truncf %41 : vector<1024x128xf32> to vector<1024x128xbf16>
    %c0_36 = arith.constant 0 : index
    %c0_37 = arith.constant 0 : index
    %c0_38 = arith.constant 0 : index
    %43 = vector.load %arg7[%c0_36, %c0_37, %c0_38] : memref<1x1024x128xbf16, #tpu.memory_space<vmem>>, vector<1x1024x128xbf16>
    %44 = vector.shape_cast %43 : vector<1x1024x128xbf16> to vector<1024x128xbf16>
    %45 = vector.shape_cast %42 : vector<1024x128xbf16> to vector<1x1024x128xbf16>
    tpu.vector_store %arg7[%c0_36, %c0_37, %c0_38], %45 {strides = array<i32>} : memref<1x1024x128xbf16, #tpu.memory_space<vmem>>, vector<1x1024x128xbf16>,
    return
  }
  func.func @transform_0(%arg0: i32, %arg1: i32) -> (i32, i32, i32) {
    %c0_i32 = arith.constant 0 : i32
    %c0_i32_0 = arith.constant 0 : i32
    %c0_i32_1 = arith.constant 0 : i32
    return %arg1, %c0_i32, %c0_i32_0 : i32, i32, i32
  }
  func.func @transform_1(%arg0: i32, %arg1: i32) -> (i32, i32, i32) {
    %c0_i32 = arith.constant 0 : i32
    %c0_i32_0 = arith.constant 0 : i32
    %c0_i32_1 = arith.constant 0 : i32
    return %arg1, %c0_i32, %c0_i32_0 : i32, i32, i32
  }
  func.func @transform_2(%arg0: i32, %arg1: i32) -> (i32, i32) {
    %c0_i32 = arith.constant 0 : i32
    %c0_i32_0 = arith.constant 0 : i32
    return %c0_i32, %arg0 : i32, i32
  }
  func.func @transform_3(%arg0: i32, %arg1: i32) -> (i32, i32) {
    %c0_i32 = arith.constant 0 : i32
    %c0_i32_0 = arith.constant 0 : i32
    return %c0_i32, %arg0 : i32, i32
  }
  func.func @transform_4(%arg0: i32, %arg1: i32) -> (i32, i32) {
    %c0_i32 = arith.constant 0 : i32
    %c0_i32_0 = arith.constant 0 : i32
    return %c0_i32, %arg0 : i32, i32
  }
  func.func @transform_5(%arg0: i32, %arg1: i32) -> (i32, i32, i32) {
    %c0_i32 = arith.constant 0 : i32
    %c0_i32_0 = arith.constant 0 : i32
    return %arg1, %c0_i32, %arg0 : i32, i32, i32
  }
}

</mosaic_0001>

<llo_original>
// kernel: tpu_custom_call.1
$region0: #{tpu_custom_call.1}
  #allocation0 [shape = 'u32[]', space=smem, size = 0x4, offset = 0x4, fixed_abs, tag = 'smem constant byte address 0x4 - core index']
  #allocation1 [shape = 'u32[72,128]{1,0:T(1,128)}', space=vmem, size = 0x9000, scoped, tag = 'internal scratch']
  %s0 = inlined_call_operand.hbm [shape: bf16[2,1120,128], index: 0, kind: input, shape index: {}]
  %s1 = inlined_call_operand.hbm [shape: bf16[2,1120,128], index: 1, kind: input, shape index: {}]
  %s2 = inlined_call_operand.hbm [shape: bf16[896,128], index: 2, kind: input, shape index: {}]
  %s3 = inlined_call_operand.vmem [shape: f32[1,128], index: 3, kind: input, shape index: {}]
  %s4 = inlined_call_operand.vmem [shape: f32[1,128], index: 4, kind: input, shape index: {}]
  %s5 = inlined_call_operand.hbm [shape: bf16[2,1024,128], index: 5, kind: output, shape index: {}]
  %s6 = sld [smem:[#allocation0]]
  $region65: #{tpu_custom_call.1} parent=0
    _
  %s8 = ssub.s32 1, %s6
  %s9 = scalar_select 0, %s8, %s6
  $region1: #{tpu_custom_call.1} parent=0
    #allocation2 [shape = 'u8[573440]{0}', space=vmem, size = 0x8c000, scoped, tag = 'input window, operand 0']
    #allocation3 [shape = 's32[2]{0}', space=sflag, size = 0x8, scoped, tag = 'scoped memory for tpu_custom_call.1']
    #allocation4 [shape = 's32[2]{0}', space=sflag, size = 0x8, scoped, tag = 'scoped memory for tpu_custom_call.1']
    #allocation5 [shape = 'u8[573440]{0}', space=vmem, size = 0x8c000, scoped, tag = 'input window, operand 1']
    #allocation6 [shape = 's32[2]{0}', space=sflag, size = 0x8, scoped, tag = 'scoped memory for tpu_custom_call.1']
    #allocation7 [shape = 'u8[229376]{0}', space=vmem, size = 0x38000, scoped, tag = 'input window, operand 2, single buffered']
    #allocation8 [shape = 'u8[524288]{0}', space=vmem, size = 0x80000, scoped, tag = 'output window, operand 0']
    %10 = vsyncpa [#allocation3], 0
    %s11 = scalar_lea.sflag [#allocation3], 1
    %12 = vsyncpa %s11, 0
    %13 = vsyncpa [#allocation6], 0
    %s14 = scalar_lea.sflag [#allocation6], 1
    %15 = vsyncpa %s14, 0
    %16 = vsyncpa [#allocation4], 0
    %s17 = scalar_lea.sflag [#allocation4], 1
    %18 = vsyncpa %s17, 0
    loop: start=0, step=1, limit=4
    $region2: #{tpu_custom_call.1} parent=1 // loop_pre_header
      _
    $region3: #{tpu_custom_call.1} parent=1 // loop_header
      %s20 = sphi 0, %s24
      %p21 = scmp.ge.s32.totalorder %s20, 4
      %s27 = sphi 0, %s39
      %s28 = sphi 0, %s35
      %s29 = sphi 0, %s27
      %s30 = sphi 0, %s28
      %s31 = sphi 0, %s29
      %s32 = sphi 0, %s30
      %s42 = sphi 0, %s44
      %s45 = sphi 0, %s42
      %s46 = sphi 0, %s45
      %s62 = sphi 0, %s46
      %s68 = sphi 0, %s70
      %s71 = sphi 0, %s68
      %s72 = sphi 0, %s71
      %s88 = sphi 0, %s72
      %s94 = sphi 0, %s96
      %s97 = sphi 0, %s94
      %s98 = sphi 0, %s97
      %s114 = sphi 0, %s98
      %s120 = sphi 0, %s122
      %s123 = sphi 0, %s120
      %s124 = sphi 0, %s123
      %s140 = sphi 0, %s124
      %s146 = sphi 0, %s148
      %s149 = sphi 0, %s146
      %s150 = sphi 0, %s149
      %s166 = sphi 0, %s150
      %s174 = sphi 0, %s176
      %s177 = sphi 0, %s174
      %s178 = sphi 0, %s177
      %s194 = sphi 0, %s178
    $region4: #{tpu_custom_call.1} parent=1 // loop_header_branch
      %23 = sbr.rel (%p21) target = $region8
    $region5: #{tpu_custom_call.1} parent=1 // loop_body
      %s25 = ssub.s32 %s20, 1
      %s26 = ssub.s32 %s20, 2
      %s33 = sadd.s32 1, %s28
      %p34 = scmp.ge.s32.totalorder %s33, 2
      %s35 = scalar_select %p34, 0, %s33
      %s36 = sadd.s32 1, %s27
      %s37 = scalar_select %p34, %s36, %s27
      %p38 = scmp.ge.s32.totalorder %s37, 1
      %s39 = scalar_select %p38, 0, %s37
      %s40 = ssub.s32 %s28, %s35
      %p41 = scmp.eq.s32.totalorder %s40, 0
      %s43 = sadd.s32 %s42, 1
      %s44 = scalar_select %p41, %s42, %s43
      %p47 = pneg %p41
      %p48 = scmp.eq.s32.totalorder %s20, 1
      %p49 = por %p47, %p48
      %p50 = scmp.ne.s32.totalorder %s42, %s45
      %p51 = scmp.eq.s32.totalorder %s20, 0
      %p52 = por %p50, %p51
      %p53 = scmp.ne.s32.totalorder %s42, %s45
      %p54 = scmp.eq.s32.totalorder %s25, 1
      %p55 = por %p53, %p54
      %p56 = scmp.ne.s32.totalorder %s45, %s46
      %p57 = scmp.eq.s32.totalorder %s25, 0
      %p58 = por %p56, %p57
      %p59 = scmp.ne.s32.totalorder %s45, %s46
      %p60 = scmp.eq.s32.totalorder %s26, 1
      %p61 = por %p59, %p60
      %p63 = scmp.ne.s32.totalorder %s46, %s62
      %p64 = scmp.eq.s32.totalorder %s26, 0
      %p65 = por %p63, %p64
      %s66 = ssub.s32 %s28, %s35
      %p67 = scmp.eq.s32.totalorder %s66, 0
      %s69 = sadd.s32 %s68, 1
      %s70 = scalar_select %p67, %s68, %s69
      %p73 = pneg %p67
      %p74 = scmp.eq.s32.totalorder %s20, 1
      %p75 = por %p73, %p74
      %p76 = scmp.ne.s32.totalorder %s68, %s71
      %p77 = scmp.eq.s32.totalorder %s20, 0
      %p78 = por %p76, %p77
      %p79 = scmp.ne.s32.totalorder %s68, %s71
      %p80 = scmp.eq.s32.totalorder %s25, 1
      %p81 = por %p79, %p80
      %p82 = scmp.ne.s32.totalorder %s71, %s72
      %p83 = scmp.eq.s32.totalorder %s25, 0
      %p84 = por %p82, %p83
      %p85 = scmp.ne.s32.totalorder %s71, %s72
      %p86 = scmp.eq.s32.totalorder %s26, 1
      %p87 = por %p85, %p86
      %p89 = scmp.ne.s32.totalorder %s72, %s88
      %p90 = scmp.eq.s32.totalorder %s26, 0
      %p91 = por %p89, %p90
      %s92 = ssub.s32 %s27, %s39
      %p93 = scmp.eq.s32.totalorder %s92, 0
      %s95 = sadd.s32 %s94, 1
      %s96 = scalar_select %p93, %s94, %s95
      %p99 = pneg %p93
      %p100 = scmp.eq.s32.totalorder %s20, 1
      %p101 = por %p99, %p100
      %p102 = scmp.ne.s32.totalorder %s94, %s97
      %p103 = scmp.eq.s32.totalorder %s20, 0
      %p104 = por %p102, %p103
      %p105 = scmp.ne.s32.totalorder %s94, %s97
      %p106 = scmp.eq.s32.totalorder %s25, 1
      %p107 = por %p105, %p106
      %p108 = scmp.ne.s32.totalorder %s97, %s98
      %p109 = scmp.eq.s32.totalorder %s25, 0
      %p110 = por %p108, %p109
      %p111 = scmp.ne.s32.totalorder %s97, %s98
      %p112 = scmp.eq.s32.totalorder %s26, 1
      %p113 = por %p111, %p112
      %p115 = scmp.ne.s32.totalorder %s98, %s114
      %p116 = scmp.eq.s32.totalorder %s26, 0
      %p117 = por %p115, %p116
      %s118 = ssub.s32 %s27, %s39
      %p119 = scmp.eq.s32.totalorder %s118, 0
      %s121 = sadd.s32 %s120, 1
      %s122 = scalar_select %p119, %s120, %s121
      %p125 = pneg %p119
      %p126 = scmp.eq.s32.totalorder %s20, 1
      %p127 = por %p125, %p126
      %p128 = scmp.ne.s32.totalorder %s120, %s123
      %p129 = scmp.eq.s32.totalorder %s20, 0
      %p130 = por %p128, %p129
      %p131 = scmp.ne.s32.totalorder %s120, %s123
      %p132 = scmp.eq.s32.totalorder %s25, 1
      %p133 = por %p131, %p132
      %p134 = scmp.ne.s32.totalorder %s123, %s124
      %p135 = scmp.eq.s32.totalorder %s25, 0
      %p136 = por %p134, %p135
      %p137 = scmp.ne.s32.totalorder %s123, %s124
      %p138 = scmp.eq.s32.totalorder %s26, 1
      %p139 = por %p137, %p138
      %p141 = scmp.ne.s32.totalorder %s124, %s140
      %p142 = scmp.eq.s32.totalorder %s26, 0
      %p143 = por %p141, %p142
      %s144 = ssub.s32 %s27, %s39
      %p145 = scmp.eq.s32.totalorder %s144, 0
      %s147 = sadd.s32 %s146, 1
      %s148 = scalar_select %p145, %s146, %s147
      %p151 = pneg %p145
      %p152 = scmp.eq.s32.totalorder %s20, 1
      %p153 = por %p151, %p152
      %p154 = scmp.ne.s32.totalorder %s146, %s149
      %p155 = scmp.eq.s32.totalorder %s20, 0
      %p156 = por %p154, %p155
      %p157 = scmp.ne.s32.totalorder %s146, %s149
      %p158 = scmp.eq.s32.totalorder %s25, 1
      %p159 = por %p157, %p158
      %p160 = scmp.ne.s32.totalorder %s149, %s150
      %p161 = scmp.eq.s32.totalorder %s25, 0
      %p162 = por %p160, %p161
      %p163 = scmp.ne.s32.totalorder %s149, %s150
      %p164 = scmp.eq.s32.totalorder %s26, 1
      %p165 = por %p163, %p164
      %p167 = scmp.ne.s32.totalorder %s150, %s166
      %p168 = scmp.eq.s32.totalorder %s26, 0
      %p169 = por %p167, %p168
      %s170 = ssub.s32 %s28, %s35
      %s171 = ssub.s32 %s27, %s39
      %s172 = sor.u32 %s170, %s171
      %p173 = scmp.eq.s32.totalorder %s172, 0
      %s175 = sadd.s32 %s174, 1
      %s176 = scalar_select %p173, %s174, %s175
      %p179 = pneg %p173
      %p180 = scmp.eq.s32.totalorder %s20, 1
      %p181 = por %p179, %p180
      %p182 = scmp.ne.s32.totalorder %s174, %s177
      %p183 = scmp.eq.s32.totalorder %s20, 0
      %p184 = por %p182, %p183
      %p185 = scmp.ne.s32.totalorder %s174, %s177
      %p186 = scmp.eq.s32.totalorder %s25, 1
      %p187 = por %p185, %p186
      %p188 = scmp.ne.s32.totalorder %s177, %s178
      %p189 = scmp.eq.s32.totalorder %s25, 0
      %p190 = por %p188, %p189
      %p191 = scmp.ne.s32.totalorder %s177, %s178
      %p192 = scmp.eq.s32.totalorder %s26, 1
      %p193 = por %p191, %p192
      %p195 = scmp.ne.s32.totalorder %s178, %s194
      %p196 = scmp.eq.s32.totalorder %s26, 0
      %p197 = por %p195, %p196
      %p198 = scmp.le.s32.totalorder 1, %s20
      %p199 = scmp.lt.s32.totalorder %s20, 3
      %p200 = pnand %p198, %p199
      %p201 = pneg %p200
      // Predicated region
      $region9: #{tpu_custom_call.1} parent=5 // pred_check
        _
      $region10: #{tpu_custom_call.1} parent=5 // pred_check_branch
        %203 = sbr.rel (%p200) target = $region12
      $region11: #{tpu_custom_call.1} parent=5 // pred_region
        %s204 = ssub.s32 %s20, 1
        // Predicated region
        $region13: #{tpu_custom_call.1} parent=11 // pred_check
          %p205 = pneg %p110
        $region14: #{tpu_custom_call.1} parent=11 // pred_check_branch
          %207 = sbr.rel (%p205) target = $region16
        $region15: #{tpu_custom_call.1} parent=11 // pred_region
          %209 = vsyncadd [#allocation6], 0
          %s210 = smul.addr %s29, 4
          %s211 = scalar_lea.hbm %s2, %s210
          %s212 = sshll.u32 %s211, 4
          %s213 = int_to_ptr.hbm [resolvable:$true] %s212
          %s214 = sshll.u32 [#allocation7], 4
          %s215 = int_to_ptr.vmem [resolvable:$true] %s214
          %220 = dma.hbm_to_vmem [thread:$0]  %s213, 7168, %s215, [#allocation6], 64, 64, 4
        $region16: #{tpu_custom_call.1} parent=11 // pred_fallthru
          _
        // Predicated region
        $region17: #{tpu_custom_call.1} parent=11 // pred_check
          %p221 = pneg %p136
        $region18: #{tpu_custom_call.1} parent=11 // pred_check_branch
          %223 = sbr.rel (%p221) target = $region20
        $region19: #{tpu_custom_call.1} parent=11 // pred_region
          %p224 = scmp.lt.s32.totalorder %s29, 0
          %s225 = scalar_select %p224, %s29, 0
          %s226 = scalar_lea.vmem %s3, %s225
        $region20: #{tpu_custom_call.1} parent=11 // pred_fallthru
          _
        // Predicated region
        $region21: #{tpu_custom_call.1} parent=11 // pred_check
          %p227 = pneg %p162
        $region22: #{tpu_custom_call.1} parent=11 // pred_check_branch
          %229 = sbr.rel (%p227) target = $region24
        $region23: #{tpu_custom_call.1} parent=11 // pred_region
          %p230 = scmp.lt.s32.totalorder %s29, 0
          %s231 = scalar_select %p230, %s29, 0
          %s232 = scalar_lea.vmem %s4, %s231
        $region24: #{tpu_custom_call.1} parent=11 // pred_fallthru
          _
      $region12: #{tpu_custom_call.1} parent=5 // pred_fallthru
        _
      %p233 = scmp.lt.s32.totalorder %s20, 2
      // Predicated region
      $region25: #{tpu_custom_call.1} parent=5 // pred_check
        %p234 = pneg %p233
      $region26: #{tpu_custom_call.1} parent=5 // pred_check_branch
        %236 = sbr.rel (%p234) target = $region28
      $region27: #{tpu_custom_call.1} parent=5 // pred_region
        // Predicated region
        $region29: #{tpu_custom_call.1} parent=27 // pred_check
          %p237 = pneg %p52
        $region30: #{tpu_custom_call.1} parent=27 // pred_check_branch
          %239 = sbr.rel (%p237) target = $region32
        $region31: #{tpu_custom_call.1} parent=27 // pred_region
          %s240 = sand.u32 %s42, 1
          %s241 = scalar_lea.sflag [#allocation3], %s240
          %s242 = sand.u32 %s42, 1
          %s243 = smul.addr %s242, 560
          %s244 = scalar_lea.vmem [#allocation2], %s243
          %246 = vsyncadd %s241, 0
          %s247 = smul.addr %s28, 140
          %s248 = smul.addr %s247, 4
          %s249 = scalar_lea.hbm %s0, %s248
          %s250 = sshll.u32 %s249, 4
          %s251 = int_to_ptr.hbm [resolvable:$true] %s250
          %s252 = sshll.u32 %s244, 4
          %s253 = int_to_ptr.vmem [resolvable:$true] %s252
          %258 = dma.hbm_to_vmem [thread:$0]  %s251, 8960, %s253, %s241, 64, 64, 4
        $region32: #{tpu_custom_call.1} parent=27 // pred_fallthru
          _
        // Predicated region
        $region33: #{tpu_custom_call.1} parent=27 // pred_check
          %p259 = pneg %p78
        $region34: #{tpu_custom_call.1} parent=27 // pred_check_branch
          %261 = sbr.rel (%p259) target = $region36
        $region35: #{tpu_custom_call.1} parent=27 // pred_region
          %s262 = sand.u32 %s20, 1
          %s263 = scalar_lea.sflag [#allocation6], %s262
          %s264 = sand.u32 %s68, 1
          %s265 = smul.addr %s264, 560
          %s266 = scalar_lea.vmem [#allocation5], %s265
          %268 = vsyncadd %s263, 0
          %s269 = smul.addr %s28, 140
          %s270 = smul.addr %s269, 4
          %s271 = scalar_lea.hbm %s1, %s270
          %s272 = sshll.u32 %s271, 4
          %s273 = int_to_ptr.hbm [resolvable:$true] %s272
          %s274 = sshll.u32 %s266, 4
          %s275 = int_to_ptr.vmem [resolvable:$true] %s274
          %280 = dma.hbm_to_vmem [thread:$0]  %s273, 8960, %s275, %s263, 64, 64, 4
        $region36: #{tpu_custom_call.1} parent=27 // pred_fallthru
          _
      $region28: #{tpu_custom_call.1} parent=5 // pred_fallthru
        _
      %p281 = scmp.le.s32.totalorder 1, %s20
      %p282 = scmp.lt.s32.totalorder %s20, 3
      %p283 = pnand %p281, %p282
      %p284 = pneg %p283
      // Predicated region
      $region37: #{tpu_custom_call.1} parent=5 // pred_check
        _
      $region38: #{tpu_custom_call.1} parent=5 // pred_check_branch
        %286 = sbr.rel (%p283) target = $region40
      $region39: #{tpu_custom_call.1} parent=5 // pred_region
        %s287 = ssub.s32 %s20, 1
        %s288 = sand.u32 %s45, 1
        %s289 = scalar_lea.sflag [#allocation3], %s288
        %s290 = sand.u32 %s45, 1
        %s291 = smul.addr %s290, 560
        %s292 = scalar_lea.vmem [#allocation2], %s291
        // Predicated region
        $region41: #{tpu_custom_call.1} parent=39 // pred_check
          %p293 = pneg %p58
        $region42: #{tpu_custom_call.1} parent=39 // pred_check_branch
          %295 = sbr.rel (%p293) target = $region44
        $region43: #{tpu_custom_call.1} parent=39 // pred_region
          %297 = dma.done %s289, 8960
        $region44: #{tpu_custom_call.1} parent=39 // pred_fallthru
          _
        %s298 = sand.u32 %s25, 1
        %s299 = scalar_lea.sflag [#allocation6], %s298
        %s300 = sand.u32 %s71, 1
        %s301 = smul.addr %s300, 560
        %s302 = scalar_lea.vmem [#allocation5], %s301
        // Predicated region
        $region45: #{tpu_custom_call.1} parent=39 // pred_check
          %p303 = pneg %p84
        $region46: #{tpu_custom_call.1} parent=39 // pred_check_branch
          %305 = sbr.rel (%p303) target = $region48
        $region47: #{tpu_custom_call.1} parent=39 // pred_region
          %307 = dma.done %s299, 8960
        $region48: #{tpu_custom_call.1} parent=39 // pred_fallthru
          _
        // Predicated region
        $region49: #{tpu_custom_call.1} parent=39 // pred_check
          %p308 = pneg %p110
        $region50: #{tpu_custom_call.1} parent=39 // pred_check_branch
          %310 = sbr.rel (%p308) target = $region52
        $region51: #{tpu_custom_call.1} parent=39 // pred_region
          %312 = dma.done [#allocation6], 7168
        $region52: #{tpu_custom_call.1} parent=39 // pred_fallthru
          _
        %s313 = sand.u32 %s45, 1
        %s314 = scalar_lea.sflag [#allocation3], %s313
        %s315 = sand.u32 %s45, 1
        %s316 = smul.addr %s315, 560
        %s317 = scalar_lea.vmem [#allocation2], %s316
        %p318 = pneg %p58
        %p319 = pneg %p55
        %s320 = sand.u32 %s25, 1
        %s321 = scalar_lea.sflag [#allocation6], %s320
        %s322 = sand.u32 %s71, 1
        %s323 = smul.addr %s322, 560
        %s324 = scalar_lea.vmem [#allocation5], %s323
        %p325 = pneg %p84
        %p326 = pneg %p81
        %p327 = pneg %p110
        %p328 = pneg %p107
        %p329 = scmp.lt.s32.totalorder %s29, 0
        %s330 = scalar_select %p329, %s29, 0
        %s331 = scalar_lea.vmem %s3, %s330
        %p332 = pneg %p136
        %p333 = pneg %p133
        %p334 = scmp.lt.s32.totalorder %s29, 0
        %s335 = scalar_select %p334, %s29, 0
        %s336 = scalar_lea.vmem %s4, %s335
        %p337 = pneg %p162
        %p338 = pneg %p159
        %p339 = pneg %p190
        %p340 = pneg %p187
        %s341 = sand.u32 %s177, 1
        %s342 = scalar_lea.sflag [#allocation4], %s341
        %s343 = sand.u32 %s177, 1
        %s344 = smul.addr %s343, 512
        %s345 = scalar_lea.vmem [#allocation8], %s344
        %p346 = scmp.lt.s32.totalorder %s29, 0
        %s347 = scalar_select %p346, %s29, 0
        %s348 = scalar_lea.vmem %s3, %s347
        %p349 = scmp.lt.s32.totalorder %s29, 0
        %s350 = scalar_select %p349, %s29, 0
        %s351 = scalar_lea.vmem %s4, %s350
        %v352 = vld [vmem:[%s292] sm:$0xf]
        %v353 = vld [vmem:[%s292 + $0x4] sm:$0xf]
        %v354 = vld [vmem:[%s292 + $0x8] sm:$0xf]
        %v355 = vld [vmem:[%s292 + $0xc] sm:$0xf]
        %v356 = vld [vmem:[%s292 + $0x10] sm:$0xf]
        %v357 = vld [vmem:[%s292 + $0x14] sm:$0xf]
        %v358 = vld [vmem:[%s292 + $0x18] sm:$0xf]
        %v359 = vld [vmem:[%s292 + $0x1c] sm:$0xf]
        %v360 = vld [vmem:[%s292 + $0x20] sm:$0xf]
        %v361 = vld [vmem:[%s292 + $0x24] sm:$0xf]
        %v362 = vld [vmem:[%s292 + $0x28] sm:$0xf]
        %v363 = vld [vmem:[%s292 + $0x2c] sm:$0xf]
        %v364 = vld [vmem:[%s292 + $0x30] sm:$0xf]
        %v365 = vld [vmem:[%s292 + $0x34] sm:$0xf]
        %v366 = vld [vmem:[%s292 + $0x38] sm:$0xf]
        %v367 = vld [vmem:[%s292 + $0x3c] sm:$0xf]
        %v368 = vld [vmem:[%s292 + $0x40] sm:$0xf]
        %v369 = vld [vmem:[%s292 + $0x44] sm:$0xf]
        %v370 = vld [vmem:[%s292 + $0x48] sm:$0xf]
        %v371 = vld [vmem:[%s292 + $0x4c] sm:$0xf]
        %v372 = vld [vmem:[%s292 + $0x50] sm:$0xf]
        %v373 = vld [vmem:[%s292 + $0x54] sm:$0xf]
        %v374 = vld [vmem:[%s292 + $0x58] sm:$0xf]
        %v375 = vld [vmem:[%s292 + $0x5c] sm:$0xf]
        %v376 = vld [vmem:[%s292 + $0x60] sm:$0xf]
        %v377 = vld [vmem:[%s292 + $0x64] sm:$0xf]
        %v378 = vld [vmem:[%s292 + $0x68] sm:$0xf]
        %v379 = vld [vmem:[%s292 + $0x6c] sm:$0xf]
        %v380 = vld [vmem:[%s292 + $0x70] sm:$0xf]
        %v381 = vld [vmem:[%s292 + $0x74] sm:$0xf]
        %v382 = vld [vmem:[%s292 + $0x78] sm:$0xf]
        %v383 = vld [vmem:[%s292 + $0x7c] sm:$0xf]
        %v384 = vld [vmem:[%s292 + $0x80] sm:$0xf]
        %v385 = vld [vmem:[%s292 + $0x84] sm:$0xf]
        %v386 = vld [vmem:[%s292 + $0x88] sm:$0xf]
        %v387 = vld [vmem:[%s292 + $0x8c] sm:$0xf]
        %v388 = vld [vmem:[%s292 + $0x90] sm:$0xf]
        %v389 = vld [vmem:[%s292 + $0x94] sm:$0xf]
        %v390 = vld [vmem:[%s292 + $0x98] sm:$0xf]
        %v391 = vld [vmem:[%s292 + $0x9c] sm:$0xf]
        %v392 = vld [vmem:[%s292 + $0xa0] sm:$0xf]
        %v393 = vld [vmem:[%s292 + $0xa4] sm:$0xf]
        %v394 = vld [vmem:[%s292 + $0xa8] sm:$0xf]
        %v395 = vld [vmem:[%s292 + $0xac] sm:$0xf]
        %v396 = vld [vmem:[%s292 + $0xb0] sm:$0xf]
        %v397 = vld [vmem:[%s292 + $0xb4] sm:$0xf]
        %v398 = vld [vmem:[%s292 + $0xb8] sm:$0xf]
        %v399 = vld [vmem:[%s292 + $0xbc] sm:$0xf]
        %v400 = vld [vmem:[%s292 + $0xc0] sm:$0xf]
        %v401 = vld [vmem:[%s292 + $0xc4] sm:$0xf]
        %v402 = vld [vmem:[%s292 + $0xc8] sm:$0xf]
        %v403 = vld [vmem:[%s292 + $0xcc] sm:$0xf]
        %v404 = vld [vmem:[%s292 + $0xd0] sm:$0xf]
        %v405 = vld [vmem:[%s292 + $0xd4] sm:$0xf]
        %v406 = vld [vmem:[%s292 + $0xd8] sm:$0xf]
        %v407 = vld [vmem:[%s292 + $0xdc] sm:$0xf]
        %v408 = vld [vmem:[%s292 + $0xe0] sm:$0xf]
        %v409 = vld [vmem:[%s292 + $0xe4] sm:$0xf]
        %v410 = vld [vmem:[%s292 + $0xe8] sm:$0xf]
        %v411 = vld [vmem:[%s292 + $0xec] sm:$0xf]
        %v412 = vld [vmem:[%s292 + $0xf0] sm:$0xf]
        %v413 = vld [vmem:[%s292 + $0xf4] sm:$0xf]
        %v414 = vld [vmem:[%s292 + $0xf8] sm:$0xf]
        %v415 = vld [vmem:[%s292 + $0xfc] sm:$0xf]
        %v416 = vld [vmem:[%s292 + $0x100] sm:$0xf]
        %v417 = vld [vmem:[%s292 + $0x104] sm:$0xf]
        %v418 = vld [vmem:[%s292 + $0x108] sm:$0xf]
        %v419 = vld [vmem:[%s292 + $0x10c] sm:$0xf]
        %v420 = vld [vmem:[%s292 + $0x110] sm:$0xf]
        %v421 = vld [vmem:[%s292 + $0x114] sm:$0xf]
        %v422 = vld [vmem:[%s292 + $0x118] sm:$0xf]
        %v423 = vld [vmem:[%s292 + $0x11c] sm:$0xf]
        %v424 = vld [vmem:[%s292 + $0x120] sm:$0xf]
        %v425 = vld [vmem:[%s292 + $0x124] sm:$0xf]
        %v426 = vld [vmem:[%s292 + $0x128] sm:$0xf]
        %v427 = vld [vmem:[%s292 + $0x12c] sm:$0xf]
        %v428 = vld [vmem:[%s292 + $0x130] sm:$0xf]
        %v429 = vld [vmem:[%s292 + $0x134] sm:$0xf]
        %v430 = vld [vmem:[%s292 + $0x138] sm:$0xf]
        %v431 = vld [vmem:[%s292 + $0x13c] sm:$0xf]
        %v432 = vld [vmem:[%s292 + $0x140] sm:$0xf]
        %v433 = vld [vmem:[%s292 + $0x144] sm:$0xf]
        %v434 = vld [vmem:[%s292 + $0x148] sm:$0xf]
        %v435 = vld [vmem:[%s292 + $0x14c] sm:$0xf]
        %v436 = vld [vmem:[%s292 + $0x150] sm:$0xf]
        %v437 = vld [vmem:[%s292 + $0x154] sm:$0xf]
        %v438 = vld [vmem:[%s292 + $0x158] sm:$0xf]
        %v439 = vld [vmem:[%s292 + $0x15c] sm:$0xf]
        %v440 = vld [vmem:[%s292 + $0x160] sm:$0xf]
        %v441 = vld [vmem:[%s292 + $0x164] sm:$0xf]
        %v442 = vld [vmem:[%s292 + $0x168] sm:$0xf]
        %v443 = vld [vmem:[%s292 + $0x16c] sm:$0xf]
        %v444 = vld [vmem:[%s292 + $0x170] sm:$0xf]
        %v445 = vld [vmem:[%s292 + $0x174] sm:$0xf]
        %v446 = vld [vmem:[%s292 + $0x178] sm:$0xf]
        %v447 = vld [vmem:[%s292 + $0x17c] sm:$0xf]
        %v448 = vld [vmem:[%s292 + $0x180] sm:$0xf]
        %v449 = vld [vmem:[%s292 + $0x184] sm:$0xf]
        %v450 = vld [vmem:[%s292 + $0x188] sm:$0xf]
        %v451 = vld [vmem:[%s292 + $0x18c] sm:$0xf]
        %v452 = vld [vmem:[%s292 + $0x190] sm:$0xf]
        %v453 = vld [vmem:[%s292 + $0x194] sm:$0xf]
        %v454 = vld [vmem:[%s292 + $0x198] sm:$0xf]
        %v455 = vld [vmem:[%s292 + $0x19c] sm:$0xf]
        %v456 = vld [vmem:[%s292 + $0x1a0] sm:$0xf]
        %v457 = vld [vmem:[%s292 + $0x1a4] sm:$0xf]
        %v458 = vld [vmem:[%s292 + $0x1a8] sm:$0xf]
        %v459 = vld [vmem:[%s292 + $0x1ac] sm:$0xf]
        %v460 = vld [vmem:[%s292 + $0x1b0] sm:$0xf]
        %v461 = vld [vmem:[%s292 + $0x1b4] sm:$0xf]
        %v462 = vld [vmem:[%s292 + $0x1b8] sm:$0xf]
        %v463 = vld [vmem:[%s292 + $0x1bc] sm:$0xf]
        %v464 = vld [vmem:[%s292 + $0x1c0] sm:$0xf]
        %v465 = vld [vmem:[%s292 + $0x1c4] sm:$0xf]
        %v466 = vld [vmem:[%s292 + $0x1c8] sm:$0xf]
        %v467 = vld [vmem:[%s292 + $0x1cc] sm:$0xf]
        %v468 = vld [vmem:[%s292 + $0x1d0] sm:$0xf]
        %v469 = vld [vmem:[%s292 + $0x1d4] sm:$0xf]
        %v470 = vld [vmem:[%s292 + $0x1d8] sm:$0xf]
        %v471 = vld [vmem:[%s292 + $0x1dc] sm:$0xf]
        %v472 = vld [vmem:[%s292 + $0x1e0] sm:$0xf]
        %v473 = vld [vmem:[%s292 + $0x1e4] sm:$0xf]
        %v474 = vld [vmem:[%s292 + $0x1e8] sm:$0xf]
        %v475 = vld [vmem:[%s292 + $0x1ec] sm:$0xf]
        %v476 = vld [vmem:[%s292 + $0x1f0] sm:$0xf]
        %v477 = vld [vmem:[%s292 + $0x1f4] sm:$0xf]
        %v478 = vld [vmem:[%s292 + $0x1f8] sm:$0xf]
        %v479 = vld [vmem:[%s292 + $0x1fc] sm:$0xf]
        %v480 = vld [vmem:[#allocation7] sm:$0xf]
        %v481 = vld [vmem:[#allocation7 + $0x4] sm:$0xf]
        %v482 = vld [vmem:[#allocation7 + $0x8] sm:$0xf]
        %v483 = vld [vmem:[#allocation7 + $0xc] sm:$0xf]
        %v484 = vld [vmem:[#allocation7 + $0x10] sm:$0xf]
        %v485 = vld [vmem:[#allocation7 + $0x14] sm:$0xf]
        %v486 = vld [vmem:[#allocation7 + $0x18] sm:$0xf]
        %v487 = vld [vmem:[#allocation7 + $0x1c] sm:$0xf]
        %v488 = vld [vmem:[#allocation7 + $0x20] sm:$0xf]
        %v489 = vld [vmem:[#allocation7 + $0x24] sm:$0xf]
        %v490 = vld [vmem:[#allocation7 + $0x28] sm:$0xf]
        %v491 = vld [vmem:[#allocation7 + $0x2c] sm:$0xf]
        %v492 = vld [vmem:[#allocation7 + $0x30] sm:$0xf]
        %v493 = vld [vmem:[#allocation7 + $0x34] sm:$0xf]
        %v494 = vld [vmem:[#allocation7 + $0x38] sm:$0xf]
        %v495 = vld [vmem:[#allocation7 + $0x3c] sm:$0xf]
        %v496 = vld [vmem:[%s302] sm:$0xf]
        %v497 = vld [vmem:[%s302 + $0x4] sm:$0xf]
        %v498 = vld [vmem:[%s302 + $0x8] sm:$0xf]
        %v499 = vld [vmem:[%s302 + $0xc] sm:$0xf]
        %v500 = vld [vmem:[%s302 + $0x10] sm:$0xf]
        %v501 = vld [vmem:[%s302 + $0x14] sm:$0xf]
        %v502 = vld [vmem:[%s302 + $0x18] sm:$0xf]
        %v503 = vld [vmem:[%s302 + $0x1c] sm:$0xf]
        %v504 = vld [vmem:[%s302 + $0x20] sm:$0xf]
        %v505 = vld [vmem:[%s302 + $0x24] sm:$0xf]
        %v506 = vld [vmem:[%s302 + $0x28] sm:$0xf]
        %v507 = vld [vmem:[%s302 + $0x2c] sm:$0xf]
        %v508 = vld [vmem:[%s302 + $0x30] sm:$0xf]
        %v509 = vld [vmem:[%s302 + $0x34] sm:$0xf]
        %v510 = vld [vmem:[%s302 + $0x38] sm:$0xf]
        %v511 = vld [vmem:[%s302 + $0x3c] sm:$0xf]
        %v512 = vld [vmem:[%s302 + $0x40] sm:$0xf]
        %v513 = vld [vmem:[%s302 + $0x44] sm:$0xf]
        %v514 = vld [vmem:[%s302 + $0x48] sm:$0xf]
        %v515 = vld [vmem:[%s302 + $0x4c] sm:$0xf]
        %v516 = vld [vmem:[%s302 + $0x50] sm:$0xf]
        %v517 = vld [vmem:[%s302 + $0x54] sm:$0xf]
        %v518 = vld [vmem:[%s302 + $0x58] sm:$0xf]
        %v519 = vld [vmem:[%s302 + $0x5c] sm:$0xf]
        %v520 = vld [vmem:[%s302 + $0x60] sm:$0xf]
        %v521 = vld [vmem:[%s302 + $0x64] sm:$0xf]
        %v522 = vld [vmem:[%s302 + $0x68] sm:$0xf]
        %v523 = vld [vmem:[%s302 + $0x6c] sm:$0xf]
        %v524 = vld [vmem:[%s302 + $0x70] sm:$0xf]
        %v525 = vld [vmem:[%s302 + $0x74] sm:$0xf]
        %v526 = vld [vmem:[%s302 + $0x78] sm:$0xf]
        %v527 = vld [vmem:[%s302 + $0x7c] sm:$0xf]
        %v528 = vld [vmem:[%s302 + $0x80] sm:$0xf]
        %v529 = vld [vmem:[%s302 + $0x84] sm:$0xf]
        %v530 = vld [vmem:[%s302 + $0x88] sm:$0xf]
        %v531 = vld [vmem:[%s302 + $0x8c] sm:$0xf]
        %v532 = vld [vmem:[%s302 + $0x90] sm:$0xf]
        %v533 = vld [vmem:[%s302 + $0x94] sm:$0xf]
        %v534 = vld [vmem:[%s302 + $0x98] sm:$0xf]
        %v535 = vld [vmem:[%s302 + $0x9c] sm:$0xf]
        %v536 = vld [vmem:[%s302 + $0xa0] sm:$0xf]
        %v537 = vld [vmem:[%s302 + $0xa4] sm:$0xf]
        %v538 = vld [vmem:[%s302 + $0xa8] sm:$0xf]
        %v539 = vld [vmem:[%s302 + $0xac] sm:$0xf]
        %v540 = vld [vmem:[%s302 + $0xb0] sm:$0xf]
        %v541 = vld [vmem:[%s302 + $0xb4] sm:$0xf]
        %v542 = vld [vmem:[%s302 + $0xb8] sm:$0xf]
        %v543 = vld [vmem:[%s302 + $0xbc] sm:$0xf]
        %v544 = vld [vmem:[%s302 + $0xc0] sm:$0xf]
        %v545 = vld [vmem:[%s302 + $0xc4] sm:$0xf]
        %v546 = vld [vmem:[%s302 + $0xc8] sm:$0xf]
        %v547 = vld [vmem:[%s302 + $0xcc] sm:$0xf]
        %v548 = vld [vmem:[%s302 + $0xd0] sm:$0xf]
        %v549 = vld [vmem:[%s302 + $0xd4] sm:$0xf]
        %v550 = vld [vmem:[%s302 + $0xd8] sm:$0xf]
        %v551 = vld [vmem:[%s302 + $0xdc] sm:$0xf]
        %v552 = vld [vmem:[%s302 + $0xe0] sm:$0xf]
        %v553 = vld [vmem:[%s302 + $0xe4] sm:$0xf]
        %v554 = vld [vmem:[%s302 + $0xe8] sm:$0xf]
        %v555 = vld [vmem:[%s302 + $0xec] sm:$0xf]
        %v556 = vld [vmem:[%s302 + $0xf0] sm:$0xf]
        %v557 = vld [vmem:[%s302 + $0xf4] sm:$0xf]
        %v558 = vld [vmem:[%s302 + $0xf8] sm:$0xf]
        %v559 = vld [vmem:[%s302 + $0xfc] sm:$0xf]
        %v560 = vld [vmem:[%s302 + $0x100] sm:$0xf]
        %v561 = vld [vmem:[%s302 + $0x104] sm:$0xf]
        %v562 = vld [vmem:[%s302 + $0x108] sm:$0xf]
        %v563 = vld [vmem:[%s302 + $0x10c] sm:$0xf]
        %v564 = vld [vmem:[%s302 + $0x110] sm:$0xf]
        %v565 = vld [vmem:[%s302 + $0x114] sm:$0xf]
        %v566 = vld [vmem:[%s302 + $0x118] sm:$0xf]
        %v567 = vld [vmem:[%s302 + $0x11c] sm:$0xf]
        %v568 = vld [vmem:[%s302 + $0x120] sm:$0xf]
        %v569 = vld [vmem:[%s302 + $0x124] sm:$0xf]
        %v570 = vld [vmem:[%s302 + $0x128] sm:$0xf]
        %v571 = vld [vmem:[%s302 + $0x12c] sm:$0xf]
        %v572 = vld [vmem:[%s302 + $0x130] sm:$0xf]
        %v573 = vld [vmem:[%s302 + $0x134] sm:$0xf]
        %v574 = vld [vmem:[%s302 + $0x138] sm:$0xf]
        %v575 = vld [vmem:[%s302 + $0x13c] sm:$0xf]
        %v576 = vld [vmem:[%s302 + $0x140] sm:$0xf]
        %v577 = vld [vmem:[%s302 + $0x144] sm:$0xf]
        %v578 = vld [vmem:[%s302 + $0x148] sm:$0xf]
        %v579 = vld [vmem:[%s302 + $0x14c] sm:$0xf]
        %v580 = vld [vmem:[%s302 + $0x150] sm:$0xf]
        %v581 = vld [vmem:[%s302 + $0x154] sm:$0xf]
        %v582 = vld [vmem:[%s302 + $0x158] sm:$0xf]
        %v583 = vld [vmem:[%s302 + $0x15c] sm:$0xf]
        %v584 = vld [vmem:[%s302 + $0x160] sm:$0xf]
        %v585 = vld [vmem:[%s302 + $0x164] sm:$0xf]
        %v586 = vld [vmem:[%s302 + $0x168] sm:$0xf]
        %v587 = vld [vmem:[%s302 + $0x16c] sm:$0xf]
        %v588 = vld [vmem:[%s302 + $0x170] sm:$0xf]
        %v589 = vld [vmem:[%s302 + $0x174] sm:$0xf]
        %v590 = vld [vmem:[%s302 + $0x178] sm:$0xf]
        %v591 = vld [vmem:[%s302 + $0x17c] sm:$0xf]
        %v592 = vld [vmem:[%s302 + $0x180] sm:$0xf]
        %v593 = vld [vmem:[%s302 + $0x184] sm:$0xf]
        %v594 = vld [vmem:[%s302 + $0x188] sm:$0xf]
        %v595 = vld [vmem:[%s302 + $0x18c] sm:$0xf]
        %v596 = vld [vmem:[%s302 + $0x190] sm:$0xf]
        %v597 = vld [vmem:[%s302 + $0x194] sm:$0xf]
        %v598 = vld [vmem:[%s302 + $0x198] sm:$0xf]
        %v599 = vld [vmem:[%s302 + $0x19c] sm:$0xf]
        %v600 = vld [vmem:[%s302 + $0x1a0] sm:$0xf]
        %v601 = vld [vmem:[%s302 + $0x1a4] sm:$0xf]
        %v602 = vld [vmem:[%s302 + $0x1a8] sm:$0xf]
        %v603 = vld [vmem:[%s302 + $0x1ac] sm:$0xf]
        %v604 = vld [vmem:[%s302 + $0x1b0] sm:$0xf]
        %v605 = vld [vmem:[%s302 + $0x1b4] sm:$0xf]
        %v606 = vld [vmem:[%s302 + $0x1b8] sm:$0xf]
        %v607 = vld [vmem:[%s302 + $0x1bc] sm:$0xf]
        %v608 = vld [vmem:[%s302 + $0x1c0] sm:$0xf]
        %v609 = vld [vmem:[%s302 + $0x1c4] sm:$0xf]
        %v610 = vld [vmem:[%s302 + $0x1c8] sm:$0xf]
        %v611 = vld [vmem:[%s302 + $0x1cc] sm:$0xf]
        %v612 = vld [vmem:[%s302 + $0x1d0] sm:$0xf]
        %v613 = vld [vmem:[%s302 + $0x1d4] sm:$0xf]
        %v614 = vld [vmem:[%s302 + $0x1d8] sm:$0xf]
        %v615 = vld [vmem:[%s302 + $0x1dc] sm:$0xf]
        %v616 = vld [vmem:[%s302 + $0x1e0] sm:$0xf]
        %v617 = vld [vmem:[%s302 + $0x1e4] sm:$0xf]
        %v618 = vld [vmem:[%s302 + $0x1e8] sm:$0xf]
        %v619 = vld [vmem:[%s302 + $0x1ec] sm:$0xf]
        %v620 = vld [vmem:[%s302 + $0x1f0] sm:$0xf]
        %v621 = vld [vmem:[%s302 + $0x1f4] sm:$0xf]
        %v622 = vld [vmem:[%s302 + $0x1f8] sm:$0xf]
        %v623 = vld [vmem:[%s302 + $0x1fc] sm:$0xf]
        %v624 = vld [vmem:[#allocation7 + $0x40] sm:$0xf]
        %v625 = vld [vmem:[#allocation7 + $0x44] sm:$0xf]
        %v626 = vld [vmem:[#allocation7 + $0x48] sm:$0xf]
        %v627 = vld [vmem:[#allocation7 + $0x4c] sm:$0xf]
        %v628 = vld [vmem:[#allocation7 + $0x50] sm:$0xf]
        %v629 = vld [vmem:[#allocation7 + $0x54] sm:$0xf]
        %v630 = vld [vmem:[#allocation7 + $0x58] sm:$0xf]
        %v631 = vld [vmem:[#allocation7 + $0x5c] sm:$0xf]
        %v632 = vld [vmem:[#allocation7 + $0x60] sm:$0xf]
        %v633 = vld [vmem:[#allocation7 + $0x64] sm:$0xf]
        %v634 = vld [vmem:[#allocation7 + $0x68] sm:$0xf]
        %v635 = vld [vmem:[#allocation7 + $0x6c] sm:$0xf]
        %v636 = vld [vmem:[#allocation7 + $0x70] sm:$0xf]
        %v637 = vld [vmem:[#allocation7 + $0x74] sm:$0xf]
        %v638 = vld [vmem:[#allocation7 + $0x78] sm:$0xf]
        %v639 = vld [vmem:[#allocation7 + $0x7c] sm:$0xf]
        %v768 = vunpack.c.l.b16 %v496
        %v769 = vunpack.c.l.b16 %v497
        %v770 = vunpack.c.l.b16 %v498
        %v771 = vunpack.c.l.b16 %v499
        %v772 = vunpack.c.l.b16 %v500
        %v773 = vunpack.c.l.b16 %v501
        %v774 = vunpack.c.l.b16 %v502
        %v775 = vunpack.c.l.b16 %v503
        %v776 = vunpack.c.l.b16 %v504
        %v777 = vunpack.c.l.b16 %v505
        %v778 = vunpack.c.l.b16 %v506
        %v779 = vunpack.c.l.b16 %v507
        %v780 = vunpack.c.l.b16 %v508
        %v781 = vunpack.c.l.b16 %v509
        %v782 = vunpack.c.l.b16 %v510
        %v783 = vunpack.c.l.b16 %v511
        %v784 = vunpack.c.l.b16 %v512
        %v785 = vunpack.c.l.b16 %v513
        %v786 = vunpack.c.l.b16 %v514
        %v787 = vunpack.c.l.b16 %v515
        %v788 = vunpack.c.l.b16 %v516
        %v789 = vunpack.c.l.b16 %v517
        %v790 = vunpack.c.l.b16 %v518
        %v791 = vunpack.c.l.b16 %v519
        %v792 = vunpack.c.l.b16 %v520
        %v793 = vunpack.c.l.b16 %v521
        %v794 = vunpack.c.l.b16 %v522
        %v795 = vunpack.c.l.b16 %v523
        %v796 = vunpack.c.l.b16 %v524
        %v797 = vunpack.c.l.b16 %v525
        %v798 = vunpack.c.l.b16 %v526
        %v799 = vunpack.c.l.b16 %v527
        %v800 = vunpack.c.l.b16 %v528
        %v801 = vunpack.c.l.b16 %v529
        %v802 = vunpack.c.l.b16 %v530
        %v803 = vunpack.c.l.b16 %v531
        %v804 = vunpack.c.l.b16 %v532
        %v805 = vunpack.c.l.b16 %v533
        %v806 = vunpack.c.l.b16 %v534
        %v807 = vunpack.c.l.b16 %v535
        %v808 = vunpack.c.l.b16 %v536
        %v809 = vunpack.c.l.b16 %v537
        %v810 = vunpack.c.l.b16 %v538
        %v811 = vunpack.c.l.b16 %v539
        %v812 = vunpack.c.l.b16 %v540
        %v813 = vunpack.c.l.b16 %v541
        %v814 = vunpack.c.l.b16 %v542
        %v815 = vunpack.c.l.b16 %v543
        %v816 = vunpack.c.l.b16 %v544
        %v817 = vunpack.c.l.b16 %v545
        %v818 = vunpack.c.l.b16 %v546
        %v819 = vunpack.c.l.b16 %v547
        %v820 = vunpack.c.l.b16 %v548
        %v821 = vunpack.c.l.b16 %v549
        %v822 = vunpack.c.l.b16 %v550
        %v823 = vunpack.c.l.b16 %v551
        %v824 = vunpack.c.l.b16 %v552
        %v825 = vunpack.c.l.b16 %v553
        %v826 = vunpack.c.l.b16 %v554
        %v827 = vunpack.c.l.b16 %v555
        %v828 = vunpack.c.l.b16 %v556
        %v829 = vunpack.c.l.b16 %v557
        %v830 = vunpack.c.l.b16 %v558
        %v831 = vunpack.c.l.b16 %v559
        %v832 = vunpack.c.l.b16 %v560
        %v833 = vunpack.c.l.b16 %v561
        %v834 = vunpack.c.l.b16 %v562
        %v835 = vunpack.c.l.b16 %v563
        %v836 = vunpack.c.l.b16 %v564
        %v837 = vunpack.c.l.b16 %v565
        %v838 = vunpack.c.l.b16 %v566
        %v839 = vunpack.c.l.b16 %v567
        %v840 = vunpack.c.l.b16 %v568
        %v841 = vunpack.c.l.b16 %v569
        %v842 = vunpack.c.l.b16 %v570
        %v843 = vunpack.c.l.b16 %v571
        %v844 = vunpack.c.l.b16 %v572
        %v845 = vunpack.c.l.b16 %v573
        %v846 = vunpack.c.l.b16 %v574
        %v847 = vunpack.c.l.b16 %v575
        %v848 = vunpack.c.l.b16 %v576
        %v849 = vunpack.c.l.b16 %v577
        %v850 = vunpack.c.l.b16 %v578
        %v851 = vunpack.c.l.b16 %v579
        %v852 = vunpack.c.l.b16 %v580
        %v853 = vunpack.c.l.b16 %v581
        %v854 = vunpack.c.l.b16 %v582
        %v855 = vunpack.c.l.b16 %v583
        %v856 = vunpack.c.l.b16 %v584
        %v857 = vunpack.c.l.b16 %v585
        %v858 = vunpack.c.l.b16 %v586
        %v859 = vunpack.c.l.b16 %v587
        %v860 = vunpack.c.l.b16 %v588
        %v861 = vunpack.c.l.b16 %v589
        %v862 = vunpack.c.l.b16 %v590
        %v863 = vunpack.c.l.b16 %v591
        %v864 = vunpack.c.l.b16 %v592
        %v865 = vunpack.c.l.b16 %v593
        %v866 = vunpack.c.l.b16 %v594
        %v867 = vunpack.c.l.b16 %v595
        %v868 = vunpack.c.l.b16 %v596
        %v869 = vunpack.c.l.b16 %v597
        %v870 = vunpack.c.l.b16 %v598
        %v871 = vunpack.c.l.b16 %v599
        %v872 = vunpack.c.l.b16 %v600
        %v873 = vunpack.c.l.b16 %v601
        %v874 = vunpack.c.l.b16 %v602
        %v875 = vunpack.c.l.b16 %v603
        %v876 = vunpack.c.l.b16 %v604
        %v877 = vunpack.c.l.b16 %v605
        %v878 = vunpack.c.l.b16 %v606
        %v879 = vunpack.c.l.b16 %v607
        %v880 = vunpack.c.l.b16 %v608
        %v881 = vunpack.c.l.b16 %v609
        %v882 = vunpack.c.l.b16 %v610
        %v883 = vunpack.c.l.b16 %v611
        %v884 = vunpack.c.l.b16 %v612
        %v885 = vunpack.c.l.b16 %v613
        %v886 = vunpack.c.l.b16 %v614
        %v887 = vunpack.c.l.b16 %v615
        %v888 = vunpack.c.l.b16 %v616
        %v889 = vunpack.c.l.b16 %v617
        %v890 = vunpack.c.l.b16 %v618
        %v891 = vunpack.c.l.b16 %v619
        %v892 = vunpack.c.l.b16 %v620
        %v893 = vunpack.c.l.b16 %v621
        %v894 = vunpack.c.l.b16 %v622
        %v895 = vunpack.c.l.b16 %v623
        %v896 = vpack.c.b16 %v769, %v768
        %v897 = vpack.c.b16 %v771, %v770
        %v898 = vpack.c.b16 %v773, %v772
        %v899 = vpack.c.b16 %v775, %v774
        %v900 = vpack.c.b16 %v777, %v776
        %v901 = vpack.c.b16 %v779, %v778
        %v902 = vpack.c.b16 %v781, %v780
        %v903 = vpack.c.b16 %v783, %v782
        %v904 = vpack.c.b16 %v785, %v784
        %v905 = vpack.c.b16 %v787, %v786
        %v906 = vpack.c.b16 %v789, %v788
        %v907 = vpack.c.b16 %v791, %v790
        %v908 = vpack.c.b16 %v793, %v792
        %v909 = vpack.c.b16 %v795, %v794
        %v910 = vpack.c.b16 %v797, %v796
        %v911 = vpack.c.b16 %v799, %v798
        %v912 = vpack.c.b16 %v801, %v800
        %v913 = vpack.c.b16 %v803, %v802
        %v914 = vpack.c.b16 %v805, %v804
        %v915 = vpack.c.b16 %v807, %v806
        %v916 = vpack.c.b16 %v809, %v808
        %v917 = vpack.c.b16 %v811, %v810
        %v918 = vpack.c.b16 %v813, %v812
        %v919 = vpack.c.b16 %v815, %v814
        %v920 = vpack.c.b16 %v817, %v816
        %v921 = vpack.c.b16 %v819, %v818
        %v922 = vpack.c.b16 %v821, %v820
        %v923 = vpack.c.b16 %v823, %v822
        %v924 = vpack.c.b16 %v825, %v824
        %v925 = vpack.c.b16 %v827, %v826
        %v926 = vpack.c.b16 %v829, %v828
        %v927 = vpack.c.b16 %v831, %v830
        %v928 = vpack.c.b16 %v833, %v832
        %v929 = vpack.c.b16 %v835, %v834
        %v930 = vpack.c.b16 %v837, %v836
        %v931 = vpack.c.b16 %v839, %v838
        %v932 = vpack.c.b16 %v841, %v840
        %v933 = vpack.c.b16 %v843, %v842
        %v934 = vpack.c.b16 %v845, %v844
        %v935 = vpack.c.b16 %v847, %v846
        %v936 = vpack.c.b16 %v849, %v848
        %v937 = vpack.c.b16 %v851, %v850
        %v938 = vpack.c.b16 %v853, %v852
        %v939 = vpack.c.b16 %v855, %v854
        %v940 = vpack.c.b16 %v857, %v856
        %v941 = vpack.c.b16 %v859, %v858
        %v942 = vpack.c.b16 %v861, %v860
        %v943 = vpack.c.b16 %v863, %v862
        %v944 = vpack.c.b16 %v865, %v864
        %v945 = vpack.c.b16 %v867, %v866
        %v946 = vpack.c.b16 %v869, %v868
        %v947 = vpack.c.b16 %v871, %v870
        %v948 = vpack.c.b16 %v873, %v872
        %v949 = vpack.c.b16 %v875, %v874
        %v950 = vpack.c.b16 %v877, %v876
        %v951 = vpack.c.b16 %v879, %v878
        %v952 = vpack.c.b16 %v881, %v880
        %v953 = vpack.c.b16 %v883, %v882
        %v954 = vpack.c.b16 %v885, %v884
        %v955 = vpack.c.b16 %v887, %v886
        %v956 = vpack.c.b16 %v889, %v888
        %v957 = vpack.c.b16 %v891, %v890
        %v958 = vpack.c.b16 %v893, %v892
        %v959 = vpack.c.b16 %v895, %v894
        %v1040 = vunpack.c.l.b16 %v624
        %v1041 = vunpack.c.l.b16 %v625
        %v1042 = vunpack.c.l.b16 %v626
        %v1043 = vunpack.c.l.b16 %v627
        %v1044 = vunpack.c.l.b16 %v628
        %v1045 = vunpack.c.l.b16 %v629
        %v1046 = vunpack.c.l.b16 %v630
        %v1047 = vunpack.c.l.b16 %v631
        %v1048 = vunpack.c.l.b16 %v632
        %v1049 = vunpack.c.l.b16 %v633
        %v1050 = vunpack.c.l.b16 %v634
        %v1051 = vunpack.c.l.b16 %v635
        %v1052 = vunpack.c.l.b16 %v636
        %v1053 = vunpack.c.l.b16 %v637
        %v1054 = vunpack.c.l.b16 %v638
        %v1055 = vunpack.c.l.b16 %v639
        %v1056 = vpack.c.b16 %v1041, %v1040
        %v1057 = vpack.c.b16 %v1043, %v1042
        %v1058 = vpack.c.b16 %v1045, %v1044
        %v1059 = vpack.c.b16 %v1047, %v1046
        %v1060 = vpack.c.b16 %v1049, %v1048
        %v1061 = vpack.c.b16 %v1051, %v1050
        %v1062 = vpack.c.b16 %v1053, %v1052
        %v1063 = vpack.c.b16 %v1055, %v1054
        %1072 = vmatpush.bf16.msra.mxu0 %v1063
        %1073 = vmatpush.bf16.msra.mxu0 %v1062
        %1074 = vmatpush.bf16.msra.mxu0 %v1061
        %1075 = vmatpush.bf16.msra.mxu0 %v1060
        %1076 = vmatpush.bf16.msra.mxu0 %v1059
        %1077 = vmatpush.bf16.msra.mxu0 %v1058
        %1078 = vmatpush.bf16.msra.mxu0 %v1057
        %1079 = vmatpush.bf16.msra.mxu0 %v1056
        %1080 = vmatmul.bf16.gmra.mxu0 %v896
        %v1081 = vpop.f32.mrf.mxu0
        %v1082 = vadd.f32 0.0, %v1081
        %v1083 = vpop.f32.mrf.mxu0
        %v1084 = vadd.f32 0.0, %v1083
        %1085 = vmatmul.bf16.gmra.mxu0 %v897
        %v1086 = vpop.f32.mrf.mxu0
        %v1087 = vadd.f32 0.0, %v1086
        %v1088 = vpop.f32.mrf.mxu0
        %v1089 = vadd.f32 0.0, %v1088
        %1090 = vmatmul.bf16.gmra.mxu0 %v898
        %v1091 = vpop.f32.mrf.mxu0
        %v1092 = vadd.f32 0.0, %v1091
        %v1093 = vpop.f32.mrf.mxu0
        %v1094 = vadd.f32 0.0, %v1093
        %1095 = vmatmul.bf16.gmra.mxu0 %v899
        %v1096 = vpop.f32.mrf.mxu0
        %v1097 = vadd.f32 0.0, %v1096
        %v1098 = vpop.f32.mrf.mxu0
        %v1099 = vadd.f32 0.0, %v1098
        %1100 = vmatmul.bf16.gmra.mxu0 %v900
        %v1101 = vpop.f32.mrf.mxu0
        %v1102 = vadd.f32 0.0, %v1101
        %v1103 = vpop.f32.mrf.mxu0
        %v1104 = vadd.f32 0.0, %v1103
        %1105 = vmatmul.bf16.gmra.mxu0 %v901
        %v1106 = vpop.f32.mrf.mxu0
        %v1107 = vadd.f32 0.0, %v1106
        %v1108 = vpop.f32.mrf.mxu0
        %v1109 = vadd.f32 0.0, %v1108
        %1110 = vmatmul.bf16.gmra.mxu0 %v902
        %v1111 = vpop.f32.mrf.mxu0
        %v1112 = vadd.f32 0.0, %v1111
        %v1113 = vpop.f32.mrf.mxu0
        %v1114 = vadd.f32 0.0, %v1113
        %1115 = vmatmul.bf16.gmra.mxu0 %v903
        %v1116 = vpop.f32.mrf.mxu0
        %v1117 = vadd.f32 0.0, %v1116
        %v1118 = vpop.f32.mrf.mxu0
        %v1119 = vadd.f32 0.0, %v1118
        %1120 = vmatmul.bf16.gmra.mxu0 %v904
        %v1121 = vpop.f32.mrf.mxu0
        %v1122 = vadd.f32 0.0, %v1121
        %v1123 = vpop.f32.mrf.mxu0
        %v1124 = vadd.f32 0.0, %v1123
        %1125 = vmatmul.bf16.gmra.mxu0 %v905
        %v1126 = vpop.f32.mrf.mxu0
        %v1127 = vadd.f32 0.0, %v1126
        %v1128 = vpop.f32.mrf.mxu0
        %v1129 = vadd.f32 0.0, %v1128
        %1130 = vmatmul.bf16.gmra.mxu0 %v906
        %v1131 = vpop.f32.mrf.mxu0
        %v1132 = vadd.f32 0.0, %v1131
        %v1133 = vpop.f32.mrf.mxu0
        %v1134 = vadd.f32 0.0, %v1133
        %1135 = vmatmul.bf16.gmra.mxu0 %v907
        %v1136 = vpop.f32.mrf.mxu0
        %v1137 = vadd.f32 0.0, %v1136
        %v1138 = vpop.f32.mrf.mxu0
        %v1139 = vadd.f32 0.0, %v1138
        %1140 = vmatmul.bf16.gmra.mxu0 %v908
        %v1141 = vpop.f32.mrf.mxu0
        %v1142 = vadd.f32 0.0, %v1141
        %v1143 = vpop.f32.mrf.mxu0
        %v1144 = vadd.f32 0.0, %v1143
        %1145 = vmatmul.bf16.gmra.mxu0 %v909
        %v1146 = vpop.f32.mrf.mxu0
        %v1147 = vadd.f32 0.0, %v1146
        %v1148 = vpop.f32.mrf.mxu0
        %v1149 = vadd.f32 0.0, %v1148
        %1150 = vmatmul.bf16.gmra.mxu0 %v910
        %v1151 = vpop.f32.mrf.mxu0
        %v1152 = vadd.f32 0.0, %v1151
        %v1153 = vpop.f32.mrf.mxu0
        %v1154 = vadd.f32 0.0, %v1153
        %1155 = vmatmul.bf16.gmra.mxu0 %v911
        %v1156 = vpop.f32.mrf.mxu0
        %v1157 = vadd.f32 0.0, %v1156
        %v1158 = vpop.f32.mrf.mxu0
        %v1159 = vadd.f32 0.0, %v1158
        %1160 = vmatmul.bf16.gmra.mxu0 %v912
        %v1161 = vpop.f32.mrf.mxu0
        %v1162 = vadd.f32 0.0, %v1161
        %v1163 = vpop.f32.mrf.mxu0
        %v1164 = vadd.f32 0.0, %v1163
        %1165 = vmatmul.bf16.gmra.mxu0 %v913
        %v1166 = vpop.f32.mrf.mxu0
        %v1167 = vadd.f32 0.0, %v1166
        %v1168 = vpop.f32.mrf.mxu0
        %v1169 = vadd.f32 0.0, %v1168
        %1170 = vmatmul.bf16.gmra.mxu0 %v914
        %v1171 = vpop.f32.mrf.mxu0
        %v1172 = vadd.f32 0.0, %v1171
        %v1173 = vpop.f32.mrf.mxu0
        %v1174 = vadd.f32 0.0, %v1173
        %1175 = vmatmul.bf16.gmra.mxu0 %v915
        %v1176 = vpop.f32.mrf.mxu0
        %v1177 = vadd.f32 0.0, %v1176
        %v1178 = vpop.f32.mrf.mxu0
        %v1179 = vadd.f32 0.0, %v1178
        %1180 = vmatmul.bf16.gmra.mxu0 %v916
        %v1181 = vpop.f32.mrf.mxu0
        %v1182 = vadd.f32 0.0, %v1181
        %v1183 = vpop.f32.mrf.mxu0
        %v1184 = vadd.f32 0.0, %v1183
        %1185 = vmatmul.bf16.gmra.mxu0 %v917
        %v1186 = vpop.f32.mrf.mxu0
        %v1187 = vadd.f32 0.0, %v1186
        %v1188 = vpop.f32.mrf.mxu0
        %v1189 = vadd.f32 0.0, %v1188
        %1190 = vmatmul.bf16.gmra.mxu0 %v918
        %v1191 = vpop.f32.mrf.mxu0
        %v1192 = vadd.f32 0.0, %v1191
        %v1193 = vpop.f32.mrf.mxu0
        %v1194 = vadd.f32 0.0, %v1193
        %1195 = vmatmul.bf16.gmra.mxu0 %v919
        %v1196 = vpop.f32.mrf.mxu0
        %v1197 = vadd.f32 0.0, %v1196
        %v1198 = vpop.f32.mrf.mxu0
        %v1199 = vadd.f32 0.0, %v1198
        %1200 = vmatmul.bf16.gmra.mxu0 %v920
        %v1201 = vpop.f32.mrf.mxu0
        %v1202 = vadd.f32 0.0, %v1201
        %v1203 = vpop.f32.mrf.mxu0
        %v1204 = vadd.f32 0.0, %v1203
        %1205 = vmatmul.bf16.gmra.mxu0 %v921
        %v1206 = vpop.f32.mrf.mxu0
        %v1207 = vadd.f32 0.0, %v1206
        %v1208 = vpop.f32.mrf.mxu0
        %v1209 = vadd.f32 0.0, %v1208
        %1210 = vmatmul.bf16.gmra.mxu0 %v922
        %v1211 = vpop.f32.mrf.mxu0
        %v1212 = vadd.f32 0.0, %v1211
        %v1213 = vpop.f32.mrf.mxu0
        %v1214 = vadd.f32 0.0, %v1213
        %1215 = vmatmul.bf16.gmra.mxu0 %v923
        %v1216 = vpop.f32.mrf.mxu0
        %v1217 = vadd.f32 0.0, %v1216
        %v1218 = vpop.f32.mrf.mxu0
        %v1219 = vadd.f32 0.0, %v1218
        %1220 = vmatmul.bf16.gmra.mxu0 %v924
        %v1221 = vpop.f32.mrf.mxu0
        %v1222 = vadd.f32 0.0, %v1221
        %v1223 = vpop.f32.mrf.mxu0
        %v1224 = vadd.f32 0.0, %v1223
        %1225 = vmatmul.bf16.gmra.mxu0 %v925
        %v1226 = vpop.f32.mrf.mxu0
        %v1227 = vadd.f32 0.0, %v1226
        %v1228 = vpop.f32.mrf.mxu0
        %v1229 = vadd.f32 0.0, %v1228
        %1230 = vmatmul.bf16.gmra.mxu0 %v926
        %v1231 = vpop.f32.mrf.mxu0
        %v1232 = vadd.f32 0.0, %v1231
        %v1233 = vpop.f32.mrf.mxu0
        %v1234 = vadd.f32 0.0, %v1233
        %1235 = vmatmul.bf16.gmra.mxu0 %v927
        %v1236 = vpop.f32.mrf.mxu0
        %v1237 = vadd.f32 0.0, %v1236
        %v1238 = vpop.f32.mrf.mxu0
        %v1239 = vadd.f32 0.0, %v1238
        %1240 = vmatmul.bf16.gmra.mxu0 %v928
        %v1241 = vpop.f32.mrf.mxu0
        %v1242 = vadd.f32 0.0, %v1241
        %v1243 = vpop.f32.mrf.mxu0
        %v1244 = vadd.f32 0.0, %v1243
        %1245 = vmatmul.bf16.gmra.mxu0 %v929
        %v1246 = vpop.f32.mrf.mxu0
        %v1247 = vadd.f32 0.0, %v1246
        %v1248 = vpop.f32.mrf.mxu0
        %v1249 = vadd.f32 0.0, %v1248
        %1250 = vmatmul.bf16.gmra.mxu0 %v930
        %v1251 = vpop.f32.mrf.mxu0
        %v1252 = vadd.f32 0.0, %v1251
        %v1253 = vpop.f32.mrf.mxu0
        %v1254 = vadd.f32 0.0, %v1253
        %1255 = vmatmul.bf16.gmra.mxu0 %v931
        %v1256 = vpop.f32.mrf.mxu0
        %v1257 = vadd.f32 0.0, %v1256
        %v1258 = vpop.f32.mrf.mxu0
        %v1259 = vadd.f32 0.0, %v1258
        %1260 = vmatmul.bf16.gmra.mxu0 %v932
        %v1261 = vpop.f32.mrf.mxu0
        %v1262 = vadd.f32 0.0, %v1261
        %v1263 = vpop.f32.mrf.mxu0
        %v1264 = vadd.f32 0.0, %v1263
        %1265 = vmatmul.bf16.gmra.mxu0 %v933
        %v1266 = vpop.f32.mrf.mxu0
        %v1267 = vadd.f32 0.0, %v1266
        %v1268 = vpop.f32.mrf.mxu0
        %v1269 = vadd.f32 0.0, %v1268
        %1270 = vmatmul.bf16.gmra.mxu0 %v934
        %v1271 = vpop.f32.mrf.mxu0
        %v1272 = vadd.f32 0.0, %v1271
        %v1273 = vpop.f32.mrf.mxu0
        %v1274 = vadd.f32 0.0, %v1273
        %1275 = vmatmul.bf16.gmra.mxu0 %v935
        %v1276 = vpop.f32.mrf.mxu0
        %v1277 = vadd.f32 0.0, %v1276
        %v1278 = vpop.f32.mrf.mxu0
        %v1279 = vadd.f32 0.0, %v1278
        %1280 = vmatmul.bf16.gmra.mxu0 %v936
        %v1281 = vpop.f32.mrf.mxu0
        %v1282 = vadd.f32 0.0, %v1281
        %v1283 = vpop.f32.mrf.mxu0
        %v1284 = vadd.f32 0.0, %v1283
        %1285 = vmatmul.bf16.gmra.mxu0 %v937
        %v1286 = vpop.f32.mrf.mxu0
        %v1287 = vadd.f32 0.0, %v1286
        %v1288 = vpop.f32.mrf.mxu0
        %v1289 = vadd.f32 0.0, %v1288
        %1290 = vmatmul.bf16.gmra.mxu0 %v938
        %v1291 = vpop.f32.mrf.mxu0
        %v1292 = vadd.f32 0.0, %v1291
        %v1293 = vpop.f32.mrf.mxu0
        %v1294 = vadd.f32 0.0, %v1293
        %1295 = vmatmul.bf16.gmra.mxu0 %v939
        %v1296 = vpop.f32.mrf.mxu0
        %v1297 = vadd.f32 0.0, %v1296
        %v1298 = vpop.f32.mrf.mxu0
        %v1299 = vadd.f32 0.0, %v1298
        %1300 = vmatmul.bf16.gmra.mxu0 %v940
        %v1301 = vpop.f32.mrf.mxu0
        %v1302 = vadd.f32 0.0, %v1301
        %v1303 = vpop.f32.mrf.mxu0
        %v1304 = vadd.f32 0.0, %v1303
        %1305 = vmatmul.bf16.gmra.mxu0 %v941
        %v1306 = vpop.f32.mrf.mxu0
        %v1307 = vadd.f32 0.0, %v1306
        %v1308 = vpop.f32.mrf.mxu0
        %v1309 = vadd.f32 0.0, %v1308
        %1310 = vmatmul.bf16.gmra.mxu0 %v942
        %v1311 = vpop.f32.mrf.mxu0
        %v1312 = vadd.f32 0.0, %v1311
        %v1313 = vpop.f32.mrf.mxu0
        %v1314 = vadd.f32 0.0, %v1313
        %1315 = vmatmul.bf16.gmra.mxu0 %v943
        %v1316 = vpop.f32.mrf.mxu0
        %v1317 = vadd.f32 0.0, %v1316
        %v1318 = vpop.f32.mrf.mxu0
        %v1319 = vadd.f32 0.0, %v1318
        %1320 = vmatmul.bf16.gmra.mxu0 %v944
        %v1321 = vpop.f32.mrf.mxu0
        %v1322 = vadd.f32 0.0, %v1321
        %v1323 = vpop.f32.mrf.mxu0
        %v1324 = vadd.f32 0.0, %v1323
        %1325 = vmatmul.bf16.gmra.mxu0 %v945
        %v1326 = vpop.f32.mrf.mxu0
        %v1327 = vadd.f32 0.0, %v1326
        %v1328 = vpop.f32.mrf.mxu0
        %v1329 = vadd.f32 0.0, %v1328
        %1330 = vmatmul.bf16.gmra.mxu0 %v946
        %v1331 = vpop.f32.mrf.mxu0
        %v1332 = vadd.f32 0.0, %v1331
        %v1333 = vpop.f32.mrf.mxu0
        %v1334 = vadd.f32 0.0, %v1333
        %1335 = vmatmul.bf16.gmra.mxu0 %v947
        %v1336 = vpop.f32.mrf.mxu0
        %v1337 = vadd.f32 0.0, %v1336
        %v1338 = vpop.f32.mrf.mxu0
        %v1339 = vadd.f32 0.0, %v1338
        %1340 = vmatmul.bf16.gmra.mxu0 %v948
        %v1341 = vpop.f32.mrf.mxu0
        %v1342 = vadd.f32 0.0, %v1341
        %v1343 = vpop.f32.mrf.mxu0
        %v1344 = vadd.f32 0.0, %v1343
        %1345 = vmatmul.bf16.gmra.mxu0 %v949
        %v1346 = vpop.f32.mrf.mxu0
        %v1347 = vadd.f32 0.0, %v1346
        %v1348 = vpop.f32.mrf.mxu0
        %v1349 = vadd.f32 0.0, %v1348
        %1350 = vmatmul.bf16.gmra.mxu0 %v950
        %v1351 = vpop.f32.mrf.mxu0
        %v1352 = vadd.f32 0.0, %v1351
        %v1353 = vpop.f32.mrf.mxu0
        %v1354 = vadd.f32 0.0, %v1353
        %1355 = vmatmul.bf16.gmra.mxu0 %v951
        %v1356 = vpop.f32.mrf.mxu0
        %v1357 = vadd.f32 0.0, %v1356
        %v1358 = vpop.f32.mrf.mxu0
        %v1359 = vadd.f32 0.0, %v1358
        %1360 = vmatmul.bf16.gmra.mxu0 %v952
        %v1361 = vpop.f32.mrf.mxu0
        %v1362 = vadd.f32 0.0, %v1361
        %v1363 = vpop.f32.mrf.mxu0
        %v1364 = vadd.f32 0.0, %v1363
        %1365 = vmatmul.bf16.gmra.mxu0 %v953
        %v1366 = vpop.f32.mrf.mxu0
        %v1367 = vadd.f32 0.0, %v1366
        %v1368 = vpop.f32.mrf.mxu0
        %v1369 = vadd.f32 0.0, %v1368
        %1370 = vmatmul.bf16.gmra.mxu0 %v954
        %v1371 = vpop.f32.mrf.mxu0
        %v1372 = vadd.f32 0.0, %v1371
        %v1373 = vpop.f32.mrf.mxu0
        %v1374 = vadd.f32 0.0, %v1373
        %1375 = vmatmul.bf16.gmra.mxu0 %v955
        %v1376 = vpop.f32.mrf.mxu0
        %v1377 = vadd.f32 0.0, %v1376
        %v1378 = vpop.f32.mrf.mxu0
        %v1379 = vadd.f32 0.0, %v1378
        %1380 = vmatmul.bf16.gmra.mxu0 %v956
        %v1381 = vpop.f32.mrf.mxu0
        %v1382 = vadd.f32 0.0, %v1381
        %v1383 = vpop.f32.mrf.mxu0
        %v1384 = vadd.f32 0.0, %v1383
        %1385 = vmatmul.bf16.gmra.mxu0 %v957
        %v1386 = vpop.f32.mrf.mxu0
        %v1387 = vadd.f32 0.0, %v1386
        %v1388 = vpop.f32.mrf.mxu0
        %v1389 = vadd.f32 0.0, %v1388
        %1390 = vmatmul.bf16.gmra.mxu0 %v958
        %v1391 = vpop.f32.mrf.mxu0
        %v1392 = vadd.f32 0.0, %v1391
        %v1393 = vpop.f32.mrf.mxu0
        %v1394 = vadd.f32 0.0, %v1393
        %1395 = vmatmul.bf16.gmra.mxu0 %v959
        %v1396 = vpop.f32.mrf.mxu0
        %v1397 = vadd.f32 0.0, %v1396
        %v1398 = vpop.f32.mrf.mxu0
        %v1399 = vadd.f32 0.0, %v1398
        %1400 = vdwg.mxu0
        %v1529 = vunpack.c.l.b16 %v352
        %v1530 = vunpack.c.l.b16 %v353
        %v1531 = vunpack.c.l.b16 %v354
        %v1532 = vunpack.c.l.b16 %v355
        %v1533 = vunpack.c.l.b16 %v356
        %v1534 = vunpack.c.l.b16 %v357
        %v1535 = vunpack.c.l.b16 %v358
        %v1536 = vunpack.c.l.b16 %v359
        %v1537 = vunpack.c.l.b16 %v360
        %v1538 = vunpack.c.l.b16 %v361
        %v1539 = vunpack.c.l.b16 %v362
        %v1540 = vunpack.c.l.b16 %v363
        %v1541 = vunpack.c.l.b16 %v364
        %v1542 = vunpack.c.l.b16 %v365
        %v1543 = vunpack.c.l.b16 %v366
        %v1544 = vunpack.c.l.b16 %v367
        %v1545 = vunpack.c.l.b16 %v368
        %v1546 = vunpack.c.l.b16 %v369
        %v1547 = vunpack.c.l.b16 %v370
        %v1548 = vunpack.c.l.b16 %v371
        %v1549 = vunpack.c.l.b16 %v372
        %v1550 = vunpack.c.l.b16 %v373
        %v1551 = vunpack.c.l.b16 %v374
        %v1552 = vunpack.c.l.b16 %v375
        %v1553 = vunpack.c.l.b16 %v376
        %v1554 = vunpack.c.l.b16 %v377
        %v1555 = vunpack.c.l.b16 %v378
        %v1556 = vunpack.c.l.b16 %v379
        %v1557 = vunpack.c.l.b16 %v380
        %v1558 = vunpack.c.l.b16 %v381
        %v1559 = vunpack.c.l.b16 %v382
        %v1560 = vunpack.c.l.b16 %v383
        %v1561 = vunpack.c.l.b16 %v384
        %v1562 = vunpack.c.l.b16 %v385
        %v1563 = vunpack.c.l.b16 %v386
        %v1564 = vunpack.c.l.b16 %v387
        %v1565 = vunpack.c.l.b16 %v388
        %v1566 = vunpack.c.l.b16 %v389
        %v1567 = vunpack.c.l.b16 %v390
        %v1568 = vunpack.c.l.b16 %v391
        %v1569 = vunpack.c.l.b16 %v392
        %v1570 = vunpack.c.l.b16 %v393
        %v1571 = vunpack.c.l.b16 %v394
        %v1572 = vunpack.c.l.b16 %v395
        %v1573 = vunpack.c.l.b16 %v396
        %v1574 = vunpack.c.l.b16 %v397
        %v1575 = vunpack.c.l.b16 %v398
        %v1576 = vunpack.c.l.b16 %v399
        %v1577 = vunpack.c.l.b16 %v400
        %v1578 = vunpack.c.l.b16 %v401
        %v1579 = vunpack.c.l.b16 %v402
        %v1580 = vunpack.c.l.b16 %v403
        %v1581 = vunpack.c.l.b16 %v404
        %v1582 = vunpack.c.l.b16 %v405
        %v1583 = vunpack.c.l.b16 %v406
        %v1584 = vunpack.c.l.b16 %v407
        %v1585 = vunpack.c.l.b16 %v408
        %v1586 = vunpack.c.l.b16 %v409
        %v1587 = vunpack.c.l.b16 %v410
        %v1588 = vunpack.c.l.b16 %v411
        %v1589 = vunpack.c.l.b16 %v412
        %v1590 = vunpack.c.l.b16 %v413
        %v1591 = vunpack.c.l.b16 %v414
        %v1592 = vunpack.c.l.b16 %v415
        %v1593 = vunpack.c.l.b16 %v416
        %v1594 = vunpack.c.l.b16 %v417
        %v1595 = vunpack.c.l.b16 %v418
        %v1596 = vunpack.c.l.b16 %v419
        %v1597 = vunpack.c.l.b16 %v420
        %v1598 = vunpack.c.l.b16 %v421
        %v1599 = vunpack.c.l.b16 %v422
        %v1600 = vunpack.c.l.b16 %v423
        %v1601 = vunpack.c.l.b16 %v424
        %v1602 = vunpack.c.l.b16 %v425
        %v1603 = vunpack.c.l.b16 %v426
        %v1604 = vunpack.c.l.b16 %v427
        %v1605 = vunpack.c.l.b16 %v428
        %v1606 = vunpack.c.l.b16 %v429
        %v1607 = vunpack.c.l.b16 %v430
        %v1608 = vunpack.c.l.b16 %v431
        %v1609 = vunpack.c.l.b16 %v432
        %v1610 = vunpack.c.l.b16 %v433
        %v1611 = vunpack.c.l.b16 %v434
        %v1612 = vunpack.c.l.b16 %v435
        %v1613 = vunpack.c.l.b16 %v436
        %v1614 = vunpack.c.l.b16 %v437
        %v1615 = vunpack.c.l.b16 %v438
        %v1616 = vunpack.c.l.b16 %v439
        %v1617 = vunpack.c.l.b16 %v440
        %v1618 = vunpack.c.l.b16 %v441
        %v1619 = vunpack.c.l.b16 %v442
        %v1620 = vunpack.c.l.b16 %v443
        %v1621 = vunpack.c.l.b16 %v444
        %v1622 = vunpack.c.l.b16 %v445
        %v1623 = vunpack.c.l.b16 %v446
        %v1624 = vunpack.c.l.b16 %v447
        %v1625 = vunpack.c.l.b16 %v448
        %v1626 = vunpack.c.l.b16 %v449
        %v1627 = vunpack.c.l.b16 %v450
        %v1628 = vunpack.c.l.b16 %v451
        %v1629 = vunpack.c.l.b16 %v452
        %v1630 = vunpack.c.l.b16 %v453
        %v1631 = vunpack.c.l.b16 %v454
        %v1632 = vunpack.c.l.b16 %v455
        %v1633 = vunpack.c.l.b16 %v456
        %v1634 = vunpack.c.l.b16 %v457
        %v1635 = vunpack.c.l.b16 %v458
        %v1636 = vunpack.c.l.b16 %v459
        %v1637 = vunpack.c.l.b16 %v460
        %v1638 = vunpack.c.l.b16 %v461
        %v1639 = vunpack.c.l.b16 %v462
        %v1640 = vunpack.c.l.b16 %v463
        %v1641 = vunpack.c.l.b16 %v464
        %v1642 = vunpack.c.l.b16 %v465
        %v1643 = vunpack.c.l.b16 %v466
        %v1644 = vunpack.c.l.b16 %v467
        %v1645 = vunpack.c.l.b16 %v468
        %v1646 = vunpack.c.l.b16 %v469
        %v1647 = vunpack.c.l.b16 %v470
        %v1648 = vunpack.c.l.b16 %v471
        %v1649 = vunpack.c.l.b16 %v472
        %v1650 = vunpack.c.l.b16 %v473
        %v1651 = vunpack.c.l.b16 %v474
        %v1652 = vunpack.c.l.b16 %v475
        %v1653 = vunpack.c.l.b16 %v476
        %v1654 = vunpack.c.l.b16 %v477
        %v1655 = vunpack.c.l.b16 %v478
        %v1656 = vunpack.c.l.b16 %v479
        %v1657 = vpack.c.b16 %v1530, %v1529
        %v1658 = vpack.c.b16 %v1532, %v1531
        %v1659 = vpack.c.b16 %v1534, %v1533
        %v1660 = vpack.c.b16 %v1536, %v1535
        %v1661 = vpack.c.b16 %v1538, %v1537
        %v1662 = vpack.c.b16 %v1540, %v1539
        %v1663 = vpack.c.b16 %v1542, %v1541
        %v1664 = vpack.c.b16 %v1544, %v1543
        %v1665 = vpack.c.b16 %v1546, %v1545
        %v1666 = vpack.c.b16 %v1548, %v1547
        %v1667 = vpack.c.b16 %v1550, %v1549
        %v1668 = vpack.c.b16 %v1552, %v1551
        %v1669 = vpack.c.b16 %v1554, %v1553
        %v1670 = vpack.c.b16 %v1556, %v1555
        %v1671 = vpack.c.b16 %v1558, %v1557
        %v1672 = vpack.c.b16 %v1560, %v1559
        %v1673 = vpack.c.b16 %v1562, %v1561
        %v1674 = vpack.c.b16 %v1564, %v1563
        %v1675 = vpack.c.b16 %v1566, %v1565
        %v1676 = vpack.c.b16 %v1568, %v1567
        %v1677 = vpack.c.b16 %v1570, %v1569
        %v1678 = vpack.c.b16 %v1572, %v1571
        %v1679 = vpack.c.b16 %v1574, %v1573
        %v1680 = vpack.c.b16 %v1576, %v1575
        %v1681 = vpack.c.b16 %v1578, %v1577
        %v1682 = vpack.c.b16 %v1580, %v1579
        %v1683 = vpack.c.b16 %v1582, %v1581
        %v1684 = vpack.c.b16 %v1584, %v1583
        %v1685 = vpack.c.b16 %v1586, %v1585
        %v1686 = vpack.c.b16 %v1588, %v1587
        %v1687 = vpack.c.b16 %v1590, %v1589
        %v1688 = vpack.c.b16 %v1592, %v1591
        %v1689 = vpack.c.b16 %v1594, %v1593
        %v1690 = vpack.c.b16 %v1596, %v1595
        %v1691 = vpack.c.b16 %v1598, %v1597
        %v1692 = vpack.c.b16 %v1600, %v1599
        %v1693 = vpack.c.b16 %v1602, %v1601
        %v1694 = vpack.c.b16 %v1604, %v1603
        %v1695 = vpack.c.b16 %v1606, %v1605
        %v1696 = vpack.c.b16 %v1608, %v1607
        %v1697 = vpack.c.b16 %v1610, %v1609
        %v1698 = vpack.c.b16 %v1612, %v1611
        %v1699 = vpack.c.b16 %v1614, %v1613
        %v1700 = vpack.c.b16 %v1616, %v1615
        %v1701 = vpack.c.b16 %v1618, %v1617
        %v1702 = vpack.c.b16 %v1620, %v1619
        %v1703 = vpack.c.b16 %v1622, %v1621
        %v1704 = vpack.c.b16 %v1624, %v1623
        %v1705 = vpack.c.b16 %v1626, %v1625
        %v1706 = vpack.c.b16 %v1628, %v1627
        %v1707 = vpack.c.b16 %v1630, %v1629
        %v1708 = vpack.c.b16 %v1632, %v1631
        %v1709 = vpack.c.b16 %v1634, %v1633
        %v1710 = vpack.c.b16 %v1636, %v1635
        %v1711 = vpack.c.b16 %v1638, %v1637
        %v1712 = vpack.c.b16 %v1640, %v1639
        %v1713 = vpack.c.b16 %v1642, %v1641
        %v1714 = vpack.c.b16 %v1644, %v1643
        %v1715 = vpack.c.b16 %v1646, %v1645
        %v1716 = vpack.c.b16 %v1648, %v1647
        %v1717 = vpack.c.b16 %v1650, %v1649
        %v1718 = vpack.c.b16 %v1652, %v1651
        %v1719 = vpack.c.b16 %v1654, %v1653
        %v1720 = vpack.c.b16 %v1656, %v1655
        %v1801 = vunpack.c.l.b16 %v480
        %v1802 = vunpack.c.l.b16 %v481
        %v1803 = vunpack.c.l.b16 %v482
        %v1804 = vunpack.c.l.b16 %v483
        %v1805 = vunpack.c.l.b16 %v484
        %v1806 = vunpack.c.l.b16 %v485
        %v1807 = vunpack.c.l.b16 %v486
        %v1808 = vunpack.c.l.b16 %v487
        %v1809 = vunpack.c.l.b16 %v488
        %v1810 = vunpack.c.l.b16 %v489
        %v1811 = vunpack.c.l.b16 %v490
        %v1812 = vunpack.c.l.b16 %v491
        %v1813 = vunpack.c.l.b16 %v492
        %v1814 = vunpack.c.l.b16 %v493
        %v1815 = vunpack.c.l.b16 %v494
        %v1816 = vunpack.c.l.b16 %v495
        %v1817 = vpack.c.b16 %v1802, %v1801
        %v1818 = vpack.c.b16 %v1804, %v1803
        %v1819 = vpack.c.b16 %v1806, %v1805
        %v1820 = vpack.c.b16 %v1808, %v1807
        %v1821 = vpack.c.b16 %v1810, %v1809
        %v1822 = vpack.c.b16 %v1812, %v1811
        %v1823 = vpack.c.b16 %v1814, %v1813
        %v1824 = vpack.c.b16 %v1816, %v1815
        %1833 = vmatpush.bf16.msra.mxu0 %v1824
        %1834 = vmatpush.bf16.msra.mxu0 %v1823
        %1835 = vmatpush.bf16.msra.mxu0 %v1822
        %1836 = vmatpush.bf16.msra.mxu0 %v1821
        %1837 = vmatpush.bf16.msra.mxu0 %v1820
        %1838 = vmatpush.bf16.msra.mxu0 %v1819
        %1839 = vmatpush.bf16.msra.mxu0 %v1818
        %1840 = vmatpush.bf16.msra.mxu0 %v1817
        %1841 = vmatmul.bf16.gmra.mxu0 %v1657
        %v1842 = vpop.f32.mrf.mxu0
        %v1843 = vadd.f32 %v1082, %v1842
        %v1844 = vpop.f32.mrf.mxu0
        %v1845 = vadd.f32 %v1084, %v1844
        %1846 = vmatmul.bf16.gmra.mxu0 %v1658
        %v1847 = vpop.f32.mrf.mxu0
        %v1848 = vadd.f32 %v1087, %v1847
        %v1849 = vpop.f32.mrf.mxu0
        %v1850 = vadd.f32 %v1089, %v1849
        %1851 = vmatmul.bf16.gmra.mxu0 %v1659
        %v1852 = vpop.f32.mrf.mxu0
        %v1853 = vadd.f32 %v1092, %v1852
        %v1854 = vpop.f32.mrf.mxu0
        %v1855 = vadd.f32 %v1094, %v1854
        %1856 = vmatmul.bf16.gmra.mxu0 %v1660
        %v1857 = vpop.f32.mrf.mxu0
        %v1858 = vadd.f32 %v1097, %v1857
        %v1859 = vpop.f32.mrf.mxu0
        %v1860 = vadd.f32 %v1099, %v1859
        %1861 = vmatmul.bf16.gmra.mxu0 %v1661
        %v1862 = vpop.f32.mrf.mxu0
        %v1863 = vadd.f32 %v1102, %v1862
        %v1864 = vpop.f32.mrf.mxu0
        %v1865 = vadd.f32 %v1104, %v1864
        %1866 = vmatmul.bf16.gmra.mxu0 %v1662
        %v1867 = vpop.f32.mrf.mxu0
        %v1868 = vadd.f32 %v1107, %v1867
        %v1869 = vpop.f32.mrf.mxu0
        %v1870 = vadd.f32 %v1109, %v1869
        %1871 = vmatmul.bf16.gmra.mxu0 %v1663
        %v1872 = vpop.f32.mrf.mxu0
        %v1873 = vadd.f32 %v1112, %v1872
        %v1874 = vpop.f32.mrf.mxu0
        %v1875 = vadd.f32 %v1114, %v1874
        %1876 = vmatmul.bf16.gmra.mxu0 %v1664
        %v1877 = vpop.f32.mrf.mxu0
        %v1878 = vadd.f32 %v1117, %v1877
        %v1879 = vpop.f32.mrf.mxu0
        %v1880 = vadd.f32 %v1119, %v1879
        %1881 = vmatmul.bf16.gmra.mxu0 %v1665
        %v1882 = vpop.f32.mrf.mxu0
        %v1883 = vadd.f32 %v1122, %v1882
        %v1884 = vpop.f32.mrf.mxu0
        %v1885 = vadd.f32 %v1124, %v1884
        %1886 = vmatmul.bf16.gmra.mxu0 %v1666
        %v1887 = vpop.f32.mrf.mxu0
        %v1888 = vadd.f32 %v1127, %v1887
        %v1889 = vpop.f32.mrf.mxu0
        %v1890 = vadd.f32 %v1129, %v1889
        %1891 = vmatmul.bf16.gmra.mxu0 %v1667
        %v1892 = vpop.f32.mrf.mxu0
        %v1893 = vadd.f32 %v1132, %v1892
        %v1894 = vpop.f32.mrf.mxu0
        %v1895 = vadd.f32 %v1134, %v1894
        %1896 = vmatmul.bf16.gmra.mxu0 %v1668
        %v1897 = vpop.f32.mrf.mxu0
        %v1898 = vadd.f32 %v1137, %v1897
        %v1899 = vpop.f32.mrf.mxu0
        %v1900 = vadd.f32 %v1139, %v1899
        %1901 = vmatmul.bf16.gmra.mxu0 %v1669
        %v1902 = vpop.f32.mrf.mxu0
        %v1903 = vadd.f32 %v1142, %v1902
        %v1904 = vpop.f32.mrf.mxu0
        %v1905 = vadd.f32 %v1144, %v1904
        %1906 = vmatmul.bf16.gmra.mxu0 %v1670
        %v1907 = vpop.f32.mrf.mxu0
        %v1908 = vadd.f32 %v1147, %v1907
        %v1909 = vpop.f32.mrf.mxu0
        %v1910 = vadd.f32 %v1149, %v1909
        %1911 = vmatmul.bf16.gmra.mxu0 %v1671
        %v1912 = vpop.f32.mrf.mxu0
        %v1913 = vadd.f32 %v1152, %v1912
        %v1914 = vpop.f32.mrf.mxu0
        %v1915 = vadd.f32 %v1154, %v1914
        %1916 = vmatmul.bf16.gmra.mxu0 %v1672
        %v1917 = vpop.f32.mrf.mxu0
        %v1918 = vadd.f32 %v1157, %v1917
        %v1919 = vpop.f32.mrf.mxu0
        %v1920 = vadd.f32 %v1159, %v1919
        %1921 = vmatmul.bf16.gmra.mxu0 %v1673
        %v1922 = vpop.f32.mrf.mxu0
        %v1923 = vadd.f32 %v1162, %v1922
        %v1924 = vpop.f32.mrf.mxu0
        %v1925 = vadd.f32 %v1164, %v1924
        %1926 = vmatmul.bf16.gmra.mxu0 %v1674
        %v1927 = vpop.f32.mrf.mxu0
        %v1928 = vadd.f32 %v1167, %v1927
        %v1929 = vpop.f32.mrf.mxu0
        %v1930 = vadd.f32 %v1169, %v1929
        %1931 = vmatmul.bf16.gmra.mxu0 %v1675
        %v1932 = vpop.f32.mrf.mxu0
        %v1933 = vadd.f32 %v1172, %v1932
        %v1934 = vpop.f32.mrf.mxu0
        %v1935 = vadd.f32 %v1174, %v1934
        %1936 = vmatmul.bf16.gmra.mxu0 %v1676
        %v1937 = vpop.f32.mrf.mxu0
        %v1938 = vadd.f32 %v1177, %v1937
        %v1939 = vpop.f32.mrf.mxu0
        %v1940 = vadd.f32 %v1179, %v1939
        %1941 = vmatmul.bf16.gmra.mxu0 %v1677
        %v1942 = vpop.f32.mrf.mxu0
        %v1943 = vadd.f32 %v1182, %v1942
        %v1944 = vpop.f32.mrf.mxu0
        %v1945 = vadd.f32 %v1184, %v1944
        %1946 = vmatmul.bf16.gmra.mxu0 %v1678
        %v1947 = vpop.f32.mrf.mxu0
        %v1948 = vadd.f32 %v1187, %v1947
        %v1949 = vpop.f32.mrf.mxu0
        %v1950 = vadd.f32 %v1189, %v1949
        %1951 = vmatmul.bf16.gmra.mxu0 %v1679
        %v1952 = vpop.f32.mrf.mxu0
        %v1953 = vadd.f32 %v1192, %v1952
        %v1954 = vpop.f32.mrf.mxu0
        %v1955 = vadd.f32 %v1194, %v1954
        %1956 = vmatmul.bf16.gmra.mxu0 %v1680
        %v1957 = vpop.f32.mrf.mxu0
        %v1958 = vadd.f32 %v1197, %v1957
        %v1959 = vpop.f32.mrf.mxu0
        %v1960 = vadd.f32 %v1199, %v1959
        %1961 = vmatmul.bf16.gmra.mxu0 %v1681
        %v1962 = vpop.f32.mrf.mxu0
        %v1963 = vadd.f32 %v1202, %v1962
        %v1964 = vpop.f32.mrf.mxu0
        %v1965 = vadd.f32 %v1204, %v1964
        %1966 = vmatmul.bf16.gmra.mxu0 %v1682
        %v1967 = vpop.f32.mrf.mxu0
        %v1968 = vadd.f32 %v1207, %v1967
        %v1969 = vpop.f32.mrf.mxu0
        %v1970 = vadd.f32 %v1209, %v1969
        %1971 = vmatmul.bf16.gmra.mxu0 %v1683
        %v1972 = vpop.f32.mrf.mxu0
        %v1973 = vadd.f32 %v1212, %v1972
        %v1974 = vpop.f32.mrf.mxu0
        %v1975 = vadd.f32 %v1214, %v1974
        %1976 = vmatmul.bf16.gmra.mxu0 %v1684
        %v1977 = vpop.f32.mrf.mxu0
        %v1978 = vadd.f32 %v1217, %v1977
        %v1979 = vpop.f32.mrf.mxu0
        %v1980 = vadd.f32 %v1219, %v1979
        %1981 = vmatmul.bf16.gmra.mxu0 %v1685
        %v1982 = vpop.f32.mrf.mxu0
        %v1983 = vadd.f32 %v1222, %v1982
        %v1984 = vpop.f32.mrf.mxu0
        %v1985 = vadd.f32 %v1224, %v1984
        %1986 = vmatmul.bf16.gmra.mxu0 %v1686
        %v1987 = vpop.f32.mrf.mxu0
        %v1988 = vadd.f32 %v1227, %v1987
        %v1989 = vpop.f32.mrf.mxu0
        %v1990 = vadd.f32 %v1229, %v1989
        %1991 = vmatmul.bf16.gmra.mxu0 %v1687
        %v1992 = vpop.f32.mrf.mxu0
        %v1993 = vadd.f32 %v1232, %v1992
        %v1994 = vpop.f32.mrf.mxu0
        %v1995 = vadd.f32 %v1234, %v1994
        %1996 = vmatmul.bf16.gmra.mxu0 %v1688
        %v1997 = vpop.f32.mrf.mxu0
        %v1998 = vadd.f32 %v1237, %v1997
        %v1999 = vpop.f32.mrf.mxu0
        %v2000 = vadd.f32 %v1239, %v1999
        %2001 = vmatmul.bf16.gmra.mxu0 %v1689
        %v2002 = vpop.f32.mrf.mxu0
        %v2003 = vadd.f32 %v1242, %v2002
        %v2004 = vpop.f32.mrf.mxu0
        %v2005 = vadd.f32 %v1244, %v2004
        %2006 = vmatmul.bf16.gmra.mxu0 %v1690
        %v2007 = vpop.f32.mrf.mxu0
        %v2008 = vadd.f32 %v1247, %v2007
        %v2009 = vpop.f32.mrf.mxu0
        %v2010 = vadd.f32 %v1249, %v2009
        %2011 = vmatmul.bf16.gmra.mxu0 %v1691
        %v2012 = vpop.f32.mrf.mxu0
        %v2013 = vadd.f32 %v1252, %v2012
        %v2014 = vpop.f32.mrf.mxu0
        %v2015 = vadd.f32 %v1254, %v2014
        %2016 = vmatmul.bf16.gmra.mxu0 %v1692
        %v2017 = vpop.f32.mrf.mxu0
        %v2018 = vadd.f32 %v1257, %v2017
        %v2019 = vpop.f32.mrf.mxu0
        %v2020 = vadd.f32 %v1259, %v2019
        %2021 = vmatmul.bf16.gmra.mxu0 %v1693
        %v2022 = vpop.f32.mrf.mxu0
        %v2023 = vadd.f32 %v1262, %v2022
        %v2024 = vpop.f32.mrf.mxu0
        %v2025 = vadd.f32 %v1264, %v2024
        %2026 = vmatmul.bf16.gmra.mxu0 %v1694
        %v2027 = vpop.f32.mrf.mxu0
        %v2028 = vadd.f32 %v1267, %v2027
        %v2029 = vpop.f32.mrf.mxu0
        %v2030 = vadd.f32 %v1269, %v2029
        %2031 = vmatmul.bf16.gmra.mxu0 %v1695
        %v2032 = vpop.f32.mrf.mxu0
        %v2033 = vadd.f32 %v1272, %v2032
        %v2034 = vpop.f32.mrf.mxu0
        %v2035 = vadd.f32 %v1274, %v2034
        %2036 = vmatmul.bf16.gmra.mxu0 %v1696
        %v2037 = vpop.f32.mrf.mxu0
        %v2038 = vadd.f32 %v1277, %v2037
        %v2039 = vpop.f32.mrf.mxu0
        %v2040 = vadd.f32 %v1279, %v2039
        %2041 = vmatmul.bf16.gmra.mxu0 %v1697
        %v2042 = vpop.f32.mrf.mxu0
        %v2043 = vadd.f32 %v1282, %v2042
        %v2044 = vpop.f32.mrf.mxu0
        %v2045 = vadd.f32 %v1284, %v2044
        %2046 = vmatmul.bf16.gmra.mxu0 %v1698
        %v2047 = vpop.f32.mrf.mxu0
        %v2048 = vadd.f32 %v1287, %v2047
        %v2049 = vpop.f32.mrf.mxu0
        %v2050 = vadd.f32 %v1289, %v2049
        %2051 = vmatmul.bf16.gmra.mxu0 %v1699
        %v2052 = vpop.f32.mrf.mxu0
        %v2053 = vadd.f32 %v1292, %v2052
        %v2054 = vpop.f32.mrf.mxu0
        %v2055 = vadd.f32 %v1294, %v2054
        %2056 = vmatmul.bf16.gmra.mxu0 %v1700
        %v2057 = vpop.f32.mrf.mxu0
        %v2058 = vadd.f32 %v1297, %v2057
        %v2059 = vpop.f32.mrf.mxu0
        %v2060 = vadd.f32 %v1299, %v2059
        %2061 = vmatmul.bf16.gmra.mxu0 %v1701
        %v2062 = vpop.f32.mrf.mxu0
        %v2063 = vadd.f32 %v1302, %v2062
        %v2064 = vpop.f32.mrf.mxu0
        %v2065 = vadd.f32 %v1304, %v2064
        %2066 = vmatmul.bf16.gmra.mxu0 %v1702
        %v2067 = vpop.f32.mrf.mxu0
        %v2068 = vadd.f32 %v1307, %v2067
        %v2069 = vpop.f32.mrf.mxu0
        %v2070 = vadd.f32 %v1309, %v2069
        %2071 = vmatmul.bf16.gmra.mxu0 %v1703
        %v2072 = vpop.f32.mrf.mxu0
        %v2073 = vadd.f32 %v1312, %v2072
        %v2074 = vpop.f32.mrf.mxu0
        %v2075 = vadd.f32 %v1314, %v2074
        %2076 = vmatmul.bf16.gmra.mxu0 %v1704
        %v2077 = vpop.f32.mrf.mxu0
        %v2078 = vadd.f32 %v1317, %v2077
        %v2079 = vpop.f32.mrf.mxu0
        %v2080 = vadd.f32 %v1319, %v2079
        %2081 = vmatmul.bf16.gmra.mxu0 %v1705
        %v2082 = vpop.f32.mrf.mxu0
        %v2083 = vadd.f32 %v1322, %v2082
        %v2084 = vpop.f32.mrf.mxu0
        %v2085 = vadd.f32 %v1324, %v2084
        %2086 = vmatmul.bf16.gmra.mxu0 %v1706
        %v2087 = vpop.f32.mrf.mxu0
        %v2088 = vadd.f32 %v1327, %v2087
        %v2089 = vpop.f32.mrf.mxu0
        %v2090 = vadd.f32 %v1329, %v2089
        %2091 = vmatmul.bf16.gmra.mxu0 %v1707
        %v2092 = vpop.f32.mrf.mxu0
        %v2093 = vadd.f32 %v1332, %v2092
        %v2094 = vpop.f32.mrf.mxu0
        %v2095 = vadd.f32 %v1334, %v2094
        %2096 = vmatmul.bf16.gmra.mxu0 %v1708
        %v2097 = vpop.f32.mrf.mxu0
        %v2098 = vadd.f32 %v1337, %v2097
        %v2099 = vpop.f32.mrf.mxu0
        %v2100 = vadd.f32 %v1339, %v2099
        %2101 = vmatmul.bf16.gmra.mxu0 %v1709
        %v2102 = vpop.f32.mrf.mxu0
        %v2103 = vadd.f32 %v1342, %v2102
        %v2104 = vpop.f32.mrf.mxu0
        %v2105 = vadd.f32 %v1344, %v2104
        %2106 = vmatmul.bf16.gmra.mxu0 %v1710
        %v2107 = vpop.f32.mrf.mxu0
        %v2108 = vadd.f32 %v1347, %v2107
        %v2109 = vpop.f32.mrf.mxu0
        %v2110 = vadd.f32 %v1349, %v2109
        %2111 = vmatmul.bf16.gmra.mxu0 %v1711
        %v2112 = vpop.f32.mrf.mxu0
        %v2113 = vadd.f32 %v1352, %v2112
        %v2114 = vpop.f32.mrf.mxu0
        %v2115 = vadd.f32 %v1354, %v2114
        %2116 = vmatmul.bf16.gmra.mxu0 %v1712
        %v2117 = vpop.f32.mrf.mxu0
        %v2118 = vadd.f32 %v1357, %v2117
        %v2119 = vpop.f32.mrf.mxu0
        %v2120 = vadd.f32 %v1359, %v2119
        %2121 = vmatmul.bf16.gmra.mxu0 %v1713
        %v2122 = vpop.f32.mrf.mxu0
        %v2123 = vadd.f32 %v1362, %v2122
        %v2124 = vpop.f32.mrf.mxu0
        %v2125 = vadd.f32 %v1364, %v2124
        %2126 = vmatmul.bf16.gmra.mxu0 %v1714
        %v2127 = vpop.f32.mrf.mxu0
        %v2128 = vadd.f32 %v1367, %v2127
        %v2129 = vpop.f32.mrf.mxu0
        %v2130 = vadd.f32 %v1369, %v2129
        %2131 = vmatmul.bf16.gmra.mxu0 %v1715
        %v2132 = vpop.f32.mrf.mxu0
        %v2133 = vadd.f32 %v1372, %v2132
        %v2134 = vpop.f32.mrf.mxu0
        %v2135 = vadd.f32 %v1374, %v2134
        %2136 = vmatmul.bf16.gmra.mxu0 %v1716
        %v2137 = vpop.f32.mrf.mxu0
        %v2138 = vadd.f32 %v1377, %v2137
        %v2139 = vpop.f32.mrf.mxu0
        %v2140 = vadd.f32 %v1379, %v2139
        %2141 = vmatmul.bf16.gmra.mxu0 %v1717
        %v2142 = vpop.f32.mrf.mxu0
        %v2143 = vadd.f32 %v1382, %v2142
        %v2144 = vpop.f32.mrf.mxu0
        %v2145 = vadd.f32 %v1384, %v2144
        %2146 = vmatmul.bf16.gmra.mxu0 %v1718
        %v2147 = vpop.f32.mrf.mxu0
        %v2148 = vadd.f32 %v1387, %v2147
        %v2149 = vpop.f32.mrf.mxu0
        %v2150 = vadd.f32 %v1389, %v2149
        %2151 = vmatmul.bf16.gmra.mxu0 %v1719
        %v2152 = vpop.f32.mrf.mxu0
        %v2153 = vadd.f32 %v1392, %v2152
        %v2154 = vpop.f32.mrf.mxu0
        %v2155 = vadd.f32 %v1394, %v2154
        %2156 = vmatmul.bf16.gmra.mxu0 %v1720
        %v2157 = vpop.f32.mrf.mxu0
        %v2158 = vadd.f32 %v1397, %v2157
        %v2159 = vpop.f32.mrf.mxu0
        %v2160 = vadd.f32 %v1399, %v2159
        %2161 = vdwg.mxu0
        %v2162 = vld [vmem:[%s292 + $0x10] sm:$0xf]
        %v2163 = vld [vmem:[%s292 + $0x14] sm:$0xf]
        %v2164 = vld [vmem:[%s292 + $0x18] sm:$0xf]
        %v2165 = vld [vmem:[%s292 + $0x1c] sm:$0xf]
        %v2166 = vld [vmem:[%s292 + $0x20] sm:$0xf]
        %v2167 = vld [vmem:[%s292 + $0x24] sm:$0xf]
        %v2168 = vld [vmem:[%s292 + $0x28] sm:$0xf]
        %v2169 = vld [vmem:[%s292 + $0x2c] sm:$0xf]
        %v2170 = vld [vmem:[%s292 + $0x30] sm:$0xf]
        %v2171 = vld [vmem:[%s292 + $0x34] sm:$0xf]
        %v2172 = vld [vmem:[%s292 + $0x38] sm:$0xf]
        %v2173 = vld [vmem:[%s292 + $0x3c] sm:$0xf]
        %v2174 = vld [vmem:[%s292 + $0x40] sm:$0xf]
        %v2175 = vld [vmem:[%s292 + $0x44] sm:$0xf]
        %v2176 = vld [vmem:[%s292 + $0x48] sm:$0xf]
        %v2177 = vld [vmem:[%s292 + $0x4c] sm:$0xf]
        %v2178 = vld [vmem:[%s292 + $0x50] sm:$0xf]
        %v2179 = vld [vmem:[%s292 + $0x54] sm:$0xf]
        %v2180 = vld [vmem:[%s292 + $0x58] sm:$0xf]
        %v2181 = vld [vmem:[%s292 + $0x5c] sm:$0xf]
        %v2182 = vld [vmem:[%s292 + $0x60] sm:$0xf]
        %v2183 = vld [vmem:[%s292 + $0x64] sm:$0xf]
        %v2184 = vld [vmem:[%s292 + $0x68] sm:$0xf]
        %v2185 = vld [vmem:[%s292 + $0x6c] sm:$0xf]
        %v2186 = vld [vmem:[%s292 + $0x70] sm:$0xf]
        %v2187 = vld [vmem:[%s292 + $0x74] sm:$0xf]
        %v2188 = vld [vmem:[%s292 + $0x78] sm:$0xf]
        %v2189 = vld [vmem:[%s292 + $0x7c] sm:$0xf]
        %v2190 = vld [vmem:[%s292 + $0x80] sm:$0xf]
        %v2191 = vld [vmem:[%s292 + $0x84] sm:$0xf]
        %v2192 = vld [vmem:[%s292 + $0x88] sm:$0xf]
        %v2193 = vld [vmem:[%s292 + $0x8c] sm:$0xf]
        %v2194 = vld [vmem:[%s292 + $0x90] sm:$0xf]
        %v2195 = vld [vmem:[%s292 + $0x94] sm:$0xf]
        %v2196 = vld [vmem:[%s292 + $0x98] sm:$0xf]
        %v2197 = vld [vmem:[%s292 + $0x9c] sm:$0xf]
        %v2198 = vld [vmem:[%s292 + $0xa0] sm:$0xf]
        %v2199 = vld [vmem:[%s292 + $0xa4] sm:$0xf]
        %v2200 = vld [vmem:[%s292 + $0xa8] sm:$0xf]
        %v2201 = vld [vmem:[%s292 + $0xac] sm:$0xf]
        %v2202 = vld [vmem:[%s292 + $0xb0] sm:$0xf]
        %v2203 = vld [vmem:[%s292 + $0xb4] sm:$0xf]
        %v2204 = vld [vmem:[%s292 + $0xb8] sm:$0xf]
        %v2205 = vld [vmem:[%s292 + $0xbc] sm:$0xf]
        %v2206 = vld [vmem:[%s292 + $0xc0] sm:$0xf]
        %v2207 = vld [vmem:[%s292 + $0xc4] sm:$0xf]
        %v2208 = vld [vmem:[%s292 + $0xc8] sm:$0xf]
        %v2209 = vld [vmem:[%s292 + $0xcc] sm:$0xf]
        %v2210 = vld [vmem:[%s292 + $0xd0] sm:$0xf]
        %v2211 = vld [vmem:[%s292 + $0xd4] sm:$0xf]
        %v2212 = vld [vmem:[%s292 + $0xd8] sm:$0xf]
        %v2213 = vld [vmem:[%s292 + $0xdc] sm:$0xf]
        %v2214 = vld [vmem:[%s292 + $0xe0] sm:$0xf]
        %v2215 = vld [vmem:[%s292 + $0xe4] sm:$0xf]
        %v2216 = vld [vmem:[%s292 + $0xe8] sm:$0xf]
        %v2217 = vld [vmem:[%s292 + $0xec] sm:$0xf]
        %v2218 = vld [vmem:[%s292 + $0xf0] sm:$0xf]
        %v2219 = vld [vmem:[%s292 + $0xf4] sm:$0xf]
        %v2220 = vld [vmem:[%s292 + $0xf8] sm:$0xf]
        %v2221 = vld [vmem:[%s292 + $0xfc] sm:$0xf]
        %v2222 = vld [vmem:[%s292 + $0x100] sm:$0xf]
        %v2223 = vld [vmem:[%s292 + $0x104] sm:$0xf]
        %v2224 = vld [vmem:[%s292 + $0x108] sm:$0xf]
        %v2225 = vld [vmem:[%s292 + $0x10c] sm:$0xf]
        %v2226 = vld [vmem:[%s292 + $0x110] sm:$0xf]
        %v2227 = vld [vmem:[%s292 + $0x114] sm:$0xf]
        %v2228 = vld [vmem:[%s292 + $0x118] sm:$0xf]
        %v2229 = vld [vmem:[%s292 + $0x11c] sm:$0xf]
        %v2230 = vld [vmem:[%s292 + $0x120] sm:$0xf]
        %v2231 = vld [vmem:[%s292 + $0x124] sm:$0xf]
        %v2232 = vld [vmem:[%s292 + $0x128] sm:$0xf]
        %v2233 = vld [vmem:[%s292 + $0x12c] sm:$0xf]
        %v2234 = vld [vmem:[%s292 + $0x130] sm:$0xf]
        %v2235 = vld [vmem:[%s292 + $0x134] sm:$0xf]
        %v2236 = vld [vmem:[%s292 + $0x138] sm:$0xf]
        %v2237 = vld [vmem:[%s292 + $0x13c] sm:$0xf]
        %v2238 = vld [vmem:[%s292 + $0x140] sm:$0xf]
        %v2239 = vld [vmem:[%s292 + $0x144] sm:$0xf]
        %v2240 = vld [vmem:[%s292 + $0x148] sm:$0xf]
        %v2241 = vld [vmem:[%s292 + $0x14c] sm:$0xf]
        %v2242 = vld [vmem:[%s292 + $0x150] sm:$0xf]
        %v2243 = vld [vmem:[%s292 + $0x154] sm:$0xf]
        %v2244 = vld [vmem:[%s292 + $0x158] sm:$0xf]
        %v2245 = vld [vmem:[%s292 + $0x15c] sm:$0xf]
        %v2246 = vld [vmem:[%s292 + $0x160] sm:$0xf]
        %v2247 = vld [vmem:[%s292 + $0x164] sm:$0xf]
        %v2248 = vld [vmem:[%s292 + $0x168] sm:$0xf]
        %v2249 = vld [vmem:[%s292 + $0x16c] sm:$0xf]
        %v2250 = vld [vmem:[%s292 + $0x170] sm:$0xf]
        %v2251 = vld [vmem:[%s292 + $0x174] sm:$0xf]
        %v2252 = vld [vmem:[%s292 + $0x178] sm:$0xf]
        %v2253 = vld [vmem:[%s292 + $0x17c] sm:$0xf]
        %v2254 = vld [vmem:[%s292 + $0x180] sm:$0xf]
        %v2255 = vld [vmem:[%s292 + $0x184] sm:$0xf]
        %v2256 = vld [vmem:[%s292 + $0x188] sm:$0xf]
        %v2257 = vld [vmem:[%s292 + $0x18c] sm:$0xf]
        %v2258 = vld [vmem:[%s292 + $0x190] sm:$0xf]
        %v2259 = vld [vmem:[%s292 + $0x194] sm:$0xf]
        %v2260 = vld [vmem:[%s292 + $0x198] sm:$0xf]
        %v2261 = vld [vmem:[%s292 + $0x19c] sm:$0xf]
        %v2262 = vld [vmem:[%s292 + $0x1a0] sm:$0xf]
        %v2263 = vld [vmem:[%s292 + $0x1a4] sm:$0xf]
        %v2264 = vld [vmem:[%s292 + $0x1a8] sm:$0xf]
        %v2265 = vld [vmem:[%s292 + $0x1ac] sm:$0xf]
        %v2266 = vld [vmem:[%s292 + $0x1b0] sm:$0xf]
        %v2267 = vld [vmem:[%s292 + $0x1b4] sm:$0xf]
        %v2268 = vld [vmem:[%s292 + $0x1b8] sm:$0xf]
        %v2269 = vld [vmem:[%s292 + $0x1bc] sm:$0xf]
        %v2270 = vld [vmem:[%s292 + $0x1c0] sm:$0xf]
        %v2271 = vld [vmem:[%s292 + $0x1c4] sm:$0xf]
        %v2272 = vld [vmem:[%s292 + $0x1c8] sm:$0xf]
        %v2273 = vld [vmem:[%s292 + $0x1cc] sm:$0xf]
        %v2274 = vld [vmem:[%s292 + $0x1d0] sm:$0xf]
        %v2275 = vld [vmem:[%s292 + $0x1d4] sm:$0xf]
        %v2276 = vld [vmem:[%s292 + $0x1d8] sm:$0xf]
        %v2277 = vld [vmem:[%s292 + $0x1dc] sm:$0xf]
        %v2278 = vld [vmem:[%s292 + $0x1e0] sm:$0xf]
        %v2279 = vld [vmem:[%s292 + $0x1e4] sm:$0xf]
        %v2280 = vld [vmem:[%s292 + $0x1e8] sm:$0xf]
        %v2281 = vld [vmem:[%s292 + $0x1ec] sm:$0xf]
        %v2282 = vld [vmem:[%s292 + $0x1f0] sm:$0xf]
        %v2283 = vld [vmem:[%s292 + $0x1f4] sm:$0xf]
        %v2284 = vld [vmem:[%s292 + $0x1f8] sm:$0xf]
        %v2285 = vld [vmem:[%s292 + $0x1fc] sm:$0xf]
        %v2286 = vld [vmem:[%s292 + $0x200] sm:$0xf]
        %v2287 = vld [vmem:[%s292 + $0x204] sm:$0xf]
        %v2288 = vld [vmem:[%s292 + $0x208] sm:$0xf]
        %v2289 = vld [vmem:[%s292 + $0x20c] sm:$0xf]
        %v2290 = vld [vmem:[#allocation7 + $0x80] sm:$0xf]
        %v2291 = vld [vmem:[#allocation7 + $0x84] sm:$0xf]
        %v2292 = vld [vmem:[#allocation7 + $0x88] sm:$0xf]
        %v2293 = vld [vmem:[#allocation7 + $0x8c] sm:$0xf]
        %v2294 = vld [vmem:[#allocation7 + $0x90] sm:$0xf]
        %v2295 = vld [vmem:[#allocation7 + $0x94] sm:$0xf]
        %v2296 = vld [vmem:[#allocation7 + $0x98] sm:$0xf]
        %v2297 = vld [vmem:[#allocation7 + $0x9c] sm:$0xf]
        %v2298 = vld [vmem:[#allocation7 + $0xa0] sm:$0xf]
        %v2299 = vld [vmem:[#allocation7 + $0xa4] sm:$0xf]
        %v2300 = vld [vmem:[#allocation7 + $0xa8] sm:$0xf]
        %v2301 = vld [vmem:[#allocation7 + $0xac] sm:$0xf]
        %v2302 = vld [vmem:[#allocation7 + $0xb0] sm:$0xf]
        %v2303 = vld [vmem:[#allocation7 + $0xb4] sm:$0xf]
        %v2304 = vld [vmem:[#allocation7 + $0xb8] sm:$0xf]
        %v2305 = vld [vmem:[#allocation7 + $0xbc] sm:$0xf]
        %v2434 = vunpack.c.l.b16 %v2162
        %v2435 = vunpack.c.l.b16 %v2163
        %v2436 = vunpack.c.l.b16 %v2164
        %v2437 = vunpack.c.l.b16 %v2165
        %v2438 = vunpack.c.l.b16 %v2166
        %v2439 = vunpack.c.l.b16 %v2167
        %v2440 = vunpack.c.l.b16 %v2168
        %v2441 = vunpack.c.l.b16 %v2169
        %v2442 = vunpack.c.l.b16 %v2170
        %v2443 = vunpack.c.l.b16 %v2171
        %v2444 = vunpack.c.l.b16 %v2172
        %v2445 = vunpack.c.l.b16 %v2173
        %v2446 = vunpack.c.l.b16 %v2174
        %v2447 = vunpack.c.l.b16 %v2175
        %v2448 = vunpack.c.l.b16 %v2176
        %v2449 = vunpack.c.l.b16 %v2177
        %v2450 = vunpack.c.l.b16 %v2178
        %v2451 = vunpack.c.l.b16 %v2179
        %v2452 = vunpack.c.l.b16 %v2180
        %v2453 = vunpack.c.l.b16 %v2181
        %v2454 = vunpack.c.l.b16 %v2182
        %v2455 = vunpack.c.l.b16 %v2183
        %v2456 = vunpack.c.l.b16 %v2184
        %v2457 = vunpack.c.l.b16 %v2185
        %v2458 = vunpack.c.l.b16 %v2186
        %v2459 = vunpack.c.l.b16 %v2187
        %v2460 = vunpack.c.l.b16 %v2188
        %v2461 = vunpack.c.l.b16 %v2189
        %v2462 = vunpack.c.l.b16 %v2190
        %v2463 = vunpack.c.l.b16 %v2191
        %v2464 = vunpack.c.l.b16 %v2192
        %v2465 = vunpack.c.l.b16 %v2193
        %v2466 = vunpack.c.l.b16 %v2194
        %v2467 = vunpack.c.l.b16 %v2195
        %v2468 = vunpack.c.l.b16 %v2196
        %v2469 = vunpack.c.l.b16 %v2197
        %v2470 = vunpack.c.l.b16 %v2198
        %v2471 = vunpack.c.l.b16 %v2199
        %v2472 = vunpack.c.l.b16 %v2200
        %v2473 = vunpack.c.l.b16 %v2201
        %v2474 = vunpack.c.l.b16 %v2202
        %v2475 = vunpack.c.l.b16 %v2203
        %v2476 = vunpack.c.l.b16 %v2204
        %v2477 = vunpack.c.l.b16 %v2205
        %v2478 = vunpack.c.l.b16 %v2206
        %v2479 = vunpack.c.l.b16 %v2207
        %v2480 = vunpack.c.l.b16 %v2208
        %v2481 = vunpack.c.l.b16 %v2209
        %v2482 = vunpack.c.l.b16 %v2210
        %v2483 = vunpack.c.l.b16 %v2211
        %v2484 = vunpack.c.l.b16 %v2212
        %v2485 = vunpack.c.l.b16 %v2213
        %v2486 = vunpack.c.l.b16 %v2214
        %v2487 = vunpack.c.l.b16 %v2215
        %v2488 = vunpack.c.l.b16 %v2216
        %v2489 = vunpack.c.l.b16 %v2217
        %v2490 = vunpack.c.l.b16 %v2218
        %v2491 = vunpack.c.l.b16 %v2219
        %v2492 = vunpack.c.l.b16 %v2220
        %v2493 = vunpack.c.l.b16 %v2221
        %v2494 = vunpack.c.l.b16 %v2222
        %v2495 = vunpack.c.l.b16 %v2223
        %v2496 = vunpack.c.l.b16 %v2224
        %v2497 = vunpack.c.l.b16 %v2225
        %v2498 = vunpack.c.l.b16 %v2226
        %v2499 = vunpack.c.l.b16 %v2227
        %v2500 = vunpack.c.l.b16 %v2228
        %v2501 = vunpack.c.l.b16 %v2229
        %v2502 = vunpack.c.l.b16 %v2230
        %v2503 = vunpack.c.l.b16 %v2231
        %v2504 = vunpack.c.l.b16 %v2232
        %v2505 = vunpack.c.l.b16 %v2233
        %v2506 = vunpack.c.l.b16 %v2234
        %v2507 = vunpack.c.l.b16 %v2235
        %v2508 = vunpack.c.l.b16 %v2236
        %v2509 = vunpack.c.l.b16 %v2237
        %v2510 = vunpack.c.l.b16 %v2238
        %v2511 = vunpack.c.l.b16 %v2239
        %v2512 = vunpack.c.l.b16 %v2240
        %v2513 = vunpack.c.l.b16 %v2241
        %v2514 = vunpack.c.l.b16 %v2242
        %v2515 = vunpack.c.l.b16 %v2243
        %v2516 = vunpack.c.l.b16 %v2244
        %v2517 = vunpack.c.l.b16 %v2245
        %v2518 = vunpack.c.l.b16 %v2246
        %v2519 = vunpack.c.l.b16 %v2247
        %v2520 = vunpack.c.l.b16 %v2248
        %v2521 = vunpack.c.l.b16 %v2249
        %v2522 = vunpack.c.l.b16 %v2250
        %v2523 = vunpack.c.l.b16 %v2251
        %v2524 = vunpack.c.l.b16 %v2252
        %v2525 = vunpack.c.l.b16 %v2253
        %v2526 = vunpack.c.l.b16 %v2254
        %v2527 = vunpack.c.l.b16 %v2255
        %v2528 = vunpack.c.l.b16 %v2256
        %v2529 = vunpack.c.l.b16 %v2257
        %v2530 = vunpack.c.l.b16 %v2258
        %v2531 = vunpack.c.l.b16 %v2259
        %v2532 = vunpack.c.l.b16 %v2260
        %v2533 = vunpack.c.l.b16 %v2261
        %v2534 = vunpack.c.l.b16 %v2262
        %v2535 = vunpack.c.l.b16 %v2263
        %v2536 = vunpack.c.l.b16 %v2264
        %v2537 = vunpack.c.l.b16 %v2265
        %v2538 = vunpack.c.l.b16 %v2266
        %v2539 = vunpack.c.l.b16 %v2267
        %v2540 = vunpack.c.l.b16 %v2268
        %v2541 = vunpack.c.l.b16 %v2269
        %v2542 = vunpack.c.l.b16 %v2270
        %v2543 = vunpack.c.l.b16 %v2271
        %v2544 = vunpack.c.l.b16 %v2272
        %v2545 = vunpack.c.l.b16 %v2273
        %v2546 = vunpack.c.l.b16 %v2274
        %v2547 = vunpack.c.l.b16 %v2275
        %v2548 = vunpack.c.l.b16 %v2276
        %v2549 = vunpack.c.l.b16 %v2277
        %v2550 = vunpack.c.l.b16 %v2278
        %v2551 = vunpack.c.l.b16 %v2279
        %v2552 = vunpack.c.l.b16 %v2280
        %v2553 = vunpack.c.l.b16 %v2281
        %v2554 = vunpack.c.l.b16 %v2282
        %v2555 = vunpack.c.l.b16 %v2283
        %v2556 = vunpack.c.l.b16 %v2284
        %v2557 = vunpack.c.l.b16 %v2285
        %v2558 = vunpack.c.l.b16 %v2286
        %v2559 = vunpack.c.l.b16 %v2287
        %v2560 = vunpack.c.l.b16 %v2288
        %v2561 = vunpack.c.l.b16 %v2289
        %v2562 = vpack.c.b16 %v2435, %v2434
        %v2563 = vpack.c.b16 %v2437, %v2436
        %v2564 = vpack.c.b16 %v2439, %v2438
        %v2565 = vpack.c.b16 %v2441, %v2440
        %v2566 = vpack.c.b16 %v2443, %v2442
        %v2567 = vpack.c.b16 %v2445, %v2444
        %v2568 = vpack.c.b16 %v2447, %v2446
        %v2569 = vpack.c.b16 %v2449, %v2448
        %v2570 = vpack.c.b16 %v2451, %v2450
        %v2571 = vpack.c.b16 %v2453, %v2452
        %v2572 = vpack.c.b16 %v2455, %v2454
        %v2573 = vpack.c.b16 %v2457, %v2456
        %v2574 = vpack.c.b16 %v2459, %v2458
        %v2575 = vpack.c.b16 %v2461, %v2460
        %v2576 = vpack.c.b16 %v2463, %v2462
        %v2577 = vpack.c.b16 %v2465, %v2464
        %v2578 = vpack.c.b16 %v2467, %v2466
        %v2579 = vpack.c.b16 %v2469, %v2468
        %v2580 = vpack.c.b16 %v2471, %v2470
        %v2581 = vpack.c.b16 %v2473, %v2472
        %v2582 = vpack.c.b16 %v2475, %v2474
        %v2583 = vpack.c.b16 %v2477, %v2476
        %v2584 = vpack.c.b16 %v2479, %v2478
        %v2585 = vpack.c.b16 %v2481, %v2480
        %v2586 = vpack.c.b16 %v2483, %v2482
        %v2587 = vpack.c.b16 %v2485, %v2484
        %v2588 = vpack.c.b16 %v2487, %v2486
        %v2589 = vpack.c.b16 %v2489, %v2488
        %v2590 = vpack.c.b16 %v2491, %v2490
        %v2591 = vpack.c.b16 %v2493, %v2492
        %v2592 = vpack.c.b16 %v2495, %v2494
        %v2593 = vpack.c.b16 %v2497, %v2496
        %v2594 = vpack.c.b16 %v2499, %v2498
        %v2595 = vpack.c.b16 %v2501, %v2500
        %v2596 = vpack.c.b16 %v2503, %v2502
        %v2597 = vpack.c.b16 %v2505, %v2504
        %v2598 = vpack.c.b16 %v2507, %v2506
        %v2599 = vpack.c.b16 %v2509, %v2508
        %v2600 = vpack.c.b16 %v2511, %v2510
        %v2601 = vpack.c.b16 %v2513, %v2512
        %v2602 = vpack.c.b16 %v2515, %v2514
        %v2603 = vpack.c.b16 %v2517, %v2516
        %v2604 = vpack.c.b16 %v2519, %v2518
        %v2605 = vpack.c.b16 %v2521, %v2520
        %v2606 = vpack.c.b16 %v2523, %v2522
        %v2607 = vpack.c.b16 %v2525, %v2524
        %v2608 = vpack.c.b16 %v2527, %v2526
        %v2609 = vpack.c.b16 %v2529, %v2528
        %v2610 = vpack.c.b16 %v2531, %v2530
        %v2611 = vpack.c.b16 %v2533, %v2532
        %v2612 = vpack.c.b16 %v2535, %v2534
        %v2613 = vpack.c.b16 %v2537, %v2536
        %v2614 = vpack.c.b16 %v2539, %v2538
        %v2615 = vpack.c.b16 %v2541, %v2540
        %v2616 = vpack.c.b16 %v2543, %v2542
        %v2617 = vpack.c.b16 %v2545, %v2544
        %v2618 = vpack.c.b16 %v2547, %v2546
        %v2619 = vpack.c.b16 %v2549, %v2548
        %v2620 = vpack.c.b16 %v2551, %v2550
        %v2621 = vpack.c.b16 %v2553, %v2552
        %v2622 = vpack.c.b16 %v2555, %v2554
        %v2623 = vpack.c.b16 %v2557, %v2556
        %v2624 = vpack.c.b16 %v2559, %v2558
        %v2625 = vpack.c.b16 %v2561, %v2560
        %v2706 = vunpack.c.l.b16 %v2290
        %v2707 = vunpack.c.l.b16 %v2291
        %v2708 = vunpack.c.l.b16 %v2292
        %v2709 = vunpack.c.l.b16 %v2293
        %v2710 = vunpack.c.l.b16 %v2294
        %v2711 = vunpack.c.l.b16 %v2295
        %v2712 = vunpack.c.l.b16 %v2296
        %v2713 = vunpack.c.l.b16 %v2297
        %v2714 = vunpack.c.l.b16 %v2298
        %v2715 = vunpack.c.l.b16 %v2299
        %v2716 = vunpack.c.l.b16 %v2300
        %v2717 = vunpack.c.l.b16 %v2301
        %v2718 = vunpack.c.l.b16 %v2302
        %v2719 = vunpack.c.l.b16 %v2303
        %v2720 = vunpack.c.l.b16 %v2304
        %v2721 = vunpack.c.l.b16 %v2305
        %v2722 = vpack.c.b16 %v2707, %v2706
        %v2723 = vpack.c.b16 %v2709, %v2708
        %v2724 = vpack.c.b16 %v2711, %v2710
        %v2725 = vpack.c.b16 %v2713, %v2712
        %v2726 = vpack.c.b16 %v2715, %v2714
        %v2727 = vpack.c.b16 %v2717, %v2716
        %v2728 = vpack.c.b16 %v2719, %v2718
        %v2729 = vpack.c.b16 %v2721, %v2720
        %2738 = vmatpush.bf16.msra.mxu0 %v2729
        %2739 = vmatpush.bf16.msra.mxu0 %v2728
        %2740 = vmatpush.bf16.msra.mxu0 %v2727
        %2741 = vmatpush.bf16.msra.mxu0 %v2726
        %2742 = vmatpush.bf16.msra.mxu0 %v2725
        %2743 = vmatpush.bf16.msra.mxu0 %v2724
        %2744 = vmatpush.bf16.msra.mxu0 %v2723
        %2745 = vmatpush.bf16.msra.mxu0 %v2722
        %2746 = vmatmul.bf16.gmra.mxu0 %v2562
        %v2747 = vpop.f32.mrf.mxu0
        %v2748 = vadd.f32 0.0, %v2747
        %v2749 = vpop.f32.mrf.mxu0
        %v2750 = vadd.f32 0.0, %v2749
        %2751 = vmatmul.bf16.gmra.mxu0 %v2563
        %v2752 = vpop.f32.mrf.mxu0
        %v2753 = vadd.f32 0.0, %v2752
        %v2754 = vpop.f32.mrf.mxu0
        %v2755 = vadd.f32 0.0, %v2754
        %2756 = vmatmul.bf16.gmra.mxu0 %v2564
        %v2757 = vpop.f32.mrf.mxu0
        %v2758 = vadd.f32 0.0, %v2757
        %v2759 = vpop.f32.mrf.mxu0
        %v2760 = vadd.f32 0.0, %v2759
        %2761 = vmatmul.bf16.gmra.mxu0 %v2565
        %v2762 = vpop.f32.mrf.mxu0
        %v2763 = vadd.f32 0.0, %v2762
        %v2764 = vpop.f32.mrf.mxu0
        %v2765 = vadd.f32 0.0, %v2764
        %2766 = vmatmul.bf16.gmra.mxu0 %v2566
        %v2767 = vpop.f32.mrf.mxu0
        %v2768 = vadd.f32 0.0, %v2767
        %v2769 = vpop.f32.mrf.mxu0
        %v2770 = vadd.f32 0.0, %v2769
        %2771 = vmatmul.bf16.gmra.mxu0 %v2567
        %v2772 = vpop.f32.mrf.mxu0
        %v2773 = vadd.f32 0.0, %v2772
        %v2774 = vpop.f32.mrf.mxu0
        %v2775 = vadd.f32 0.0, %v2774
        %2776 = vmatmul.bf16.gmra.mxu0 %v2568
        %v2777 = vpop.f32.mrf.mxu0
        %v2778 = vadd.f32 0.0, %v2777
        %v2779 = vpop.f32.mrf.mxu0
        %v2780 = vadd.f32 0.0, %v2779
        %2781 = vmatmul.bf16.gmra.mxu0 %v2569
        %v2782 = vpop.f32.mrf.mxu0
        %v2783 = vadd.f32 0.0, %v2782
        %v2784 = vpop.f32.mrf.mxu0
        %v2785 = vadd.f32 0.0, %v2784
        %2786 = vmatmul.bf16.gmra.mxu0 %v2570
        %v2787 = vpop.f32.mrf.mxu0
        %v2788 = vadd.f32 0.0, %v2787
        %v2789 = vpop.f32.mrf.mxu0
        %v2790 = vadd.f32 0.0, %v2789
        %2791 = vmatmul.bf16.gmra.mxu0 %v2571
        %v2792 = vpop.f32.mrf.mxu0
        %v2793 = vadd.f32 0.0, %v2792
        %v2794 = vpop.f32.mrf.mxu0
        %v2795 = vadd.f32 0.0, %v2794
        %2796 = vmatmul.bf16.gmra.mxu0 %v2572
        %v2797 = vpop.f32.mrf.mxu0
        %v2798 = vadd.f32 0.0, %v2797
        %v2799 = vpop.f32.mrf.mxu0
        %v2800 = vadd.f32 0.0, %v2799
        %2801 = vmatmul.bf16.gmra.mxu0 %v2573
        %v2802 = vpop.f32.mrf.mxu0
        %v2803 = vadd.f32 0.0, %v2802
        %v2804 = vpop.f32.mrf.mxu0
        %v2805 = vadd.f32 0.0, %v2804
        %2806 = vmatmul.bf16.gmra.mxu0 %v2574
        %v2807 = vpop.f32.mrf.mxu0
        %v2808 = vadd.f32 0.0, %v2807
        %v2809 = vpop.f32.mrf.mxu0
        %v2810 = vadd.f32 0.0, %v2809
        %2811 = vmatmul.bf16.gmra.mxu0 %v2575
        %v2812 = vpop.f32.mrf.mxu0
        %v2813 = vadd.f32 0.0, %v2812
        %v2814 = vpop.f32.mrf.mxu0
        %v2815 = vadd.f32 0.0, %v2814
        %2816 = vmatmul.bf16.gmra.mxu0 %v2576
        %v2817 = vpop.f32.mrf.mxu0
        %v2818 = vadd.f32 0.0, %v2817
        %v2819 = vpop.f32.mrf.mxu0
        %v2820 = vadd.f32 0.0, %v2819
        %2821 = vmatmul.bf16.gmra.mxu0 %v2577
        %v2822 = vpop.f32.mrf.mxu0
        %v2823 = vadd.f32 0.0, %v2822
        %v2824 = vpop.f32.mrf.mxu0
        %v2825 = vadd.f32 0.0, %v2824
        %2826 = vmatmul.bf16.gmra.mxu0 %v2578
        %v2827 = vpop.f32.mrf.mxu0
        %v2828 = vadd.f32 0.0, %v2827
        %v2829 = vpop.f32.mrf.mxu0
        %v2830 = vadd.f32 0.0, %v2829
        %2831 = vmatmul.bf16.gmra.mxu0 %v2579
        %v2832 = vpop.f32.mrf.mxu0
        %v2833 = vadd.f32 0.0, %v2832
        %v2834 = vpop.f32.mrf.mxu0
        %v2835 = vadd.f32 0.0, %v2834
        %2836 = vmatmul.bf16.gmra.mxu0 %v2580
        %v2837 = vpop.f32.mrf.mxu0
        %v2838 = vadd.f32 0.0, %v2837
        %v2839 = vpop.f32.mrf.mxu0
        %v2840 = vadd.f32 0.0, %v2839
        %2841 = vmatmul.bf16.gmra.mxu0 %v2581
        %v2842 = vpop.f32.mrf.mxu0
        %v2843 = vadd.f32 0.0, %v2842
        %v2844 = vpop.f32.mrf.mxu0
        %v2845 = vadd.f32 0.0, %v2844
        %2846 = vmatmul.bf16.gmra.mxu0 %v2582
        %v2847 = vpop.f32.mrf.mxu0
        %v2848 = vadd.f32 0.0, %v2847
        %v2849 = vpop.f32.mrf.mxu0
        %v2850 = vadd.f32 0.0, %v2849
        %2851 = vmatmul.bf16.gmra.mxu0 %v2583
        %v2852 = vpop.f32.mrf.mxu0
        %v2853 = vadd.f32 0.0, %v2852
        %v2854 = vpop.f32.mrf.mxu0
        %v2855 = vadd.f32 0.0, %v2854
        %2856 = vmatmul.bf16.gmra.mxu0 %v2584
        %v2857 = vpop.f32.mrf.mxu0
        %v2858 = vadd.f32 0.0, %v2857
        %v2859 = vpop.f32.mrf.mxu0
        %v2860 = vadd.f32 0.0, %v2859
        %2861 = vmatmul.bf16.gmra.mxu0 %v2585
        %v2862 = vpop.f32.mrf.mxu0
        %v2863 = vadd.f32 0.0, %v2862
        %v2864 = vpop.f32.mrf.mxu0
        %v2865 = vadd.f32 0.0, %v2864
        %2866 = vmatmul.bf16.gmra.mxu0 %v2586
        %v2867 = vpop.f32.mrf.mxu0
        %v2868 = vadd.f32 0.0, %v2867
        %v2869 = vpop.f32.mrf.mxu0
        %v2870 = vadd.f32 0.0, %v2869
        %2871 = vmatmul.bf16.gmra.mxu0 %v2587
        %v2872 = vpop.f32.mrf.mxu0
        %v2873 = vadd.f32 0.0, %v2872
        %v2874 = vpop.f32.mrf.mxu0
        %v2875 = vadd.f32 0.0, %v2874
        %2876 = vmatmul.bf16.gmra.mxu0 %v2588
        %v2877 = vpop.f32.mrf.mxu0
        %v2878 = vadd.f32 0.0, %v2877
        %v2879 = vpop.f32.mrf.mxu0
        %v2880 = vadd.f32 0.0, %v2879
        %2881 = vmatmul.bf16.gmra.mxu0 %v2589
        %v2882 = vpop.f32.mrf.mxu0
        %v2883 = vadd.f32 0.0, %v2882
        %v2884 = vpop.f32.mrf.mxu0
        %v2885 = vadd.f32 0.0, %v2884
        %2886 = vmatmul.bf16.gmra.mxu0 %v2590
        %v2887 = vpop.f32.mrf.mxu0
        %v2888 = vadd.f32 0.0, %v2887
        %v2889 = vpop.f32.mrf.mxu0
        %v2890 = vadd.f32 0.0, %v2889
        %2891 = vmatmul.bf16.gmra.mxu0 %v2591
        %v2892 = vpop.f32.mrf.mxu0
        %v2893 = vadd.f32 0.0, %v2892
        %v2894 = vpop.f32.mrf.mxu0
        %v2895 = vadd.f32 0.0, %v2894
        %2896 = vmatmul.bf16.gmra.mxu0 %v2592
        %v2897 = vpop.f32.mrf.mxu0
        %v2898 = vadd.f32 0.0, %v2897
        %v2899 = vpop.f32.mrf.mxu0
        %v2900 = vadd.f32 0.0, %v2899
        %2901 = vmatmul.bf16.gmra.mxu0 %v2593
        %v2902 = vpop.f32.mrf.mxu0
        %v2903 = vadd.f32 0.0, %v2902
        %v2904 = vpop.f32.mrf.mxu0
        %v2905 = vadd.f32 0.0, %v2904
        %2906 = vmatmul.bf16.gmra.mxu0 %v2594
        %v2907 = vpop.f32.mrf.mxu0
        %v2908 = vadd.f32 0.0, %v2907
        %v2909 = vpop.f32.mrf.mxu0
        %v2910 = vadd.f32 0.0, %v2909
        %2911 = vmatmul.bf16.gmra.mxu0 %v2595
        %v2912 = vpop.f32.mrf.mxu0
        %v2913 = vadd.f32 0.0, %v2912
        %v2914 = vpop.f32.mrf.mxu0
        %v2915 = vadd.f32 0.0, %v2914
        %2916 = vmatmul.bf16.gmra.mxu0 %v2596
        %v2917 = vpop.f32.mrf.mxu0
        %v2918 = vadd.f32 0.0, %v2917
        %v2919 = vpop.f32.mrf.mxu0
        %v2920 = vadd.f32 0.0, %v2919
        %2921 = vmatmul.bf16.gmra.mxu0 %v2597
        %v2922 = vpop.f32.mrf.mxu0
        %v2923 = vadd.f32 0.0, %v2922
        %v2924 = vpop.f32.mrf.mxu0
        %v2925 = vadd.f32 0.0, %v2924
        %2926 = vmatmul.bf16.gmra.mxu0 %v2598
        %v2927 = vpop.f32.mrf.mxu0
        %v2928 = vadd.f32 0.0, %v2927
        %v2929 = vpop.f32.mrf.mxu0
        %v2930 = vadd.f32 0.0, %v2929
        %2931 = vmatmul.bf16.gmra.mxu0 %v2599
        %v2932 = vpop.f32.mrf.mxu0
        %v2933 = vadd.f32 0.0, %v2932
        %v2934 = vpop.f32.mrf.mxu0
        %v2935 = vadd.f32 0.0, %v2934
        %2936 = vmatmul.bf16.gmra.mxu0 %v2600
        %v2937 = vpop.f32.mrf.mxu0
        %v2938 = vadd.f32 0.0, %v2937
        %v2939 = vpop.f32.mrf.mxu0
        %v2940 = vadd.f32 0.0, %v2939
        %2941 = vmatmul.bf16.gmra.mxu0 %v2601
        %v2942 = vpop.f32.mrf.mxu0
        %v2943 = vadd.f32 0.0, %v2942
        %v2944 = vpop.f32.mrf.mxu0
        %v2945 = vadd.f32 0.0, %v2944
        %2946 = vmatmul.bf16.gmra.mxu0 %v2602
        %v2947 = vpop.f32.mrf.mxu0
        %v2948 = vadd.f32 0.0, %v2947
        %v2949 = vpop.f32.mrf.mxu0
        %v2950 = vadd.f32 0.0, %v2949
        %2951 = vmatmul.bf16.gmra.mxu0 %v2603
        %v2952 = vpop.f32.mrf.mxu0
        %v2953 = vadd.f32 0.0, %v2952
        %v2954 = vpop.f32.mrf.mxu0
        %v2955 = vadd.f32 0.0, %v2954
        %2956 = vmatmul.bf16.gmra.mxu0 %v2604
        %v2957 = vpop.f32.mrf.mxu0
        %v2958 = vadd.f32 0.0, %v2957
        %v2959 = vpop.f32.mrf.mxu0
        %v2960 = vadd.f32 0.0, %v2959
        %2961 = vmatmul.bf16.gmra.mxu0 %v2605
        %v2962 = vpop.f32.mrf.mxu0
        %v2963 = vadd.f32 0.0, %v2962
        %v2964 = vpop.f32.mrf.mxu0
        %v2965 = vadd.f32 0.0, %v2964
        %2966 = vmatmul.bf16.gmra.mxu0 %v2606
        %v2967 = vpop.f32.mrf.mxu0
        %v2968 = vadd.f32 0.0, %v2967
        %v2969 = vpop.f32.mrf.mxu0
        %v2970 = vadd.f32 0.0, %v2969
        %2971 = vmatmul.bf16.gmra.mxu0 %v2607
        %v2972 = vpop.f32.mrf.mxu0
        %v2973 = vadd.f32 0.0, %v2972
        %v2974 = vpop.f32.mrf.mxu0
        %v2975 = vadd.f32 0.0, %v2974
        %2976 = vmatmul.bf16.gmra.mxu0 %v2608
        %v2977 = vpop.f32.mrf.mxu0
        %v2978 = vadd.f32 0.0, %v2977
        %v2979 = vpop.f32.mrf.mxu0
        %v2980 = vadd.f32 0.0, %v2979
        %2981 = vmatmul.bf16.gmra.mxu0 %v2609
        %v2982 = vpop.f32.mrf.mxu0
        %v2983 = vadd.f32 0.0, %v2982
        %v2984 = vpop.f32.mrf.mxu0
        %v2985 = vadd.f32 0.0, %v2984
        %2986 = vmatmul.bf16.gmra.mxu0 %v2610
        %v2987 = vpop.f32.mrf.mxu0
        %v2988 = vadd.f32 0.0, %v2987
        %v2989 = vpop.f32.mrf.mxu0
        %v2990 = vadd.f32 0.0, %v2989
        %2991 = vmatmul.bf16.gmra.mxu0 %v2611
        %v2992 = vpop.f32.mrf.mxu0
        %v2993 = vadd.f32 0.0, %v2992
        %v2994 = vpop.f32.mrf.mxu0
        %v2995 = vadd.f32 0.0, %v2994
        %2996 = vmatmul.bf16.gmra.mxu0 %v2612
        %v2997 = vpop.f32.mrf.mxu0
        %v2998 = vadd.f32 0.0, %v2997
        %v2999 = vpop.f32.mrf.mxu0
        %v3000 = vadd.f32 0.0, %v2999
        %3001 = vmatmul.bf16.gmra.mxu0 %v2613
        %v3002 = vpop.f32.mrf.mxu0
        %v3003 = vadd.f32 0.0, %v3002
        %v3004 = vpop.f32.mrf.mxu0
        %v3005 = vadd.f32 0.0, %v3004
        %3006 = vmatmul.bf16.gmra.mxu0 %v2614
        %v3007 = vpop.f32.mrf.mxu0
        %v3008 = vadd.f32 0.0, %v3007
        %v3009 = vpop.f32.mrf.mxu0
        %v3010 = vadd.f32 0.0, %v3009
        %3011 = vmatmul.bf16.gmra.mxu0 %v2615
        %v3012 = vpop.f32.mrf.mxu0
        %v3013 = vadd.f32 0.0, %v3012
        %v3014 = vpop.f32.mrf.mxu0
        %v3015 = vadd.f32 0.0, %v3014
        %3016 = vmatmul.bf16.gmra.mxu0 %v2616
        %v3017 = vpop.f32.mrf.mxu0
        %v3018 = vadd.f32 0.0, %v3017
        %v3019 = vpop.f32.mrf.mxu0
        %v3020 = vadd.f32 0.0, %v3019
        %3021 = vmatmul.bf16.gmra.mxu0 %v2617
        %v3022 = vpop.f32.mrf.mxu0
        %v3023 = vadd.f32 0.0, %v3022
        %v3024 = vpop.f32.mrf.mxu0
        %v3025 = vadd.f32 0.0, %v3024
        %3026 = vmatmul.bf16.gmra.mxu0 %v2618
        %v3027 = vpop.f32.mrf.mxu0
        %v3028 = vadd.f32 0.0, %v3027
        %v3029 = vpop.f32.mrf.mxu0
        %v3030 = vadd.f32 0.0, %v3029
        %3031 = vmatmul.bf16.gmra.mxu0 %v2619
        %v3032 = vpop.f32.mrf.mxu0
        %v3033 = vadd.f32 0.0, %v3032
        %v3034 = vpop.f32.mrf.mxu0
        %v3035 = vadd.f32 0.0, %v3034
        %3036 = vmatmul.bf16.gmra.mxu0 %v2620
        %v3037 = vpop.f32.mrf.mxu0
        %v3038 = vadd.f32 0.0, %v3037
        %v3039 = vpop.f32.mrf.mxu0
        %v3040 = vadd.f32 0.0, %v3039
        %3041 = vmatmul.bf16.gmra.mxu0 %v2621
        %v3042 = vpop.f32.mrf.mxu0
        %v3043 = vadd.f32 0.0, %v3042
        %v3044 = vpop.f32.mrf.mxu0
        %v3045 = vadd.f32 0.0, %v3044
        %3046 = vmatmul.bf16.gmra.mxu0 %v2622
        %v3047 = vpop.f32.mrf.mxu0
        %v3048 = vadd.f32 0.0, %v3047
        %v3049 = vpop.f32.mrf.mxu0
        %v3050 = vadd.f32 0.0, %v3049
        %3051 = vmatmul.bf16.gmra.mxu0 %v2623
        %v3052 = vpop.f32.mrf.mxu0
        %v3053 = vadd.f32 0.0, %v3052
        %v3054 = vpop.f32.mrf.mxu0
        %v3055 = vadd.f32 0.0, %v3054
        %3056 = vmatmul.bf16.gmra.mxu0 %v2624
        %v3057 = vpop.f32.mrf.mxu0
        %v3058 = vadd.f32 0.0, %v3057
        %v3059 = vpop.f32.mrf.mxu0
        %v3060 = vadd.f32 0.0, %v3059
        %3061 = vmatmul.bf16.gmra.mxu0 %v2625
        %v3062 = vpop.f32.mrf.mxu0
        %v3063 = vadd.f32 0.0, %v3062
        %v3064 = vpop.f32.mrf.mxu0
        %v3065 = vadd.f32 0.0, %v3064
        %3066 = vdwg.mxu0
        %v3067 = vadd.f32 %v1843, %v2748
        %v3068 = vadd.f32 %v1845, %v2750
        %v3069 = vadd.f32 %v1848, %v2753
        %v3070 = vadd.f32 %v1850, %v2755
        %v3071 = vadd.f32 %v1853, %v2758
        %v3072 = vadd.f32 %v1855, %v2760
        %v3073 = vadd.f32 %v1858, %v2763
        %v3074 = vadd.f32 %v1860, %v2765
        %v3075 = vadd.f32 %v1863, %v2768
        %v3076 = vadd.f32 %v1865, %v2770
        %v3077 = vadd.f32 %v1868, %v2773
        %v3078 = vadd.f32 %v1870, %v2775
        %v3079 = vadd.f32 %v1873, %v2778
        %v3080 = vadd.f32 %v1875, %v2780
        %v3081 = vadd.f32 %v1878, %v2783
        %v3082 = vadd.f32 %v1880, %v2785
        %v3083 = vadd.f32 %v1883, %v2788
        %v3084 = vadd.f32 %v1885, %v2790
        %v3085 = vadd.f32 %v1888, %v2793
        %v3086 = vadd.f32 %v1890, %v2795
        %v3087 = vadd.f32 %v1893, %v2798
        %v3088 = vadd.f32 %v1895, %v2800
        %v3089 = vadd.f32 %v1898, %v2803
        %v3090 = vadd.f32 %v1900, %v2805
        %v3091 = vadd.f32 %v1903, %v2808
        %v3092 = vadd.f32 %v1905, %v2810
        %v3093 = vadd.f32 %v1908, %v2813
        %v3094 = vadd.f32 %v1910, %v2815
        %v3095 = vadd.f32 %v1913, %v2818
        %v3096 = vadd.f32 %v1915, %v2820
        %v3097 = vadd.f32 %v1918, %v2823
        %v3098 = vadd.f32 %v1920, %v2825
        %v3099 = vadd.f32 %v1923, %v2828
        %v3100 = vadd.f32 %v1925, %v2830
        %v3101 = vadd.f32 %v1928, %v2833
        %v3102 = vadd.f32 %v1930, %v2835
        %v3103 = vadd.f32 %v1933, %v2838
        %v3104 = vadd.f32 %v1935, %v2840
        %v3105 = vadd.f32 %v1938, %v2843
        %v3106 = vadd.f32 %v1940, %v2845
        %v3107 = vadd.f32 %v1943, %v2848
        %v3108 = vadd.f32 %v1945, %v2850
        %v3109 = vadd.f32 %v1948, %v2853
        %v3110 = vadd.f32 %v1950, %v2855
        %v3111 = vadd.f32 %v1953, %v2858
        %v3112 = vadd.f32 %v1955, %v2860
        %v3113 = vadd.f32 %v1958, %v2863
        %v3114 = vadd.f32 %v1960, %v2865
        %v3115 = vadd.f32 %v1963, %v2868
        %v3116 = vadd.f32 %v1965, %v2870
        %v3117 = vadd.f32 %v1968, %v2873
        %v3118 = vadd.f32 %v1970, %v2875
        %v3119 = vadd.f32 %v1973, %v2878
        %v3120 = vadd.f32 %v1975, %v2880
        %v3121 = vadd.f32 %v1978, %v2883
        %v3122 = vadd.f32 %v1980, %v2885
        %v3123 = vadd.f32 %v1983, %v2888
        %v3124 = vadd.f32 %v1985, %v2890
        %v3125 = vadd.f32 %v1988, %v2893
        %v3126 = vadd.f32 %v1990, %v2895
        %v3127 = vadd.f32 %v1993, %v2898
        %v3128 = vadd.f32 %v1995, %v2900
        %v3129 = vadd.f32 %v1998, %v2903
        %v3130 = vadd.f32 %v2000, %v2905
        %v3131 = vadd.f32 %v2003, %v2908
        %v3132 = vadd.f32 %v2005, %v2910
        %v3133 = vadd.f32 %v2008, %v2913
        %v3134 = vadd.f32 %v2010, %v2915
        %v3135 = vadd.f32 %v2013, %v2918
        %v3136 = vadd.f32 %v2015, %v2920
        %v3137 = vadd.f32 %v2018, %v2923
        %v3138 = vadd.f32 %v2020, %v2925
        %v3139 = vadd.f32 %v2023, %v2928
        %v3140 = vadd.f32 %v2025, %v2930
        %v3141 = vadd.f32 %v2028, %v2933
        %v3142 = vadd.f32 %v2030, %v2935
        %v3143 = vadd.f32 %v2033, %v2938
        %v3144 = vadd.f32 %v2035, %v2940
        %v3145 = vadd.f32 %v2038, %v2943
        %v3146 = vadd.f32 %v2040, %v2945
        %v3147 = vadd.f32 %v2043, %v2948
        %v3148 = vadd.f32 %v2045, %v2950
        %v3149 = vadd.f32 %v2048, %v2953
        %v3150 = vadd.f32 %v2050, %v2955
        %v3151 = vadd.f32 %v2053, %v2958
        %v3152 = vadd.f32 %v2055, %v2960
        %v3153 = vadd.f32 %v2058, %v2963
        %v3154 = vadd.f32 %v2060, %v2965
        %v3155 = vadd.f32 %v2063, %v2968
        %v3156 = vadd.f32 %v2065, %v2970
        %v3157 = vadd.f32 %v2068, %v2973
        %v3158 = vadd.f32 %v2070, %v2975
        %v3159 = vadd.f32 %v2073, %v2978
        %v3160 = vadd.f32 %v2075, %v2980
        %v3161 = vadd.f32 %v2078, %v2983
        %v3162 = vadd.f32 %v2080, %v2985
        %v3163 = vadd.f32 %v2083, %v2988
        %v3164 = vadd.f32 %v2085, %v2990
        %v3165 = vadd.f32 %v2088, %v2993
        %v3166 = vadd.f32 %v2090, %v2995
        %v3167 = vadd.f32 %v2093, %v2998
        %v3168 = vadd.f32 %v2095, %v3000
        %v3169 = vadd.f32 %v2098, %v3003
        %v3170 = vadd.f32 %v2100, %v3005
        %v3171 = vadd.f32 %v2103, %v3008
        %v3172 = vadd.f32 %v2105, %v3010
        %v3173 = vadd.f32 %v2108, %v3013
        %v3174 = vadd.f32 %v2110, %v3015
        %v3175 = vadd.f32 %v2113, %v3018
        %v3176 = vadd.f32 %v2115, %v3020
        %v3177 = vadd.f32 %v2118, %v3023
        %v3178 = vadd.f32 %v2120, %v3025
        %v3179 = vadd.f32 %v2123, %v3028
        %v3180 = vadd.f32 %v2125, %v3030
        %v3181 = vadd.f32 %v2128, %v3033
        %v3182 = vadd.f32 %v2130, %v3035
        %v3183 = vadd.f32 %v2133, %v3038
        %v3184 = vadd.f32 %v2135, %v3040
        %v3185 = vadd.f32 %v2138, %v3043
        %v3186 = vadd.f32 %v2140, %v3045
        %v3187 = vadd.f32 %v2143, %v3048
        %v3188 = vadd.f32 %v2145, %v3050
        %v3189 = vadd.f32 %v2148, %v3053
        %v3190 = vadd.f32 %v2150, %v3055
        %v3191 = vadd.f32 %v2153, %v3058
        %v3192 = vadd.f32 %v2155, %v3060
        %v3193 = vadd.f32 %v2158, %v3063
        %v3194 = vadd.f32 %v2160, %v3065
        %v3195 = vld [vmem:[%s302 + $0x10] sm:$0xf]
        %v3196 = vld [vmem:[%s302 + $0x14] sm:$0xf]
        %v3197 = vld [vmem:[%s302 + $0x18] sm:$0xf]
        %v3198 = vld [vmem:[%s302 + $0x1c] sm:$0xf]
        %v3199 = vld [vmem:[%s302 + $0x20] sm:$0xf]
        %v3200 = vld [vmem:[%s302 + $0x24] sm:$0xf]
        %v3201 = vld [vmem:[%s302 + $0x28] sm:$0xf]
        %v3202 = vld [vmem:[%s302 + $0x2c] sm:$0xf]
        %v3203 = vld [vmem:[%s302 + $0x30] sm:$0xf]
        %v3204 = vld [vmem:[%s302 + $0x34] sm:$0xf]
        %v3205 = vld [vmem:[%s302 + $0x38] sm:$0xf]
        %v3206 = vld [vmem:[%s302 + $0x3c] sm:$0xf]
        %v3207 = vld [vmem:[%s302 + $0x40] sm:$0xf]
        %v3208 = vld [vmem:[%s302 + $0x44] sm:$0xf]
        %v3209 = vld [vmem:[%s302 + $0x48] sm:$0xf]
        %v3210 = vld [vmem:[%s302 + $0x4c] sm:$0xf]
        %v3211 = vld [vmem:[%s302 + $0x50] sm:$0xf]
        %v3212 = vld [vmem:[%s302 + $0x54] sm:$0xf]
        %v3213 = vld [vmem:[%s302 + $0x58] sm:$0xf]
        %v3214 = vld [vmem:[%s302 + $0x5c] sm:$0xf]
        %v3215 = vld [vmem:[%s302 + $0x60] sm:$0xf]
        %v3216 = vld [vmem:[%s302 + $0x64] sm:$0xf]
        %v3217 = vld [vmem:[%s302 + $0x68] sm:$0xf]
        %v3218 = vld [vmem:[%s302 + $0x6c] sm:$0xf]
        %v3219 = vld [vmem:[%s302 + $0x70] sm:$0xf]
        %v3220 = vld [vmem:[%s302 + $0x74] sm:$0xf]
        %v3221 = vld [vmem:[%s302 + $0x78] sm:$0xf]
        %v3222 = vld [vmem:[%s302 + $0x7c] sm:$0xf]
        %v3223 = vld [vmem:[%s302 + $0x80] sm:$0xf]
        %v3224 = vld [vmem:[%s302 + $0x84] sm:$0xf]
        %v3225 = vld [vmem:[%s302 + $0x88] sm:$0xf]
        %v3226 = vld [vmem:[%s302 + $0x8c] sm:$0xf]
        %v3227 = vld [vmem:[%s302 + $0x90] sm:$0xf]
        %v3228 = vld [vmem:[%s302 + $0x94] sm:$0xf]
        %v3229 = vld [vmem:[%s302 + $0x98] sm:$0xf]
        %v3230 = vld [vmem:[%s302 + $0x9c] sm:$0xf]
        %v3231 = vld [vmem:[%s302 + $0xa0] sm:$0xf]
        %v3232 = vld [vmem:[%s302 + $0xa4] sm:$0xf]
        %v3233 = vld [vmem:[%s302 + $0xa8] sm:$0xf]
        %v3234 = vld [vmem:[%s302 + $0xac] sm:$0xf]
        %v3235 = vld [vmem:[%s302 + $0xb0] sm:$0xf]
        %v3236 = vld [vmem:[%s302 + $0xb4] sm:$0xf]
        %v3237 = vld [vmem:[%s302 + $0xb8] sm:$0xf]
        %v3238 = vld [vmem:[%s302 + $0xbc] sm:$0xf]
        %v3239 = vld [vmem:[%s302 + $0xc0] sm:$0xf]
        %v3240 = vld [vmem:[%s302 + $0xc4] sm:$0xf]
        %v3241 = vld [vmem:[%s302 + $0xc8] sm:$0xf]
        %v3242 = vld [vmem:[%s302 + $0xcc] sm:$0xf]
        %v3243 = vld [vmem:[%s302 + $0xd0] sm:$0xf]
        %v3244 = vld [vmem:[%s302 + $0xd4] sm:$0xf]
        %v3245 = vld [vmem:[%s302 + $0xd8] sm:$0xf]
        %v3246 = vld [vmem:[%s302 + $0xdc] sm:$0xf]
        %v3247 = vld [vmem:[%s302 + $0xe0] sm:$0xf]
        %v3248 = vld [vmem:[%s302 + $0xe4] sm:$0xf]
        %v3249 = vld [vmem:[%s302 + $0xe8] sm:$0xf]
        %v3250 = vld [vmem:[%s302 + $0xec] sm:$0xf]
        %v3251 = vld [vmem:[%s302 + $0xf0] sm:$0xf]
        %v3252 = vld [vmem:[%s302 + $0xf4] sm:$0xf]
        %v3253 = vld [vmem:[%s302 + $0xf8] sm:$0xf]
        %v3254 = vld [vmem:[%s302 + $0xfc] sm:$0xf]
        %v3255 = vld [vmem:[%s302 + $0x100] sm:$0xf]
        %v3256 = vld [vmem:[%s302 + $0x104] sm:$0xf]
        %v3257 = vld [vmem:[%s302 + $0x108] sm:$0xf]
        %v3258 = vld [vmem:[%s302 + $0x10c] sm:$0xf]
        %v3259 = vld [vmem:[%s302 + $0x110] sm:$0xf]
        %v3260 = vld [vmem:[%s302 + $0x114] sm:$0xf]
        %v3261 = vld [vmem:[%s302 + $0x118] sm:$0xf]
        %v3262 = vld [vmem:[%s302 + $0x11c] sm:$0xf]
        %v3263 = vld [vmem:[%s302 + $0x120] sm:$0xf]
        %v3264 = vld [vmem:[%s302 + $0x124] sm:$0xf]
        %v3265 = vld [vmem:[%s302 + $0x128] sm:$0xf]
        %v3266 = vld [vmem:[%s302 + $0x12c] sm:$0xf]
        %v3267 = vld [vmem:[%s302 + $0x130] sm:$0xf]
        %v3268 = vld [vmem:[%s302 + $0x134] sm:$0xf]
        %v3269 = vld [vmem:[%s302 + $0x138] sm:$0xf]
        %v3270 = vld [vmem:[%s302 + $0x13c] sm:$0xf]
        %v3271 = vld [vmem:[%s302 + $0x140] sm:$0xf]
        %v3272 = vld [vmem:[%s302 + $0x144] sm:$0xf]
        %v3273 = vld [vmem:[%s302 + $0x148] sm:$0xf]
        %v3274 = vld [vmem:[%s302 + $0x14c] sm:$0xf]
        %v3275 = vld [vmem:[%s302 + $0x150] sm:$0xf]
        %v3276 = vld [vmem:[%s302 + $0x154] sm:$0xf]
        %v3277 = vld [vmem:[%s302 + $0x158] sm:$0xf]
        %v3278 = vld [vmem:[%s302 + $0x15c] sm:$0xf]
        %v3279 = vld [vmem:[%s302 + $0x160] sm:$0xf]
        %v3280 = vld [vmem:[%s302 + $0x164] sm:$0xf]
        %v3281 = vld [vmem:[%s302 + $0x168] sm:$0xf]
        %v3282 = vld [vmem:[%s302 + $0x16c] sm:$0xf]
        %v3283 = vld [vmem:[%s302 + $0x170] sm:$0xf]
        %v3284 = vld [vmem:[%s302 + $0x174] sm:$0xf]
        %v3285 = vld [vmem:[%s302 + $0x178] sm:$0xf]
        %v3286 = vld [vmem:[%s302 + $0x17c] sm:$0xf]
        %v3287 = vld [vmem:[%s302 + $0x180] sm:$0xf]
        %v3288 = vld [vmem:[%s302 + $0x184] sm:$0xf]
        %v3289 = vld [vmem:[%s302 + $0x188] sm:$0xf]
        %v3290 = vld [vmem:[%s302 + $0x18c] sm:$0xf]
        %v3291 = vld [vmem:[%s302 + $0x190] sm:$0xf]
        %v3292 = vld [vmem:[%s302 + $0x194] sm:$0xf]
        %v3293 = vld [vmem:[%s302 + $0x198] sm:$0xf]
        %v3294 = vld [vmem:[%s302 + $0x19c] sm:$0xf]
        %v3295 = vld [vmem:[%s302 + $0x1a0] sm:$0xf]
        %v3296 = vld [vmem:[%s302 + $0x1a4] sm:$0xf]
        %v3297 = vld [vmem:[%s302 + $0x1a8] sm:$0xf]
        %v3298 = vld [vmem:[%s302 + $0x1ac] sm:$0xf]
        %v3299 = vld [vmem:[%s302 + $0x1b0] sm:$0xf]
        %v3300 = vld [vmem:[%s302 + $0x1b4] sm:$0xf]
        %v3301 = vld [vmem:[%s302 + $0x1b8] sm:$0xf]
        %v3302 = vld [vmem:[%s302 + $0x1bc] sm:$0xf]
        %v3303 = vld [vmem:[%s302 + $0x1c0] sm:$0xf]
        %v3304 = vld [vmem:[%s302 + $0x1c4] sm:$0xf]
        %v3305 = vld [vmem:[%s302 + $0x1c8] sm:$0xf]
        %v3306 = vld [vmem:[%s302 + $0x1cc] sm:$0xf]
        %v3307 = vld [vmem:[%s302 + $0x1d0] sm:$0xf]
        %v3308 = vld [vmem:[%s302 + $0x1d4] sm:$0xf]
        %v3309 = vld [vmem:[%s302 + $0x1d8] sm:$0xf]
        %v3310 = vld [vmem:[%s302 + $0x1dc] sm:$0xf]
        %v3311 = vld [vmem:[%s302 + $0x1e0] sm:$0xf]
        %v3312 = vld [vmem:[%s302 + $0x1e4] sm:$0xf]
        %v3313 = vld [vmem:[%s302 + $0x1e8] sm:$0xf]
        %v3314 = vld [vmem:[%s302 + $0x1ec] sm:$0xf]
        %v3315 = vld [vmem:[%s302 + $0x1f0] sm:$0xf]
        %v3316 = vld [vmem:[%s302 + $0x1f4] sm:$0xf]
        %v3317 = vld [vmem:[%s302 + $0x1f8] sm:$0xf]
        %v3318 = vld [vmem:[%s302 + $0x1fc] sm:$0xf]
        %v3319 = vld [vmem:[%s302 + $0x200] sm:$0xf]
        %v3320 = vld [vmem:[%s302 + $0x204] sm:$0xf]
        %v3321 = vld [vmem:[%s302 + $0x208] sm:$0xf]
        %v3322 = vld [vmem:[%s302 + $0x20c] sm:$0xf]
        %v3323 = vld [vmem:[#allocation7 + $0xc0] sm:$0xf]
        %v3324 = vld [vmem:[#allocation7 + $0xc4] sm:$0xf]
        %v3325 = vld [vmem:[#allocation7 + $0xc8] sm:$0xf]
        %v3326 = vld [vmem:[#allocation7 + $0xcc] sm:$0xf]
        %v3327 = vld [vmem:[#allocation7 + $0xd0] sm:$0xf]
        %v3328 = vld [vmem:[#allocation7 + $0xd4] sm:$0xf]
        %v3329 = vld [vmem:[#allocation7 + $0xd8] sm:$0xf]
        %v3330 = vld [vmem:[#allocation7 + $0xdc] sm:$0xf]
        %v3331 = vld [vmem:[#allocation7 + $0xe0] sm:$0xf]
        %v3332 = vld [vmem:[#allocation7 + $0xe4] sm:$0xf]
        %v3333 = vld [vmem:[#allocation7 + $0xe8] sm:$0xf]
        %v3334 = vld [vmem:[#allocation7 + $0xec] sm:$0xf]
        %v3335 = vld [vmem:[#allocation7 + $0xf0] sm:$0xf]
        %v3336 = vld [vmem:[#allocation7 + $0xf4] sm:$0xf]
        %v3337 = vld [vmem:[#allocation7 + $0xf8] sm:$0xf]
        %v3338 = vld [vmem:[#allocation7 + $0xfc] sm:$0xf]
        %v3467 = vunpack.c.l.b16 %v3195
        %v3468 = vunpack.c.l.b16 %v3196
        %v3469 = vunpack.c.l.b16 %v3197
        %v3470 = vunpack.c.l.b16 %v3198
        %v3471 = vunpack.c.l.b16 %v3199
        %v3472 = vunpack.c.l.b16 %v3200
        %v3473 = vunpack.c.l.b16 %v3201
        %v3474 = vunpack.c.l.b16 %v3202
        %v3475 = vunpack.c.l.b16 %v3203
        %v3476 = vunpack.c.l.b16 %v3204
        %v3477 = vunpack.c.l.b16 %v3205
        %v3478 = vunpack.c.l.b16 %v3206
        %v3479 = vunpack.c.l.b16 %v3207
        %v3480 = vunpack.c.l.b16 %v3208
        %v3481 = vunpack.c.l.b16 %v3209
        %v3482 = vunpack.c.l.b16 %v3210
        %v3483 = vunpack.c.l.b16 %v3211
        %v3484 = vunpack.c.l.b16 %v3212
        %v3485 = vunpack.c.l.b16 %v3213
        %v3486 = vunpack.c.l.b16 %v3214
        %v3487 = vunpack.c.l.b16 %v3215
        %v3488 = vunpack.c.l.b16 %v3216
        %v3489 = vunpack.c.l.b16 %v3217
        %v3490 = vunpack.c.l.b16 %v3218
        %v3491 = vunpack.c.l.b16 %v3219
        %v3492 = vunpack.c.l.b16 %v3220
        %v3493 = vunpack.c.l.b16 %v3221
        %v3494 = vunpack.c.l.b16 %v3222
        %v3495 = vunpack.c.l.b16 %v3223
        %v3496 = vunpack.c.l.b16 %v3224
        %v3497 = vunpack.c.l.b16 %v3225
        %v3498 = vunpack.c.l.b16 %v3226
        %v3499 = vunpack.c.l.b16 %v3227
        %v3500 = vunpack.c.l.b16 %v3228
        %v3501 = vunpack.c.l.b16 %v3229
        %v3502 = vunpack.c.l.b16 %v3230
        %v3503 = vunpack.c.l.b16 %v3231
        %v3504 = vunpack.c.l.b16 %v3232
        %v3505 = vunpack.c.l.b16 %v3233
        %v3506 = vunpack.c.l.b16 %v3234
        %v3507 = vunpack.c.l.b16 %v3235
        %v3508 = vunpack.c.l.b16 %v3236
        %v3509 = vunpack.c.l.b16 %v3237
        %v3510 = vunpack.c.l.b16 %v3238
        %v3511 = vunpack.c.l.b16 %v3239
        %v3512 = vunpack.c.l.b16 %v3240
        %v3513 = vunpack.c.l.b16 %v3241
        %v3514 = vunpack.c.l.b16 %v3242
        %v3515 = vunpack.c.l.b16 %v3243
        %v3516 = vunpack.c.l.b16 %v3244
        %v3517 = vunpack.c.l.b16 %v3245
        %v3518 = vunpack.c.l.b16 %v3246
        %v3519 = vunpack.c.l.b16 %v3247
        %v3520 = vunpack.c.l.b16 %v3248
        %v3521 = vunpack.c.l.b16 %v3249
        %v3522 = vunpack.c.l.b16 %v3250
        %v3523 = vunpack.c.l.b16 %v3251
        %v3524 = vunpack.c.l.b16 %v3252
        %v3525 = vunpack.c.l.b16 %v3253
        %v3526 = vunpack.c.l.b16 %v3254
        %v3527 = vunpack.c.l.b16 %v3255
        %v3528 = vunpack.c.l.b16 %v3256
        %v3529 = vunpack.c.l.b16 %v3257
        %v3530 = vunpack.c.l.b16 %v3258
        %v3531 = vunpack.c.l.b16 %v3259
        %v3532 = vunpack.c.l.b16 %v3260
        %v3533 = vunpack.c.l.b16 %v3261
        %v3534 = vunpack.c.l.b16 %v3262
        %v3535 = vunpack.c.l.b16 %v3263
        %v3536 = vunpack.c.l.b16 %v3264
        %v3537 = vunpack.c.l.b16 %v3265
        %v3538 = vunpack.c.l.b16 %v3266
        %v3539 = vunpack.c.l.b16 %v3267
        %v3540 = vunpack.c.l.b16 %v3268
        %v3541 = vunpack.c.l.b16 %v3269
        %v3542 = vunpack.c.l.b16 %v3270
        %v3543 = vunpack.c.l.b16 %v3271
        %v3544 = vunpack.c.l.b16 %v3272
        %v3545 = vunpack.c.l.b16 %v3273
        %v3546 = vunpack.c.l.b16 %v3274
        %v3547 = vunpack.c.l.b16 %v3275
        %v3548 = vunpack.c.l.b16 %v3276
        %v3549 = vunpack.c.l.b16 %v3277
        %v3550 = vunpack.c.l.b16 %v3278
        %v3551 = vunpack.c.l.b16 %v3279
        %v3552 = vunpack.c.l.b16 %v3280
        %v3553 = vunpack.c.l.b16 %v3281
        %v3554 = vunpack.c.l.b16 %v3282
        %v3555 = vunpack.c.l.b16 %v3283
        %v3556 = vunpack.c.l.b16 %v3284
        %v3557 = vunpack.c.l.b16 %v3285
        %v3558 = vunpack.c.l.b16 %v3286
        %v3559 = vunpack.c.l.b16 %v3287
        %v3560 = vunpack.c.l.b16 %v3288
        %v3561 = vunpack.c.l.b16 %v3289
        %v3562 = vunpack.c.l.b16 %v3290
        %v3563 = vunpack.c.l.b16 %v3291
        %v3564 = vunpack.c.l.b16 %v3292
        %v3565 = vunpack.c.l.b16 %v3293
        %v3566 = vunpack.c.l.b16 %v3294
        %v3567 = vunpack.c.l.b16 %v3295
        %v3568 = vunpack.c.l.b16 %v3296
        %v3569 = vunpack.c.l.b16 %v3297
        %v3570 = vunpack.c.l.b16 %v3298
        %v3571 = vunpack.c.l.b16 %v3299
        %v3572 = vunpack.c.l.b16 %v3300
        %v3573 = vunpack.c.l.b16 %v3301
        %v3574 = vunpack.c.l.b16 %v3302
        %v3575 = vunpack.c.l.b16 %v3303
        %v3576 = vunpack.c.l.b16 %v3304
        %v3577 = vunpack.c.l.b16 %v3305
        %v3578 = vunpack.c.l.b16 %v3306
        %v3579 = vunpack.c.l.b16 %v3307
        %v3580 = vunpack.c.l.b16 %v3308
        %v3581 = vunpack.c.l.b16 %v3309
        %v3582 = vunpack.c.l.b16 %v3310
        %v3583 = vunpack.c.l.b16 %v3311
        %v3584 = vunpack.c.l.b16 %v3312
        %v3585 = vunpack.c.l.b16 %v3313
        %v3586 = vunpack.c.l.b16 %v3314
        %v3587 = vunpack.c.l.b16 %v3315
        %v3588 = vunpack.c.l.b16 %v3316
        %v3589 = vunpack.c.l.b16 %v3317
        %v3590 = vunpack.c.l.b16 %v3318
        %v3591 = vunpack.c.l.b16 %v3319
        %v3592 = vunpack.c.l.b16 %v3320
        %v3593 = vunpack.c.l.b16 %v3321
        %v3594 = vunpack.c.l.b16 %v3322
        %v3595 = vpack.c.b16 %v3468, %v3467
        %v3596 = vpack.c.b16 %v3470, %v3469
        %v3597 = vpack.c.b16 %v3472, %v3471
        %v3598 = vpack.c.b16 %v3474, %v3473
        %v3599 = vpack.c.b16 %v3476, %v3475
        %v3600 = vpack.c.b16 %v3478, %v3477
        %v3601 = vpack.c.b16 %v3480, %v3479
        %v3602 = vpack.c.b16 %v3482, %v3481
        %v3603 = vpack.c.b16 %v3484, %v3483
        %v3604 = vpack.c.b16 %v3486, %v3485
        %v3605 = vpack.c.b16 %v3488, %v3487
        %v3606 = vpack.c.b16 %v3490, %v3489
        %v3607 = vpack.c.b16 %v3492, %v3491
        %v3608 = vpack.c.b16 %v3494, %v3493
        %v3609 = vpack.c.b16 %v3496, %v3495
        %v3610 = vpack.c.b16 %v3498, %v3497
        %v3611 = vpack.c.b16 %v3500, %v3499
        %v3612 = vpack.c.b16 %v3502, %v3501
        %v3613 = vpack.c.b16 %v3504, %v3503
        %v3614 = vpack.c.b16 %v3506, %v3505
        %v3615 = vpack.c.b16 %v3508, %v3507
        %v3616 = vpack.c.b16 %v3510, %v3509
        %v3617 = vpack.c.b16 %v3512, %v3511
        %v3618 = vpack.c.b16 %v3514, %v3513
        %v3619 = vpack.c.b16 %v3516, %v3515
        %v3620 = vpack.c.b16 %v3518, %v3517
        %v3621 = vpack.c.b16 %v3520, %v3519
        %v3622 = vpack.c.b16 %v3522, %v3521
        %v3623 = vpack.c.b16 %v3524, %v3523
        %v3624 = vpack.c.b16 %v3526, %v3525
        %v3625 = vpack.c.b16 %v3528, %v3527
        %v3626 = vpack.c.b16 %v3530, %v3529
        %v3627 = vpack.c.b16 %v3532, %v3531
        %v3628 = vpack.c.b16 %v3534, %v3533
        %v3629 = vpack.c.b16 %v3536, %v3535
        %v3630 = vpack.c.b16 %v3538, %v3537
        %v3631 = vpack.c.b16 %v3540, %v3539
        %v3632 = vpack.c.b16 %v3542, %v3541
        %v3633 = vpack.c.b16 %v3544, %v3543
        %v3634 = vpack.c.b16 %v3546, %v3545
        %v3635 = vpack.c.b16 %v3548, %v3547
        %v3636 = vpack.c.b16 %v3550, %v3549
        %v3637 = vpack.c.b16 %v3552, %v3551
        %v3638 = vpack.c.b16 %v3554, %v3553
        %v3639 = vpack.c.b16 %v3556, %v3555
        %v3640 = vpack.c.b16 %v3558, %v3557
        %v3641 = vpack.c.b16 %v3560, %v3559
        %v3642 = vpack.c.b16 %v3562, %v3561
        %v3643 = vpack.c.b16 %v3564, %v3563
        %v3644 = vpack.c.b16 %v3566, %v3565
        %v3645 = vpack.c.b16 %v3568, %v3567
        %v3646 = vpack.c.b16 %v3570, %v3569
        %v3647 = vpack.c.b16 %v3572, %v3571
        %v3648 = vpack.c.b16 %v3574, %v3573
        %v3649 = vpack.c.b16 %v3576, %v3575
        %v3650 = vpack.c.b16 %v3578, %v3577
        %v3651 = vpack.c.b16 %v3580, %v3579
        %v3652 = vpack.c.b16 %v3582, %v3581
        %v3653 = vpack.c.b16 %v3584, %v3583
        %v3654 = vpack.c.b16 %v3586, %v3585
        %v3655 = vpack.c.b16 %v3588, %v3587
        %v3656 = vpack.c.b16 %v3590, %v3589
        %v3657 = vpack.c.b16 %v3592, %v3591
        %v3658 = vpack.c.b16 %v3594, %v3593
        %v3739 = vunpack.c.l.b16 %v3323
        %v3740 = vunpack.c.l.b16 %v3324
        %v3741 = vunpack.c.l.b16 %v3325
        %v3742 = vunpack.c.l.b16 %v3326
        %v3743 = vunpack.c.l.b16 %v3327
        %v3744 = vunpack.c.l.b16 %v3328
        %v3745 = vunpack.c.l.b16 %v3329
        %v3746 = vunpack.c.l.b16 %v3330
        %v3747 = vunpack.c.l.b16 %v3331
        %v3748 = vunpack.c.l.b16 %v3332
        %v3749 = vunpack.c.l.b16 %v3333
        %v3750 = vunpack.c.l.b16 %v3334
        %v3751 = vunpack.c.l.b16 %v3335
        %v3752 = vunpack.c.l.b16 %v3336
        %v3753 = vunpack.c.l.b16 %v3337
        %v3754 = vunpack.c.l.b16 %v3338
        %v3755 = vpack.c.b16 %v3740, %v3739
        %v3756 = vpack.c.b16 %v3742, %v3741
        %v3757 = vpack.c.b16 %v3744, %v3743
        %v3758 = vpack.c.b16 %v3746, %v3745
        %v3759 = vpack.c.b16 %v3748, %v3747
        %v3760 = vpack.c.b16 %v3750, %v3749
        %v3761 = vpack.c.b16 %v3752, %v3751
        %v3762 = vpack.c.b16 %v3754, %v3753
        %3771 = vmatpush.bf16.msra.mxu0 %v3762
        %3772 = vmatpush.bf16.msra.mxu0 %v3761
        %3773 = vmatpush.bf16.msra.mxu0 %v3760
        %3774 = vmatpush.bf16.msra.mxu0 %v3759
        %3775 = vmatpush.bf16.msra.mxu0 %v3758
        %3776 = vmatpush.bf16.msra.mxu0 %v3757
        %3777 = vmatpush.bf16.msra.mxu0 %v3756
        %3778 = vmatpush.bf16.msra.mxu0 %v3755
        %3779 = vmatmul.bf16.gmra.mxu0 %v3595
        %v3780 = vpop.f32.mrf.mxu0
        %v3781 = vadd.f32 0.0, %v3780
        %v3782 = vpop.f32.mrf.mxu0
        %v3783 = vadd.f32 0.0, %v3782
        %3784 = vmatmul.bf16.gmra.mxu0 %v3596
        %v3785 = vpop.f32.mrf.mxu0
        %v3786 = vadd.f32 0.0, %v3785
        %v3787 = vpop.f32.mrf.mxu0
        %v3788 = vadd.f32 0.0, %v3787
        %3789 = vmatmul.bf16.gmra.mxu0 %v3597
        %v3790 = vpop.f32.mrf.mxu0
        %v3791 = vadd.f32 0.0, %v3790
        %v3792 = vpop.f32.mrf.mxu0
        %v3793 = vadd.f32 0.0, %v3792
        %3794 = vmatmul.bf16.gmra.mxu0 %v3598
        %v3795 = vpop.f32.mrf.mxu0
        %v3796 = vadd.f32 0.0, %v3795
        %v3797 = vpop.f32.mrf.mxu0
        %v3798 = vadd.f32 0.0, %v3797
        %3799 = vmatmul.bf16.gmra.mxu0 %v3599
        %v3800 = vpop.f32.mrf.mxu0
        %v3801 = vadd.f32 0.0, %v3800
        %v3802 = vpop.f32.mrf.mxu0
        %v3803 = vadd.f32 0.0, %v3802
        %3804 = vmatmul.bf16.gmra.mxu0 %v3600
        %v3805 = vpop.f32.mrf.mxu0
        %v3806 = vadd.f32 0.0, %v3805
        %v3807 = vpop.f32.mrf.mxu0
        %v3808 = vadd.f32 0.0, %v3807
        %3809 = vmatmul.bf16.gmra.mxu0 %v3601
        %v3810 = vpop.f32.mrf.mxu0
        %v3811 = vadd.f32 0.0, %v3810
        %v3812 = vpop.f32.mrf.mxu0
        %v3813 = vadd.f32 0.0, %v3812
        %3814 = vmatmul.bf16.gmra.mxu0 %v3602
        %v3815 = vpop.f32.mrf.mxu0
        %v3816 = vadd.f32 0.0, %v3815
        %v3817 = vpop.f32.mrf.mxu0
        %v3818 = vadd.f32 0.0, %v3817
        %3819 = vmatmul.bf16.gmra.mxu0 %v3603
        %v3820 = vpop.f32.mrf.mxu0
        %v3821 = vadd.f32 0.0, %v3820
        %v3822 = vpop.f32.mrf.mxu0
        %v3823 = vadd.f32 0.0, %v3822
        %3824 = vmatmul.bf16.gmra.mxu0 %v3604
        %v3825 = vpop.f32.mrf.mxu0
        %v3826 = vadd.f32 0.0, %v3825
        %v3827 = vpop.f32.mrf.mxu0
        %v3828 = vadd.f32 0.0, %v3827
        %3829 = vmatmul.bf16.gmra.mxu0 %v3605
        %v3830 = vpop.f32.mrf.mxu0
        %v3831 = vadd.f32 0.0, %v3830
        %v3832 = vpop.f32.mrf.mxu0
        %v3833 = vadd.f32 0.0, %v3832
        %3834 = vmatmul.bf16.gmra.mxu0 %v3606
        %v3835 = vpop.f32.mrf.mxu0
        %v3836 = vadd.f32 0.0, %v3835
        %v3837 = vpop.f32.mrf.mxu0
        %v3838 = vadd.f32 0.0, %v3837
        %3839 = vmatmul.bf16.gmra.mxu0 %v3607
        %v3840 = vpop.f32.mrf.mxu0
        %v3841 = vadd.f32 0.0, %v3840
        %v3842 = vpop.f32.mrf.mxu0
        %v3843 = vadd.f32 0.0, %v3842
        %3844 = vmatmul.bf16.gmra.mxu0 %v3608
        %v3845 = vpop.f32.mrf.mxu0
        %v3846 = vadd.f32 0.0, %v3845
        %v3847 = vpop.f32.mrf.mxu0
        %v3848 = vadd.f32 0.0, %v3847
        %3849 = vmatmul.bf16.gmra.mxu0 %v3609
        %v3850 = vpop.f32.mrf.mxu0
        %v3851 = vadd.f32 0.0, %v3850
        %v3852 = vpop.f32.mrf.mxu0
        %v3853 = vadd.f32 0.0, %v3852
        %3854 = vmatmul.bf16.gmra.mxu0 %v3610
        %v3855 = vpop.f32.mrf.mxu0
        %v3856 = vadd.f32 0.0, %v3855
        %v3857 = vpop.f32.mrf.mxu0
        %v3858 = vadd.f32 0.0, %v3857
        %3859 = vmatmul.bf16.gmra.mxu0 %v3611
        %v3860 = vpop.f32.mrf.mxu0
        %v3861 = vadd.f32 0.0, %v3860
        %v3862 = vpop.f32.mrf.mxu0
        %v3863 = vadd.f32 0.0, %v3862
        %3864 = vmatmul.bf16.gmra.mxu0 %v3612
        %v3865 = vpop.f32.mrf.mxu0
        %v3866 = vadd.f32 0.0, %v3865
        %v3867 = vpop.f32.mrf.mxu0
        %v3868 = vadd.f32 0.0, %v3867
        %3869 = vmatmul.bf16.gmra.mxu0 %v3613
        %v3870 = vpop.f32.mrf.mxu0
        %v3871 = vadd.f32 0.0, %v3870
        %v3872 = vpop.f32.mrf.mxu0
        %v3873 = vadd.f32 0.0, %v3872
        %3874 = vmatmul.bf16.gmra.mxu0 %v3614
        %v3875 = vpop.f32.mrf.mxu0
        %v3876 = vadd.f32 0.0, %v3875
        %v3877 = vpop.f32.mrf.mxu0
        %v3878 = vadd.f32 0.0, %v3877
        %3879 = vmatmul.bf16.gmra.mxu0 %v3615
        %v3880 = vpop.f32.mrf.mxu0
        %v3881 = vadd.f32 0.0, %v3880
        %v3882 = vpop.f32.mrf.mxu0
        %v3883 = vadd.f32 0.0, %v3882
        %3884 = vmatmul.bf16.gmra.mxu0 %v3616
        %v3885 = vpop.f32.mrf.mxu0
        %v3886 = vadd.f32 0.0, %v3885
        %v3887 = vpop.f32.mrf.mxu0
        %v3888 = vadd.f32 0.0, %v3887
        %3889 = vmatmul.bf16.gmra.mxu0 %v3617
        %v3890 = vpop.f32.mrf.mxu0
        %v3891 = vadd.f32 0.0, %v3890
        %v3892 = vpop.f32.mrf.mxu0
        %v3893 = vadd.f32 0.0, %v3892
        %3894 = vmatmul.bf16.gmra.mxu0 %v3618
        %v3895 = vpop.f32.mrf.mxu0
        %v3896 = vadd.f32 0.0, %v3895
        %v3897 = vpop.f32.mrf.mxu0
        %v3898 = vadd.f32 0.0, %v3897
        %3899 = vmatmul.bf16.gmra.mxu0 %v3619
        %v3900 = vpop.f32.mrf.mxu0
        %v3901 = vadd.f32 0.0, %v3900
        %v3902 = vpop.f32.mrf.mxu0
        %v3903 = vadd.f32 0.0, %v3902
        %3904 = vmatmul.bf16.gmra.mxu0 %v3620
        %v3905 = vpop.f32.mrf.mxu0
        %v3906 = vadd.f32 0.0, %v3905
        %v3907 = vpop.f32.mrf.mxu0
        %v3908 = vadd.f32 0.0, %v3907
        %3909 = vmatmul.bf16.gmra.mxu0 %v3621
        %v3910 = vpop.f32.mrf.mxu0
        %v3911 = vadd.f32 0.0, %v3910
        %v3912 = vpop.f32.mrf.mxu0
        %v3913 = vadd.f32 0.0, %v3912
        %3914 = vmatmul.bf16.gmra.mxu0 %v3622
        %v3915 = vpop.f32.mrf.mxu0
        %v3916 = vadd.f32 0.0, %v3915
        %v3917 = vpop.f32.mrf.mxu0
        %v3918 = vadd.f32 0.0, %v3917
        %3919 = vmatmul.bf16.gmra.mxu0 %v3623
        %v3920 = vpop.f32.mrf.mxu0
        %v3921 = vadd.f32 0.0, %v3920
        %v3922 = vpop.f32.mrf.mxu0
        %v3923 = vadd.f32 0.0, %v3922
        %3924 = vmatmul.bf16.gmra.mxu0 %v3624
        %v3925 = vpop.f32.mrf.mxu0
        %v3926 = vadd.f32 0.0, %v3925
        %v3927 = vpop.f32.mrf.mxu0
        %v3928 = vadd.f32 0.0, %v3927
        %3929 = vmatmul.bf16.gmra.mxu0 %v3625
        %v3930 = vpop.f32.mrf.mxu0
        %v3931 = vadd.f32 0.0, %v3930
        %v3932 = vpop.f32.mrf.mxu0
        %v3933 = vadd.f32 0.0, %v3932
        %3934 = vmatmul.bf16.gmra.mxu0 %v3626
        %v3935 = vpop.f32.mrf.mxu0
        %v3936 = vadd.f32 0.0, %v3935
        %v3937 = vpop.f32.mrf.mxu0
        %v3938 = vadd.f32 0.0, %v3937
        %3939 = vmatmul.bf16.gmra.mxu0 %v3627
        %v3940 = vpop.f32.mrf.mxu0
        %v3941 = vadd.f32 0.0, %v3940
        %v3942 = vpop.f32.mrf.mxu0
        %v3943 = vadd.f32 0.0, %v3942
        %3944 = vmatmul.bf16.gmra.mxu0 %v3628
        %v3945 = vpop.f32.mrf.mxu0
        %v3946 = vadd.f32 0.0, %v3945
        %v3947 = vpop.f32.mrf.mxu0
        %v3948 = vadd.f32 0.0, %v3947
        %3949 = vmatmul.bf16.gmra.mxu0 %v3629
        %v3950 = vpop.f32.mrf.mxu0
        %v3951 = vadd.f32 0.0, %v3950
        %v3952 = vpop.f32.mrf.mxu0
        %v3953 = vadd.f32 0.0, %v3952
        %3954 = vmatmul.bf16.gmra.mxu0 %v3630
        %v3955 = vpop.f32.mrf.mxu0
        %v3956 = vadd.f32 0.0, %v3955
        %v3957 = vpop.f32.mrf.mxu0
        %v3958 = vadd.f32 0.0, %v3957
        %3959 = vmatmul.bf16.gmra.mxu0 %v3631
        %v3960 = vpop.f32.mrf.mxu0
        %v3961 = vadd.f32 0.0, %v3960
        %v3962 = vpop.f32.mrf.mxu0
        %v3963 = vadd.f32 0.0, %v3962
        %3964 = vmatmul.bf16.gmra.mxu0 %v3632
        %v3965 = vpop.f32.mrf.mxu0
        %v3966 = vadd.f32 0.0, %v3965
        %v3967 = vpop.f32.mrf.mxu0
        %v3968 = vadd.f32 0.0, %v3967
        %3969 = vmatmul.bf16.gmra.mxu0 %v3633
        %v3970 = vpop.f32.mrf.mxu0
        %v3971 = vadd.f32 0.0, %v3970
        %v3972 = vpop.f32.mrf.mxu0
        %v3973 = vadd.f32 0.0, %v3972
        %3974 = vmatmul.bf16.gmra.mxu0 %v3634
        %v3975 = vpop.f32.mrf.mxu0
        %v3976 = vadd.f32 0.0, %v3975
        %v3977 = vpop.f32.mrf.mxu0
        %v3978 = vadd.f32 0.0, %v3977
        %3979 = vmatmul.bf16.gmra.mxu0 %v3635
        %v3980 = vpop.f32.mrf.mxu0
        %v3981 = vadd.f32 0.0, %v3980
        %v3982 = vpop.f32.mrf.mxu0
        %v3983 = vadd.f32 0.0, %v3982
        %3984 = vmatmul.bf16.gmra.mxu0 %v3636
        %v3985 = vpop.f32.mrf.mxu0
        %v3986 = vadd.f32 0.0, %v3985
        %v3987 = vpop.f32.mrf.mxu0
        %v3988 = vadd.f32 0.0, %v3987
        %3989 = vmatmul.bf16.gmra.mxu0 %v3637
        %v3990 = vpop.f32.mrf.mxu0
        %v3991 = vadd.f32 0.0, %v3990
        %v3992 = vpop.f32.mrf.mxu0
        %v3993 = vadd.f32 0.0, %v3992
        %3994 = vmatmul.bf16.gmra.mxu0 %v3638
        %v3995 = vpop.f32.mrf.mxu0
        %v3996 = vadd.f32 0.0, %v3995
        %v3997 = vpop.f32.mrf.mxu0
        %v3998 = vadd.f32 0.0, %v3997
        %3999 = vmatmul.bf16.gmra.mxu0 %v3639
        %v4000 = vpop.f32.mrf.mxu0
        %v4001 = vadd.f32 0.0, %v4000
        %v4002 = vpop.f32.mrf.mxu0
        %v4003 = vadd.f32 0.0, %v4002
        %4004 = vmatmul.bf16.gmra.mxu0 %v3640
        %v4005 = vpop.f32.mrf.mxu0
        %v4006 = vadd.f32 0.0, %v4005
        %v4007 = vpop.f32.mrf.mxu0
        %v4008 = vadd.f32 0.0, %v4007
        %4009 = vmatmul.bf16.gmra.mxu0 %v3641
        %v4010 = vpop.f32.mrf.mxu0
        %v4011 = vadd.f32 0.0, %v4010
        %v4012 = vpop.f32.mrf.mxu0
        %v4013 = vadd.f32 0.0, %v4012
        %4014 = vmatmul.bf16.gmra.mxu0 %v3642
        %v4015 = vpop.f32.mrf.mxu0
        %v4016 = vadd.f32 0.0, %v4015
        %v4017 = vpop.f32.mrf.mxu0
        %v4018 = vadd.f32 0.0, %v4017
        %4019 = vmatmul.bf16.gmra.mxu0 %v3643
        %v4020 = vpop.f32.mrf.mxu0
        %v4021 = vadd.f32 0.0, %v4020
        %v4022 = vpop.f32.mrf.mxu0
        %v4023 = vadd.f32 0.0, %v4022
        %4024 = vmatmul.bf16.gmra.mxu0 %v3644
        %v4025 = vpop.f32.mrf.mxu0
        %v4026 = vadd.f32 0.0, %v4025
        %v4027 = vpop.f32.mrf.mxu0
        %v4028 = vadd.f32 0.0, %v4027
        %4029 = vmatmul.bf16.gmra.mxu0 %v3645
        %v4030 = vpop.f32.mrf.mxu0
        %v4031 = vadd.f32 0.0, %v4030
        %v4032 = vpop.f32.mrf.mxu0
        %v4033 = vadd.f32 0.0, %v4032
        %4034 = vmatmul.bf16.gmra.mxu0 %v3646
        %v4035 = vpop.f32.mrf.mxu0
        %v4036 = vadd.f32 0.0, %v4035
        %v4037 = vpop.f32.mrf.mxu0
        %v4038 = vadd.f32 0.0, %v4037
        %4039 = vmatmul.bf16.gmra.mxu0 %v3647
        %v4040 = vpop.f32.mrf.mxu0
        %v4041 = vadd.f32 0.0, %v4040
        %v4042 = vpop.f32.mrf.mxu0
        %v4043 = vadd.f32 0.0, %v4042
        %4044 = vmatmul.bf16.gmra.mxu0 %v3648
        %v4045 = vpop.f32.mrf.mxu0
        %v4046 = vadd.f32 0.0, %v4045
        %v4047 = vpop.f32.mrf.mxu0
        %v4048 = vadd.f32 0.0, %v4047
        %4049 = vmatmul.bf16.gmra.mxu0 %v3649
        %v4050 = vpop.f32.mrf.mxu0
        %v4051 = vadd.f32 0.0, %v4050
        %v4052 = vpop.f32.mrf.mxu0
        %v4053 = vadd.f32 0.0, %v4052
        %4054 = vmatmul.bf16.gmra.mxu0 %v3650
        %v4055 = vpop.f32.mrf.mxu0
        %v4056 = vadd.f32 0.0, %v4055
        %v4057 = vpop.f32.mrf.mxu0
        %v4058 = vadd.f32 0.0, %v4057
        %4059 = vmatmul.bf16.gmra.mxu0 %v3651
        %v4060 = vpop.f32.mrf.mxu0
        %v4061 = vadd.f32 0.0, %v4060
        %v4062 = vpop.f32.mrf.mxu0
        %v4063 = vadd.f32 0.0, %v4062
        %4064 = vmatmul.bf16.gmra.mxu0 %v3652
        %v4065 = vpop.f32.mrf.mxu0
        %v4066 = vadd.f32 0.0, %v4065
        %v4067 = vpop.f32.mrf.mxu0
        %v4068 = vadd.f32 0.0, %v4067
        %4069 = vmatmul.bf16.gmra.mxu0 %v3653
        %v4070 = vpop.f32.mrf.mxu0
        %v4071 = vadd.f32 0.0, %v4070
        %v4072 = vpop.f32.mrf.mxu0
        %v4073 = vadd.f32 0.0, %v4072
        %4074 = vmatmul.bf16.gmra.mxu0 %v3654
        %v4075 = vpop.f32.mrf.mxu0
        %v4076 = vadd.f32 0.0, %v4075
        %v4077 = vpop.f32.mrf.mxu0
        %v4078 = vadd.f32 0.0, %v4077
        %4079 = vmatmul.bf16.gmra.mxu0 %v3655
        %v4080 = vpop.f32.mrf.mxu0
        %v4081 = vadd.f32 0.0, %v4080
        %v4082 = vpop.f32.mrf.mxu0
        %v4083 = vadd.f32 0.0, %v4082
        %4084 = vmatmul.bf16.gmra.mxu0 %v3656
        %v4085 = vpop.f32.mrf.mxu0
        %v4086 = vadd.f32 0.0, %v4085
        %v4087 = vpop.f32.mrf.mxu0
        %v4088 = vadd.f32 0.0, %v4087
        %4089 = vmatmul.bf16.gmra.mxu0 %v3657
        %v4090 = vpop.f32.mrf.mxu0
        %v4091 = vadd.f32 0.0, %v4090
        %v4092 = vpop.f32.mrf.mxu0
        %v4093 = vadd.f32 0.0, %v4092
        %4094 = vmatmul.bf16.gmra.mxu0 %v3658
        %v4095 = vpop.f32.mrf.mxu0
        %v4096 = vadd.f32 0.0, %v4095
        %v4097 = vpop.f32.mrf.mxu0
        %v4098 = vadd.f32 0.0, %v4097
        %4099 = vdwg.mxu0
        %v4100 = vadd.f32 %v3067, %v3781
        %v4101 = vadd.f32 %v3068, %v3783
        %v4102 = vadd.f32 %v3069, %v3786
        %v4103 = vadd.f32 %v3070, %v3788
        %v4104 = vadd.f32 %v3071, %v3791
        %v4105 = vadd.f32 %v3072, %v3793
        %v4106 = vadd.f32 %v3073, %v3796
        %v4107 = vadd.f32 %v3074, %v3798
        %v4108 = vadd.f32 %v3075, %v3801
        %v4109 = vadd.f32 %v3076, %v3803
        %v4110 = vadd.f32 %v3077, %v3806
        %v4111 = vadd.f32 %v3078, %v3808
        %v4112 = vadd.f32 %v3079, %v3811
        %v4113 = vadd.f32 %v3080, %v3813
        %v4114 = vadd.f32 %v3081, %v3816
        %v4115 = vadd.f32 %v3082, %v3818
        %v4116 = vadd.f32 %v3083, %v3821
        %v4117 = vadd.f32 %v3084, %v3823
        %v4118 = vadd.f32 %v3085, %v3826
        %v4119 = vadd.f32 %v3086, %v3828
        %v4120 = vadd.f32 %v3087, %v3831
        %v4121 = vadd.f32 %v3088, %v3833
        %v4122 = vadd.f32 %v3089, %v3836
        %v4123 = vadd.f32 %v3090, %v3838
        %v4124 = vadd.f32 %v3091, %v3841
        %v4125 = vadd.f32 %v3092, %v3843
        %v4126 = vadd.f32 %v3093, %v3846
        %v4127 = vadd.f32 %v3094, %v3848
        %v4128 = vadd.f32 %v3095, %v3851
        %v4129 = vadd.f32 %v3096, %v3853
        %v4130 = vadd.f32 %v3097, %v3856
        %v4131 = vadd.f32 %v3098, %v3858
        %v4132 = vadd.f32 %v3099, %v3861
        %v4133 = vadd.f32 %v3100, %v3863
        %v4134 = vadd.f32 %v3101, %v3866
        %v4135 = vadd.f32 %v3102, %v3868
        %v4136 = vadd.f32 %v3103, %v3871
        %v4137 = vadd.f32 %v3104, %v3873
        %v4138 = vadd.f32 %v3105, %v3876
        %v4139 = vadd.f32 %v3106, %v3878
        %v4140 = vadd.f32 %v3107, %v3881
        %v4141 = vadd.f32 %v3108, %v3883
        %v4142 = vadd.f32 %v3109, %v3886
        %v4143 = vadd.f32 %v3110, %v3888
        %v4144 = vadd.f32 %v3111, %v3891
        %v4145 = vadd.f32 %v3112, %v3893
        %v4146 = vadd.f32 %v3113, %v3896
        %v4147 = vadd.f32 %v3114, %v3898
        %v4148 = vadd.f32 %v3115, %v3901
        %v4149 = vadd.f32 %v3116, %v3903
        %v4150 = vadd.f32 %v3117, %v3906
        %v4151 = vadd.f32 %v3118, %v3908
        %v4152 = vadd.f32 %v3119, %v3911
        %v4153 = vadd.f32 %v3120, %v3913
        %v4154 = vadd.f32 %v3121, %v3916
        %v4155 = vadd.f32 %v3122, %v3918
        %v4156 = vadd.f32 %v3123, %v3921
        %v4157 = vadd.f32 %v3124, %v3923
        %v4158 = vadd.f32 %v3125, %v3926
        %v4159 = vadd.f32 %v3126, %v3928
        %v4160 = vadd.f32 %v3127, %v3931
        %v4161 = vadd.f32 %v3128, %v3933
        %v4162 = vadd.f32 %v3129, %v3936
        %v4163 = vadd.f32 %v3130, %v3938
        %v4164 = vadd.f32 %v3131, %v3941
        %v4165 = vadd.f32 %v3132, %v3943
        %v4166 = vadd.f32 %v3133, %v3946
        %v4167 = vadd.f32 %v3134, %v3948
        %v4168 = vadd.f32 %v3135, %v3951
        %v4169 = vadd.f32 %v3136, %v3953
        %v4170 = vadd.f32 %v3137, %v3956
        %v4171 = vadd.f32 %v3138, %v3958
        %v4172 = vadd.f32 %v3139, %v3961
        %v4173 = vadd.f32 %v3140, %v3963
        %v4174 = vadd.f32 %v3141, %v3966
        %v4175 = vadd.f32 %v3142, %v3968
        %v4176 = vadd.f32 %v3143, %v3971
        %v4177 = vadd.f32 %v3144, %v3973
        %v4178 = vadd.f32 %v3145, %v3976
        %v4179 = vadd.f32 %v3146, %v3978
        %v4180 = vadd.f32 %v3147, %v3981
        %v4181 = vadd.f32 %v3148, %v3983
        %v4182 = vadd.f32 %v3149, %v3986
        %v4183 = vadd.f32 %v3150, %v3988
        %v4184 = vadd.f32 %v3151, %v3991
        %v4185 = vadd.f32 %v3152, %v3993
        %v4186 = vadd.f32 %v3153, %v3996
        %v4187 = vadd.f32 %v3154, %v3998
        %v4188 = vadd.f32 %v3155, %v4001
        %v4189 = vadd.f32 %v3156, %v4003
        %v4190 = vadd.f32 %v3157, %v4006
        %v4191 = vadd.f32 %v3158, %v4008
        %v4192 = vadd.f32 %v3159, %v4011
        %v4193 = vadd.f32 %v3160, %v4013
        %v4194 = vadd.f32 %v3161, %v4016
        %v4195 = vadd.f32 %v3162, %v4018
        %v4196 = vadd.f32 %v3163, %v4021
        %v4197 = vadd.f32 %v3164, %v4023
        %v4198 = vadd.f32 %v3165, %v4026
        %v4199 = vadd.f32 %v3166, %v4028
        %v4200 = vadd.f32 %v3167, %v4031
        %v4201 = vadd.f32 %v3168, %v4033
        %v4202 = vadd.f32 %v3169, %v4036
        %v4203 = vadd.f32 %v3170, %v4038
        %v4204 = vadd.f32 %v3171, %v4041
        %v4205 = vadd.f32 %v3172, %v4043
        %v4206 = vadd.f32 %v3173, %v4046
        %v4207 = vadd.f32 %v3174, %v4048
        %v4208 = vadd.f32 %v3175, %v4051
        %v4209 = vadd.f32 %v3176, %v4053
        %v4210 = vadd.f32 %v3177, %v4056
        %v4211 = vadd.f32 %v3178, %v4058
        %v4212 = vadd.f32 %v3179, %v4061
        %v4213 = vadd.f32 %v3180, %v4063
        %v4214 = vadd.f32 %v3181, %v4066
        %v4215 = vadd.f32 %v3182, %v4068
        %v4216 = vadd.f32 %v3183, %v4071
        %v4217 = vadd.f32 %v3184, %v4073
        %v4218 = vadd.f32 %v3185, %v4076
        %v4219 = vadd.f32 %v3186, %v4078
        %v4220 = vadd.f32 %v3187, %v4081
        %v4221 = vadd.f32 %v3188, %v4083
        %v4222 = vadd.f32 %v3189, %v4086
        %v4223 = vadd.f32 %v3190, %v4088
        %v4224 = vadd.f32 %v3191, %v4091
        %v4225 = vadd.f32 %v3192, %v4093
        %v4226 = vadd.f32 %v3193, %v4096
        %v4227 = vadd.f32 %v3194, %v4098
        %v4228 = vld [vmem:[%s292 + $0x20] sm:$0xf]
        %v4229 = vld [vmem:[%s292 + $0x24] sm:$0xf]
        %v4230 = vld [vmem:[%s292 + $0x28] sm:$0xf]
        %v4231 = vld [vmem:[%s292 + $0x2c] sm:$0xf]
        %v4232 = vld [vmem:[%s292 + $0x30] sm:$0xf]
        %v4233 = vld [vmem:[%s292 + $0x34] sm:$0xf]
        %v4234 = vld [vmem:[%s292 + $0x38] sm:$0xf]
        %v4235 = vld [vmem:[%s292 + $0x3c] sm:$0xf]
        %v4236 = vld [vmem:[%s292 + $0x40] sm:$0xf]
        %v4237 = vld [vmem:[%s292 + $0x44] sm:$0xf]
        %v4238 = vld [vmem:[%s292 + $0x48] sm:$0xf]
        %v4239 = vld [vmem:[%s292 + $0x4c] sm:$0xf]
        %v4240 = vld [vmem:[%s292 + $0x50] sm:$0xf]
        %v4241 = vld [vmem:[%s292 + $0x54] sm:$0xf]
        %v4242 = vld [vmem:[%s292 + $0x58] sm:$0xf]
        %v4243 = vld [vmem:[%s292 + $0x5c] sm:$0xf]
        %v4244 = vld [vmem:[%s292 + $0x60] sm:$0xf]
        %v4245 = vld [vmem:[%s292 + $0x64] sm:$0xf]
        %v4246 = vld [vmem:[%s292 + $0x68] sm:$0xf]
        %v4247 = vld [vmem:[%s292 + $0x6c] sm:$0xf]
        %v4248 = vld [vmem:[%s292 + $0x70] sm:$0xf]
        %v4249 = vld [vmem:[%s292 + $0x74] sm:$0xf]
        %v4250 = vld [vmem:[%s292 + $0x78] sm:$0xf]
        %v4251 = vld [vmem:[%s292 + $0x7c] sm:$0xf]
        %v4252 = vld [vmem:[%s292 + $0x80] sm:$0xf]
        %v4253 = vld [vmem:[%s292 + $0x84] sm:$0xf]
        %v4254 = vld [vmem:[%s292 + $0x88] sm:$0xf]
        %v4255 = vld [vmem:[%s292 + $0x8c] sm:$0xf]
        %v4256 = vld [vmem:[%s292 + $0x90] sm:$0xf]
        %v4257 = vld [vmem:[%s292 + $0x94] sm:$0xf]
        %v4258 = vld [vmem:[%s292 + $0x98] sm:$0xf]
        %v4259 = vld [vmem:[%s292 + $0x9c] sm:$0xf]
        %v4260 = vld [vmem:[%s292 + $0xa0] sm:$0xf]
        %v4261 = vld [vmem:[%s292 + $0xa4] sm:$0xf]
        %v4262 = vld [vmem:[%s292 + $0xa8] sm:$0xf]
        %v4263 = vld [vmem:[%s292 + $0xac] sm:$0xf]
        %v4264 = vld [vmem:[%s292 + $0xb0] sm:$0xf]
        %v4265 = vld [vmem:[%s292 + $0xb4] sm:$0xf]
        %v4266 = vld [vmem:[%s292 + $0xb8] sm:$0xf]
        %v4267 = vld [vmem:[%s292 + $0xbc] sm:$0xf]
        %v4268 = vld [vmem:[%s292 + $0xc0] sm:$0xf]
        %v4269 = vld [vmem:[%s292 + $0xc4] sm:$0xf]
        %v4270 = vld [vmem:[%s292 + $0xc8] sm:$0xf]
        %v4271 = vld [vmem:[%s292 + $0xcc] sm:$0xf]
        %v4272 = vld [vmem:[%s292 + $0xd0] sm:$0xf]
        %v4273 = vld [vmem:[%s292 + $0xd4] sm:$0xf]
        %v4274 = vld [vmem:[%s292 + $0xd8] sm:$0xf]
        %v4275 = vld [vmem:[%s292 + $0xdc] sm:$0xf]
        %v4276 = vld [vmem:[%s292 + $0xe0] sm:$0xf]
        %v4277 = vld [vmem:[%s292 + $0xe4] sm:$0xf]
        %v4278 = vld [vmem:[%s292 + $0xe8] sm:$0xf]
        %v4279 = vld [vmem:[%s292 + $0xec] sm:$0xf]
        %v4280 = vld [vmem:[%s292 + $0xf0] sm:$0xf]
        %v4281 = vld [vmem:[%s292 + $0xf4] sm:$0xf]
        %v4282 = vld [vmem:[%s292 + $0xf8] sm:$0xf]
        %v4283 = vld [vmem:[%s292 + $0xfc] sm:$0xf]
        %v4284 = vld [vmem:[%s292 + $0x100] sm:$0xf]
        %v4285 = vld [vmem:[%s292 + $0x104] sm:$0xf]
        %v4286 = vld [vmem:[%s292 + $0x108] sm:$0xf]
        %v4287 = vld [vmem:[%s292 + $0x10c] sm:$0xf]
        %v4288 = vld [vmem:[%s292 + $0x110] sm:$0xf]
        %v4289 = vld [vmem:[%s292 + $0x114] sm:$0xf]
        %v4290 = vld [vmem:[%s292 + $0x118] sm:$0xf]
        %v4291 = vld [vmem:[%s292 + $0x11c] sm:$0xf]
        %v4292 = vld [vmem:[%s292 + $0x120] sm:$0xf]
        %v4293 = vld [vmem:[%s292 + $0x124] sm:$0xf]
        %v4294 = vld [vmem:[%s292 + $0x128] sm:$0xf]
        %v4295 = vld [vmem:[%s292 + $0x12c] sm:$0xf]
        %v4296 = vld [vmem:[%s292 + $0x130] sm:$0xf]
        %v4297 = vld [vmem:[%s292 + $0x134] sm:$0xf]
        %v4298 = vld [vmem:[%s292 + $0x138] sm:$0xf]
        %v4299 = vld [vmem:[%s292 + $0x13c] sm:$0xf]
        %v4300 = vld [vmem:[%s292 + $0x140] sm:$0xf]
        %v4301 = vld [vmem:[%s292 + $0x144] sm:$0xf]
        %v4302 = vld [vmem:[%s292 + $0x148] sm:$0xf]
        %v4303 = vld [vmem:[%s292 + $0x14c] sm:$0xf]
        %v4304 = vld [vmem:[%s292 + $0x150] sm:$0xf]
        %v4305 = vld [vmem:[%s292 + $0x154] sm:$0xf]
        %v4306 = vld [vmem:[%s292 + $0x158] sm:$0xf]
        %v4307 = vld [vmem:[%s292 + $0x15c] sm:$0xf]
        %v4308 = vld [vmem:[%s292 + $0x160] sm:$0xf]
        %v4309 = vld [vmem:[%s292 + $0x164] sm:$0xf]
        %v4310 = vld [vmem:[%s292 + $0x168] sm:$0xf]
        %v4311 = vld [vmem:[%s292 + $0x16c] sm:$0xf]
        %v4312 = vld [vmem:[%s292 + $0x170] sm:$0xf]
        %v4313 = vld [vmem:[%s292 + $0x174] sm:$0xf]
        %v4314 = vld [vmem:[%s292 + $0x178] sm:$0xf]
        %v4315 = vld [vmem:[%s292 + $0x17c] sm:$0xf]
        %v4316 = vld [vmem:[%s292 + $0x180] sm:$0xf]
        %v4317 = vld [vmem:[%s292 + $0x184] sm:$0xf]
        %v4318 = vld [vmem:[%s292 + $0x188] sm:$0xf]
        %v4319 = vld [vmem:[%s292 + $0x18c] sm:$0xf]
        %v4320 = vld [vmem:[%s292 + $0x190] sm:$0xf]
        %v4321 = vld [vmem:[%s292 + $0x194] sm:$0xf]
        %v4322 = vld [vmem:[%s292 + $0x198] sm:$0xf]
        %v4323 = vld [vmem:[%s292 + $0x19c] sm:$0xf]
        %v4324 = vld [vmem:[%s292 + $0x1a0] sm:$0xf]
        %v4325 = vld [vmem:[%s292 + $0x1a4] sm:$0xf]
        %v4326 = vld [vmem:[%s292 + $0x1a8] sm:$0xf]
        %v4327 = vld [vmem:[%s292 + $0x1ac] sm:$0xf]
        %v4328 = vld [vmem:[%s292 + $0x1b0] sm:$0xf]
        %v4329 = vld [vmem:[%s292 + $0x1b4] sm:$0xf]
        %v4330 = vld [vmem:[%s292 + $0x1b8] sm:$0xf]
        %v4331 = vld [vmem:[%s292 + $0x1bc] sm:$0xf]
        %v4332 = vld [vmem:[%s292 + $0x1c0] sm:$0xf]
        %v4333 = vld [vmem:[%s292 + $0x1c4] sm:$0xf]
        %v4334 = vld [vmem:[%s292 + $0x1c8] sm:$0xf]
        %v4335 = vld [vmem:[%s292 + $0x1cc] sm:$0xf]
        %v4336 = vld [vmem:[%s292 + $0x1d0] sm:$0xf]
        %v4337 = vld [vmem:[%s292 + $0x1d4] sm:$0xf]
        %v4338 = vld [vmem:[%s292 + $0x1d8] sm:$0xf]
        %v4339 = vld [vmem:[%s292 + $0x1dc] sm:$0xf]
        %v4340 = vld [vmem:[%s292 + $0x1e0] sm:$0xf]
        %v4341 = vld [vmem:[%s292 + $0x1e4] sm:$0xf]
        %v4342 = vld [vmem:[%s292 + $0x1e8] sm:$0xf]
        %v4343 = vld [vmem:[%s292 + $0x1ec] sm:$0xf]
        %v4344 = vld [vmem:[%s292 + $0x1f0] sm:$0xf]
        %v4345 = vld [vmem:[%s292 + $0x1f4] sm:$0xf]
        %v4346 = vld [vmem:[%s292 + $0x1f8] sm:$0xf]
        %v4347 = vld [vmem:[%s292 + $0x1fc] sm:$0xf]
        %v4348 = vld [vmem:[%s292 + $0x200] sm:$0xf]
        %v4349 = vld [vmem:[%s292 + $0x204] sm:$0xf]
        %v4350 = vld [vmem:[%s292 + $0x208] sm:$0xf]
        %v4351 = vld [vmem:[%s292 + $0x20c] sm:$0xf]
        %v4352 = vld [vmem:[%s292 + $0x210] sm:$0xf]
        %v4353 = vld [vmem:[%s292 + $0x214] sm:$0xf]
        %v4354 = vld [vmem:[%s292 + $0x218] sm:$0xf]
        %v4355 = vld [vmem:[%s292 + $0x21c] sm:$0xf]
        %v4356 = vld [vmem:[#allocation7 + $0x100] sm:$0xf]
        %v4357 = vld [vmem:[#allocation7 + $0x104] sm:$0xf]
        %v4358 = vld [vmem:[#allocation7 + $0x108] sm:$0xf]
        %v4359 = vld [vmem:[#allocation7 + $0x10c] sm:$0xf]
        %v4360 = vld [vmem:[#allocation7 + $0x110] sm:$0xf]
        %v4361 = vld [vmem:[#allocation7 + $0x114] sm:$0xf]
        %v4362 = vld [vmem:[#allocation7 + $0x118] sm:$0xf]
        %v4363 = vld [vmem:[#allocation7 + $0x11c] sm:$0xf]
        %v4364 = vld [vmem:[#allocation7 + $0x120] sm:$0xf]
        %v4365 = vld [vmem:[#allocation7 + $0x124] sm:$0xf]
        %v4366 = vld [vmem:[#allocation7 + $0x128] sm:$0xf]
        %v4367 = vld [vmem:[#allocation7 + $0x12c] sm:$0xf]
        %v4368 = vld [vmem:[#allocation7 + $0x130] sm:$0xf]
        %v4369 = vld [vmem:[#allocation7 + $0x134] sm:$0xf]
        %v4370 = vld [vmem:[#allocation7 + $0x138] sm:$0xf]
        %v4371 = vld [vmem:[#allocation7 + $0x13c] sm:$0xf]
        %v4500 = vunpack.c.l.b16 %v4228
        %v4501 = vunpack.c.l.b16 %v4229
        %v4502 = vunpack.c.l.b16 %v4230
        %v4503 = vunpack.c.l.b16 %v4231
        %v4504 = vunpack.c.l.b16 %v4232
        %v4505 = vunpack.c.l.b16 %v4233
        %v4506 = vunpack.c.l.b16 %v4234
        %v4507 = vunpack.c.l.b16 %v4235
        %v4508 = vunpack.c.l.b16 %v4236
        %v4509 = vunpack.c.l.b16 %v4237
        %v4510 = vunpack.c.l.b16 %v4238
        %v4511 = vunpack.c.l.b16 %v4239
        %v4512 = vunpack.c.l.b16 %v4240
        %v4513 = vunpack.c.l.b16 %v4241
        %v4514 = vunpack.c.l.b16 %v4242
        %v4515 = vunpack.c.l.b16 %v4243
        %v4516 = vunpack.c.l.b16 %v4244
        %v4517 = vunpack.c.l.b16 %v4245
        %v4518 = vunpack.c.l.b16 %v4246
        %v4519 = vunpack.c.l.b16 %v4247
        %v4520 = vunpack.c.l.b16 %v4248
        %v4521 = vunpack.c.l.b16 %v4249
        %v4522 = vunpack.c.l.b16 %v4250
        %v4523 = vunpack.c.l.b16 %v4251
        %v4524 = vunpack.c.l.b16 %v4252
        %v4525 = vunpack.c.l.b16 %v4253
        %v4526 = vunpack.c.l.b16 %v4254
        %v4527 = vunpack.c.l.b16 %v4255
        %v4528 = vunpack.c.l.b16 %v4256
        %v4529 = vunpack.c.l.b16 %v4257
        %v4530 = vunpack.c.l.b16 %v4258
        %v4531 = vunpack.c.l.b16 %v4259
        %v4532 = vunpack.c.l.b16 %v4260
        %v4533 = vunpack.c.l.b16 %v4261
        %v4534 = vunpack.c.l.b16 %v4262
        %v4535 = vunpack.c.l.b16 %v4263
        %v4536 = vunpack.c.l.b16 %v4264
        %v4537 = vunpack.c.l.b16 %v4265
        %v4538 = vunpack.c.l.b16 %v4266
        %v4539 = vunpack.c.l.b16 %v4267
        %v4540 = vunpack.c.l.b16 %v4268
        %v4541 = vunpack.c.l.b16 %v4269
        %v4542 = vunpack.c.l.b16 %v4270
        %v4543 = vunpack.c.l.b16 %v4271
        %v4544 = vunpack.c.l.b16 %v4272
        %v4545 = vunpack.c.l.b16 %v4273
        %v4546 = vunpack.c.l.b16 %v4274
        %v4547 = vunpack.c.l.b16 %v4275
        %v4548 = vunpack.c.l.b16 %v4276
        %v4549 = vunpack.c.l.b16 %v4277
        %v4550 = vunpack.c.l.b16 %v4278
        %v4551 = vunpack.c.l.b16 %v4279
        %v4552 = vunpack.c.l.b16 %v4280
        %v4553 = vunpack.c.l.b16 %v4281
        %v4554 = vunpack.c.l.b16 %v4282
        %v4555 = vunpack.c.l.b16 %v4283
        %v4556 = vunpack.c.l.b16 %v4284
        %v4557 = vunpack.c.l.b16 %v4285
        %v4558 = vunpack.c.l.b16 %v4286
        %v4559 = vunpack.c.l.b16 %v4287
        %v4560 = vunpack.c.l.b16 %v4288
        %v4561 = vunpack.c.l.b16 %v4289
        %v4562 = vunpack.c.l.b16 %v4290
        %v4563 = vunpack.c.l.b16 %v4291
        %v4564 = vunpack.c.l.b16 %v4292
        %v4565 = vunpack.c.l.b16 %v4293
        %v4566 = vunpack.c.l.b16 %v4294
        %v4567 = vunpack.c.l.b16 %v4295
        %v4568 = vunpack.c.l.b16 %v4296
        %v4569 = vunpack.c.l.b16 %v4297
        %v4570 = vunpack.c.l.b16 %v4298
        %v4571 = vunpack.c.l.b16 %v4299
        %v4572 = vunpack.c.l.b16 %v4300
        %v4573 = vunpack.c.l.b16 %v4301
        %v4574 = vunpack.c.l.b16 %v4302
        %v4575 = vunpack.c.l.b16 %v4303
        %v4576 = vunpack.c.l.b16 %v4304
        %v4577 = vunpack.c.l.b16 %v4305
        %v4578 = vunpack.c.l.b16 %v4306
        %v4579 = vunpack.c.l.b16 %v4307
        %v4580 = vunpack.c.l.b16 %v4308
        %v4581 = vunpack.c.l.b16 %v4309
        %v4582 = vunpack.c.l.b16 %v4310
        %v4583 = vunpack.c.l.b16 %v4311
        %v4584 = vunpack.c.l.b16 %v4312
        %v4585 = vunpack.c.l.b16 %v4313
        %v4586 = vunpack.c.l.b16 %v4314
        %v4587 = vunpack.c.l.b16 %v4315
        %v4588 = vunpack.c.l.b16 %v4316
        %v4589 = vunpack.c.l.b16 %v4317
        %v4590 = vunpack.c.l.b16 %v4318
        %v4591 = vunpack.c.l.b16 %v4319
        %v4592 = vunpack.c.l.b16 %v4320
        %v4593 = vunpack.c.l.b16 %v4321
        %v4594 = vunpack.c.l.b16 %v4322
        %v4595 = vunpack.c.l.b16 %v4323
        %v4596 = vunpack.c.l.b16 %v4324
        %v4597 = vunpack.c.l.b16 %v4325
        %v4598 = vunpack.c.l.b16 %v4326
        %v4599 = vunpack.c.l.b16 %v4327
        %v4600 = vunpack.c.l.b16 %v4328
        %v4601 = vunpack.c.l.b16 %v4329
        %v4602 = vunpack.c.l.b16 %v4330
        %v4603 = vunpack.c.l.b16 %v4331
        %v4604 = vunpack.c.l.b16 %v4332
        %v4605 = vunpack.c.l.b16 %v4333
        %v4606 = vunpack.c.l.b16 %v4334
        %v4607 = vunpack.c.l.b16 %v4335
        %v4608 = vunpack.c.l.b16 %v4336
        %v4609 = vunpack.c.l.b16 %v4337
        %v4610 = vunpack.c.l.b16 %v4338
        %v4611 = vunpack.c.l.b16 %v4339
        %v4612 = vunpack.c.l.b16 %v4340
        %v4613 = vunpack.c.l.b16 %v4341
        %v4614 = vunpack.c.l.b16 %v4342
        %v4615 = vunpack.c.l.b16 %v4343
        %v4616 = vunpack.c.l.b16 %v4344
        %v4617 = vunpack.c.l.b16 %v4345
        %v4618 = vunpack.c.l.b16 %v4346
        %v4619 = vunpack.c.l.b16 %v4347
        %v4620 = vunpack.c.l.b16 %v4348
        %v4621 = vunpack.c.l.b16 %v4349
        %v4622 = vunpack.c.l.b16 %v4350
        %v4623 = vunpack.c.l.b16 %v4351
        %v4624 = vunpack.c.l.b16 %v4352
        %v4625 = vunpack.c.l.b16 %v4353
        %v4626 = vunpack.c.l.b16 %v4354
        %v4627 = vunpack.c.l.b16 %v4355
        %v4628 = vpack.c.b16 %v4501, %v4500
        %v4629 = vpack.c.b16 %v4503, %v4502
        %v4630 = vpack.c.b16 %v4505, %v4504
        %v4631 = vpack.c.b16 %v4507, %v4506
        %v4632 = vpack.c.b16 %v4509, %v4508
        %v4633 = vpack.c.b16 %v4511, %v4510
        %v4634 = vpack.c.b16 %v4513, %v4512
        %v4635 = vpack.c.b16 %v4515, %v4514
        %v4636 = vpack.c.b16 %v4517, %v4516
        %v4637 = vpack.c.b16 %v4519, %v4518
        %v4638 = vpack.c.b16 %v4521, %v4520
        %v4639 = vpack.c.b16 %v4523, %v4522
        %v4640 = vpack.c.b16 %v4525, %v4524
        %v4641 = vpack.c.b16 %v4527, %v4526
        %v4642 = vpack.c.b16 %v4529, %v4528
        %v4643 = vpack.c.b16 %v4531, %v4530
        %v4644 = vpack.c.b16 %v4533, %v4532
        %v4645 = vpack.c.b16 %v4535, %v4534
        %v4646 = vpack.c.b16 %v4537, %v4536
        %v4647 = vpack.c.b16 %v4539, %v4538
        %v4648 = vpack.c.b16 %v4541, %v4540
        %v4649 = vpack.c.b16 %v4543, %v4542
        %v4650 = vpack.c.b16 %v4545, %v4544
        %v4651 = vpack.c.b16 %v4547, %v4546
        %v4652 = vpack.c.b16 %v4549, %v4548
        %v4653 = vpack.c.b16 %v4551, %v4550
        %v4654 = vpack.c.b16 %v4553, %v4552
        %v4655 = vpack.c.b16 %v4555, %v4554
        %v4656 = vpack.c.b16 %v4557, %v4556
        %v4657 = vpack.c.b16 %v4559, %v4558
        %v4658 = vpack.c.b16 %v4561, %v4560
        %v4659 = vpack.c.b16 %v4563, %v4562
        %v4660 = vpack.c.b16 %v4565, %v4564
        %v4661 = vpack.c.b16 %v4567, %v4566
        %v4662 = vpack.c.b16 %v4569, %v4568
        %v4663 = vpack.c.b16 %v4571, %v4570
        %v4664 = vpack.c.b16 %v4573, %v4572
        %v4665 = vpack.c.b16 %v4575, %v4574
        %v4666 = vpack.c.b16 %v4577, %v4576
        %v4667 = vpack.c.b16 %v4579, %v4578
        %v4668 = vpack.c.b16 %v4581, %v4580
        %v4669 = vpack.c.b16 %v4583, %v4582
        %v4670 = vpack.c.b16 %v4585, %v4584
        %v4671 = vpack.c.b16 %v4587, %v4586
        %v4672 = vpack.c.b16 %v4589, %v4588
        %v4673 = vpack.c.b16 %v4591, %v4590
        %v4674 = vpack.c.b16 %v4593, %v4592
        %v4675 = vpack.c.b16 %v4595, %v4594
        %v4676 = vpack.c.b16 %v4597, %v4596
        %v4677 = vpack.c.b16 %v4599, %v4598
        %v4678 = vpack.c.b16 %v4601, %v4600
        %v4679 = vpack.c.b16 %v4603, %v4602
        %v4680 = vpack.c.b16 %v4605, %v4604
        %v4681 = vpack.c.b16 %v4607, %v4606
        %v4682 = vpack.c.b16 %v4609, %v4608
        %v4683 = vpack.c.b16 %v4611, %v4610
        %v4684 = vpack.c.b16 %v4613, %v4612
        %v4685 = vpack.c.b16 %v4615, %v4614
        %v4686 = vpack.c.b16 %v4617, %v4616
        %v4687 = vpack.c.b16 %v4619, %v4618
        %v4688 = vpack.c.b16 %v4621, %v4620
        %v4689 = vpack.c.b16 %v4623, %v4622
        %v4690 = vpack.c.b16 %v4625, %v4624
        %v4691 = vpack.c.b16 %v4627, %v4626
        %v4772 = vunpack.c.l.b16 %v4356
        %v4773 = vunpack.c.l.b16 %v4357
        %v4774 = vunpack.c.l.b16 %v4358
        %v4775 = vunpack.c.l.b16 %v4359
        %v4776 = vunpack.c.l.b16 %v4360
        %v4777 = vunpack.c.l.b16 %v4361
        %v4778 = vunpack.c.l.b16 %v4362
        %v4779 = vunpack.c.l.b16 %v4363
        %v4780 = vunpack.c.l.b16 %v4364
        %v4781 = vunpack.c.l.b16 %v4365
        %v4782 = vunpack.c.l.b16 %v4366
        %v4783 = vunpack.c.l.b16 %v4367
        %v4784 = vunpack.c.l.b16 %v4368
        %v4785 = vunpack.c.l.b16 %v4369
        %v4786 = vunpack.c.l.b16 %v4370
        %v4787 = vunpack.c.l.b16 %v4371
        %v4788 = vpack.c.b16 %v4773, %v4772
        %v4789 = vpack.c.b16 %v4775, %v4774
        %v4790 = vpack.c.b16 %v4777, %v4776
        %v4791 = vpack.c.b16 %v4779, %v4778
        %v4792 = vpack.c.b16 %v4781, %v4780
        %v4793 = vpack.c.b16 %v4783, %v4782
        %v4794 = vpack.c.b16 %v4785, %v4784
        %v4795 = vpack.c.b16 %v4787, %v4786
        %4804 = vmatpush.bf16.msra.mxu0 %v4795
        %4805 = vmatpush.bf16.msra.mxu0 %v4794
        %4806 = vmatpush.bf16.msra.mxu0 %v4793
        %4807 = vmatpush.bf16.msra.mxu0 %v4792
        %4808 = vmatpush.bf16.msra.mxu0 %v4791
        %4809 = vmatpush.bf16.msra.mxu0 %v4790
        %4810 = vmatpush.bf16.msra.mxu0 %v4789
        %4811 = vmatpush.bf16.msra.mxu0 %v4788
        %4812 = vmatmul.bf16.gmra.mxu0 %v4628
        %v4813 = vpop.f32.mrf.mxu0
        %v4814 = vadd.f32 0.0, %v4813
        %v4815 = vpop.f32.mrf.mxu0
        %v4816 = vadd.f32 0.0, %v4815
        %4817 = vmatmul.bf16.gmra.mxu0 %v4629
        %v4818 = vpop.f32.mrf.mxu0
        %v4819 = vadd.f32 0.0, %v4818
        %v4820 = vpop.f32.mrf.mxu0
        %v4821 = vadd.f32 0.0, %v4820
        %4822 = vmatmul.bf16.gmra.mxu0 %v4630
        %v4823 = vpop.f32.mrf.mxu0
        %v4824 = vadd.f32 0.0, %v4823
        %v4825 = vpop.f32.mrf.mxu0
        %v4826 = vadd.f32 0.0, %v4825
        %4827 = vmatmul.bf16.gmra.mxu0 %v4631
        %v4828 = vpop.f32.mrf.mxu0
        %v4829 = vadd.f32 0.0, %v4828
        %v4830 = vpop.f32.mrf.mxu0
        %v4831 = vadd.f32 0.0, %v4830
        %4832 = vmatmul.bf16.gmra.mxu0 %v4632
        %v4833 = vpop.f32.mrf.mxu0
        %v4834 = vadd.f32 0.0, %v4833
        %v4835 = vpop.f32.mrf.mxu0
        %v4836 = vadd.f32 0.0, %v4835
        %4837 = vmatmul.bf16.gmra.mxu0 %v4633
        %v4838 = vpop.f32.mrf.mxu0
        %v4839 = vadd.f32 0.0, %v4838
        %v4840 = vpop.f32.mrf.mxu0
        %v4841 = vadd.f32 0.0, %v4840
        %4842 = vmatmul.bf16.gmra.mxu0 %v4634
        %v4843 = vpop.f32.mrf.mxu0
        %v4844 = vadd.f32 0.0, %v4843
        %v4845 = vpop.f32.mrf.mxu0
        %v4846 = vadd.f32 0.0, %v4845
        %4847 = vmatmul.bf16.gmra.mxu0 %v4635
        %v4848 = vpop.f32.mrf.mxu0
        %v4849 = vadd.f32 0.0, %v4848
        %v4850 = vpop.f32.mrf.mxu0
        %v4851 = vadd.f32 0.0, %v4850
        %4852 = vmatmul.bf16.gmra.mxu0 %v4636
        %v4853 = vpop.f32.mrf.mxu0
        %v4854 = vadd.f32 0.0, %v4853
        %v4855 = vpop.f32.mrf.mxu0
        %v4856 = vadd.f32 0.0, %v4855
        %4857 = vmatmul.bf16.gmra.mxu0 %v4637
        %v4858 = vpop.f32.mrf.mxu0
        %v4859 = vadd.f32 0.0, %v4858
        %v4860 = vpop.f32.mrf.mxu0
        %v4861 = vadd.f32 0.0, %v4860
        %4862 = vmatmul.bf16.gmra.mxu0 %v4638
        %v4863 = vpop.f32.mrf.mxu0
        %v4864 = vadd.f32 0.0, %v4863
        %v4865 = vpop.f32.mrf.mxu0
        %v4866 = vadd.f32 0.0, %v4865
        %4867 = vmatmul.bf16.gmra.mxu0 %v4639
        %v4868 = vpop.f32.mrf.mxu0
        %v4869 = vadd.f32 0.0, %v4868
        %v4870 = vpop.f32.mrf.mxu0
        %v4871 = vadd.f32 0.0, %v4870
        %4872 = vmatmul.bf16.gmra.mxu0 %v4640
        %v4873 = vpop.f32.mrf.mxu0
        %v4874 = vadd.f32 0.0, %v4873
        %v4875 = vpop.f32.mrf.mxu0
        %v4876 = vadd.f32 0.0, %v4875
        %4877 = vmatmul.bf16.gmra.mxu0 %v4641
        %v4878 = vpop.f32.mrf.mxu0
        %v4879 = vadd.f32 0.0, %v4878
        %v4880 = vpop.f32.mrf.mxu0
        %v4881 = vadd.f32 0.0, %v4880
        %4882 = vmatmul.bf16.gmra.mxu0 %v4642
        %v4883 = vpop.f32.mrf.mxu0
        %v4884 = vadd.f32 0.0, %v4883
        %v4885 = vpop.f32.mrf.mxu0
        %v4886 = vadd.f32 0.0, %v4885
        %4887 = vmatmul.bf16.gmra.mxu0 %v4643
        %v4888 = vpop.f32.mrf.mxu0
        %v4889 = vadd.f32 0.0, %v4888
        %v4890 = vpop.f32.mrf.mxu0
        %v4891 = vadd.f32 0.0, %v4890
        %4892 = vmatmul.bf16.gmra.mxu0 %v4644
        %v4893 = vpop.f32.mrf.mxu0
        %v4894 = vadd.f32 0.0, %v4893
        %v4895 = vpop.f32.mrf.mxu0
        %v4896 = vadd.f32 0.0, %v4895
        %4897 = vmatmul.bf16.gmra.mxu0 %v4645
        %v4898 = vpop.f32.mrf.mxu0
        %v4899 = vadd.f32 0.0, %v4898
        %v4900 = vpop.f32.mrf.mxu0
        %v4901 = vadd.f32 0.0, %v4900
        %4902 = vmatmul.bf16.gmra.mxu0 %v4646
        %v4903 = vpop.f32.mrf.mxu0
        %v4904 = vadd.f32 0.0, %v4903
        %v4905 = vpop.f32.mrf.mxu0
        %v4906 = vadd.f32 0.0, %v4905
        %4907 = vmatmul.bf16.gmra.mxu0 %v4647
        %v4908 = vpop.f32.mrf.mxu0
        %v4909 = vadd.f32 0.0, %v4908
        %v4910 = vpop.f32.mrf.mxu0
        %v4911 = vadd.f32 0.0, %v4910
        %4912 = vmatmul.bf16.gmra.mxu0 %v4648
        %v4913 = vpop.f32.mrf.mxu0
        %v4914 = vadd.f32 0.0, %v4913
        %v4915 = vpop.f32.mrf.mxu0
        %v4916 = vadd.f32 0.0, %v4915
        %4917 = vmatmul.bf16.gmra.mxu0 %v4649
        %v4918 = vpop.f32.mrf.mxu0
        %v4919 = vadd.f32 0.0, %v4918
        %v4920 = vpop.f32.mrf.mxu0
        %v4921 = vadd.f32 0.0, %v4920
        %4922 = vmatmul.bf16.gmra.mxu0 %v4650
        %v4923 = vpop.f32.mrf.mxu0
        %v4924 = vadd.f32 0.0, %v4923
        %v4925 = vpop.f32.mrf.mxu0
        %v4926 = vadd.f32 0.0, %v4925
        %4927 = vmatmul.bf16.gmra.mxu0 %v4651
        %v4928 = vpop.f32.mrf.mxu0
        %v4929 = vadd.f32 0.0, %v4928
        %v4930 = vpop.f32.mrf.mxu0
        %v4931 = vadd.f32 0.0, %v4930
        %4932 = vmatmul.bf16.gmra.mxu0 %v4652
        %v4933 = vpop.f32.mrf.mxu0
        %v4934 = vadd.f32 0.0, %v4933
        %v4935 = vpop.f32.mrf.mxu0
        %v4936 = vadd.f32 0.0, %v4935
        %4937 = vmatmul.bf16.gmra.mxu0 %v4653
        %v4938 = vpop.f32.mrf.mxu0
        %v4939 = vadd.f32 0.0, %v4938
        %v4940 = vpop.f32.mrf.mxu0
        %v4941 = vadd.f32 0.0, %v4940
        %4942 = vmatmul.bf16.gmra.mxu0 %v4654
        %v4943 = vpop.f32.mrf.mxu0
        %v4944 = vadd.f32 0.0, %v4943
        %v4945 = vpop.f32.mrf.mxu0
        %v4946 = vadd.f32 0.0, %v4945
        %4947 = vmatmul.bf16.gmra.mxu0 %v4655
        %v4948 = vpop.f32.mrf.mxu0
        %v4949 = vadd.f32 0.0, %v4948
        %v4950 = vpop.f32.mrf.mxu0
        %v4951 = vadd.f32 0.0, %v4950
        %4952 = vmatmul.bf16.gmra.mxu0 %v4656
        %v4953 = vpop.f32.mrf.mxu0
        %v4954 = vadd.f32 0.0, %v4953
        %v4955 = vpop.f32.mrf.mxu0
        %v4956 = vadd.f32 0.0, %v4955
        %4957 = vmatmul.bf16.gmra.mxu0 %v4657
        %v4958 = vpop.f32.mrf.mxu0
        %v4959 = vadd.f32 0.0, %v4958
        %v4960 = vpop.f32.mrf.mxu0
        %v4961 = vadd.f32 0.0, %v4960
        %4962 = vmatmul.bf16.gmra.mxu0 %v4658
        %v4963 = vpop.f32.mrf.mxu0
        %v4964 = vadd.f32 0.0, %v4963
        %v4965 = vpop.f32.mrf.mxu0
        %v4966 = vadd.f32 0.0, %v4965
        %4967 = vmatmul.bf16.gmra.mxu0 %v4659
        %v4968 = vpop.f32.mrf.mxu0
        %v4969 = vadd.f32 0.0, %v4968
        %v4970 = vpop.f32.mrf.mxu0
        %v4971 = vadd.f32 0.0, %v4970
        %4972 = vmatmul.bf16.gmra.mxu0 %v4660
        %v4973 = vpop.f32.mrf.mxu0
        %v4974 = vadd.f32 0.0, %v4973
        %v4975 = vpop.f32.mrf.mxu0
        %v4976 = vadd.f32 0.0, %v4975
        %4977 = vmatmul.bf16.gmra.mxu0 %v4661
        %v4978 = vpop.f32.mrf.mxu0
        %v4979 = vadd.f32 0.0, %v4978
        %v4980 = vpop.f32.mrf.mxu0
        %v4981 = vadd.f32 0.0, %v4980
        %4982 = vmatmul.bf16.gmra.mxu0 %v4662
        %v4983 = vpop.f32.mrf.mxu0
        %v4984 = vadd.f32 0.0, %v4983
        %v4985 = vpop.f32.mrf.mxu0
        %v4986 = vadd.f32 0.0, %v4985
        %4987 = vmatmul.bf16.gmra.mxu0 %v4663
        %v4988 = vpop.f32.mrf.mxu0
        %v4989 = vadd.f32 0.0, %v4988
        %v4990 = vpop.f32.mrf.mxu0
        %v4991 = vadd.f32 0.0, %v4990
        %4992 = vmatmul.bf16.gmra.mxu0 %v4664
        %v4993 = vpop.f32.mrf.mxu0
        %v4994 = vadd.f32 0.0, %v4993
        %v4995 = vpop.f32.mrf.mxu0
        %v4996 = vadd.f32 0.0, %v4995
        %4997 = vmatmul.bf16.gmra.mxu0 %v4665
        %v4998 = vpop.f32.mrf.mxu0
        %v4999 = vadd.f32 0.0, %v4998
        %v5000 = vpop.f32.mrf.mxu0
        %v5001 = vadd.f32 0.0, %v5000
        %5002 = vmatmul.bf16.gmra.mxu0 %v4666
        %v5003 = vpop.f32.mrf.mxu0
        %v5004 = vadd.f32 0.0, %v5003
        %v5005 = vpop.f32.mrf.mxu0
        %v5006 = vadd.f32 0.0, %v5005
        %5007 = vmatmul.bf16.gmra.mxu0 %v4667
        %v5008 = vpop.f32.mrf.mxu0
        %v5009 = vadd.f32 0.0, %v5008
        %v5010 = vpop.f32.mrf.mxu0
        %v5011 = vadd.f32 0.0, %v5010
        %5012 = vmatmul.bf16.gmra.mxu0 %v4668
        %v5013 = vpop.f32.mrf.mxu0
        %v5014 = vadd.f32 0.0, %v5013
        %v5015 = vpop.f32.mrf.mxu0
        %v5016 = vadd.f32 0.0, %v5015
        %5017 = vmatmul.bf16.gmra.mxu0 %v4669
        %v5018 = vpop.f32.mrf.mxu0
        %v5019 = vadd.f32 0.0, %v5018
        %v5020 = vpop.f32.mrf.mxu0
        %v5021 = vadd.f32 0.0, %v5020
        %5022 = vmatmul.bf16.gmra.mxu0 %v4670
        %v5023 = vpop.f32.mrf.mxu0
        %v5024 = vadd.f32 0.0, %v5023
        %v5025 = vpop.f32.mrf.mxu0
        %v5026 = vadd.f32 0.0, %v5025
        %5027 = vmatmul.bf16.gmra.mxu0 %v4671
        %v5028 = vpop.f32.mrf.mxu0
        %v5029 = vadd.f32 0.0, %v5028
        %v5030 = vpop.f32.mrf.mxu0
        %v5031 = vadd.f32 0.0, %v5030
        %5032 = vmatmul.bf16.gmra.mxu0 %v4672
        %v5033 = vpop.f32.mrf.mxu0
        %v5034 = vadd.f32 0.0, %v5033
        %v5035 = vpop.f32.mrf.mxu0
        %v5036 = vadd.f32 0.0, %v5035
        %5037 = vmatmul.bf16.gmra.mxu0 %v4673
        %v5038 = vpop.f32.mrf.mxu0
        %v5039 = vadd.f32 0.0, %v5038
        %v5040 = vpop.f32.mrf.mxu0
        %v5041 = vadd.f32 0.0, %v5040
        %5042 = vmatmul.bf16.gmra.mxu0 %v4674
        %v5043 = vpop.f32.mrf.mxu0
        %v5044 = vadd.f32 0.0, %v5043
        %v5045 = vpop.f32.mrf.mxu0
        %v5046 = vadd.f32 0.0, %v5045
        %5047 = vmatmul.bf16.gmra.mxu0 %v4675
        %v5048 = vpop.f32.mrf.mxu0
        %v5049 = vadd.f32 0.0, %v5048
        %v5050 = vpop.f32.mrf.mxu0
        %v5051 = vadd.f32 0.0, %v5050
        %5052 = vmatmul.bf16.gmra.mxu0 %v4676
        %v5053 = vpop.f32.mrf.mxu0
        %v5054 = vadd.f32 0.0, %v5053
        %v5055 = vpop.f32.mrf.mxu0
        %v5056 = vadd.f32 0.0, %v5055
        %5057 = vmatmul.bf16.gmra.mxu0 %v4677
        %v5058 = vpop.f32.mrf.mxu0
        %v5059 = vadd.f32 0.0, %v5058
        %v5060 = vpop.f32.mrf.mxu0
        %v5061 = vadd.f32 0.0, %v5060
        %5062 = vmatmul.bf16.gmra.mxu0 %v4678
        %v5063 = vpop.f32.mrf.mxu0
        %v5064 = vadd.f32 0.0, %v5063
        %v5065 = vpop.f32.mrf.mxu0
        %v5066 = vadd.f32 0.0, %v5065
        %5067 = vmatmul.bf16.gmra.mxu0 %v4679
        %v5068 = vpop.f32.mrf.mxu0
        %v5069 = vadd.f32 0.0, %v5068
        %v5070 = vpop.f32.mrf.mxu0
        %v5071 = vadd.f32 0.0, %v5070
        %5072 = vmatmul.bf16.gmra.mxu0 %v4680
        %v5073 = vpop.f32.mrf.mxu0
        %v5074 = vadd.f32 0.0, %v5073
        %v5075 = vpop.f32.mrf.mxu0
        %v5076 = vadd.f32 0.0, %v5075
        %5077 = vmatmul.bf16.gmra.mxu0 %v4681
        %v5078 = vpop.f32.mrf.mxu0
        %v5079 = vadd.f32 0.0, %v5078
        %v5080 = vpop.f32.mrf.mxu0
        %v5081 = vadd.f32 0.0, %v5080
        %5082 = vmatmul.bf16.gmra.mxu0 %v4682
        %v5083 = vpop.f32.mrf.mxu0
        %v5084 = vadd.f32 0.0, %v5083
        %v5085 = vpop.f32.mrf.mxu0
        %v5086 = vadd.f32 0.0, %v5085
        %5087 = vmatmul.bf16.gmra.mxu0 %v4683
        %v5088 = vpop.f32.mrf.mxu0
        %v5089 = vadd.f32 0.0, %v5088
        %v5090 = vpop.f32.mrf.mxu0
        %v5091 = vadd.f32 0.0, %v5090
        %5092 = vmatmul.bf16.gmra.mxu0 %v4684
        %v5093 = vpop.f32.mrf.mxu0
        %v5094 = vadd.f32 0.0, %v5093
        %v5095 = vpop.f32.mrf.mxu0
        %v5096 = vadd.f32 0.0, %v5095
        %5097 = vmatmul.bf16.gmra.mxu0 %v4685
        %v5098 = vpop.f32.mrf.mxu0
        %v5099 = vadd.f32 0.0, %v5098
        %v5100 = vpop.f32.mrf.mxu0
        %v5101 = vadd.f32 0.0, %v5100
        %5102 = vmatmul.bf16.gmra.mxu0 %v4686
        %v5103 = vpop.f32.mrf.mxu0
        %v5104 = vadd.f32 0.0, %v5103
        %v5105 = vpop.f32.mrf.mxu0
        %v5106 = vadd.f32 0.0, %v5105
        %5107 = vmatmul.bf16.gmra.mxu0 %v4687
        %v5108 = vpop.f32.mrf.mxu0
        %v5109 = vadd.f32 0.0, %v5108
        %v5110 = vpop.f32.mrf.mxu0
        %v5111 = vadd.f32 0.0, %v5110
        %5112 = vmatmul.bf16.gmra.mxu0 %v4688
        %v5113 = vpop.f32.mrf.mxu0
        %v5114 = vadd.f32 0.0, %v5113
        %v5115 = vpop.f32.mrf.mxu0
        %v5116 = vadd.f32 0.0, %v5115
        %5117 = vmatmul.bf16.gmra.mxu0 %v4689
        %v5118 = vpop.f32.mrf.mxu0
        %v5119 = vadd.f32 0.0, %v5118
        %v5120 = vpop.f32.mrf.mxu0
        %v5121 = vadd.f32 0.0, %v5120
        %5122 = vmatmul.bf16.gmra.mxu0 %v4690
        %v5123 = vpop.f32.mrf.mxu0
        %v5124 = vadd.f32 0.0, %v5123
        %v5125 = vpop.f32.mrf.mxu0
        %v5126 = vadd.f32 0.0, %v5125
        %5127 = vmatmul.bf16.gmra.mxu0 %v4691
        %v5128 = vpop.f32.mrf.mxu0
        %v5129 = vadd.f32 0.0, %v5128
        %v5130 = vpop.f32.mrf.mxu0
        %v5131 = vadd.f32 0.0, %v5130
        %5132 = vdwg.mxu0
        %v5133 = vadd.f32 %v4100, %v4814
        %v5134 = vadd.f32 %v4101, %v4816
        %v5135 = vadd.f32 %v4102, %v4819
        %v5136 = vadd.f32 %v4103, %v4821
        %v5137 = vadd.f32 %v4104, %v4824
        %v5138 = vadd.f32 %v4105, %v4826
        %v5139 = vadd.f32 %v4106, %v4829
        %v5140 = vadd.f32 %v4107, %v4831
        %v5141 = vadd.f32 %v4108, %v4834
        %v5142 = vadd.f32 %v4109, %v4836
        %v5143 = vadd.f32 %v4110, %v4839
        %v5144 = vadd.f32 %v4111, %v4841
        %v5145 = vadd.f32 %v4112, %v4844
        %v5146 = vadd.f32 %v4113, %v4846
        %v5147 = vadd.f32 %v4114, %v4849
        %v5148 = vadd.f32 %v4115, %v4851
        %v5149 = vadd.f32 %v4116, %v4854
        %v5150 = vadd.f32 %v4117, %v4856
        %v5151 = vadd.f32 %v4118, %v4859
        %v5152 = vadd.f32 %v4119, %v4861
        %v5153 = vadd.f32 %v4120, %v4864
        %v5154 = vadd.f32 %v4121, %v4866
        %v5155 = vadd.f32 %v4122, %v4869
        %v5156 = vadd.f32 %v4123, %v4871
        %v5157 = vadd.f32 %v4124, %v4874
        %v5158 = vadd.f32 %v4125, %v4876
        %v5159 = vadd.f32 %v4126, %v4879
        %v5160 = vadd.f32 %v4127, %v4881
        %v5161 = vadd.f32 %v4128, %v4884
        %v5162 = vadd.f32 %v4129, %v4886
        %v5163 = vadd.f32 %v4130, %v4889
        %v5164 = vadd.f32 %v4131, %v4891
        %v5165 = vadd.f32 %v4132, %v4894
        %v5166 = vadd.f32 %v4133, %v4896
        %v5167 = vadd.f32 %v4134, %v4899
        %v5168 = vadd.f32 %v4135, %v4901
        %v5169 = vadd.f32 %v4136, %v4904
        %v5170 = vadd.f32 %v4137, %v4906
        %v5171 = vadd.f32 %v4138, %v4909
        %v5172 = vadd.f32 %v4139, %v4911
        %v5173 = vadd.f32 %v4140, %v4914
        %v5174 = vadd.f32 %v4141, %v4916
        %v5175 = vadd.f32 %v4142, %v4919
        %v5176 = vadd.f32 %v4143, %v4921
        %v5177 = vadd.f32 %v4144, %v4924
        %v5178 = vadd.f32 %v4145, %v4926
        %v5179 = vadd.f32 %v4146, %v4929
        %v5180 = vadd.f32 %v4147, %v4931
        %v5181 = vadd.f32 %v4148, %v4934
        %v5182 = vadd.f32 %v4149, %v4936
        %v5183 = vadd.f32 %v4150, %v4939
        %v5184 = vadd.f32 %v4151, %v4941
        %v5185 = vadd.f32 %v4152, %v4944
        %v5186 = vadd.f32 %v4153, %v4946
        %v5187 = vadd.f32 %v4154, %v4949
        %v5188 = vadd.f32 %v4155, %v4951
        %v5189 = vadd.f32 %v4156, %v4954
        %v5190 = vadd.f32 %v4157, %v4956
        %v5191 = vadd.f32 %v4158, %v4959
        %v5192 = vadd.f32 %v4159, %v4961
        %v5193 = vadd.f32 %v4160, %v4964
        %v5194 = vadd.f32 %v4161, %v4966
        %v5195 = vadd.f32 %v4162, %v4969
        %v5196 = vadd.f32 %v4163, %v4971
        %v5197 = vadd.f32 %v4164, %v4974
        %v5198 = vadd.f32 %v4165, %v4976
        %v5199 = vadd.f32 %v4166, %v4979
        %v5200 = vadd.f32 %v4167, %v4981
        %v5201 = vadd.f32 %v4168, %v4984
        %v5202 = vadd.f32 %v4169, %v4986
        %v5203 = vadd.f32 %v4170, %v4989
        %v5204 = vadd.f32 %v4171, %v4991
        %v5205 = vadd.f32 %v4172, %v4994
        %v5206 = vadd.f32 %v4173, %v4996
        %v5207 = vadd.f32 %v4174, %v4999
        %v5208 = vadd.f32 %v4175, %v5001
        %v5209 = vadd.f32 %v4176, %v5004
        %v5210 = vadd.f32 %v4177, %v5006
        %v5211 = vadd.f32 %v4178, %v5009
        %v5212 = vadd.f32 %v4179, %v5011
        %v5213 = vadd.f32 %v4180, %v5014
        %v5214 = vadd.f32 %v4181, %v5016
        %v5215 = vadd.f32 %v4182, %v5019
        %v5216 = vadd.f32 %v4183, %v5021
        %v5217 = vadd.f32 %v4184, %v5024
        %v5218 = vadd.f32 %v4185, %v5026
        %v5219 = vadd.f32 %v4186, %v5029
        %v5220 = vadd.f32 %v4187, %v5031
        %v5221 = vadd.f32 %v4188, %v5034
        %v5222 = vadd.f32 %v4189, %v5036
        %v5223 = vadd.f32 %v4190, %v5039
        %v5224 = vadd.f32 %v4191, %v5041
        %v5225 = vadd.f32 %v4192, %v5044
        %v5226 = vadd.f32 %v4193, %v5046
        %v5227 = vadd.f32 %v4194, %v5049
        %v5228 = vadd.f32 %v4195, %v5051
        %v5229 = vadd.f32 %v4196, %v5054
        %v5230 = vadd.f32 %v4197, %v5056
        %v5231 = vadd.f32 %v4198, %v5059
        %v5232 = vadd.f32 %v4199, %v5061
        %v5233 = vadd.f32 %v4200, %v5064
        %v5234 = vadd.f32 %v4201, %v5066
        %v5235 = vadd.f32 %v4202, %v5069
        %v5236 = vadd.f32 %v4203, %v5071
        %v5237 = vadd.f32 %v4204, %v5074
        %v5238 = vadd.f32 %v4205, %v5076
        %v5239 = vadd.f32 %v4206, %v5079
        %v5240 = vadd.f32 %v4207, %v5081
        %v5241 = vadd.f32 %v4208, %v5084
        %v5242 = vadd.f32 %v4209, %v5086
        %v5243 = vadd.f32 %v4210, %v5089
        %v5244 = vadd.f32 %v4211, %v5091
        %v5245 = vadd.f32 %v4212, %v5094
        %v5246 = vadd.f32 %v4213, %v5096
        %v5247 = vadd.f32 %v4214, %v5099
        %v5248 = vadd.f32 %v4215, %v5101
        %v5249 = vadd.f32 %v4216, %v5104
        %v5250 = vadd.f32 %v4217, %v5106
        %v5251 = vadd.f32 %v4218, %v5109
        %v5252 = vadd.f32 %v4219, %v5111
        %v5253 = vadd.f32 %v4220, %v5114
        %v5254 = vadd.f32 %v4221, %v5116
        %v5255 = vadd.f32 %v4222, %v5119
        %v5256 = vadd.f32 %v4223, %v5121
        %v5257 = vadd.f32 %v4224, %v5124
        %v5258 = vadd.f32 %v4225, %v5126
        %v5259 = vadd.f32 %v4226, %v5129
        %v5260 = vadd.f32 %v4227, %v5131
        %v5261 = vld [vmem:[%s302 + $0x20] sm:$0xf]
        %v5262 = vld [vmem:[%s302 + $0x24] sm:$0xf]
        %v5263 = vld [vmem:[%s302 + $0x28] sm:$0xf]
        %v5264 = vld [vmem:[%s302 + $0x2c] sm:$0xf]
        %v5265 = vld [vmem:[%s302 + $0x30] sm:$0xf]
        %v5266 = vld [vmem:[%s302 + $0x34] sm:$0xf]
        %v5267 = vld [vmem:[%s302 + $0x38] sm:$0xf]
        %v5268 = vld [vmem:[%s302 + $0x3c] sm:$0xf]
        %v5269 = vld [vmem:[%s302 + $0x40] sm:$0xf]
        %v5270 = vld [vmem:[%s302 + $0x44] sm:$0xf]
        %v5271 = vld [vmem:[%s302 + $0x48] sm:$0xf]
        %v5272 = vld [vmem:[%s302 + $0x4c] sm:$0xf]
        %v5273 = vld [vmem:[%s302 + $0x50] sm:$0xf]
        %v5274 = vld [vmem:[%s302 + $0x54] sm:$0xf]
        %v5275 = vld [vmem:[%s302 + $0x58] sm:$0xf]
        %v5276 = vld [vmem:[%s302 + $0x5c] sm:$0xf]
        %v5277 = vld [vmem:[%s302 + $0x60] sm:$0xf]
        %v5278 = vld [vmem:[%s302 + $0x64] sm:$0xf]
        %v5279 = vld [vmem:[%s302 + $0x68] sm:$0xf]
        %v5280 = vld [vmem:[%s302 + $0x6c] sm:$0xf]
        %v5281 = vld [vmem:[%s302 + $0x70] sm:$0xf]
        %v5282 = vld [vmem:[%s302 + $0x74] sm:$0xf]
        %v5283 = vld [vmem:[%s302 + $0x78] sm:$0xf]
        %v5284 = vld [vmem:[%s302 + $0x7c] sm:$0xf]
        %v5285 = vld [vmem:[%s302 + $0x80] sm:$0xf]
        %v5286 = vld [vmem:[%s302 + $0x84] sm:$0xf]
        %v5287 = vld [vmem:[%s302 + $0x88] sm:$0xf]
        %v5288 = vld [vmem:[%s302 + $0x8c] sm:$0xf]
        %v5289 = vld [vmem:[%s302 + $0x90] sm:$0xf]
        %v5290 = vld [vmem:[%s302 + $0x94] sm:$0xf]
        %v5291 = vld [vmem:[%s302 + $0x98] sm:$0xf]
        %v5292 = vld [vmem:[%s302 + $0x9c] sm:$0xf]
        %v5293 = vld [vmem:[%s302 + $0xa0] sm:$0xf]
        %v5294 = vld [vmem:[%s302 + $0xa4] sm:$0xf]
        %v5295 = vld [vmem:[%s302 + $0xa8] sm:$0xf]
        %v5296 = vld [vmem:[%s302 + $0xac] sm:$0xf]
        %v5297 = vld [vmem:[%s302 + $0xb0] sm:$0xf]
        %v5298 = vld [vmem:[%s302 + $0xb4] sm:$0xf]
        %v5299 = vld [vmem:[%s302 + $0xb8] sm:$0xf]
        %v5300 = vld [vmem:[%s302 + $0xbc] sm:$0xf]
        %v5301 = vld [vmem:[%s302 + $0xc0] sm:$0xf]
        %v5302 = vld [vmem:[%s302 + $0xc4] sm:$0xf]
        %v5303 = vld [vmem:[%s302 + $0xc8] sm:$0xf]
        %v5304 = vld [vmem:[%s302 + $0xcc] sm:$0xf]
        %v5305 = vld [vmem:[%s302 + $0xd0] sm:$0xf]
        %v5306 = vld [vmem:[%s302 + $0xd4] sm:$0xf]
        %v5307 = vld [vmem:[%s302 + $0xd8] sm:$0xf]
        %v5308 = vld [vmem:[%s302 + $0xdc] sm:$0xf]
        %v5309 = vld [vmem:[%s302 + $0xe0] sm:$0xf]
        %v5310 = vld [vmem:[%s302 + $0xe4] sm:$0xf]
        %v5311 = vld [vmem:[%s302 + $0xe8] sm:$0xf]
        %v5312 = vld [vmem:[%s302 + $0xec] sm:$0xf]
        %v5313 = vld [vmem:[%s302 + $0xf0] sm:$0xf]
        %v5314 = vld [vmem:[%s302 + $0xf4] sm:$0xf]
        %v5315 = vld [vmem:[%s302 + $0xf8] sm:$0xf]
        %v5316 = vld [vmem:[%s302 + $0xfc] sm:$0xf]
        %v5317 = vld [vmem:[%s302 + $0x100] sm:$0xf]
        %v5318 = vld [vmem:[%s302 + $0x104] sm:$0xf]
        %v5319 = vld [vmem:[%s302 + $0x108] sm:$0xf]
        %v5320 = vld [vmem:[%s302 + $0x10c] sm:$0xf]
        %v5321 = vld [vmem:[%s302 + $0x110] sm:$0xf]
        %v5322 = vld [vmem:[%s302 + $0x114] sm:$0xf]
        %v5323 = vld [vmem:[%s302 + $0x118] sm:$0xf]
        %v5324 = vld [vmem:[%s302 + $0x11c] sm:$0xf]
        %v5325 = vld [vmem:[%s302 + $0x120] sm:$0xf]
        %v5326 = vld [vmem:[%s302 + $0x124] sm:$0xf]
        %v5327 = vld [vmem:[%s302 + $0x128] sm:$0xf]
        %v5328 = vld [vmem:[%s302 + $0x12c] sm:$0xf]
        %v5329 = vld [vmem:[%s302 + $0x130] sm:$0xf]
        %v5330 = vld [vmem:[%s302 + $0x134] sm:$0xf]
        %v5331 = vld [vmem:[%s302 + $0x138] sm:$0xf]
        %v5332 = vld [vmem:[%s302 + $0x13c] sm:$0xf]
        %v5333 = vld [vmem:[%s302 + $0x140] sm:$0xf]
        %v5334 = vld [vmem:[%s302 + $0x144] sm:$0xf]
        %v5335 = vld [vmem:[%s302 + $0x148] sm:$0xf]
        %v5336 = vld [vmem:[%s302 + $0x14c] sm:$0xf]
        %v5337 = vld [vmem:[%s302 + $0x150] sm:$0xf]
        %v5338 = vld [vmem:[%s302 + $0x154] sm:$0xf]
        %v5339 = vld [vmem:[%s302 + $0x158] sm:$0xf]
        %v5340 = vld [vmem:[%s302 + $0x15c] sm:$0xf]
        %v5341 = vld [vmem:[%s302 + $0x160] sm:$0xf]
        %v5342 = vld [vmem:[%s302 + $0x164] sm:$0xf]
        %v5343 = vld [vmem:[%s302 + $0x168] sm:$0xf]
        %v5344 = vld [vmem:[%s302 + $0x16c] sm:$0xf]
        %v5345 = vld [vmem:[%s302 + $0x170] sm:$0xf]
        %v5346 = vld [vmem:[%s302 + $0x174] sm:$0xf]
        %v5347 = vld [vmem:[%s302 + $0x178] sm:$0xf]
        %v5348 = vld [vmem:[%s302 + $0x17c] sm:$0xf]
        %v5349 = vld [vmem:[%s302 + $0x180] sm:$0xf]
        %v5350 = vld [vmem:[%s302 + $0x184] sm:$0xf]
        %v5351 = vld [vmem:[%s302 + $0x188] sm:$0xf]
        %v5352 = vld [vmem:[%s302 + $0x18c] sm:$0xf]
        %v5353 = vld [vmem:[%s302 + $0x190] sm:$0xf]
        %v5354 = vld [vmem:[%s302 + $0x194] sm:$0xf]
        %v5355 = vld [vmem:[%s302 + $0x198] sm:$0xf]
        %v5356 = vld [vmem:[%s302 + $0x19c] sm:$0xf]
        %v5357 = vld [vmem:[%s302 + $0x1a0] sm:$0xf]
        %v5358 = vld [vmem:[%s302 + $0x1a4] sm:$0xf]
        %v5359 = vld [vmem:[%s302 + $0x1a8] sm:$0xf]
        %v5360 = vld [vmem:[%s302 + $0x1ac] sm:$0xf]
        %v5361 = vld [vmem:[%s302 + $0x1b0] sm:$0xf]
        %v5362 = vld [vmem:[%s302 + $0x1b4] sm:$0xf]
        %v5363 = vld [vmem:[%s302 + $0x1b8] sm:$0xf]
        %v5364 = vld [vmem:[%s302 + $0x1bc] sm:$0xf]
        %v5365 = vld [vmem:[%s302 + $0x1c0] sm:$0xf]
        %v5366 = vld [vmem:[%s302 + $0x1c4] sm:$0xf]
        %v5367 = vld [vmem:[%s302 + $0x1c8] sm:$0xf]
        %v5368 = vld [vmem:[%s302 + $0x1cc] sm:$0xf]
        %v5369 = vld [vmem:[%s302 + $0x1d0] sm:$0xf]
        %v5370 = vld [vmem:[%s302 + $0x1d4] sm:$0xf]
        %v5371 = vld [vmem:[%s302 + $0x1d8] sm:$0xf]
        %v5372 = vld [vmem:[%s302 + $0x1dc] sm:$0xf]
        %v5373 = vld [vmem:[%s302 + $0x1e0] sm:$0xf]
        %v5374 = vld [vmem:[%s302 + $0x1e4] sm:$0xf]
        %v5375 = vld [vmem:[%s302 + $0x1e8] sm:$0xf]
        %v5376 = vld [vmem:[%s302 + $0x1ec] sm:$0xf]
        %v5377 = vld [vmem:[%s302 + $0x1f0] sm:$0xf]
        %v5378 = vld [vmem:[%s302 + $0x1f4] sm:$0xf]
        %v5379 = vld [vmem:[%s302 + $0x1f8] sm:$0xf]
        %v5380 = vld [vmem:[%s302 + $0x1fc] sm:$0xf]
        %v5381 = vld [vmem:[%s302 + $0x200] sm:$0xf]
        %v5382 = vld [vmem:[%s302 + $0x204] sm:$0xf]
        %v5383 = vld [vmem:[%s302 + $0x208] sm:$0xf]
        %v5384 = vld [vmem:[%s302 + $0x20c] sm:$0xf]
        %v5385 = vld [vmem:[%s302 + $0x210] sm:$0xf]
        %v5386 = vld [vmem:[%s302 + $0x214] sm:$0xf]
        %v5387 = vld [vmem:[%s302 + $0x218] sm:$0xf]
        %v5388 = vld [vmem:[%s302 + $0x21c] sm:$0xf]
        %v5389 = vld [vmem:[#allocation7 + $0x140] sm:$0xf]
        %v5390 = vld [vmem:[#allocation7 + $0x144] sm:$0xf]
        %v5391 = vld [vmem:[#allocation7 + $0x148] sm:$0xf]
        %v5392 = vld [vmem:[#allocation7 + $0x14c] sm:$0xf]
        %v5393 = vld [vmem:[#allocation7 + $0x150] sm:$0xf]
        %v5394 = vld [vmem:[#allocation7 + $0x154] sm:$0xf]
        %v5395 = vld [vmem:[#allocation7 + $0x158] sm:$0xf]
        %v5396 = vld [vmem:[#allocation7 + $0x15c] sm:$0xf]
        %v5397 = vld [vmem:[#allocation7 + $0x160] sm:$0xf]
        %v5398 = vld [vmem:[#allocation7 + $0x164] sm:$0xf]
        %v5399 = vld [vmem:[#allocation7 + $0x168] sm:$0xf]
        %v5400 = vld [vmem:[#allocation7 + $0x16c] sm:$0xf]
        %v5401 = vld [vmem:[#allocation7 + $0x170] sm:$0xf]
        %v5402 = vld [vmem:[#allocation7 + $0x174] sm:$0xf]
        %v5403 = vld [vmem:[#allocation7 + $0x178] sm:$0xf]
        %v5404 = vld [vmem:[#allocation7 + $0x17c] sm:$0xf]
        %v5533 = vunpack.c.l.b16 %v5261
        %v5534 = vunpack.c.l.b16 %v5262
        %v5535 = vunpack.c.l.b16 %v5263
        %v5536 = vunpack.c.l.b16 %v5264
        %v5537 = vunpack.c.l.b16 %v5265
        %v5538 = vunpack.c.l.b16 %v5266
        %v5539 = vunpack.c.l.b16 %v5267
        %v5540 = vunpack.c.l.b16 %v5268
        %v5541 = vunpack.c.l.b16 %v5269
        %v5542 = vunpack.c.l.b16 %v5270
        %v5543 = vunpack.c.l.b16 %v5271
        %v5544 = vunpack.c.l.b16 %v5272
        %v5545 = vunpack.c.l.b16 %v5273
        %v5546 = vunpack.c.l.b16 %v5274
        %v5547 = vunpack.c.l.b16 %v5275
        %v5548 = vunpack.c.l.b16 %v5276
        %v5549 = vunpack.c.l.b16 %v5277
        %v5550 = vunpack.c.l.b16 %v5278
        %v5551 = vunpack.c.l.b16 %v5279
        %v5552 = vunpack.c.l.b16 %v5280
        %v5553 = vunpack.c.l.b16 %v5281
        %v5554 = vunpack.c.l.b16 %v5282
        %v5555 = vunpack.c.l.b16 %v5283
        %v5556 = vunpack.c.l.b16 %v5284
        %v5557 = vunpack.c.l.b16 %v5285
        %v5558 = vunpack.c.l.b16 %v5286
        %v5559 = vunpack.c.l.b16 %v5287
        %v5560 = vunpack.c.l.b16 %v5288
        %v5561 = vunpack.c.l.b16 %v5289
        %v5562 = vunpack.c.l.b16 %v5290
        %v5563 = vunpack.c.l.b16 %v5291
        %v5564 = vunpack.c.l.b16 %v5292
        %v5565 = vunpack.c.l.b16 %v5293
        %v5566 = vunpack.c.l.b16 %v5294
        %v5567 = vunpack.c.l.b16 %v5295
        %v5568 = vunpack.c.l.b16 %v5296
        %v5569 = vunpack.c.l.b16 %v5297
        %v5570 = vunpack.c.l.b16 %v5298
        %v5571 = vunpack.c.l.b16 %v5299
        %v5572 = vunpack.c.l.b16 %v5300
        %v5573 = vunpack.c.l.b16 %v5301
        %v5574 = vunpack.c.l.b16 %v5302
        %v5575 = vunpack.c.l.b16 %v5303
        %v5576 = vunpack.c.l.b16 %v5304
        %v5577 = vunpack.c.l.b16 %v5305
        %v5578 = vunpack.c.l.b16 %v5306
        %v5579 = vunpack.c.l.b16 %v5307
        %v5580 = vunpack.c.l.b16 %v5308
        %v5581 = vunpack.c.l.b16 %v5309
        %v5582 = vunpack.c.l.b16 %v5310
        %v5583 = vunpack.c.l.b16 %v5311
        %v5584 = vunpack.c.l.b16 %v5312
        %v5585 = vunpack.c.l.b16 %v5313
        %v5586 = vunpack.c.l.b16 %v5314
        %v5587 = vunpack.c.l.b16 %v5315
        %v5588 = vunpack.c.l.b16 %v5316
        %v5589 = vunpack.c.l.b16 %v5317
        %v5590 = vunpack.c.l.b16 %v5318
        %v5591 = vunpack.c.l.b16 %v5319
        %v5592 = vunpack.c.l.b16 %v5320
        %v5593 = vunpack.c.l.b16 %v5321
        %v5594 = vunpack.c.l.b16 %v5322
        %v5595 = vunpack.c.l.b16 %v5323
        %v5596 = vunpack.c.l.b16 %v5324
        %v5597 = vunpack.c.l.b16 %v5325
        %v5598 = vunpack.c.l.b16 %v5326
        %v5599 = vunpack.c.l.b16 %v5327
        %v5600 = vunpack.c.l.b16 %v5328
        %v5601 = vunpack.c.l.b16 %v5329
        %v5602 = vunpack.c.l.b16 %v5330
        %v5603 = vunpack.c.l.b16 %v5331
        %v5604 = vunpack.c.l.b16 %v5332
        %v5605 = vunpack.c.l.b16 %v5333
        %v5606 = vunpack.c.l.b16 %v5334
        %v5607 = vunpack.c.l.b16 %v5335
        %v5608 = vunpack.c.l.b16 %v5336
        %v5609 = vunpack.c.l.b16 %v5337
        %v5610 = vunpack.c.l.b16 %v5338
        %v5611 = vunpack.c.l.b16 %v5339
        %v5612 = vunpack.c.l.b16 %v5340
        %v5613 = vunpack.c.l.b16 %v5341
        %v5614 = vunpack.c.l.b16 %v5342
        %v5615 = vunpack.c.l.b16 %v5343
        %v5616 = vunpack.c.l.b16 %v5344
        %v5617 = vunpack.c.l.b16 %v5345
        %v5618 = vunpack.c.l.b16 %v5346
        %v5619 = vunpack.c.l.b16 %v5347
        %v5620 = vunpack.c.l.b16 %v5348
        %v5621 = vunpack.c.l.b16 %v5349
        %v5622 = vunpack.c.l.b16 %v5350
        %v5623 = vunpack.c.l.b16 %v5351
        %v5624 = vunpack.c.l.b16 %v5352
        %v5625 = vunpack.c.l.b16 %v5353
        %v5626 = vunpack.c.l.b16 %v5354
        %v5627 = vunpack.c.l.b16 %v5355
        %v5628 = vunpack.c.l.b16 %v5356
        %v5629 = vunpack.c.l.b16 %v5357
        %v5630 = vunpack.c.l.b16 %v5358
        %v5631 = vunpack.c.l.b16 %v5359
        %v5632 = vunpack.c.l.b16 %v5360
        %v5633 = vunpack.c.l.b16 %v5361
        %v5634 = vunpack.c.l.b16 %v5362
        %v5635 = vunpack.c.l.b16 %v5363
        %v5636 = vunpack.c.l.b16 %v5364
        %v5637 = vunpack.c.l.b16 %v5365
        %v5638 = vunpack.c.l.b16 %v5366
        %v5639 = vunpack.c.l.b16 %v5367
        %v5640 = vunpack.c.l.b16 %v5368
        %v5641 = vunpack.c.l.b16 %v5369
        %v5642 = vunpack.c.l.b16 %v5370
        %v5643 = vunpack.c.l.b16 %v5371
        %v5644 = vunpack.c.l.b16 %v5372
        %v5645 = vunpack.c.l.b16 %v5373
        %v5646 = vunpack.c.l.b16 %v5374
        %v5647 = vunpack.c.l.b16 %v5375
        %v5648 = vunpack.c.l.b16 %v5376
        %v5649 = vunpack.c.l.b16 %v5377
        %v5650 = vunpack.c.l.b16 %v5378
        %v5651 = vunpack.c.l.b16 %v5379
        %v5652 = vunpack.c.l.b16 %v5380
        %v5653 = vunpack.c.l.b16 %v5381
        %v5654 = vunpack.c.l.b16 %v5382
        %v5655 = vunpack.c.l.b16 %v5383
        %v5656 = vunpack.c.l.b16 %v5384
        %v5657 = vunpack.c.l.b16 %v5385
        %v5658 = vunpack.c.l.b16 %v5386
        %v5659 = vunpack.c.l.b16 %v5387
        %v5660 = vunpack.c.l.b16 %v5388
        %v5661 = vpack.c.b16 %v5534, %v5533
        %v5662 = vpack.c.b16 %v5536, %v5535
        %v5663 = vpack.c.b16 %v5538, %v5537
        %v5664 = vpack.c.b16 %v5540, %v5539
        %v5665 = vpack.c.b16 %v5542, %v5541
        %v5666 = vpack.c.b16 %v5544, %v5543
        %v5667 = vpack.c.b16 %v5546, %v5545
        %v5668 = vpack.c.b16 %v5548, %v5547
        %v5669 = vpack.c.b16 %v5550, %v5549
        %v5670 = vpack.c.b16 %v5552, %v5551
        %v5671 = vpack.c.b16 %v5554, %v5553
        %v5672 = vpack.c.b16 %v5556, %v5555
        %v5673 = vpack.c.b16 %v5558, %v5557
        %v5674 = vpack.c.b16 %v5560, %v5559
        %v5675 = vpack.c.b16 %v5562, %v5561
        %v5676 = vpack.c.b16 %v5564, %v5563
        %v5677 = vpack.c.b16 %v5566, %v5565
        %v5678 = vpack.c.b16 %v5568, %v5567
        %v5679 = vpack.c.b16 %v5570, %v5569
        %v5680 = vpack.c.b16 %v5572, %v5571
        %v5681 = vpack.c.b16 %v5574, %v5573
        %v5682 = vpack.c.b16 %v5576, %v5575
        %v5683 = vpack.c.b16 %v5578, %v5577
        %v5684 = vpack.c.b16 %v5580, %v5579
        %v5685 = vpack.c.b16 %v5582, %v5581
        %v5686 = vpack.c.b16 %v5584, %v5583
        %v5687 = vpack.c.b16 %v5586, %v5585
        %v5688 = vpack.c.b16 %v5588, %v5587
        %v5689 = vpack.c.b16 %v5590, %v5589
        %v5690 = vpack.c.b16 %v5592, %v5591
        %v5691 = vpack.c.b16 %v5594, %v5593
        %v5692 = vpack.c.b16 %v5596, %v5595
        %v5693 = vpack.c.b16 %v5598, %v5597
        %v5694 = vpack.c.b16 %v5600, %v5599
        %v5695 = vpack.c.b16 %v5602, %v5601
        %v5696 = vpack.c.b16 %v5604, %v5603
        %v5697 = vpack.c.b16 %v5606, %v5605
        %v5698 = vpack.c.b16 %v5608, %v5607
        %v5699 = vpack.c.b16 %v5610, %v5609
        %v5700 = vpack.c.b16 %v5612, %v5611
        %v5701 = vpack.c.b16 %v5614, %v5613
        %v5702 = vpack.c.b16 %v5616, %v5615
        %v5703 = vpack.c.b16 %v5618, %v5617
        %v5704 = vpack.c.b16 %v5620, %v5619
        %v5705 = vpack.c.b16 %v5622, %v5621
        %v5706 = vpack.c.b16 %v5624, %v5623
        %v5707 = vpack.c.b16 %v5626, %v5625
        %v5708 = vpack.c.b16 %v5628, %v5627
        %v5709 = vpack.c.b16 %v5630, %v5629
        %v5710 = vpack.c.b16 %v5632, %v5631
        %v5711 = vpack.c.b16 %v5634, %v5633
        %v5712 = vpack.c.b16 %v5636, %v5635
        %v5713 = vpack.c.b16 %v5638, %v5637
        %v5714 = vpack.c.b16 %v5640, %v5639
        %v5715 = vpack.c.b16 %v5642, %v5641
        %v5716 = vpack.c.b16 %v5644, %v5643
        %v5717 = vpack.c.b16 %v5646, %v5645
        %v5718 = vpack.c.b16 %v5648, %v5647
        %v5719 = vpack.c.b16 %v5650, %v5649
        %v5720 = vpack.c.b16 %v5652, %v5651
        %v5721 = vpack.c.b16 %v5654, %v5653
        %v5722 = vpack.c.b16 %v5656, %v5655
        %v5723 = vpack.c.b16 %v5658, %v5657
        %v5724 = vpack.c.b16 %v5660, %v5659
        %v5805 = vunpack.c.l.b16 %v5389
        %v5806 = vunpack.c.l.b16 %v5390
        %v5807 = vunpack.c.l.b16 %v5391
        %v5808 = vunpack.c.l.b16 %v5392
        %v5809 = vunpack.c.l.b16 %v5393
        %v5810 = vunpack.c.l.b16 %v5394
        %v5811 = vunpack.c.l.b16 %v5395
        %v5812 = vunpack.c.l.b16 %v5396
        %v5813 = vunpack.c.l.b16 %v5397
        %v5814 = vunpack.c.l.b16 %v5398
        %v5815 = vunpack.c.l.b16 %v5399
        %v5816 = vunpack.c.l.b16 %v5400
        %v5817 = vunpack.c.l.b16 %v5401
        %v5818 = vunpack.c.l.b16 %v5402
        %v5819 = vunpack.c.l.b16 %v5403
        %v5820 = vunpack.c.l.b16 %v5404
        %v5821 = vpack.c.b16 %v5806, %v5805
        %v5822 = vpack.c.b16 %v5808, %v5807
        %v5823 = vpack.c.b16 %v5810, %v5809
        %v5824 = vpack.c.b16 %v5812, %v5811
        %v5825 = vpack.c.b16 %v5814, %v5813
        %v5826 = vpack.c.b16 %v5816, %v5815
        %v5827 = vpack.c.b16 %v5818, %v5817
        %v5828 = vpack.c.b16 %v5820, %v5819
        %5837 = vmatpush.bf16.msra.mxu0 %v5828
        %5838 = vmatpush.bf16.msra.mxu0 %v5827
        %5839 = vmatpush.bf16.msra.mxu0 %v5826
        %5840 = vmatpush.bf16.msra.mxu0 %v5825
        %5841 = vmatpush.bf16.msra.mxu0 %v5824
        %5842 = vmatpush.bf16.msra.mxu0 %v5823
        %5843 = vmatpush.bf16.msra.mxu0 %v5822
        %5844 = vmatpush.bf16.msra.mxu0 %v5821
        %5845 = vmatmul.bf16.gmra.mxu0 %v5661
        %v5846 = vpop.f32.mrf.mxu0
        %v5847 = vadd.f32 0.0, %v5846
        %v5848 = vpop.f32.mrf.mxu0
        %v5849 = vadd.f32 0.0, %v5848
        %5850 = vmatmul.bf16.gmra.mxu0 %v5662
        %v5851 = vpop.f32.mrf.mxu0
        %v5852 = vadd.f32 0.0, %v5851
        %v5853 = vpop.f32.mrf.mxu0
        %v5854 = vadd.f32 0.0, %v5853
        %5855 = vmatmul.bf16.gmra.mxu0 %v5663
        %v5856 = vpop.f32.mrf.mxu0
        %v5857 = vadd.f32 0.0, %v5856
        %v5858 = vpop.f32.mrf.mxu0
        %v5859 = vadd.f32 0.0, %v5858
        %5860 = vmatmul.bf16.gmra.mxu0 %v5664
        %v5861 = vpop.f32.mrf.mxu0
        %v5862 = vadd.f32 0.0, %v5861
        %v5863 = vpop.f32.mrf.mxu0
        %v5864 = vadd.f32 0.0, %v5863
        %5865 = vmatmul.bf16.gmra.mxu0 %v5665
        %v5866 = vpop.f32.mrf.mxu0
        %v5867 = vadd.f32 0.0, %v5866
        %v5868 = vpop.f32.mrf.mxu0
        %v5869 = vadd.f32 0.0, %v5868
        %5870 = vmatmul.bf16.gmra.mxu0 %v5666
        %v5871 = vpop.f32.mrf.mxu0
        %v5872 = vadd.f32 0.0, %v5871
        %v5873 = vpop.f32.mrf.mxu0
        %v5874 = vadd.f32 0.0, %v5873
        %5875 = vmatmul.bf16.gmra.mxu0 %v5667
        %v5876 = vpop.f32.mrf.mxu0
        %v5877 = vadd.f32 0.0, %v5876
        %v5878 = vpop.f32.mrf.mxu0
        %v5879 = vadd.f32 0.0, %v5878
        %5880 = vmatmul.bf16.gmra.mxu0 %v5668
        %v5881 = vpop.f32.mrf.mxu0
        %v5882 = vadd.f32 0.0, %v5881
        %v5883 = vpop.f32.mrf.mxu0
        %v5884 = vadd.f32 0.0, %v5883
        %5885 = vmatmul.bf16.gmra.mxu0 %v5669
        %v5886 = vpop.f32.mrf.mxu0
        %v5887 = vadd.f32 0.0, %v5886
        %v5888 = vpop.f32.mrf.mxu0
        %v5889 = vadd.f32 0.0, %v5888
        %5890 = vmatmul.bf16.gmra.mxu0 %v5670
        %v5891 = vpop.f32.mrf.mxu0
        %v5892 = vadd.f32 0.0, %v5891
        %v5893 = vpop.f32.mrf.mxu0
        %v5894 = vadd.f32 0.0, %v5893
        %5895 = vmatmul.bf16.gmra.mxu0 %v5671
        %v5896 = vpop.f32.mrf.mxu0
        %v5897 = vadd.f32 0.0, %v5896
        %v5898 = vpop.f32.mrf.mxu0
        %v5899 = vadd.f32 0.0, %v5898
        %5900 = vmatmul.bf16.gmra.mxu0 %v5672
        %v5901 = vpop.f32.mrf.mxu0
        %v5902 = vadd.f32 0.0, %v5901
        %v5903 = vpop.f32.mrf.mxu0
        %v5904 = vadd.f32 0.0, %v5903
        %5905 = vmatmul.bf16.gmra.mxu0 %v5673
        %v5906 = vpop.f32.mrf.mxu0
        %v5907 = vadd.f32 0.0, %v5906
        %v5908 = vpop.f32.mrf.mxu0
        %v5909 = vadd.f32 0.0, %v5908
        %5910 = vmatmul.bf16.gmra.mxu0 %v5674
        %v5911 = vpop.f32.mrf.mxu0
        %v5912 = vadd.f32 0.0, %v5911
        %v5913 = vpop.f32.mrf.mxu0
        %v5914 = vadd.f32 0.0, %v5913
        %5915 = vmatmul.bf16.gmra.mxu0 %v5675
        %v5916 = vpop.f32.mrf.mxu0
        %v5917 = vadd.f32 0.0, %v5916
        %v5918 = vpop.f32.mrf.mxu0
        %v5919 = vadd.f32 0.0, %v5918
        %5920 = vmatmul.bf16.gmra.mxu0 %v5676
        %v5921 = vpop.f32.mrf.mxu0
        %v5922 = vadd.f32 0.0, %v5921
        %v5923 = vpop.f32.mrf.mxu0
        %v5924 = vadd.f32 0.0, %v5923
        %5925 = vmatmul.bf16.gmra.mxu0 %v5677
        %v5926 = vpop.f32.mrf.mxu0
        %v5927 = vadd.f32 0.0, %v5926
        %v5928 = vpop.f32.mrf.mxu0
        %v5929 = vadd.f32 0.0, %v5928
        %5930 = vmatmul.bf16.gmra.mxu0 %v5678
        %v5931 = vpop.f32.mrf.mxu0
        %v5932 = vadd.f32 0.0, %v5931
        %v5933 = vpop.f32.mrf.mxu0
        %v5934 = vadd.f32 0.0, %v5933
        %5935 = vmatmul.bf16.gmra.mxu0 %v5679
        %v5936 = vpop.f32.mrf.mxu0
        %v5937 = vadd.f32 0.0, %v5936
        %v5938 = vpop.f32.mrf.mxu0
        %v5939 = vadd.f32 0.0, %v5938
        %5940 = vmatmul.bf16.gmra.mxu0 %v5680
        %v5941 = vpop.f32.mrf.mxu0
        %v5942 = vadd.f32 0.0, %v5941
        %v5943 = vpop.f32.mrf.mxu0
        %v5944 = vadd.f32 0.0, %v5943
        %5945 = vmatmul.bf16.gmra.mxu0 %v5681
        %v5946 = vpop.f32.mrf.mxu0
        %v5947 = vadd.f32 0.0, %v5946
        %v5948 = vpop.f32.mrf.mxu0
        %v5949 = vadd.f32 0.0, %v5948
        %5950 = vmatmul.bf16.gmra.mxu0 %v5682
        %v5951 = vpop.f32.mrf.mxu0
        %v5952 = vadd.f32 0.0, %v5951
        %v5953 = vpop.f32.mrf.mxu0
        %v5954 = vadd.f32 0.0, %v5953
        %5955 = vmatmul.bf16.gmra.mxu0 %v5683
        %v5956 = vpop.f32.mrf.mxu0
        %v5957 = vadd.f32 0.0, %v5956
        %v5958 = vpop.f32.mrf.mxu0
        %v5959 = vadd.f32 0.0, %v5958
        %5960 = vmatmul.bf16.gmra.mxu0 %v5684
        %v5961 = vpop.f32.mrf.mxu0
        %v5962 = vadd.f32 0.0, %v5961
        %v5963 = vpop.f32.mrf.mxu0
        %v5964 = vadd.f32 0.0, %v5963
        %5965 = vmatmul.bf16.gmra.mxu0 %v5685
        %v5966 = vpop.f32.mrf.mxu0
        %v5967 = vadd.f32 0.0, %v5966
        %v5968 = vpop.f32.mrf.mxu0
        %v5969 = vadd.f32 0.0, %v5968
        %5970 = vmatmul.bf16.gmra.mxu0 %v5686
        %v5971 = vpop.f32.mrf.mxu0
        %v5972 = vadd.f32 0.0, %v5971
        %v5973 = vpop.f32.mrf.mxu0
        %v5974 = vadd.f32 0.0, %v5973
        %5975 = vmatmul.bf16.gmra.mxu0 %v5687
        %v5976 = vpop.f32.mrf.mxu0
        %v5977 = vadd.f32 0.0, %v5976
        %v5978 = vpop.f32.mrf.mxu0
        %v5979 = vadd.f32 0.0, %v5978
        %5980 = vmatmul.bf16.gmra.mxu0 %v5688
        %v5981 = vpop.f32.mrf.mxu0
        %v5982 = vadd.f32 0.0, %v5981
        %v5983 = vpop.f32.mrf.mxu0
        %v5984 = vadd.f32 0.0, %v5983
        %5985 = vmatmul.bf16.gmra.mxu0 %v5689
        %v5986 = vpop.f32.mrf.mxu0
        %v5987 = vadd.f32 0.0, %v5986
        %v5988 = vpop.f32.mrf.mxu0
        %v5989 = vadd.f32 0.0, %v5988
        %5990 = vmatmul.bf16.gmra.mxu0 %v5690
        %v5991 = vpop.f32.mrf.mxu0
        %v5992 = vadd.f32 0.0, %v5991
        %v5993 = vpop.f32.mrf.mxu0
        %v5994 = vadd.f32 0.0, %v5993
        %5995 = vmatmul.bf16.gmra.mxu0 %v5691
        %v5996 = vpop.f32.mrf.mxu0
        %v5997 = vadd.f32 0.0, %v5996
        %v5998 = vpop.f32.mrf.mxu0
        %v5999 = vadd.f32 0.0, %v5998
        %6000 = vmatmul.bf16.gmra.mxu0 %v5692
        %v6001 = vpop.f32.mrf.mxu0
        %v6002 = vadd.f32 0.0, %v6001
        %v6003 = vpop.f32.mrf.mxu0
        %v6004 = vadd.f32 0.0, %v6003
        %6005 = vmatmul.bf16.gmra.mxu0 %v5693
        %v6006 = vpop.f32.mrf.mxu0
        %v6007 = vadd.f32 0.0, %v6006
        %v6008 = vpop.f32.mrf.mxu0
        %v6009 = vadd.f32 0.0, %v6008
        %6010 = vmatmul.bf16.gmra.mxu0 %v5694
        %v6011 = vpop.f32.mrf.mxu0
        %v6012 = vadd.f32 0.0, %v6011
        %v6013 = vpop.f32.mrf.mxu0
        %v6014 = vadd.f32 0.0, %v6013
        %6015 = vmatmul.bf16.gmra.mxu0 %v5695
        %v6016 = vpop.f32.mrf.mxu0
        %v6017 = vadd.f32 0.0, %v6016
        %v6018 = vpop.f32.mrf.mxu0
        %v6019 = vadd.f32 0.0, %v6018
        %6020 = vmatmul.bf16.gmra.mxu0 %v5696
        %v6021 = vpop.f32.mrf.mxu0
        %v6022 = vadd.f32 0.0, %v6021
        %v6023 = vpop.f32.mrf.mxu0
        %v6024 = vadd.f32 0.0, %v6023
        %6025 = vmatmul.bf16.gmra.mxu0 %v5697
        %v6026 = vpop.f32.mrf.mxu0
        %v6027 = vadd.f32 0.0, %v6026
        %v6028 = vpop.f32.mrf.mxu0
        %v6029 = vadd.f32 0.0, %v6028
        %6030 = vmatmul.bf16.gmra.mxu0 %v5698
        %v6031 = vpop.f32.mrf.mxu0
        %v6032 = vadd.f32 0.0, %v6031
        %v6033 = vpop.f32.mrf.mxu0
        %v6034 = vadd.f32 0.0, %v6033
        %6035 = vmatmul.bf16.gmra.mxu0 %v5699
        %v6036 = vpop.f32.mrf.mxu0
        %v6037 = vadd.f32 0.0, %v6036
        %v6038 = vpop.f32.mrf.mxu0
        %v6039 = vadd.f32 0.0, %v6038
        %6040 = vmatmul.bf16.gmra.mxu0 %v5700
        %v6041 = vpop.f32.mrf.mxu0
        %v6042 = vadd.f32 0.0, %v6041
        %v6043 = vpop.f32.mrf.mxu0
        %v6044 = vadd.f32 0.0, %v6043
        %6045 = vmatmul.bf16.gmra.mxu0 %v5701
        %v6046 = vpop.f32.mrf.mxu0
        %v6047 = vadd.f32 0.0, %v6046
        %v6048 = vpop.f32.mrf.mxu0
        %v6049 = vadd.f32 0.0, %v6048
        %6050 = vmatmul.bf16.gmra.mxu0 %v5702
        %v6051 = vpop.f32.mrf.mxu0
        %v6052 = vadd.f32 0.0, %v6051
        %v6053 = vpop.f32.mrf.mxu0
        %v6054 = vadd.f32 0.0, %v6053
        %6055 = vmatmul.bf16.gmra.mxu0 %v5703
        %v6056 = vpop.f32.mrf.mxu0
        %v6057 = vadd.f32 0.0, %v6056
        %v6058 = vpop.f32.mrf.mxu0
        %v6059 = vadd.f32 0.0, %v6058
        %6060 = vmatmul.bf16.gmra.mxu0 %v5704
        %v6061 = vpop.f32.mrf.mxu0
        %v6062 = vadd.f32 0.0, %v6061
        %v6063 = vpop.f32.mrf.mxu0
        %v6064 = vadd.f32 0.0, %v6063
        %6065 = vmatmul.bf16.gmra.mxu0 %v5705
        %v6066 = vpop.f32.mrf.mxu0
        %v6067 = vadd.f32 0.0, %v6066
        %v6068 = vpop.f32.mrf.mxu0
        %v6069 = vadd.f32 0.0, %v6068
        %6070 = vmatmul.bf16.gmra.mxu0 %v5706
        %v6071 = vpop.f32.mrf.mxu0
        %v6072 = vadd.f32 0.0, %v6071
        %v6073 = vpop.f32.mrf.mxu0
        %v6074 = vadd.f32 0.0, %v6073
        %6075 = vmatmul.bf16.gmra.mxu0 %v5707
        %v6076 = vpop.f32.mrf.mxu0
        %v6077 = vadd.f32 0.0, %v6076
        %v6078 = vpop.f32.mrf.mxu0
        %v6079 = vadd.f32 0.0, %v6078
        %6080 = vmatmul.bf16.gmra.mxu0 %v5708
        %v6081 = vpop.f32.mrf.mxu0
        %v6082 = vadd.f32 0.0, %v6081
        %v6083 = vpop.f32.mrf.mxu0
        %v6084 = vadd.f32 0.0, %v6083
        %6085 = vmatmul.bf16.gmra.mxu0 %v5709
        %v6086 = vpop.f32.mrf.mxu0
        %v6087 = vadd.f32 0.0, %v6086
        %v6088 = vpop.f32.mrf.mxu0
        %v6089 = vadd.f32 0.0, %v6088
        %6090 = vmatmul.bf16.gmra.mxu0 %v5710
        %v6091 = vpop.f32.mrf.mxu0
        %v6092 = vadd.f32 0.0, %v6091
        %v6093 = vpop.f32.mrf.mxu0
        %v6094 = vadd.f32 0.0, %v6093
        %6095 = vmatmul.bf16.gmra.mxu0 %v5711
        %v6096 = vpop.f32.mrf.mxu0
        %v6097 = vadd.f32 0.0, %v6096
        %v6098 = vpop.f32.mrf.mxu0
        %v6099 = vadd.f32 0.0, %v6098
        %6100 = vmatmul.bf16.gmra.mxu0 %v5712
        %v6101 = vpop.f32.mrf.mxu0
        %v6102 = vadd.f32 0.0, %v6101
        %v6103 = vpop.f32.mrf.mxu0
        %v6104 = vadd.f32 0.0, %v6103
        %6105 = vmatmul.bf16.gmra.mxu0 %v5713
        %v6106 = vpop.f32.mrf.mxu0
        %v6107 = vadd.f32 0.0, %v6106
        %v6108 = vpop.f32.mrf.mxu0
        %v6109 = vadd.f32 0.0, %v6108
        %6110 = vmatmul.bf16.gmra.mxu0 %v5714
        %v6111 = vpop.f32.mrf.mxu0
        %v6112 = vadd.f32 0.0, %v6111
        %v6113 = vpop.f32.mrf.mxu0
        %v6114 = vadd.f32 0.0, %v6113
        %6115 = vmatmul.bf16.gmra.mxu0 %v5715
        %v6116 = vpop.f32.mrf.mxu0
        %v6117 = vadd.f32 0.0, %v6116
        %v6118 = vpop.f32.mrf.mxu0
        %v6119 = vadd.f32 0.0, %v6118
        %6120 = vmatmul.bf16.gmra.mxu0 %v5716
        %v6121 = vpop.f32.mrf.mxu0
        %v6122 = vadd.f32 0.0, %v6121
        %v6123 = vpop.f32.mrf.mxu0
        %v6124 = vadd.f32 0.0, %v6123
        %6125 = vmatmul.bf16.gmra.mxu0 %v5717
        %v6126 = vpop.f32.mrf.mxu0
        %v6127 = vadd.f32 0.0, %v6126
        %v6128 = vpop.f32.mrf.mxu0
        %v6129 = vadd.f32 0.0, %v6128
        %6130 = vmatmul.bf16.gmra.mxu0 %v5718
        %v6131 = vpop.f32.mrf.mxu0
        %v6132 = vadd.f32 0.0, %v6131
        %v6133 = vpop.f32.mrf.mxu0
        %v6134 = vadd.f32 0.0, %v6133
        %6135 = vmatmul.bf16.gmra.mxu0 %v5719
        %v6136 = vpop.f32.mrf.mxu0
        %v6137 = vadd.f32 0.0, %v6136
        %v6138 = vpop.f32.mrf.mxu0
        %v6139 = vadd.f32 0.0, %v6138
        %6140 = vmatmul.bf16.gmra.mxu0 %v5720
        %v6141 = vpop.f32.mrf.mxu0
        %v6142 = vadd.f32 0.0, %v6141
        %v6143 = vpop.f32.mrf.mxu0
        %v6144 = vadd.f32 0.0, %v6143
        %6145 = vmatmul.bf16.gmra.mxu0 %v5721
        %v6146 = vpop.f32.mrf.mxu0
        %v6147 = vadd.f32 0.0, %v6146
        %v6148 = vpop.f32.mrf.mxu0
        %v6149 = vadd.f32 0.0, %v6148
        %6150 = vmatmul.bf16.gmra.mxu0 %v5722
        %v6151 = vpop.f32.mrf.mxu0
        %v6152 = vadd.f32 0.0, %v6151
        %v6153 = vpop.f32.mrf.mxu0
        %v6154 = vadd.f32 0.0, %v6153
        %6155 = vmatmul.bf16.gmra.mxu0 %v5723
        %v6156 = vpop.f32.mrf.mxu0
        %v6157 = vadd.f32 0.0, %v6156
        %v6158 = vpop.f32.mrf.mxu0
        %v6159 = vadd.f32 0.0, %v6158
        %6160 = vmatmul.bf16.gmra.mxu0 %v5724
        %v6161 = vpop.f32.mrf.mxu0
        %v6162 = vadd.f32 0.0, %v6161
        %v6163 = vpop.f32.mrf.mxu0
        %v6164 = vadd.f32 0.0, %v6163
        %6165 = vdwg.mxu0
        %v6166 = vadd.f32 %v5133, %v5847
        %v6167 = vadd.f32 %v5134, %v5849
        %v6168 = vadd.f32 %v5135, %v5852
        %v6169 = vadd.f32 %v5136, %v5854
        %v6170 = vadd.f32 %v5137, %v5857
        %v6171 = vadd.f32 %v5138, %v5859
        %v6172 = vadd.f32 %v5139, %v5862
        %v6173 = vadd.f32 %v5140, %v5864
        %v6174 = vadd.f32 %v5141, %v5867
        %v6175 = vadd.f32 %v5142, %v5869
        %v6176 = vadd.f32 %v5143, %v5872
        %v6177 = vadd.f32 %v5144, %v5874
        %v6178 = vadd.f32 %v5145, %v5877
        %v6179 = vadd.f32 %v5146, %v5879
        %v6180 = vadd.f32 %v5147, %v5882
        %v6181 = vadd.f32 %v5148, %v5884
        %v6182 = vadd.f32 %v5149, %v5887
        %v6183 = vadd.f32 %v5150, %v5889
        %v6184 = vadd.f32 %v5151, %v5892
        %v6185 = vadd.f32 %v5152, %v5894
        %v6186 = vadd.f32 %v5153, %v5897
        %v6187 = vadd.f32 %v5154, %v5899
        %v6188 = vadd.f32 %v5155, %v5902
        %v6189 = vadd.f32 %v5156, %v5904
        %v6190 = vadd.f32 %v5157, %v5907
        %v6191 = vadd.f32 %v5158, %v5909
        %v6192 = vadd.f32 %v5159, %v5912
        %v6193 = vadd.f32 %v5160, %v5914
        %v6194 = vadd.f32 %v5161, %v5917
        %v6195 = vadd.f32 %v5162, %v5919
        %v6196 = vadd.f32 %v5163, %v5922
        %v6197 = vadd.f32 %v5164, %v5924
        %v6198 = vadd.f32 %v5165, %v5927
        %v6199 = vadd.f32 %v5166, %v5929
        %v6200 = vadd.f32 %v5167, %v5932
        %v6201 = vadd.f32 %v5168, %v5934
        %v6202 = vadd.f32 %v5169, %v5937
        %v6203 = vadd.f32 %v5170, %v5939
        %v6204 = vadd.f32 %v5171, %v5942
        %v6205 = vadd.f32 %v5172, %v5944
        %v6206 = vadd.f32 %v5173, %v5947
        %v6207 = vadd.f32 %v5174, %v5949
        %v6208 = vadd.f32 %v5175, %v5952
        %v6209 = vadd.f32 %v5176, %v5954
        %v6210 = vadd.f32 %v5177, %v5957
        %v6211 = vadd.f32 %v5178, %v5959
        %v6212 = vadd.f32 %v5179, %v5962
        %v6213 = vadd.f32 %v5180, %v5964
        %v6214 = vadd.f32 %v5181, %v5967
        %v6215 = vadd.f32 %v5182, %v5969
        %v6216 = vadd.f32 %v5183, %v5972
        %v6217 = vadd.f32 %v5184, %v5974
        %v6218 = vadd.f32 %v5185, %v5977
        %v6219 = vadd.f32 %v5186, %v5979
        %v6220 = vadd.f32 %v5187, %v5982
        %v6221 = vadd.f32 %v5188, %v5984
        %v6222 = vadd.f32 %v5189, %v5987
        %v6223 = vadd.f32 %v5190, %v5989
        %v6224 = vadd.f32 %v5191, %v5992
        %v6225 = vadd.f32 %v5192, %v5994
        %v6226 = vadd.f32 %v5193, %v5997
        %v6227 = vadd.f32 %v5194, %v5999
        %v6228 = vadd.f32 %v5195, %v6002
        %v6229 = vadd.f32 %v5196, %v6004
        %v6230 = vadd.f32 %v5197, %v6007
        %v6231 = vadd.f32 %v5198, %v6009
        %v6232 = vadd.f32 %v5199, %v6012
        %v6233 = vadd.f32 %v5200, %v6014
        %v6234 = vadd.f32 %v5201, %v6017
        %v6235 = vadd.f32 %v5202, %v6019
        %v6236 = vadd.f32 %v5203, %v6022
        %v6237 = vadd.f32 %v5204, %v6024
        %v6238 = vadd.f32 %v5205, %v6027
        %v6239 = vadd.f32 %v5206, %v6029
        %v6240 = vadd.f32 %v5207, %v6032
        %v6241 = vadd.f32 %v5208, %v6034
        %v6242 = vadd.f32 %v5209, %v6037
        %v6243 = vadd.f32 %v5210, %v6039
        %v6244 = vadd.f32 %v5211, %v6042
        %v6245 = vadd.f32 %v5212, %v6044
        %v6246 = vadd.f32 %v5213, %v6047
        %v6247 = vadd.f32 %v5214, %v6049
        %v6248 = vadd.f32 %v5215, %v6052
        %v6249 = vadd.f32 %v5216, %v6054
        %v6250 = vadd.f32 %v5217, %v6057
        %v6251 = vadd.f32 %v5218, %v6059
        %v6252 = vadd.f32 %v5219, %v6062
        %v6253 = vadd.f32 %v5220, %v6064
        %v6254 = vadd.f32 %v5221, %v6067
        %v6255 = vadd.f32 %v5222, %v6069
        %v6256 = vadd.f32 %v5223, %v6072
        %v6257 = vadd.f32 %v5224, %v6074
        %v6258 = vadd.f32 %v5225, %v6077
        %v6259 = vadd.f32 %v5226, %v6079
        %v6260 = vadd.f32 %v5227, %v6082
        %v6261 = vadd.f32 %v5228, %v6084
        %v6262 = vadd.f32 %v5229, %v6087
        %v6263 = vadd.f32 %v5230, %v6089
        %v6264 = vadd.f32 %v5231, %v6092
        %v6265 = vadd.f32 %v5232, %v6094
        %v6266 = vadd.f32 %v5233, %v6097
        %v6267 = vadd.f32 %v5234, %v6099
        %v6268 = vadd.f32 %v5235, %v6102
        %v6269 = vadd.f32 %v5236, %v6104
        %v6270 = vadd.f32 %v5237, %v6107
        %v6271 = vadd.f32 %v5238, %v6109
        %v6272 = vadd.f32 %v5239, %v6112
        %v6273 = vadd.f32 %v5240, %v6114
        %v6274 = vadd.f32 %v5241, %v6117
        %v6275 = vadd.f32 %v5242, %v6119
        %v6276 = vadd.f32 %v5243, %v6122
        %v6277 = vadd.f32 %v5244, %v6124
        %v6278 = vadd.f32 %v5245, %v6127
        %v6279 = vadd.f32 %v5246, %v6129
        %v6280 = vadd.f32 %v5247, %v6132
        %v6281 = vadd.f32 %v5248, %v6134
        %v6282 = vadd.f32 %v5249, %v6137
        %v6283 = vadd.f32 %v5250, %v6139
        %v6284 = vadd.f32 %v5251, %v6142
        %v6285 = vadd.f32 %v5252, %v6144
        %v6286 = vadd.f32 %v5253, %v6147
        %v6287 = vadd.f32 %v5254, %v6149
        %v6288 = vadd.f32 %v5255, %v6152
        %v6289 = vadd.f32 %v5256, %v6154
        %v6290 = vadd.f32 %v5257, %v6157
        %v6291 = vadd.f32 %v5258, %v6159
        %v6292 = vadd.f32 %v5259, %v6162
        %v6293 = vadd.f32 %v5260, %v6164
        %v6294 = vld [vmem:[%s292 + $0x30] sm:$0xf]
        %v6295 = vld [vmem:[%s292 + $0x34] sm:$0xf]
        %v6296 = vld [vmem:[%s292 + $0x38] sm:$0xf]
        %v6297 = vld [vmem:[%s292 + $0x3c] sm:$0xf]
        %v6298 = vld [vmem:[%s292 + $0x40] sm:$0xf]
        %v6299 = vld [vmem:[%s292 + $0x44] sm:$0xf]
        %v6300 = vld [vmem:[%s292 + $0x48] sm:$0xf]
        %v6301 = vld [vmem:[%s292 + $0x4c] sm:$0xf]
        %v6302 = vld [vmem:[%s292 + $0x50] sm:$0xf]
        %v6303 = vld [vmem:[%s292 + $0x54] sm:$0xf]
        %v6304 = vld [vmem:[%s292 + $0x58] sm:$0xf]
        %v6305 = vld [vmem:[%s292 + $0x5c] sm:$0xf]
        %v6306 = vld [vmem:[%s292 + $0x60] sm:$0xf]
        %v6307 = vld [vmem:[%s292 + $0x64] sm:$0xf]
        %v6308 = vld [vmem:[%s292 + $0x68] sm:$0xf]
        %v6309 = vld [vmem:[%s292 + $0x6c] sm:$0xf]
        %v6310 = vld [vmem:[%s292 + $0x70] sm:$0xf]
        %v6311 = vld [vmem:[%s292 + $0x74] sm:$0xf]
        %v6312 = vld [vmem:[%s292 + $0x78] sm:$0xf]
        %v6313 = vld [vmem:[%s292 + $0x7c] sm:$0xf]
        %v6314 = vld [vmem:[%s292 + $0x80] sm:$0xf]
        %v6315 = vld [vmem:[%s292 + $0x84] sm:$0xf]
        %v6316 = vld [vmem:[%s292 + $0x88] sm:$0xf]
        %v6317 = vld [vmem:[%s292 + $0x8c] sm:$0xf]
        %v6318 = vld [vmem:[%s292 + $0x90] sm:$0xf]
        %v6319 = vld [vmem:[%s292 + $0x94] sm:$0xf]
        %v6320 = vld [vmem:[%s292 + $0x98] sm:$0xf]
        %v6321 = vld [vmem:[%s292 + $0x9c] sm:$0xf]
        %v6322 = vld [vmem:[%s292 + $0xa0] sm:$0xf]
        %v6323 = vld [vmem:[%s292 + $0xa4] sm:$0xf]
        %v6324 = vld [vmem:[%s292 + $0xa8] sm:$0xf]
        %v6325 = vld [vmem:[%s292 + $0xac] sm:$0xf]
        %v6326 = vld [vmem:[%s292 + $0xb0] sm:$0xf]
        %v6327 = vld [vmem:[%s292 + $0xb4] sm:$0xf]
        %v6328 = vld [vmem:[%s292 + $0xb8] sm:$0xf]
        %v6329 = vld [vmem:[%s292 + $0xbc] sm:$0xf]
        %v6330 = vld [vmem:[%s292 + $0xc0] sm:$0xf]
        %v6331 = vld [vmem:[%s292 + $0xc4] sm:$0xf]
        %v6332 = vld [vmem:[%s292 + $0xc8] sm:$0xf]
        %v6333 = vld [vmem:[%s292 + $0xcc] sm:$0xf]
        %v6334 = vld [vmem:[%s292 + $0xd0] sm:$0xf]
        %v6335 = vld [vmem:[%s292 + $0xd4] sm:$0xf]
        %v6336 = vld [vmem:[%s292 + $0xd8] sm:$0xf]
        %v6337 = vld [vmem:[%s292 + $0xdc] sm:$0xf]
        %v6338 = vld [vmem:[%s292 + $0xe0] sm:$0xf]
        %v6339 = vld [vmem:[%s292 + $0xe4] sm:$0xf]
        %v6340 = vld [vmem:[%s292 + $0xe8] sm:$0xf]
        %v6341 = vld [vmem:[%s292 + $0xec] sm:$0xf]
        %v6342 = vld [vmem:[%s292 + $0xf0] sm:$0xf]
        %v6343 = vld [vmem:[%s292 + $0xf4] sm:$0xf]
        %v6344 = vld [vmem:[%s292 + $0xf8] sm:$0xf]
        %v6345 = vld [vmem:[%s292 + $0xfc] sm:$0xf]
        %v6346 = vld [vmem:[%s292 + $0x100] sm:$0xf]
        %v6347 = vld [vmem:[%s292 + $0x104] sm:$0xf]
        %v6348 = vld [vmem:[%s292 + $0x108] sm:$0xf]
        %v6349 = vld [vmem:[%s292 + $0x10c] sm:$0xf]
        %v6350 = vld [vmem:[%s292 + $0x110] sm:$0xf]
        %v6351 = vld [vmem:[%s292 + $0x114] sm:$0xf]
        %v6352 = vld [vmem:[%s292 + $0x118] sm:$0xf]
        %v6353 = vld [vmem:[%s292 + $0x11c] sm:$0xf]
        %v6354 = vld [vmem:[%s292 + $0x120] sm:$0xf]
        %v6355 = vld [vmem:[%s292 + $0x124] sm:$0xf]
        %v6356 = vld [vmem:[%s292 + $0x128] sm:$0xf]
        %v6357 = vld [vmem:[%s292 + $0x12c] sm:$0xf]
        %v6358 = vld [vmem:[%s292 + $0x130] sm:$0xf]
        %v6359 = vld [vmem:[%s292 + $0x134] sm:$0xf]
        %v6360 = vld [vmem:[%s292 + $0x138] sm:$0xf]
        %v6361 = vld [vmem:[%s292 + $0x13c] sm:$0xf]
        %v6362 = vld [vmem:[%s292 + $0x140] sm:$0xf]
        %v6363 = vld [vmem:[%s292 + $0x144] sm:$0xf]
        %v6364 = vld [vmem:[%s292 + $0x148] sm:$0xf]
        %v6365 = vld [vmem:[%s292 + $0x14c] sm:$0xf]
        %v6366 = vld [vmem:[%s292 + $0x150] sm:$0xf]
        %v6367 = vld [vmem:[%s292 + $0x154] sm:$0xf]
        %v6368 = vld [vmem:[%s292 + $0x158] sm:$0xf]
        %v6369 = vld [vmem:[%s292 + $0x15c] sm:$0xf]
        %v6370 = vld [vmem:[%s292 + $0x160] sm:$0xf]
        %v6371 = vld [vmem:[%s292 + $0x164] sm:$0xf]
        %v6372 = vld [vmem:[%s292 + $0x168] sm:$0xf]
        %v6373 = vld [vmem:[%s292 + $0x16c] sm:$0xf]
        %v6374 = vld [vmem:[%s292 + $0x170] sm:$0xf]
        %v6375 = vld [vmem:[%s292 + $0x174] sm:$0xf]
        %v6376 = vld [vmem:[%s292 + $0x178] sm:$0xf]
        %v6377 = vld [vmem:[%s292 + $0x17c] sm:$0xf]
        %v6378 = vld [vmem:[%s292 + $0x180] sm:$0xf]
        %v6379 = vld [vmem:[%s292 + $0x184] sm:$0xf]
        %v6380 = vld [vmem:[%s292 + $0x188] sm:$0xf]
        %v6381 = vld [vmem:[%s292 + $0x18c] sm:$0xf]
        %v6382 = vld [vmem:[%s292 + $0x190] sm:$0xf]
        %v6383 = vld [vmem:[%s292 + $0x194] sm:$0xf]
        %v6384 = vld [vmem:[%s292 + $0x198] sm:$0xf]
        %v6385 = vld [vmem:[%s292 + $0x19c] sm:$0xf]
        %v6386 = vld [vmem:[%s292 + $0x1a0] sm:$0xf]
        %v6387 = vld [vmem:[%s292 + $0x1a4] sm:$0xf]
        %v6388 = vld [vmem:[%s292 + $0x1a8] sm:$0xf]
        %v6389 = vld [vmem:[%s292 + $0x1ac] sm:$0xf]
        %v6390 = vld [vmem:[%s292 + $0x1b0] sm:$0xf]
        %v6391 = vld [vmem:[%s292 + $0x1b4] sm:$0xf]
        %v6392 = vld [vmem:[%s292 + $0x1b8] sm:$0xf]
        %v6393 = vld [vmem:[%s292 + $0x1bc] sm:$0xf]
        %v6394 = vld [vmem:[%s292 + $0x1c0] sm:$0xf]
        %v6395 = vld [vmem:[%s292 + $0x1c4] sm:$0xf]
        %v6396 = vld [vmem:[%s292 + $0x1c8] sm:$0xf]
        %v6397 = vld [vmem:[%s292 + $0x1cc] sm:$0xf]
        %v6398 = vld [vmem:[%s292 + $0x1d0] sm:$0xf]
        %v6399 = vld [vmem:[%s292 + $0x1d4] sm:$0xf]
        %v6400 = vld [vmem:[%s292 + $0x1d8] sm:$0xf]
        %v6401 = vld [vmem:[%s292 + $0x1dc] sm:$0xf]
        %v6402 = vld [vmem:[%s292 + $0x1e0] sm:$0xf]
        %v6403 = vld [vmem:[%s292 + $0x1e4] sm:$0xf]
        %v6404 = vld [vmem:[%s292 + $0x1e8] sm:$0xf]
        %v6405 = vld [vmem:[%s292 + $0x1ec] sm:$0xf]
        %v6406 = vld [vmem:[%s292 + $0x1f0] sm:$0xf]
        %v6407 = vld [vmem:[%s292 + $0x1f4] sm:$0xf]
        %v6408 = vld [vmem:[%s292 + $0x1f8] sm:$0xf]
        %v6409 = vld [vmem:[%s292 + $0x1fc] sm:$0xf]
        %v6410 = vld [vmem:[%s292 + $0x200] sm:$0xf]
        %v6411 = vld [vmem:[%s292 + $0x204] sm:$0xf]
        %v6412 = vld [vmem:[%s292 + $0x208] sm:$0xf]
        %v6413 = vld [vmem:[%s292 + $0x20c] sm:$0xf]
        %v6414 = vld [vmem:[%s292 + $0x210] sm:$0xf]
        %v6415 = vld [vmem:[%s292 + $0x214] sm:$0xf]
        %v6416 = vld [vmem:[%s292 + $0x218] sm:$0xf]
        %v6417 = vld [vmem:[%s292 + $0x21c] sm:$0xf]
        %v6418 = vld [vmem:[%s292 + $0x220] sm:$0xf]
        %v6419 = vld [vmem:[%s292 + $0x224] sm:$0xf]
        %v6420 = vld [vmem:[%s292 + $0x228] sm:$0xf]
        %v6421 = vld [vmem:[%s292 + $0x22c] sm:$0xf]
        %v6422 = vld [vmem:[#allocation7 + $0x180] sm:$0xf]
        %v6423 = vld [vmem:[#allocation7 + $0x184] sm:$0xf]
        %v6424 = vld [vmem:[#allocation7 + $0x188] sm:$0xf]
        %v6425 = vld [vmem:[#allocation7 + $0x18c] sm:$0xf]
        %v6426 = vld [vmem:[#allocation7 + $0x190] sm:$0xf]
        %v6427 = vld [vmem:[#allocation7 + $0x194] sm:$0xf]
        %v6428 = vld [vmem:[#allocation7 + $0x198] sm:$0xf]
        %v6429 = vld [vmem:[#allocation7 + $0x19c] sm:$0xf]
        %v6430 = vld [vmem:[#allocation7 + $0x1a0] sm:$0xf]
        %v6431 = vld [vmem:[#allocation7 + $0x1a4] sm:$0xf]
        %v6432 = vld [vmem:[#allocation7 + $0x1a8] sm:$0xf]
        %v6433 = vld [vmem:[#allocation7 + $0x1ac] sm:$0xf]
        %v6434 = vld [vmem:[#allocation7 + $0x1b0] sm:$0xf]
        %v6435 = vld [vmem:[#allocation7 + $0x1b4] sm:$0xf]
        %v6436 = vld [vmem:[#allocation7 + $0x1b8] sm:$0xf]
        %v6437 = vld [vmem:[#allocation7 + $0x1bc] sm:$0xf]
        %v6566 = vunpack.c.l.b16 %v6294
        %v6567 = vunpack.c.l.b16 %v6295
        %v6568 = vunpack.c.l.b16 %v6296
        %v6569 = vunpack.c.l.b16 %v6297
        %v6570 = vunpack.c.l.b16 %v6298
        %v6571 = vunpack.c.l.b16 %v6299
        %v6572 = vunpack.c.l.b16 %v6300
        %v6573 = vunpack.c.l.b16 %v6301
        %v6574 = vunpack.c.l.b16 %v6302
        %v6575 = vunpack.c.l.b16 %v6303
        %v6576 = vunpack.c.l.b16 %v6304
        %v6577 = vunpack.c.l.b16 %v6305
        %v6578 = vunpack.c.l.b16 %v6306
        %v6579 = vunpack.c.l.b16 %v6307
        %v6580 = vunpack.c.l.b16 %v6308
        %v6581 = vunpack.c.l.b16 %v6309
        %v6582 = vunpack.c.l.b16 %v6310
        %v6583 = vunpack.c.l.b16 %v6311
        %v6584 = vunpack.c.l.b16 %v6312
        %v6585 = vunpack.c.l.b16 %v6313
        %v6586 = vunpack.c.l.b16 %v6314
        %v6587 = vunpack.c.l.b16 %v6315
        %v6588 = vunpack.c.l.b16 %v6316
        %v6589 = vunpack.c.l.b16 %v6317
        %v6590 = vunpack.c.l.b16 %v6318
        %v6591 = vunpack.c.l.b16 %v6319
        %v6592 = vunpack.c.l.b16 %v6320
        %v6593 = vunpack.c.l.b16 %v6321
        %v6594 = vunpack.c.l.b16 %v6322
        %v6595 = vunpack.c.l.b16 %v6323
        %v6596 = vunpack.c.l.b16 %v6324
        %v6597 = vunpack.c.l.b16 %v6325
        %v6598 = vunpack.c.l.b16 %v6326
        %v6599 = vunpack.c.l.b16 %v6327
        %v6600 = vunpack.c.l.b16 %v6328
        %v6601 = vunpack.c.l.b16 %v6329
        %v6602 = vunpack.c.l.b16 %v6330
        %v6603 = vunpack.c.l.b16 %v6331
        %v6604 = vunpack.c.l.b16 %v6332
        %v6605 = vunpack.c.l.b16 %v6333
        %v6606 = vunpack.c.l.b16 %v6334
        %v6607 = vunpack.c.l.b16 %v6335
        %v6608 = vunpack.c.l.b16 %v6336
        %v6609 = vunpack.c.l.b16 %v6337
        %v6610 = vunpack.c.l.b16 %v6338
        %v6611 = vunpack.c.l.b16 %v6339
        %v6612 = vunpack.c.l.b16 %v6340
        %v6613 = vunpack.c.l.b16 %v6341
        %v6614 = vunpack.c.l.b16 %v6342
        %v6615 = vunpack.c.l.b16 %v6343
        %v6616 = vunpack.c.l.b16 %v6344
        %v6617 = vunpack.c.l.b16 %v6345
        %v6618 = vunpack.c.l.b16 %v6346
        %v6619 = vunpack.c.l.b16 %v6347
        %v6620 = vunpack.c.l.b16 %v6348
        %v6621 = vunpack.c.l.b16 %v6349
        %v6622 = vunpack.c.l.b16 %v6350
        %v6623 = vunpack.c.l.b16 %v6351
        %v6624 = vunpack.c.l.b16 %v6352
        %v6625 = vunpack.c.l.b16 %v6353
        %v6626 = vunpack.c.l.b16 %v6354
        %v6627 = vunpack.c.l.b16 %v6355
        %v6628 = vunpack.c.l.b16 %v6356
        %v6629 = vunpack.c.l.b16 %v6357
        %v6630 = vunpack.c.l.b16 %v6358
        %v6631 = vunpack.c.l.b16 %v6359
        %v6632 = vunpack.c.l.b16 %v6360
        %v6633 = vunpack.c.l.b16 %v6361
        %v6634 = vunpack.c.l.b16 %v6362
        %v6635 = vunpack.c.l.b16 %v6363
        %v6636 = vunpack.c.l.b16 %v6364
        %v6637 = vunpack.c.l.b16 %v6365
        %v6638 = vunpack.c.l.b16 %v6366
        %v6639 = vunpack.c.l.b16 %v6367
        %v6640 = vunpack.c.l.b16 %v6368
        %v6641 = vunpack.c.l.b16 %v6369
        %v6642 = vunpack.c.l.b16 %v6370
        %v6643 = vunpack.c.l.b16 %v6371
        %v6644 = vunpack.c.l.b16 %v6372
        %v6645 = vunpack.c.l.b16 %v6373
        %v6646 = vunpack.c.l.b16 %v6374
        %v6647 = vunpack.c.l.b16 %v6375
        %v6648 = vunpack.c.l.b16 %v6376
        %v6649 = vunpack.c.l.b16 %v6377
        %v6650 = vunpack.c.l.b16 %v6378
        %v6651 = vunpack.c.l.b16 %v6379
        %v6652 = vunpack.c.l.b16 %v6380
        %v6653 = vunpack.c.l.b16 %v6381
        %v6654 = vunpack.c.l.b16 %v6382
        %v6655 = vunpack.c.l.b16 %v6383
        %v6656 = vunpack.c.l.b16 %v6384
        %v6657 = vunpack.c.l.b16 %v6385
        %v6658 = vunpack.c.l.b16 %v6386
        %v6659 = vunpack.c.l.b16 %v6387
        %v6660 = vunpack.c.l.b16 %v6388
        %v6661 = vunpack.c.l.b16 %v6389
        %v6662 = vunpack.c.l.b16 %v6390
        %v6663 = vunpack.c.l.b16 %v6391
        %v6664 = vunpack.c.l.b16 %v6392
        %v6665 = vunpack.c.l.b16 %v6393
        %v6666 = vunpack.c.l.b16 %v6394
        %v6667 = vunpack.c.l.b16 %v6395
        %v6668 = vunpack.c.l.b16 %v6396
        %v6669 = vunpack.c.l.b16 %v6397
        %v6670 = vunpack.c.l.b16 %v6398
        %v6671 = vunpack.c.l.b16 %v6399
        %v6672 = vunpack.c.l.b16 %v6400
        %v6673 = vunpack.c.l.b16 %v6401
        %v6674 = vunpack.c.l.b16 %v6402
        %v6675 = vunpack.c.l.b16 %v6403
        %v6676 = vunpack.c.l.b16 %v6404
        %v6677 = vunpack.c.l.b16 %v6405
        %v6678 = vunpack.c.l.b16 %v6406
        %v6679 = vunpack.c.l.b16 %v6407
        %v6680 = vunpack.c.l.b16 %v6408
        %v6681 = vunpack.c.l.b16 %v6409
        %v6682 = vunpack.c.l.b16 %v6410
        %v6683 = vunpack.c.l.b16 %v6411
        %v6684 = vunpack.c.l.b16 %v6412
        %v6685 = vunpack.c.l.b16 %v6413
        %v6686 = vunpack.c.l.b16 %v6414
        %v6687 = vunpack.c.l.b16 %v6415
        %v6688 = vunpack.c.l.b16 %v6416
        %v6689 = vunpack.c.l.b16 %v6417
        %v6690 = vunpack.c.l.b16 %v6418
        %v6691 = vunpack.c.l.b16 %v6419
        %v6692 = vunpack.c.l.b16 %v6420
        %v6693 = vunpack.c.l.b16 %v6421
        %v6694 = vpack.c.b16 %v6567, %v6566
        %v6695 = vpack.c.b16 %v6569, %v6568
        %v6696 = vpack.c.b16 %v6571, %v6570
        %v6697 = vpack.c.b16 %v6573, %v6572
        %v6698 = vpack.c.b16 %v6575, %v6574
        %v6699 = vpack.c.b16 %v6577, %v6576
        %v6700 = vpack.c.b16 %v6579, %v6578
        %v6701 = vpack.c.b16 %v6581, %v6580
        %v6702 = vpack.c.b16 %v6583, %v6582
        %v6703 = vpack.c.b16 %v6585, %v6584
        %v6704 = vpack.c.b16 %v6587, %v6586
        %v6705 = vpack.c.b16 %v6589, %v6588
        %v6706 = vpack.c.b16 %v6591, %v6590
        %v6707 = vpack.c.b16 %v6593, %v6592
        %v6708 = vpack.c.b16 %v6595, %v6594
        %v6709 = vpack.c.b16 %v6597, %v6596
        %v6710 = vpack.c.b16 %v6599, %v6598
        %v6711 = vpack.c.b16 %v6601, %v6600
        %v6712 = vpack.c.b16 %v6603, %v6602
        %v6713 = vpack.c.b16 %v6605, %v6604
        %v6714 = vpack.c.b16 %v6607, %v6606
        %v6715 = vpack.c.b16 %v6609, %v6608
        %v6716 = vpack.c.b16 %v6611, %v6610
        %v6717 = vpack.c.b16 %v6613, %v6612
        %v6718 = vpack.c.b16 %v6615, %v6614
        %v6719 = vpack.c.b16 %v6617, %v6616
        %v6720 = vpack.c.b16 %v6619, %v6618
        %v6721 = vpack.c.b16 %v6621, %v6620
        %v6722 = vpack.c.b16 %v6623, %v6622
        %v6723 = vpack.c.b16 %v6625, %v6624
        %v6724 = vpack.c.b16 %v6627, %v6626
        %v6725 = vpack.c.b16 %v6629, %v6628
        %v6726 = vpack.c.b16 %v6631, %v6630
        %v6727 = vpack.c.b16 %v6633, %v6632
        %v6728 = vpack.c.b16 %v6635, %v6634
        %v6729 = vpack.c.b16 %v6637, %v6636
        %v6730 = vpack.c.b16 %v6639, %v6638
        %v6731 = vpack.c.b16 %v6641, %v6640
        %v6732 = vpack.c.b16 %v6643, %v6642
        %v6733 = vpack.c.b16 %v6645, %v6644
        %v6734 = vpack.c.b16 %v6647, %v6646
        %v6735 = vpack.c.b16 %v6649, %v6648
        %v6736 = vpack.c.b16 %v6651, %v6650
        %v6737 = vpack.c.b16 %v6653, %v6652
        %v6738 = vpack.c.b16 %v6655, %v6654
        %v6739 = vpack.c.b16 %v6657, %v6656
        %v6740 = vpack.c.b16 %v6659, %v6658
        %v6741 = vpack.c.b16 %v6661, %v6660
        %v6742 = vpack.c.b16 %v6663, %v6662
        %v6743 = vpack.c.b16 %v6665, %v6664
        %v6744 = vpack.c.b16 %v6667, %v6666
        %v6745 = vpack.c.b16 %v6669, %v6668
        %v6746 = vpack.c.b16 %v6671, %v6670
        %v6747 = vpack.c.b16 %v6673, %v6672
        %v6748 = vpack.c.b16 %v6675, %v6674
        %v6749 = vpack.c.b16 %v6677, %v6676
        %v6750 = vpack.c.b16 %v6679, %v6678
        %v6751 = vpack.c.b16 %v6681, %v6680
        %v6752 = vpack.c.b16 %v6683, %v6682
        %v6753 = vpack.c.b16 %v6685, %v6684
        %v6754 = vpack.c.b16 %v6687, %v6686
        %v6755 = vpack.c.b16 %v6689, %v6688
        %v6756 = vpack.c.b16 %v6691, %v6690
        %v6757 = vpack.c.b16 %v6693, %v6692
        %v6838 = vunpack.c.l.b16 %v6422
        %v6839 = vunpack.c.l.b16 %v6423
        %v6840 = vunpack.c.l.b16 %v6424
        %v6841 = vunpack.c.l.b16 %v6425
        %v6842 = vunpack.c.l.b16 %v6426
        %v6843 = vunpack.c.l.b16 %v6427
        %v6844 = vunpack.c.l.b16 %v6428
        %v6845 = vunpack.c.l.b16 %v6429
        %v6846 = vunpack.c.l.b16 %v6430
        %v6847 = vunpack.c.l.b16 %v6431
        %v6848 = vunpack.c.l.b16 %v6432
        %v6849 = vunpack.c.l.b16 %v6433
        %v6850 = vunpack.c.l.b16 %v6434
        %v6851 = vunpack.c.l.b16 %v6435
        %v6852 = vunpack.c.l.b16 %v6436
        %v6853 = vunpack.c.l.b16 %v6437
        %v6854 = vpack.c.b16 %v6839, %v6838
        %v6855 = vpack.c.b16 %v6841, %v6840
        %v6856 = vpack.c.b16 %v6843, %v6842
        %v6857 = vpack.c.b16 %v6845, %v6844
        %v6858 = vpack.c.b16 %v6847, %v6846
        %v6859 = vpack.c.b16 %v6849, %v6848
        %v6860 = vpack.c.b16 %v6851, %v6850
        %v6861 = vpack.c.b16 %v6853, %v6852
        %6870 = vmatpush.bf16.msra.mxu0 %v6861
        %6871 = vmatpush.bf16.msra.mxu0 %v6860
        %6872 = vmatpush.bf16.msra.mxu0 %v6859
        %6873 = vmatpush.bf16.msra.mxu0 %v6858
        %6874 = vmatpush.bf16.msra.mxu0 %v6857
        %6875 = vmatpush.bf16.msra.mxu0 %v6856
        %6876 = vmatpush.bf16.msra.mxu0 %v6855
        %6877 = vmatpush.bf16.msra.mxu0 %v6854
        %6878 = vmatmul.bf16.gmra.mxu0 %v6694
        %v6879 = vpop.f32.mrf.mxu0
        %v6880 = vadd.f32 0.0, %v6879
        %v6881 = vpop.f32.mrf.mxu0
        %v6882 = vadd.f32 0.0, %v6881
        %6883 = vmatmul.bf16.gmra.mxu0 %v6695
        %v6884 = vpop.f32.mrf.mxu0
        %v6885 = vadd.f32 0.0, %v6884
        %v6886 = vpop.f32.mrf.mxu0
        %v6887 = vadd.f32 0.0, %v6886
        %6888 = vmatmul.bf16.gmra.mxu0 %v6696
        %v6889 = vpop.f32.mrf.mxu0
        %v6890 = vadd.f32 0.0, %v6889
        %v6891 = vpop.f32.mrf.mxu0
        %v6892 = vadd.f32 0.0, %v6891
        %6893 = vmatmul.bf16.gmra.mxu0 %v6697
        %v6894 = vpop.f32.mrf.mxu0
        %v6895 = vadd.f32 0.0, %v6894
        %v6896 = vpop.f32.mrf.mxu0
        %v6897 = vadd.f32 0.0, %v6896
        %6898 = vmatmul.bf16.gmra.mxu0 %v6698
        %v6899 = vpop.f32.mrf.mxu0
        %v6900 = vadd.f32 0.0, %v6899
        %v6901 = vpop.f32.mrf.mxu0
        %v6902 = vadd.f32 0.0, %v6901
        %6903 = vmatmul.bf16.gmra.mxu0 %v6699
        %v6904 = vpop.f32.mrf.mxu0
        %v6905 = vadd.f32 0.0, %v6904
        %v6906 = vpop.f32.mrf.mxu0
        %v6907 = vadd.f32 0.0, %v6906
        %6908 = vmatmul.bf16.gmra.mxu0 %v6700
        %v6909 = vpop.f32.mrf.mxu0
        %v6910 = vadd.f32 0.0, %v6909
        %v6911 = vpop.f32.mrf.mxu0
        %v6912 = vadd.f32 0.0, %v6911
        %6913 = vmatmul.bf16.gmra.mxu0 %v6701
        %v6914 = vpop.f32.mrf.mxu0
        %v6915 = vadd.f32 0.0, %v6914
        %v6916 = vpop.f32.mrf.mxu0
        %v6917 = vadd.f32 0.0, %v6916
        %6918 = vmatmul.bf16.gmra.mxu0 %v6702
        %v6919 = vpop.f32.mrf.mxu0
        %v6920 = vadd.f32 0.0, %v6919
        %v6921 = vpop.f32.mrf.mxu0
        %v6922 = vadd.f32 0.0, %v6921
        %6923 = vmatmul.bf16.gmra.mxu0 %v6703
        %v6924 = vpop.f32.mrf.mxu0
        %v6925 = vadd.f32 0.0, %v6924
        %v6926 = vpop.f32.mrf.mxu0
        %v6927 = vadd.f32 0.0, %v6926
        %6928 = vmatmul.bf16.gmra.mxu0 %v6704
        %v6929 = vpop.f32.mrf.mxu0
        %v6930 = vadd.f32 0.0, %v6929
        %v6931 = vpop.f32.mrf.mxu0
        %v6932 = vadd.f32 0.0, %v6931
        %6933 = vmatmul.bf16.gmra.mxu0 %v6705
        %v6934 = vpop.f32.mrf.mxu0
        %v6935 = vadd.f32 0.0, %v6934
        %v6936 = vpop.f32.mrf.mxu0
        %v6937 = vadd.f32 0.0, %v6936
        %6938 = vmatmul.bf16.gmra.mxu0 %v6706
        %v6939 = vpop.f32.mrf.mxu0
        %v6940 = vadd.f32 0.0, %v6939
        %v6941 = vpop.f32.mrf.mxu0
        %v6942 = vadd.f32 0.0, %v6941
        %6943 = vmatmul.bf16.gmra.mxu0 %v6707
        %v6944 = vpop.f32.mrf.mxu0
        %v6945 = vadd.f32 0.0, %v6944
        %v6946 = vpop.f32.mrf.mxu0
        %v6947 = vadd.f32 0.0, %v6946
        %6948 = vmatmul.bf16.gmra.mxu0 %v6708
        %v6949 = vpop.f32.mrf.mxu0
        %v6950 = vadd.f32 0.0, %v6949
        %v6951 = vpop.f32.mrf.mxu0
        %v6952 = vadd.f32 0.0, %v6951
        %6953 = vmatmul.bf16.gmra.mxu0 %v6709
        %v6954 = vpop.f32.mrf.mxu0
        %v6955 = vadd.f32 0.0, %v6954
        %v6956 = vpop.f32.mrf.mxu0
        %v6957 = vadd.f32 0.0, %v6956
        %6958 = vmatmul.bf16.gmra.mxu0 %v6710
        %v6959 = vpop.f32.mrf.mxu0
        %v6960 = vadd.f32 0.0, %v6959
        %v6961 = vpop.f32.mrf.mxu0
        %v6962 = vadd.f32 0.0, %v6961
        %6963 = vmatmul.bf16.gmra.mxu0 %v6711
        %v6964 = vpop.f32.mrf.mxu0
        %v6965 = vadd.f32 0.0, %v6964
        %v6966 = vpop.f32.mrf.mxu0
        %v6967 = vadd.f32 0.0, %v6966
        %6968 = vmatmul.bf16.gmra.mxu0 %v6712
        %v6969 = vpop.f32.mrf.mxu0
        %v6970 = vadd.f32 0.0, %v6969
        %v6971 = vpop.f32.mrf.mxu0
        %v6972 = vadd.f32 0.0, %v6971
        %6973 = vmatmul.bf16.gmra.mxu0 %v6713
        %v6974 = vpop.f32.mrf.mxu0
        %v6975 = vadd.f32 0.0, %v6974
        %v6976 = vpop.f32.mrf.mxu0
        %v6977 = vadd.f32 0.0, %v6976
        %6978 = vmatmul.bf16.gmra.mxu0 %v6714
        %v6979 = vpop.f32.mrf.mxu0
        %v6980 = vadd.f32 0.0, %v6979
        %v6981 = vpop.f32.mrf.mxu0
        %v6982 = vadd.f32 0.0, %v6981
        %6983 = vmatmul.bf16.gmra.mxu0 %v6715
        %v6984 = vpop.f32.mrf.mxu0
        %v6985 = vadd.f32 0.0, %v6984
        %v6986 = vpop.f32.mrf.mxu0
        %v6987 = vadd.f32 0.0, %v6986
        %6988 = vmatmul.bf16.gmra.mxu0 %v6716
        %v6989 = vpop.f32.mrf.mxu0
        %v6990 = vadd.f32 0.0, %v6989
        %v6991 = vpop.f32.mrf.mxu0
        %v6992 = vadd.f32 0.0, %v6991
        %6993 = vmatmul.bf16.gmra.mxu0 %v6717
        %v6994 = vpop.f32.mrf.mxu0
        %v6995 = vadd.f32 0.0, %v6994
        %v6996 = vpop.f32.mrf.mxu0
        %v6997 = vadd.f32 0.0, %v6996
        %6998 = vmatmul.bf16.gmra.mxu0 %v6718
        %v6999 = vpop.f32.mrf.mxu0
        %v7000 = vadd.f32 0.0, %v6999
        %v7001 = vpop.f32.mrf.mxu0
        %v7002 = vadd.f32 0.0, %v7001
        %7003 = vmatmul.bf16.gmra.mxu0 %v6719
        %v7004 = vpop.f32.mrf.mxu0
        %v7005 = vadd.f32 0.0, %v7004
        %v7006 = vpop.f32.mrf.mxu0
        %v7007 = vadd.f32 0.0, %v7006
        %7008 = vmatmul.bf16.gmra.mxu0 %v6720
        %v7009 = vpop.f32.mrf.mxu0
        %v7010 = vadd.f32 0.0, %v7009
        %v7011 = vpop.f32.mrf.mxu0
        %v7012 = vadd.f32 0.0, %v7011
        %7013 = vmatmul.bf16.gmra.mxu0 %v6721
        %v7014 = vpop.f32.mrf.mxu0
        %v7015 = vadd.f32 0.0, %v7014
        %v7016 = vpop.f32.mrf.mxu0
        %v7017 = vadd.f32 0.0, %v7016
        %7018 = vmatmul.bf16.gmra.mxu0 %v6722
        %v7019 = vpop.f32.mrf.mxu0
        %v7020 = vadd.f32 0.0, %v7019
        %v7021 = vpop.f32.mrf.mxu0
        %v7022 = vadd.f32 0.0, %v7021
        %7023 = vmatmul.bf16.gmra.mxu0 %v6723
        %v7024 = vpop.f32.mrf.mxu0
        %v7025 = vadd.f32 0.0, %v7024
        %v7026 = vpop.f32.mrf.mxu0
        %v7027 = vadd.f32 0.0, %v7026
        %7028 = vmatmul.bf16.gmra.mxu0 %v6724
        %v7029 = vpop.f32.mrf.mxu0
        %v7030 = vadd.f32 0.0, %v7029
        %v7031 = vpop.f32.mrf.mxu0
        %v7032 = vadd.f32 0.0, %v7031
        %7033 = vmatmul.bf16.gmra.mxu0 %v6725
        %v7034 = vpop.f32.mrf.mxu0
        %v7035 = vadd.f32 0.0, %v7034
        %v7036 = vpop.f32.mrf.mxu0
        %v7037 = vadd.f32 0.0, %v7036
        %7038 = vmatmul.bf16.gmra.mxu0 %v6726
        %v7039 = vpop.f32.mrf.mxu0
        %v7040 = vadd.f32 0.0, %v7039
        %v7041 = vpop.f32.mrf.mxu0
        %v7042 = vadd.f32 0.0, %v7041
        %7043 = vmatmul.bf16.gmra.mxu0 %v6727
        %v7044 = vpop.f32.mrf.mxu0
        %v7045 = vadd.f32 0.0, %v7044
        %v7046 = vpop.f32.mrf.mxu0
        %v7047 = vadd.f32 0.0, %v7046
        %7048 = vmatmul.bf16.gmra.mxu0 %v6728
        %v7049 = vpop.f32.mrf.mxu0
        %v7050 = vadd.f32 0.0, %v7049
        %v7051 = vpop.f32.mrf.mxu0
        %v7052 = vadd.f32 0.0, %v7051
        %7053 = vmatmul.bf16.gmra.mxu0 %v6729
        %v7054 = vpop.f32.mrf.mxu0
        %v7055 = vadd.f32 0.0, %v7054
        %v7056 = vpop.f32.mrf.mxu0
        %v7057 = vadd.f32 0.0, %v7056
        %7058 = vmatmul.bf16.gmra.mxu0 %v6730
        %v7059 = vpop.f32.mrf.mxu0
        %v7060 = vadd.f32 0.0, %v7059
        %v7061 = vpop.f32.mrf.mxu0
        %v7062 = vadd.f32 0.0, %v7061
        %7063 = vmatmul.bf16.gmra.mxu0 %v6731
        %v7064 = vpop.f32.mrf.mxu0
        %v7065 = vadd.f32 0.0, %v7064
        %v7066 = vpop.f32.mrf.mxu0
        %v7067 = vadd.f32 0.0, %v7066
        %7068 = vmatmul.bf16.gmra.mxu0 %v6732
        %v7069 = vpop.f32.mrf.mxu0
        %v7070 = vadd.f32 0.0, %v7069
        %v7071 = vpop.f32.mrf.mxu0
        %v7072 = vadd.f32 0.0, %v7071
        %7073 = vmatmul.bf16.gmra.mxu0 %v6733
        %v7074 = vpop.f32.mrf.mxu0
        %v7075 = vadd.f32 0.0, %v7074
        %v7076 = vpop.f32.mrf.mxu0
        %v7077 = vadd.f32 0.0, %v7076
        %7078 = vmatmul.bf16.gmra.mxu0 %v6734
        %v7079 = vpop.f32.mrf.mxu0
        %v7080 = vadd.f32 0.0, %v7079
        %v7081 = vpop.f32.mrf.mxu0
        %v7082 = vadd.f32 0.0, %v7081
        %7083 = vmatmul.bf16.gmra.mxu0 %v6735
        %v7084 = vpop.f32.mrf.mxu0
        %v7085 = vadd.f32 0.0, %v7084
        %v7086 = vpop.f32.mrf.mxu0
        %v7087 = vadd.f32 0.0, %v7086
        %7088 = vmatmul.bf16.gmra.mxu0 %v6736
        %v7089 = vpop.f32.mrf.mxu0
        %v7090 = vadd.f32 0.0, %v7089
        %v7091 = vpop.f32.mrf.mxu0
        %v7092 = vadd.f32 0.0, %v7091
        %7093 = vmatmul.bf16.gmra.mxu0 %v6737
        %v7094 = vpop.f32.mrf.mxu0
        %v7095 = vadd.f32 0.0, %v7094
        %v7096 = vpop.f32.mrf.mxu0
        %v7097 = vadd.f32 0.0, %v7096
        %7098 = vmatmul.bf16.gmra.mxu0 %v6738
        %v7099 = vpop.f32.mrf.mxu0
        %v7100 = vadd.f32 0.0, %v7099
        %v7101 = vpop.f32.mrf.mxu0
        %v7102 = vadd.f32 0.0, %v7101
        %7103 = vmatmul.bf16.gmra.mxu0 %v6739
        %v7104 = vpop.f32.mrf.mxu0
        %v7105 = vadd.f32 0.0, %v7104
        %v7106 = vpop.f32.mrf.mxu0
        %v7107 = vadd.f32 0.0, %v7106
        %7108 = vmatmul.bf16.gmra.mxu0 %v6740
        %v7109 = vpop.f32.mrf.mxu0
        %v7110 = vadd.f32 0.0, %v7109
        %v7111 = vpop.f32.mrf.mxu0
        %v7112 = vadd.f32 0.0, %v7111
        %7113 = vmatmul.bf16.gmra.mxu0 %v6741
        %v7114 = vpop.f32.mrf.mxu0
        %v7115 = vadd.f32 0.0, %v7114
        %v7116 = vpop.f32.mrf.mxu0
        %v7117 = vadd.f32 0.0, %v7116
        %7118 = vmatmul.bf16.gmra.mxu0 %v6742
        %v7119 = vpop.f32.mrf.mxu0
        %v7120 = vadd.f32 0.0, %v7119
        %v7121 = vpop.f32.mrf.mxu0
        %v7122 = vadd.f32 0.0, %v7121
        %7123 = vmatmul.bf16.gmra.mxu0 %v6743
        %v7124 = vpop.f32.mrf.mxu0
        %v7125 = vadd.f32 0.0, %v7124
        %v7126 = vpop.f32.mrf.mxu0
        %v7127 = vadd.f32 0.0, %v7126
        %7128 = vmatmul.bf16.gmra.mxu0 %v6744
        %v7129 = vpop.f32.mrf.mxu0
        %v7130 = vadd.f32 0.0, %v7129
        %v7131 = vpop.f32.mrf.mxu0
        %v7132 = vadd.f32 0.0, %v7131
        %7133 = vmatmul.bf16.gmra.mxu0 %v6745
        %v7134 = vpop.f32.mrf.mxu0
        %v7135 = vadd.f32 0.0, %v7134
        %v7136 = vpop.f32.mrf.mxu0
        %v7137 = vadd.f32 0.0, %v7136
        %7138 = vmatmul.bf16.gmra.mxu0 %v6746
        %v7139 = vpop.f32.mrf.mxu0
        %v7140 = vadd.f32 0.0, %v7139
        %v7141 = vpop.f32.mrf.mxu0
        %v7142 = vadd.f32 0.0, %v7141
        %7143 = vmatmul.bf16.gmra.mxu0 %v6747
        %v7144 = vpop.f32.mrf.mxu0
        %v7145 = vadd.f32 0.0, %v7144
        %v7146 = vpop.f32.mrf.mxu0
        %v7147 = vadd.f32 0.0, %v7146
        %7148 = vmatmul.bf16.gmra.mxu0 %v6748
        %v7149 = vpop.f32.mrf.mxu0
        %v7150 = vadd.f32 0.0, %v7149
        %v7151 = vpop.f32.mrf.mxu0
        %v7152 = vadd.f32 0.0, %v7151
        %7153 = vmatmul.bf16.gmra.mxu0 %v6749
        %v7154 = vpop.f32.mrf.mxu0
        %v7155 = vadd.f32 0.0, %v7154
        %v7156 = vpop.f32.mrf.mxu0
        %v7157 = vadd.f32 0.0, %v7156
        %7158 = vmatmul.bf16.gmra.mxu0 %v6750
        %v7159 = vpop.f32.mrf.mxu0
        %v7160 = vadd.f32 0.0, %v7159
        %v7161 = vpop.f32.mrf.mxu0
        %v7162 = vadd.f32 0.0, %v7161
        %7163 = vmatmul.bf16.gmra.mxu0 %v6751
        %v7164 = vpop.f32.mrf.mxu0
        %v7165 = vadd.f32 0.0, %v7164
        %v7166 = vpop.f32.mrf.mxu0
        %v7167 = vadd.f32 0.0, %v7166
        %7168 = vmatmul.bf16.gmra.mxu0 %v6752
        %v7169 = vpop.f32.mrf.mxu0
        %v7170 = vadd.f32 0.0, %v7169
        %v7171 = vpop.f32.mrf.mxu0
        %v7172 = vadd.f32 0.0, %v7171
        %7173 = vmatmul.bf16.gmra.mxu0 %v6753
        %v7174 = vpop.f32.mrf.mxu0
        %v7175 = vadd.f32 0.0, %v7174
        %v7176 = vpop.f32.mrf.mxu0
        %v7177 = vadd.f32 0.0, %v7176
        %7178 = vmatmul.bf16.gmra.mxu0 %v6754
        %v7179 = vpop.f32.mrf.mxu0
        %v7180 = vadd.f32 0.0, %v7179
        %v7181 = vpop.f32.mrf.mxu0
        %v7182 = vadd.f32 0.0, %v7181
        %7183 = vmatmul.bf16.gmra.mxu0 %v6755
        %v7184 = vpop.f32.mrf.mxu0
        %v7185 = vadd.f32 0.0, %v7184
        %v7186 = vpop.f32.mrf.mxu0
        %v7187 = vadd.f32 0.0, %v7186
        %7188 = vmatmul.bf16.gmra.mxu0 %v6756
        %v7189 = vpop.f32.mrf.mxu0
        %v7190 = vadd.f32 0.0, %v7189
        %v7191 = vpop.f32.mrf.mxu0
        %v7192 = vadd.f32 0.0, %v7191
        %7193 = vmatmul.bf16.gmra.mxu0 %v6757
        %v7194 = vpop.f32.mrf.mxu0
        %v7195 = vadd.f32 0.0, %v7194
        %v7196 = vpop.f32.mrf.mxu0
        %v7197 = vadd.f32 0.0, %v7196
        %7198 = vdwg.mxu0
        %v7199 = vadd.f32 %v6166, %v6880
        %v7200 = vadd.f32 %v6167, %v6882
        %v7201 = vadd.f32 %v6168, %v6885
        %v7202 = vadd.f32 %v6169, %v6887
        %v7203 = vadd.f32 %v6170, %v6890
        %v7204 = vadd.f32 %v6171, %v6892
        %v7205 = vadd.f32 %v6172, %v6895
        %v7206 = vadd.f32 %v6173, %v6897
        %v7207 = vadd.f32 %v6174, %v6900
        %v7208 = vadd.f32 %v6175, %v6902
        %v7209 = vadd.f32 %v6176, %v6905
        %v7210 = vadd.f32 %v6177, %v6907
        %v7211 = vadd.f32 %v6178, %v6910
        %v7212 = vadd.f32 %v6179, %v6912
        %v7213 = vadd.f32 %v6180, %v6915
        %v7214 = vadd.f32 %v6181, %v6917
        %v7215 = vadd.f32 %v6182, %v6920
        %v7216 = vadd.f32 %v6183, %v6922
        %v7217 = vadd.f32 %v6184, %v6925
        %v7218 = vadd.f32 %v6185, %v6927
        %v7219 = vadd.f32 %v6186, %v6930
        %v7220 = vadd.f32 %v6187, %v6932
        %v7221 = vadd.f32 %v6188, %v6935
        %v7222 = vadd.f32 %v6189, %v6937
        %v7223 = vadd.f32 %v6190, %v6940
        %v7224 = vadd.f32 %v6191, %v6942
        %v7225 = vadd.f32 %v6192, %v6945
        %v7226 = vadd.f32 %v6193, %v6947
        %v7227 = vadd.f32 %v6194, %v6950
        %v7228 = vadd.f32 %v6195, %v6952
        %v7229 = vadd.f32 %v6196, %v6955
        %v7230 = vadd.f32 %v6197, %v6957
        %v7231 = vadd.f32 %v6198, %v6960
        %v7232 = vadd.f32 %v6199, %v6962
        %v7233 = vadd.f32 %v6200, %v6965
        %v7234 = vadd.f32 %v6201, %v6967
        %v7235 = vadd.f32 %v6202, %v6970
        %v7236 = vadd.f32 %v6203, %v6972
        %v7237 = vadd.f32 %v6204, %v6975
        %v7238 = vadd.f32 %v6205, %v6977
        %v7239 = vadd.f32 %v6206, %v6980
        %v7240 = vadd.f32 %v6207, %v6982
        %v7241 = vadd.f32 %v6208, %v6985
        %v7242 = vadd.f32 %v6209, %v6987
        %v7243 = vadd.f32 %v6210, %v6990
        %v7244 = vadd.f32 %v6211, %v6992
        %v7245 = vadd.f32 %v6212, %v6995
        %v7246 = vadd.f32 %v6213, %v6997
        %v7247 = vadd.f32 %v6214, %v7000
        %v7248 = vadd.f32 %v6215, %v7002
        %v7249 = vadd.f32 %v6216, %v7005
        %v7250 = vadd.f32 %v6217, %v7007
        %v7251 = vadd.f32 %v6218, %v7010
        %v7252 = vadd.f32 %v6219, %v7012
        %v7253 = vadd.f32 %v6220, %v7015
        %v7254 = vadd.f32 %v6221, %v7017
        %v7255 = vadd.f32 %v6222, %v7020
        %v7256 = vadd.f32 %v6223, %v7022
        %v7257 = vadd.f32 %v6224, %v7025
        %v7258 = vadd.f32 %v6225, %v7027
        %v7259 = vadd.f32 %v6226, %v7030
        %v7260 = vadd.f32 %v6227, %v7032
        %v7261 = vadd.f32 %v6228, %v7035
        %v7262 = vadd.f32 %v6229, %v7037
        %v7263 = vadd.f32 %v6230, %v7040
        %v7264 = vadd.f32 %v6231, %v7042
        %v7265 = vadd.f32 %v6232, %v7045
        %v7266 = vadd.f32 %v6233, %v7047
        %v7267 = vadd.f32 %v6234, %v7050
        %v7268 = vadd.f32 %v6235, %v7052
        %v7269 = vadd.f32 %v6236, %v7055
        %v7270 = vadd.f32 %v6237, %v7057
        %v7271 = vadd.f32 %v6238, %v7060
        %v7272 = vadd.f32 %v6239, %v7062
        %v7273 = vadd.f32 %v6240, %v7065
        %v7274 = vadd.f32 %v6241, %v7067
        %v7275 = vadd.f32 %v6242, %v7070
        %v7276 = vadd.f32 %v6243, %v7072
        %v7277 = vadd.f32 %v6244, %v7075
        %v7278 = vadd.f32 %v6245, %v7077
        %v7279 = vadd.f32 %v6246, %v7080
        %v7280 = vadd.f32 %v6247, %v7082
        %v7281 = vadd.f32 %v6248, %v7085
        %v7282 = vadd.f32 %v6249, %v7087
        %v7283 = vadd.f32 %v6250, %v7090
        %v7284 = vadd.f32 %v6251, %v7092
        %v7285 = vadd.f32 %v6252, %v7095
        %v7286 = vadd.f32 %v6253, %v7097
        %v7287 = vadd.f32 %v6254, %v7100
        %v7288 = vadd.f32 %v6255, %v7102
        %v7289 = vadd.f32 %v6256, %v7105
        %v7290 = vadd.f32 %v6257, %v7107
        %v7291 = vadd.f32 %v6258, %v7110
        %v7292 = vadd.f32 %v6259, %v7112
        %v7293 = vadd.f32 %v6260, %v7115
        %v7294 = vadd.f32 %v6261, %v7117
        %v7295 = vadd.f32 %v6262, %v7120
        %v7296 = vadd.f32 %v6263, %v7122
        %v7297 = vadd.f32 %v6264, %v7125
        %v7298 = vadd.f32 %v6265, %v7127
        %v7299 = vadd.f32 %v6266, %v7130
        %v7300 = vadd.f32 %v6267, %v7132
        %v7301 = vadd.f32 %v6268, %v7135
        %v7302 = vadd.f32 %v6269, %v7137
        %v7303 = vadd.f32 %v6270, %v7140
        %v7304 = vadd.f32 %v6271, %v7142
        %v7305 = vadd.f32 %v6272, %v7145
        %v7306 = vadd.f32 %v6273, %v7147
        %v7307 = vadd.f32 %v6274, %v7150
        %v7308 = vadd.f32 %v6275, %v7152
        %v7309 = vadd.f32 %v6276, %v7155
        %v7310 = vadd.f32 %v6277, %v7157
        %v7311 = vadd.f32 %v6278, %v7160
        %v7312 = vadd.f32 %v6279, %v7162
        %v7313 = vadd.f32 %v6280, %v7165
        %v7314 = vadd.f32 %v6281, %v7167
        %v7315 = vadd.f32 %v6282, %v7170
        %v7316 = vadd.f32 %v6283, %v7172
        %v7317 = vadd.f32 %v6284, %v7175
        %v7318 = vadd.f32 %v6285, %v7177
        %v7319 = vadd.f32 %v6286, %v7180
        %v7320 = vadd.f32 %v6287, %v7182
        %v7321 = vadd.f32 %v6288, %v7185
        %v7322 = vadd.f32 %v6289, %v7187
        %v7323 = vadd.f32 %v6290, %v7190
        %v7324 = vadd.f32 %v6291, %v7192
        %v7325 = vadd.f32 %v6292, %v7195
        %v7326 = vadd.f32 %v6293, %v7197
        %v7327 = vld [vmem:[%s348] sm:$0x1]
        %v7329 = vperm.slane %v7327, 0
        %v7331 = vmul.f32 %v7199, %v7329
        %v7332 = vmul.f32 %v7200, %v7329
        %v7333 = vmul.f32 %v7201, %v7329
        %v7334 = vmul.f32 %v7202, %v7329
        %v7335 = vmul.f32 %v7203, %v7329
        %v7336 = vmul.f32 %v7204, %v7329
        %v7337 = vmul.f32 %v7205, %v7329
        %v7338 = vmul.f32 %v7206, %v7329
        %v7339 = vmul.f32 %v7207, %v7329
        %v7340 = vmul.f32 %v7208, %v7329
        %v7341 = vmul.f32 %v7209, %v7329
        %v7342 = vmul.f32 %v7210, %v7329
        %v7343 = vmul.f32 %v7211, %v7329
        %v7344 = vmul.f32 %v7212, %v7329
        %v7345 = vmul.f32 %v7213, %v7329
        %v7346 = vmul.f32 %v7214, %v7329
        %v7347 = vmul.f32 %v7215, %v7329
        %v7348 = vmul.f32 %v7216, %v7329
        %v7349 = vmul.f32 %v7217, %v7329
        %v7350 = vmul.f32 %v7218, %v7329
        %v7351 = vmul.f32 %v7219, %v7329
        %v7352 = vmul.f32 %v7220, %v7329
        %v7353 = vmul.f32 %v7221, %v7329
        %v7354 = vmul.f32 %v7222, %v7329
        %v7355 = vmul.f32 %v7223, %v7329
        %v7356 = vmul.f32 %v7224, %v7329
        %v7357 = vmul.f32 %v7225, %v7329
        %v7358 = vmul.f32 %v7226, %v7329
        %v7359 = vmul.f32 %v7227, %v7329
        %v7360 = vmul.f32 %v7228, %v7329
        %v7361 = vmul.f32 %v7229, %v7329
        %v7362 = vmul.f32 %v7230, %v7329
        %v7363 = vmul.f32 %v7231, %v7329
        %v7364 = vmul.f32 %v7232, %v7329
        %v7365 = vmul.f32 %v7233, %v7329
        %v7366 = vmul.f32 %v7234, %v7329
        %v7367 = vmul.f32 %v7235, %v7329
        %v7368 = vmul.f32 %v7236, %v7329
        %v7369 = vmul.f32 %v7237, %v7329
        %v7370 = vmul.f32 %v7238, %v7329
        %v7371 = vmul.f32 %v7239, %v7329
        %v7372 = vmul.f32 %v7240, %v7329
        %v7373 = vmul.f32 %v7241, %v7329
        %v7374 = vmul.f32 %v7242, %v7329
        %v7375 = vmul.f32 %v7243, %v7329
        %v7376 = vmul.f32 %v7244, %v7329
        %v7377 = vmul.f32 %v7245, %v7329
        %v7378 = vmul.f32 %v7246, %v7329
        %v7379 = vmul.f32 %v7247, %v7329
        %v7380 = vmul.f32 %v7248, %v7329
        %v7381 = vmul.f32 %v7249, %v7329
        %v7382 = vmul.f32 %v7250, %v7329
        %v7383 = vmul.f32 %v7251, %v7329
        %v7384 = vmul.f32 %v7252, %v7329
        %v7385 = vmul.f32 %v7253, %v7329
        %v7386 = vmul.f32 %v7254, %v7329
        %v7387 = vmul.f32 %v7255, %v7329
        %v7388 = vmul.f32 %v7256, %v7329
        %v7389 = vmul.f32 %v7257, %v7329
        %v7390 = vmul.f32 %v7258, %v7329
        %v7391 = vmul.f32 %v7259, %v7329
        %v7392 = vmul.f32 %v7260, %v7329
        %v7393 = vmul.f32 %v7261, %v7329
        %v7394 = vmul.f32 %v7262, %v7329
        %v7395 = vmul.f32 %v7263, %v7329
        %v7396 = vmul.f32 %v7264, %v7329
        %v7397 = vmul.f32 %v7265, %v7329
        %v7398 = vmul.f32 %v7266, %v7329
        %v7399 = vmul.f32 %v7267, %v7329
        %v7400 = vmul.f32 %v7268, %v7329
        %v7401 = vmul.f32 %v7269, %v7329
        %v7402 = vmul.f32 %v7270, %v7329
        %v7403 = vmul.f32 %v7271, %v7329
        %v7404 = vmul.f32 %v7272, %v7329
        %v7405 = vmul.f32 %v7273, %v7329
        %v7406 = vmul.f32 %v7274, %v7329
        %v7407 = vmul.f32 %v7275, %v7329
        %v7408 = vmul.f32 %v7276, %v7329
        %v7409 = vmul.f32 %v7277, %v7329
        %v7410 = vmul.f32 %v7278, %v7329
        %v7411 = vmul.f32 %v7279, %v7329
        %v7412 = vmul.f32 %v7280, %v7329
        %v7413 = vmul.f32 %v7281, %v7329
        %v7414 = vmul.f32 %v7282, %v7329
        %v7415 = vmul.f32 %v7283, %v7329
        %v7416 = vmul.f32 %v7284, %v7329
        %v7417 = vmul.f32 %v7285, %v7329
        %v7418 = vmul.f32 %v7286, %v7329
        %v7419 = vmul.f32 %v7287, %v7329
        %v7420 = vmul.f32 %v7288, %v7329
        %v7421 = vmul.f32 %v7289, %v7329
        %v7422 = vmul.f32 %v7290, %v7329
        %v7423 = vmul.f32 %v7291, %v7329
        %v7424 = vmul.f32 %v7292, %v7329
        %v7425 = vmul.f32 %v7293, %v7329
        %v7426 = vmul.f32 %v7294, %v7329
        %v7427 = vmul.f32 %v7295, %v7329
        %v7428 = vmul.f32 %v7296, %v7329
        %v7429 = vmul.f32 %v7297, %v7329
        %v7430 = vmul.f32 %v7298, %v7329
        %v7431 = vmul.f32 %v7299, %v7329
        %v7432 = vmul.f32 %v7300, %v7329
        %v7433 = vmul.f32 %v7301, %v7329
        %v7434 = vmul.f32 %v7302, %v7329
        %v7435 = vmul.f32 %v7303, %v7329
        %v7436 = vmul.f32 %v7304, %v7329
        %v7437 = vmul.f32 %v7305, %v7329
        %v7438 = vmul.f32 %v7306, %v7329
        %v7439 = vmul.f32 %v7307, %v7329
        %v7440 = vmul.f32 %v7308, %v7329
        %v7441 = vmul.f32 %v7309, %v7329
        %v7442 = vmul.f32 %v7310, %v7329
        %v7443 = vmul.f32 %v7311, %v7329
        %v7444 = vmul.f32 %v7312, %v7329
        %v7445 = vmul.f32 %v7313, %v7329
        %v7446 = vmul.f32 %v7314, %v7329
        %v7447 = vmul.f32 %v7315, %v7329
        %v7448 = vmul.f32 %v7316, %v7329
        %v7449 = vmul.f32 %v7317, %v7329
        %v7450 = vmul.f32 %v7318, %v7329
        %v7451 = vmul.f32 %v7319, %v7329
        %v7452 = vmul.f32 %v7320, %v7329
        %v7453 = vmul.f32 %v7321, %v7329
        %v7454 = vmul.f32 %v7322, %v7329
        %v7455 = vmul.f32 %v7323, %v7329
        %v7456 = vmul.f32 %v7324, %v7329
        %v7457 = vmul.f32 %v7325, %v7329
        %v7458 = vmul.f32 %v7326, %v7329
        %v7459 = vld [vmem:[%s351] sm:$0x1]
        %v7461 = vperm.slane %v7459, 0
        %v7463 = vadd.f32 %v7331, %v7461
        %v7464 = vadd.f32 %v7332, %v7461
        %v7465 = vadd.f32 %v7333, %v7461
        %v7466 = vadd.f32 %v7334, %v7461
        %v7467 = vadd.f32 %v7335, %v7461
        %v7468 = vadd.f32 %v7336, %v7461
        %v7469 = vadd.f32 %v7337, %v7461
        %v7470 = vadd.f32 %v7338, %v7461
        %v7471 = vadd.f32 %v7339, %v7461
        %v7472 = vadd.f32 %v7340, %v7461
        %v7473 = vadd.f32 %v7341, %v7461
        %v7474 = vadd.f32 %v7342, %v7461
        %v7475 = vadd.f32 %v7343, %v7461
        %v7476 = vadd.f32 %v7344, %v7461
        %v7477 = vadd.f32 %v7345, %v7461
        %v7478 = vadd.f32 %v7346, %v7461
        %v7479 = vadd.f32 %v7347, %v7461
        %v7480 = vadd.f32 %v7348, %v7461
        %v7481 = vadd.f32 %v7349, %v7461
        %v7482 = vadd.f32 %v7350, %v7461
        %v7483 = vadd.f32 %v7351, %v7461
        %v7484 = vadd.f32 %v7352, %v7461
        %v7485 = vadd.f32 %v7353, %v7461
        %v7486 = vadd.f32 %v7354, %v7461
        %v7487 = vadd.f32 %v7355, %v7461
        %v7488 = vadd.f32 %v7356, %v7461
        %v7489 = vadd.f32 %v7357, %v7461
        %v7490 = vadd.f32 %v7358, %v7461
        %v7491 = vadd.f32 %v7359, %v7461
        %v7492 = vadd.f32 %v7360, %v7461
        %v7493 = vadd.f32 %v7361, %v7461
        %v7494 = vadd.f32 %v7362, %v7461
        %v7495 = vadd.f32 %v7363, %v7461
        %v7496 = vadd.f32 %v7364, %v7461
        %v7497 = vadd.f32 %v7365, %v7461
        %v7498 = vadd.f32 %v7366, %v7461
        %v7499 = vadd.f32 %v7367, %v7461
        %v7500 = vadd.f32 %v7368, %v7461
        %v7501 = vadd.f32 %v7369, %v7461
        %v7502 = vadd.f32 %v7370, %v7461
        %v7503 = vadd.f32 %v7371, %v7461
        %v7504 = vadd.f32 %v7372, %v7461
        %v7505 = vadd.f32 %v7373, %v7461
        %v7506 = vadd.f32 %v7374, %v7461
        %v7507 = vadd.f32 %v7375, %v7461
        %v7508 = vadd.f32 %v7376, %v7461
        %v7509 = vadd.f32 %v7377, %v7461
        %v7510 = vadd.f32 %v7378, %v7461
        %v7511 = vadd.f32 %v7379, %v7461
        %v7512 = vadd.f32 %v7380, %v7461
        %v7513 = vadd.f32 %v7381, %v7461
        %v7514 = vadd.f32 %v7382, %v7461
        %v7515 = vadd.f32 %v7383, %v7461
        %v7516 = vadd.f32 %v7384, %v7461
        %v7517 = vadd.f32 %v7385, %v7461
        %v7518 = vadd.f32 %v7386, %v7461
        %v7519 = vadd.f32 %v7387, %v7461
        %v7520 = vadd.f32 %v7388, %v7461
        %v7521 = vadd.f32 %v7389, %v7461
        %v7522 = vadd.f32 %v7390, %v7461
        %v7523 = vadd.f32 %v7391, %v7461
        %v7524 = vadd.f32 %v7392, %v7461
        %v7525 = vadd.f32 %v7393, %v7461
        %v7526 = vadd.f32 %v7394, %v7461
        %v7527 = vadd.f32 %v7395, %v7461
        %v7528 = vadd.f32 %v7396, %v7461
        %v7529 = vadd.f32 %v7397, %v7461
        %v7530 = vadd.f32 %v7398, %v7461
        %v7531 = vadd.f32 %v7399, %v7461
        %v7532 = vadd.f32 %v7400, %v7461
        %v7533 = vadd.f32 %v7401, %v7461
        %v7534 = vadd.f32 %v7402, %v7461
        %v7535 = vadd.f32 %v7403, %v7461
        %v7536 = vadd.f32 %v7404, %v7461
        %v7537 = vadd.f32 %v7405, %v7461
        %v7538 = vadd.f32 %v7406, %v7461
        %v7539 = vadd.f32 %v7407, %v7461
        %v7540 = vadd.f32 %v7408, %v7461
        %v7541 = vadd.f32 %v7409, %v7461
        %v7542 = vadd.f32 %v7410, %v7461
        %v7543 = vadd.f32 %v7411, %v7461
        %v7544 = vadd.f32 %v7412, %v7461
        %v7545 = vadd.f32 %v7413, %v7461
        %v7546 = vadd.f32 %v7414, %v7461
        %v7547 = vadd.f32 %v7415, %v7461
        %v7548 = vadd.f32 %v7416, %v7461
        %v7549 = vadd.f32 %v7417, %v7461
        %v7550 = vadd.f32 %v7418, %v7461
        %v7551 = vadd.f32 %v7419, %v7461
        %v7552 = vadd.f32 %v7420, %v7461
        %v7553 = vadd.f32 %v7421, %v7461
        %v7554 = vadd.f32 %v7422, %v7461
        %v7555 = vadd.f32 %v7423, %v7461
        %v7556 = vadd.f32 %v7424, %v7461
        %v7557 = vadd.f32 %v7425, %v7461
        %v7558 = vadd.f32 %v7426, %v7461
        %v7559 = vadd.f32 %v7427, %v7461
        %v7560 = vadd.f32 %v7428, %v7461
        %v7561 = vadd.f32 %v7429, %v7461
        %v7562 = vadd.f32 %v7430, %v7461
        %v7563 = vadd.f32 %v7431, %v7461
        %v7564 = vadd.f32 %v7432, %v7461
        %v7565 = vadd.f32 %v7433, %v7461
        %v7566 = vadd.f32 %v7434, %v7461
        %v7567 = vadd.f32 %v7435, %v7461
        %v7568 = vadd.f32 %v7436, %v7461
        %v7569 = vadd.f32 %v7437, %v7461
        %v7570 = vadd.f32 %v7438, %v7461
        %v7571 = vadd.f32 %v7439, %v7461
        %v7572 = vadd.f32 %v7440, %v7461
        %v7573 = vadd.f32 %v7441, %v7461
        %v7574 = vadd.f32 %v7442, %v7461
        %v7575 = vadd.f32 %v7443, %v7461
        %v7576 = vadd.f32 %v7444, %v7461
        %v7577 = vadd.f32 %v7445, %v7461
        %v7578 = vadd.f32 %v7446, %v7461
        %v7579 = vadd.f32 %v7447, %v7461
        %v7580 = vadd.f32 %v7448, %v7461
        %v7581 = vadd.f32 %v7449, %v7461
        %v7582 = vadd.f32 %v7450, %v7461
        %v7583 = vadd.f32 %v7451, %v7461
        %v7584 = vadd.f32 %v7452, %v7461
        %v7585 = vadd.f32 %v7453, %v7461
        %v7586 = vadd.f32 %v7454, %v7461
        %v7587 = vadd.f32 %v7455, %v7461
        %v7588 = vadd.f32 %v7456, %v7461
        %v7589 = vadd.f32 %v7457, %v7461
        %v7590 = vadd.f32 %v7458, %v7461
        %v7591 = vmax.f32 %v7463, 0.0
        %v7592 = vmax.f32 %v7464, 0.0
        %v7593 = vmax.f32 %v7465, 0.0
        %v7594 = vmax.f32 %v7466, 0.0
        %v7595 = vmax.f32 %v7467, 0.0
        %v7596 = vmax.f32 %v7468, 0.0
        %v7597 = vmax.f32 %v7469, 0.0
        %v7598 = vmax.f32 %v7470, 0.0
        %v7599 = vmax.f32 %v7471, 0.0
        %v7600 = vmax.f32 %v7472, 0.0
        %v7601 = vmax.f32 %v7473, 0.0
        %v7602 = vmax.f32 %v7474, 0.0
        %v7603 = vmax.f32 %v7475, 0.0
        %v7604 = vmax.f32 %v7476, 0.0
        %v7605 = vmax.f32 %v7477, 0.0
        %v7606 = vmax.f32 %v7478, 0.0
        %v7607 = vmax.f32 %v7479, 0.0
        %v7608 = vmax.f32 %v7480, 0.0
        %v7609 = vmax.f32 %v7481, 0.0
        %v7610 = vmax.f32 %v7482, 0.0
        %v7611 = vmax.f32 %v7483, 0.0
        %v7612 = vmax.f32 %v7484, 0.0
        %v7613 = vmax.f32 %v7485, 0.0
        %v7614 = vmax.f32 %v7486, 0.0
        %v7615 = vmax.f32 %v7487, 0.0
        %v7616 = vmax.f32 %v7488, 0.0
        %v7617 = vmax.f32 %v7489, 0.0
        %v7618 = vmax.f32 %v7490, 0.0
        %v7619 = vmax.f32 %v7491, 0.0
        %v7620 = vmax.f32 %v7492, 0.0
        %v7621 = vmax.f32 %v7493, 0.0
        %v7622 = vmax.f32 %v7494, 0.0
        %v7623 = vmax.f32 %v7495, 0.0
        %v7624 = vmax.f32 %v7496, 0.0
        %v7625 = vmax.f32 %v7497, 0.0
        %v7626 = vmax.f32 %v7498, 0.0
        %v7627 = vmax.f32 %v7499, 0.0
        %v7628 = vmax.f32 %v7500, 0.0
        %v7629 = vmax.f32 %v7501, 0.0
        %v7630 = vmax.f32 %v7502, 0.0
        %v7631 = vmax.f32 %v7503, 0.0
        %v7632 = vmax.f32 %v7504, 0.0
        %v7633 = vmax.f32 %v7505, 0.0
        %v7634 = vmax.f32 %v7506, 0.0
        %v7635 = vmax.f32 %v7507, 0.0
        %v7636 = vmax.f32 %v7508, 0.0
        %v7637 = vmax.f32 %v7509, 0.0
        %v7638 = vmax.f32 %v7510, 0.0
        %v7639 = vmax.f32 %v7511, 0.0
        %v7640 = vmax.f32 %v7512, 0.0
        %v7641 = vmax.f32 %v7513, 0.0
        %v7642 = vmax.f32 %v7514, 0.0
        %v7643 = vmax.f32 %v7515, 0.0
        %v7644 = vmax.f32 %v7516, 0.0
        %v7645 = vmax.f32 %v7517, 0.0
        %v7646 = vmax.f32 %v7518, 0.0
        %v7647 = vmax.f32 %v7519, 0.0
        %v7648 = vmax.f32 %v7520, 0.0
        %v7649 = vmax.f32 %v7521, 0.0
        %v7650 = vmax.f32 %v7522, 0.0
        %v7651 = vmax.f32 %v7523, 0.0
        %v7652 = vmax.f32 %v7524, 0.0
        %v7653 = vmax.f32 %v7525, 0.0
        %v7654 = vmax.f32 %v7526, 0.0
        %v7655 = vmax.f32 %v7527, 0.0
        %v7656 = vmax.f32 %v7528, 0.0
        %v7657 = vmax.f32 %v7529, 0.0
        %v7658 = vmax.f32 %v7530, 0.0
        %v7659 = vmax.f32 %v7531, 0.0
        %v7660 = vmax.f32 %v7532, 0.0
        %v7661 = vmax.f32 %v7533, 0.0
        %v7662 = vmax.f32 %v7534, 0.0
        %v7663 = vmax.f32 %v7535, 0.0
        %v7664 = vmax.f32 %v7536, 0.0
        %v7665 = vmax.f32 %v7537, 0.0
        %v7666 = vmax.f32 %v7538, 0.0
        %v7667 = vmax.f32 %v7539, 0.0
        %v7668 = vmax.f32 %v7540, 0.0
        %v7669 = vmax.f32 %v7541, 0.0
        %v7670 = vmax.f32 %v7542, 0.0
        %v7671 = vmax.f32 %v7543, 0.0
        %v7672 = vmax.f32 %v7544, 0.0
        %v7673 = vmax.f32 %v7545, 0.0
        %v7674 = vmax.f32 %v7546, 0.0
        %v7675 = vmax.f32 %v7547, 0.0
        %v7676 = vmax.f32 %v7548, 0.0
        %v7677 = vmax.f32 %v7549, 0.0
        %v7678 = vmax.f32 %v7550, 0.0
        %v7679 = vmax.f32 %v7551, 0.0
        %v7680 = vmax.f32 %v7552, 0.0
        %v7681 = vmax.f32 %v7553, 0.0
        %v7682 = vmax.f32 %v7554, 0.0
        %v7683 = vmax.f32 %v7555, 0.0
        %v7684 = vmax.f32 %v7556, 0.0
        %v7685 = vmax.f32 %v7557, 0.0
        %v7686 = vmax.f32 %v7558, 0.0
        %v7687 = vmax.f32 %v7559, 0.0
        %v7688 = vmax.f32 %v7560, 0.0
        %v7689 = vmax.f32 %v7561, 0.0
        %v7690 = vmax.f32 %v7562, 0.0
        %v7691 = vmax.f32 %v7563, 0.0
        %v7692 = vmax.f32 %v7564, 0.0
        %v7693 = vmax.f32 %v7565, 0.0
        %v7694 = vmax.f32 %v7566, 0.0
        %v7695 = vmax.f32 %v7567, 0.0
        %v7696 = vmax.f32 %v7568, 0.0
        %v7697 = vmax.f32 %v7569, 0.0
        %v7698 = vmax.f32 %v7570, 0.0
        %v7699 = vmax.f32 %v7571, 0.0
        %v7700 = vmax.f32 %v7572, 0.0
        %v7701 = vmax.f32 %v7573, 0.0
        %v7702 = vmax.f32 %v7574, 0.0
        %v7703 = vmax.f32 %v7575, 0.0
        %v7704 = vmax.f32 %v7576, 0.0
        %v7705 = vmax.f32 %v7577, 0.0
        %v7706 = vmax.f32 %v7578, 0.0
        %v7707 = vmax.f32 %v7579, 0.0
        %v7708 = vmax.f32 %v7580, 0.0
        %v7709 = vmax.f32 %v7581, 0.0
        %v7710 = vmax.f32 %v7582, 0.0
        %v7711 = vmax.f32 %v7583, 0.0
        %v7712 = vmax.f32 %v7584, 0.0
        %v7713 = vmax.f32 %v7585, 0.0
        %v7714 = vmax.f32 %v7586, 0.0
        %v7715 = vmax.f32 %v7587, 0.0
        %v7716 = vmax.f32 %v7588, 0.0
        %v7717 = vmax.f32 %v7589, 0.0
        %v7718 = vmax.f32 %v7590, 0.0
        %v7719 = vpack.c.bf16 %v7591, %v7591
        %v7720 = vpack.c.bf16 %v7592, %v7592
        %v7721 = vpack.c.bf16 %v7593, %v7593
        %v7722 = vpack.c.bf16 %v7594, %v7594
        %v7723 = vpack.c.bf16 %v7595, %v7595
        %v7724 = vpack.c.bf16 %v7596, %v7596
        %v7725 = vpack.c.bf16 %v7597, %v7597
        %v7726 = vpack.c.bf16 %v7598, %v7598
        %v7727 = vpack.c.bf16 %v7599, %v7599
        %v7728 = vpack.c.bf16 %v7600, %v7600
        %v7729 = vpack.c.bf16 %v7601, %v7601
        %v7730 = vpack.c.bf16 %v7602, %v7602
        %v7731 = vpack.c.bf16 %v7603, %v7603
        %v7732 = vpack.c.bf16 %v7604, %v7604
        %v7733 = vpack.c.bf16 %v7605, %v7605
        %v7734 = vpack.c.bf16 %v7606, %v7606
        %v7735 = vpack.c.bf16 %v7607, %v7607
        %v7736 = vpack.c.bf16 %v7608, %v7608
        %v7737 = vpack.c.bf16 %v7609, %v7609
        %v7738 = vpack.c.bf16 %v7610, %v7610
        %v7739 = vpack.c.bf16 %v7611, %v7611
        %v7740 = vpack.c.bf16 %v7612, %v7612
        %v7741 = vpack.c.bf16 %v7613, %v7613
        %v7742 = vpack.c.bf16 %v7614, %v7614
        %v7743 = vpack.c.bf16 %v7615, %v7615
        %v7744 = vpack.c.bf16 %v7616, %v7616
        %v7745 = vpack.c.bf16 %v7617, %v7617
        %v7746 = vpack.c.bf16 %v7618, %v7618
        %v7747 = vpack.c.bf16 %v7619, %v7619
        %v7748 = vpack.c.bf16 %v7620, %v7620
        %v7749 = vpack.c.bf16 %v7621, %v7621
        %v7750 = vpack.c.bf16 %v7622, %v7622
        %v7751 = vpack.c.bf16 %v7623, %v7623
        %v7752 = vpack.c.bf16 %v7624, %v7624
        %v7753 = vpack.c.bf16 %v7625, %v7625
        %v7754 = vpack.c.bf16 %v7626, %v7626
        %v7755 = vpack.c.bf16 %v7627, %v7627
        %v7756 = vpack.c.bf16 %v7628, %v7628
        %v7757 = vpack.c.bf16 %v7629, %v7629
        %v7758 = vpack.c.bf16 %v7630, %v7630
        %v7759 = vpack.c.bf16 %v7631, %v7631
        %v7760 = vpack.c.bf16 %v7632, %v7632
        %v7761 = vpack.c.bf16 %v7633, %v7633
        %v7762 = vpack.c.bf16 %v7634, %v7634
        %v7763 = vpack.c.bf16 %v7635, %v7635
        %v7764 = vpack.c.bf16 %v7636, %v7636
        %v7765 = vpack.c.bf16 %v7637, %v7637
        %v7766 = vpack.c.bf16 %v7638, %v7638
        %v7767 = vpack.c.bf16 %v7639, %v7639
        %v7768 = vpack.c.bf16 %v7640, %v7640
        %v7769 = vpack.c.bf16 %v7641, %v7641
        %v7770 = vpack.c.bf16 %v7642, %v7642
        %v7771 = vpack.c.bf16 %v7643, %v7643
        %v7772 = vpack.c.bf16 %v7644, %v7644
        %v7773 = vpack.c.bf16 %v7645, %v7645
        %v7774 = vpack.c.bf16 %v7646, %v7646
        %v7775 = vpack.c.bf16 %v7647, %v7647
        %v7776 = vpack.c.bf16 %v7648, %v7648
        %v7777 = vpack.c.bf16 %v7649, %v7649
        %v7778 = vpack.c.bf16 %v7650, %v7650
        %v7779 = vpack.c.bf16 %v7651, %v7651
        %v7780 = vpack.c.bf16 %v7652, %v7652
        %v7781 = vpack.c.bf16 %v7653, %v7653
        %v7782 = vpack.c.bf16 %v7654, %v7654
        %v7783 = vpack.c.bf16 %v7655, %v7655
        %v7784 = vpack.c.bf16 %v7656, %v7656
        %v7785 = vpack.c.bf16 %v7657, %v7657
        %v7786 = vpack.c.bf16 %v7658, %v7658
        %v7787 = vpack.c.bf16 %v7659, %v7659
        %v7788 = vpack.c.bf16 %v7660, %v7660
        %v7789 = vpack.c.bf16 %v7661, %v7661
        %v7790 = vpack.c.bf16 %v7662, %v7662
        %v7791 = vpack.c.bf16 %v7663, %v7663
        %v7792 = vpack.c.bf16 %v7664, %v7664
        %v7793 = vpack.c.bf16 %v7665, %v7665
        %v7794 = vpack.c.bf16 %v7666, %v7666
        %v7795 = vpack.c.bf16 %v7667, %v7667
        %v7796 = vpack.c.bf16 %v7668, %v7668
        %v7797 = vpack.c.bf16 %v7669, %v7669
        %v7798 = vpack.c.bf16 %v7670, %v7670
        %v7799 = vpack.c.bf16 %v7671, %v7671
        %v7800 = vpack.c.bf16 %v7672, %v7672
        %v7801 = vpack.c.bf16 %v7673, %v7673
        %v7802 = vpack.c.bf16 %v7674, %v7674
        %v7803 = vpack.c.bf16 %v7675, %v7675
        %v7804 = vpack.c.bf16 %v7676, %v7676
        %v7805 = vpack.c.bf16 %v7677, %v7677
        %v7806 = vpack.c.bf16 %v7678, %v7678
        %v7807 = vpack.c.bf16 %v7679, %v7679
        %v7808 = vpack.c.bf16 %v7680, %v7680
        %v7809 = vpack.c.bf16 %v7681, %v7681
        %v7810 = vpack.c.bf16 %v7682, %v7682
        %v7811 = vpack.c.bf16 %v7683, %v7683
        %v7812 = vpack.c.bf16 %v7684, %v7684
        %v7813 = vpack.c.bf16 %v7685, %v7685
        %v7814 = vpack.c.bf16 %v7686, %v7686
        %v7815 = vpack.c.bf16 %v7687, %v7687
        %v7816 = vpack.c.bf16 %v7688, %v7688
        %v7817 = vpack.c.bf16 %v7689, %v7689
        %v7818 = vpack.c.bf16 %v7690, %v7690
        %v7819 = vpack.c.bf16 %v7691, %v7691
        %v7820 = vpack.c.bf16 %v7692, %v7692
        %v7821 = vpack.c.bf16 %v7693, %v7693
        %v7822 = vpack.c.bf16 %v7694, %v7694
        %v7823 = vpack.c.bf16 %v7695, %v7695
        %v7824 = vpack.c.bf16 %v7696, %v7696
        %v7825 = vpack.c.bf16 %v7697, %v7697
        %v7826 = vpack.c.bf16 %v7698, %v7698
        %v7827 = vpack.c.bf16 %v7699, %v7699
        %v7828 = vpack.c.bf16 %v7700, %v7700
        %v7829 = vpack.c.bf16 %v7701, %v7701
        %v7830 = vpack.c.bf16 %v7702, %v7702
        %v7831 = vpack.c.bf16 %v7703, %v7703
        %v7832 = vpack.c.bf16 %v7704, %v7704
        %v7833 = vpack.c.bf16 %v7705, %v7705
        %v7834 = vpack.c.bf16 %v7706, %v7706
        %v7835 = vpack.c.bf16 %v7707, %v7707
        %v7836 = vpack.c.bf16 %v7708, %v7708
        %v7837 = vpack.c.bf16 %v7709, %v7709
        %v7838 = vpack.c.bf16 %v7710, %v7710
        %v7839 = vpack.c.bf16 %v7711, %v7711
        %v7840 = vpack.c.bf16 %v7712, %v7712
        %v7841 = vpack.c.bf16 %v7713, %v7713
        %v7842 = vpack.c.bf16 %v7714, %v7714
        %v7843 = vpack.c.bf16 %v7715, %v7715
        %v7844 = vpack.c.bf16 %v7716, %v7716
        %v7845 = vpack.c.bf16 %v7717, %v7717
        %v7846 = vpack.c.bf16 %v7718, %v7718
        %7847 = vst [vmem:[%s345] sm:$0xf] %v7719
        %7848 = vst [vmem:[%s345 + $0x4] sm:$0xf] %v7720
        %7849 = vst [vmem:[%s345 + $0x8] sm:$0xf] %v7721
        %7850 = vst [vmem:[%s345 + $0xc] sm:$0xf] %v7722
        %7851 = vst [vmem:[%s345 + $0x10] sm:$0xf] %v7723
        %7852 = vst [vmem:[%s345 + $0x14] sm:$0xf] %v7724
        %7853 = vst [vmem:[%s345 + $0x18] sm:$0xf] %v7725
        %7854 = vst [vmem:[%s345 + $0x1c] sm:$0xf] %v7726
        %7855 = vst [vmem:[%s345 + $0x20] sm:$0xf] %v7727
        %7856 = vst [vmem:[%s345 + $0x24] sm:$0xf] %v7728
        %7857 = vst [vmem:[%s345 + $0x28] sm:$0xf] %v7729
        %7858 = vst [vmem:[%s345 + $0x2c] sm:$0xf] %v7730
        %7859 = vst [vmem:[%s345 + $0x30] sm:$0xf] %v7731
        %7860 = vst [vmem:[%s345 + $0x34] sm:$0xf] %v7732
        %7861 = vst [vmem:[%s345 + $0x38] sm:$0xf] %v7733
        %7862 = vst [vmem:[%s345 + $0x3c] sm:$0xf] %v7734
        %7863 = vst [vmem:[%s345 + $0x40] sm:$0xf] %v7735
        %7864 = vst [vmem:[%s345 + $0x44] sm:$0xf] %v7736
        %7865 = vst [vmem:[%s345 + $0x48] sm:$0xf] %v7737
        %7866 = vst [vmem:[%s345 + $0x4c] sm:$0xf] %v7738
        %7867 = vst [vmem:[%s345 + $0x50] sm:$0xf] %v7739
        %7868 = vst [vmem:[%s345 + $0x54] sm:$0xf] %v7740
        %7869 = vst [vmem:[%s345 + $0x58] sm:$0xf] %v7741
        %7870 = vst [vmem:[%s345 + $0x5c] sm:$0xf] %v7742
        %7871 = vst [vmem:[%s345 + $0x60] sm:$0xf] %v7743
        %7872 = vst [vmem:[%s345 + $0x64] sm:$0xf] %v7744
        %7873 = vst [vmem:[%s345 + $0x68] sm:$0xf] %v7745
        %7874 = vst [vmem:[%s345 + $0x6c] sm:$0xf] %v7746
        %7875 = vst [vmem:[%s345 + $0x70] sm:$0xf] %v7747
        %7876 = vst [vmem:[%s345 + $0x74] sm:$0xf] %v7748
        %7877 = vst [vmem:[%s345 + $0x78] sm:$0xf] %v7749
        %7878 = vst [vmem:[%s345 + $0x7c] sm:$0xf] %v7750
        %7879 = vst [vmem:[%s345 + $0x80] sm:$0xf] %v7751
        %7880 = vst [vmem:[%s345 + $0x84] sm:$0xf] %v7752
        %7881 = vst [vmem:[%s345 + $0x88] sm:$0xf] %v7753
        %7882 = vst [vmem:[%s345 + $0x8c] sm:$0xf] %v7754
        %7883 = vst [vmem:[%s345 + $0x90] sm:$0xf] %v7755
        %7884 = vst [vmem:[%s345 + $0x94] sm:$0xf] %v7756
        %7885 = vst [vmem:[%s345 + $0x98] sm:$0xf] %v7757
        %7886 = vst [vmem:[%s345 + $0x9c] sm:$0xf] %v7758
        %7887 = vst [vmem:[%s345 + $0xa0] sm:$0xf] %v7759
        %7888 = vst [vmem:[%s345 + $0xa4] sm:$0xf] %v7760
        %7889 = vst [vmem:[%s345 + $0xa8] sm:$0xf] %v7761
        %7890 = vst [vmem:[%s345 + $0xac] sm:$0xf] %v7762
        %7891 = vst [vmem:[%s345 + $0xb0] sm:$0xf] %v7763
        %7892 = vst [vmem:[%s345 + $0xb4] sm:$0xf] %v7764
        %7893 = vst [vmem:[%s345 + $0xb8] sm:$0xf] %v7765
        %7894 = vst [vmem:[%s345 + $0xbc] sm:$0xf] %v7766
        %7895 = vst [vmem:[%s345 + $0xc0] sm:$0xf] %v7767
        %7896 = vst [vmem:[%s345 + $0xc4] sm:$0xf] %v7768
        %7897 = vst [vmem:[%s345 + $0xc8] sm:$0xf] %v7769
        %7898 = vst [vmem:[%s345 + $0xcc] sm:$0xf] %v7770
        %7899 = vst [vmem:[%s345 + $0xd0] sm:$0xf] %v7771
        %7900 = vst [vmem:[%s345 + $0xd4] sm:$0xf] %v7772
        %7901 = vst [vmem:[%s345 + $0xd8] sm:$0xf] %v7773
        %7902 = vst [vmem:[%s345 + $0xdc] sm:$0xf] %v7774
        %7903 = vst [vmem:[%s345 + $0xe0] sm:$0xf] %v7775
        %7904 = vst [vmem:[%s345 + $0xe4] sm:$0xf] %v7776
        %7905 = vst [vmem:[%s345 + $0xe8] sm:$0xf] %v7777
        %7906 = vst [vmem:[%s345 + $0xec] sm:$0xf] %v7778
        %7907 = vst [vmem:[%s345 + $0xf0] sm:$0xf] %v7779
        %7908 = vst [vmem:[%s345 + $0xf4] sm:$0xf] %v7780
        %7909 = vst [vmem:[%s345 + $0xf8] sm:$0xf] %v7781
        %7910 = vst [vmem:[%s345 + $0xfc] sm:$0xf] %v7782
        %7911 = vst [vmem:[%s345 + $0x100] sm:$0xf] %v7783
        %7912 = vst [vmem:[%s345 + $0x104] sm:$0xf] %v7784
        %7913 = vst [vmem:[%s345 + $0x108] sm:$0xf] %v7785
        %7914 = vst [vmem:[%s345 + $0x10c] sm:$0xf] %v7786
        %7915 = vst [vmem:[%s345 + $0x110] sm:$0xf] %v7787
        %7916 = vst [vmem:[%s345 + $0x114] sm:$0xf] %v7788
        %7917 = vst [vmem:[%s345 + $0x118] sm:$0xf] %v7789
        %7918 = vst [vmem:[%s345 + $0x11c] sm:$0xf] %v7790
        %7919 = vst [vmem:[%s345 + $0x120] sm:$0xf] %v7791
        %7920 = vst [vmem:[%s345 + $0x124] sm:$0xf] %v7792
        %7921 = vst [vmem:[%s345 + $0x128] sm:$0xf] %v7793
        %7922 = vst [vmem:[%s345 + $0x12c] sm:$0xf] %v7794
        %7923 = vst [vmem:[%s345 + $0x130] sm:$0xf] %v7795
        %7924 = vst [vmem:[%s345 + $0x134] sm:$0xf] %v7796
        %7925 = vst [vmem:[%s345 + $0x138] sm:$0xf] %v7797
        %7926 = vst [vmem:[%s345 + $0x13c] sm:$0xf] %v7798
        %7927 = vst [vmem:[%s345 + $0x140] sm:$0xf] %v7799
        %7928 = vst [vmem:[%s345 + $0x144] sm:$0xf] %v7800
        %7929 = vst [vmem:[%s345 + $0x148] sm:$0xf] %v7801
        %7930 = vst [vmem:[%s345 + $0x14c] sm:$0xf] %v7802
        %7931 = vst [vmem:[%s345 + $0x150] sm:$0xf] %v7803
        %7932 = vst [vmem:[%s345 + $0x154] sm:$0xf] %v7804
        %7933 = vst [vmem:[%s345 + $0x158] sm:$0xf] %v7805
        %7934 = vst [vmem:[%s345 + $0x15c] sm:$0xf] %v7806
        %7935 = vst [vmem:[%s345 + $0x160] sm:$0xf] %v7807
        %7936 = vst [vmem:[%s345 + $0x164] sm:$0xf] %v7808
        %7937 = vst [vmem:[%s345 + $0x168] sm:$0xf] %v7809
        %7938 = vst [vmem:[%s345 + $0x16c] sm:$0xf] %v7810
        %7939 = vst [vmem:[%s345 + $0x170] sm:$0xf] %v7811
        %7940 = vst [vmem:[%s345 + $0x174] sm:$0xf] %v7812
        %7941 = vst [vmem:[%s345 + $0x178] sm:$0xf] %v7813
        %7942 = vst [vmem:[%s345 + $0x17c] sm:$0xf] %v7814
        %7943 = vst [vmem:[%s345 + $0x180] sm:$0xf] %v7815
        %7944 = vst [vmem:[%s345 + $0x184] sm:$0xf] %v7816
        %7945 = vst [vmem:[%s345 + $0x188] sm:$0xf] %v7817
        %7946 = vst [vmem:[%s345 + $0x18c] sm:$0xf] %v7818
        %7947 = vst [vmem:[%s345 + $0x190] sm:$0xf] %v7819
        %7948 = vst [vmem:[%s345 + $0x194] sm:$0xf] %v7820
        %7949 = vst [vmem:[%s345 + $0x198] sm:$0xf] %v7821
        %7950 = vst [vmem:[%s345 + $0x19c] sm:$0xf] %v7822
        %7951 = vst [vmem:[%s345 + $0x1a0] sm:$0xf] %v7823
        %7952 = vst [vmem:[%s345 + $0x1a4] sm:$0xf] %v7824
        %7953 = vst [vmem:[%s345 + $0x1a8] sm:$0xf] %v7825
        %7954 = vst [vmem:[%s345 + $0x1ac] sm:$0xf] %v7826
        %7955 = vst [vmem:[%s345 + $0x1b0] sm:$0xf] %v7827
        %7956 = vst [vmem:[%s345 + $0x1b4] sm:$0xf] %v7828
        %7957 = vst [vmem:[%s345 + $0x1b8] sm:$0xf] %v7829
        %7958 = vst [vmem:[%s345 + $0x1bc] sm:$0xf] %v7830
        %7959 = vst [vmem:[%s345 + $0x1c0] sm:$0xf] %v7831
        %7960 = vst [vmem:[%s345 + $0x1c4] sm:$0xf] %v7832
        %7961 = vst [vmem:[%s345 + $0x1c8] sm:$0xf] %v7833
        %7962 = vst [vmem:[%s345 + $0x1cc] sm:$0xf] %v7834
        %7963 = vst [vmem:[%s345 + $0x1d0] sm:$0xf] %v7835
        %7964 = vst [vmem:[%s345 + $0x1d4] sm:$0xf] %v7836
        %7965 = vst [vmem:[%s345 + $0x1d8] sm:$0xf] %v7837
        %7966 = vst [vmem:[%s345 + $0x1dc] sm:$0xf] %v7838
        %7967 = vst [vmem:[%s345 + $0x1e0] sm:$0xf] %v7839
        %7968 = vst [vmem:[%s345 + $0x1e4] sm:$0xf] %v7840
        %7969 = vst [vmem:[%s345 + $0x1e8] sm:$0xf] %v7841
        %7970 = vst [vmem:[%s345 + $0x1ec] sm:$0xf] %v7842
        %7971 = vst [vmem:[%s345 + $0x1f0] sm:$0xf] %v7843
        %7972 = vst [vmem:[%s345 + $0x1f4] sm:$0xf] %v7844
        %7973 = vst [vmem:[%s345 + $0x1f8] sm:$0xf] %v7845
        %7974 = vst [vmem:[%s345 + $0x1fc] sm:$0xf] %v7846
        %s7975 = sand.u32 %s177, 1
        %s7976 = scalar_lea.sflag [#allocation4], %s7975
        %s7977 = sand.u32 %s177, 1
        %s7978 = smul.addr %s7977, 512
        %s7979 = scalar_lea.vmem [#allocation8], %s7978
        // Predicated region
        $region53: #{tpu_custom_call.1} parent=39 // pred_check
          %p7980 = pneg %p187
        $region54: #{tpu_custom_call.1} parent=39 // pred_check_branch
          %7982 = sbr.rel (%p7980) target = $region56
        $region55: #{tpu_custom_call.1} parent=39 // pred_region
          %7984 = vsyncadd %s7976, 0
          %s7985 = smul.addr %s30, 128
          %s7986 = sadd.s32 %s29, %s7985
          %s7987 = smul.addr %s7986, 4
          %s7988 = scalar_lea.hbm %s5, %s7987
          %s7989 = sshll.u32 %s7979, 4
          %s7990 = int_to_ptr.vmem [resolvable:$true] %s7989
          %s7991 = sshll.u32 %s7988, 4
          %s7992 = int_to_ptr.hbm [resolvable:$true] %s7991
          %7997 = dma.vmem_to_hbm [thread:$0]  %s7990, 8192, %s7992, %s7976, 64, 64, 4
        $region56: #{tpu_custom_call.1} parent=39 // pred_fallthru
          _
      $region40: #{tpu_custom_call.1} parent=5 // pred_fallthru
        _
      %p7998 = scmp.le.s32.totalorder 2, %s20
      // Predicated region
      $region57: #{tpu_custom_call.1} parent=5 // pred_check
        %p7999 = pneg %p7998
      $region58: #{tpu_custom_call.1} parent=5 // pred_check_branch
        %8001 = sbr.rel (%p7999) target = $region60
      $region59: #{tpu_custom_call.1} parent=5 // pred_region
        %s8002 = ssub.s32 %s20, 2
        // Predicated region
        $region61: #{tpu_custom_call.1} parent=59 // pred_check
          %p8003 = pneg %p193
        $region62: #{tpu_custom_call.1} parent=59 // pred_check_branch
          %8005 = sbr.rel (%p8003) target = $region64
        $region63: #{tpu_custom_call.1} parent=59 // pred_region
          %s8006 = sand.u32 %s178, 1
          %s8007 = scalar_lea.sflag [#allocation4], %s8006
          %s8008 = sand.u32 %s178, 1
          %s8009 = smul.addr %s8008, 512
          %s8010 = scalar_lea.vmem [#allocation8], %s8009
          %8012 = dma.done %s8007, 8192
        $region64: #{tpu_custom_call.1} parent=59 // pred_fallthru
          _
      $region60: #{tpu_custom_call.1} parent=5 // pred_fallthru
        _
    $region6: #{tpu_custom_call.1} parent=1 // loop_footer
      %s24 = sadd.s32 1, %s20
    $region7: #{tpu_custom_call.1} parent=1 // loop_footer_branch
      %19 = sbr.rel target = $region3
    $region8: #{tpu_custom_call.1} parent=1 // loop_exit
      _
    %8013 = vsyncpa [#allocation3], 1
    %s8014 = scalar_lea.sflag [#allocation3], 1
    %8015 = vsyncpa %s8014, 1
    %8016 = vsyncpa [#allocation6], 1
    %s8017 = scalar_lea.sflag [#allocation6], 1
    %8018 = vsyncpa %s8017, 1
    %8019 = vsyncpa [#allocation4], 1
    %s8020 = scalar_lea.sflag [#allocation4], 1
    %8021 = vsyncpa %s8020, 1

</llo_original>
